<compile_context>
chip_gen: v7x
topology: tpu7x:2x2x1
jax: 0.10.0
libtpu: 0.0.40
codegen_flags: <defaults>
</compile_context>

<pallas_src>
import math
import numpy as np
import jax
import jax.numpy as jnp
from jax.experimental import pallas as pl
from jax.experimental.pallas import tpu as pltpu


# ----------------------------- Pallas kernel -----------------------------

def _silu(x):
    # x * sigmoid(x), with sigmoid in its tanh form (EUP-friendly, exact math).
    return x * (0.5 * jnp.tanh(0.5 * x) + 0.5)


def fused_decoy_kernel(feats0_ref, coords0_ref, mask_ref, ei_ref, ej_ref, eit_ref,
                       ew1a_ref, ew1b_ref, ew1c_ref, eb1_ref,
                       ew2_ref, eb2_ref,
                       cw1_ref, cb1_ref, cw2_ref, cb2_ref,
                       nw1f_ref, nw1m_ref, nb1_ref, nw2_ref, nb2_ref,
                       geom_ref):
    """One decoy (4 EGNN layers) per grid step; whole problem resident in VMEM."""
    feats = feats0_ref[...]          # (N, D)
    coords = coords0_ref[...]        # (N, 3)
    mask = mask_ref[...]             # (N, 1)
    ei = ei_ref[...]                 # (N*N, N)   one-hot: row i*N+j selects i
    ej = ej_ref[...]                 # (N*N, N)   one-hot: row i*N+j selects j
    eit = eit_ref[...]               # (N, N*N)   = ei.T  (reduce over j)

    # Layer-invariant quantities (hoisted out of the layer loop).
    inv_msum = 1.0 / jnp.sum(mask, axis=(0, 1), keepdims=True)              # (1, 1)
    mi_mask = jnp.dot(ei, mask, preferred_element_type=jnp.float32)         # (NN, 1)
    mj_mask = jnp.dot(ej, mask, preferred_element_type=jnp.float32)         # (NN, 1)
    pm = mi_mask * mj_mask                                                  # (NN, 1)

    num_layers = ew1a_ref.shape[0]
    for l in range(num_layers):      # statically unrolled: LLO sees across layers
        ew1a = ew1a_ref[l]; ew1b = ew1b_ref[l]; ew1c = ew1c_ref[l]; eb1 = eb1_ref[l]
        ew2 = ew2_ref[l]; eb2 = eb2_ref[l]
        cw1 = cw1_ref[l]; cb1 = cb1_ref[l]; cw2 = cw2_ref[l]; cb2 = cb2_ref[l]
        nw1f = nw1f_ref[l]; nw1m = nw1m_ref[l]; nb1 = nb1_ref[l]
        nw2 = nw2_ref[l]; nb2 = nb2_ref[l]

        # Pairwise geometry over all N*N pairs at once (pair expansion via MXU).
        ci = jnp.dot(ei, coords, preferred_element_type=jnp.float32)        # (NN, 3)
        cj = jnp.dot(ej, coords, preferred_element_type=jnp.float32)        # (NN, 3)
        rel = ci - cj                                                       # (NN, 3)
        rd = jnp.sum(rel * rel, axis=-1, keepdims=True)                     # (NN, 1)

        # edge_mlp: Linear(2D+1 -> 2(2D+1)), SiLU, Linear(-> M), SiLU
        # Project per-node first (N rows), expand to pairs afterwards (cheaper).
        fi_p = jnp.dot(feats, ew1a, preferred_element_type=jnp.float32)     # (N, 2E)
        fj_p = jnp.dot(feats, ew1b, preferred_element_type=jnp.float32)     # (N, 2E)
        pre1 = (jnp.dot(ei, fi_p, preferred_element_type=jnp.float32)
                + jnp.dot(ej, fj_p, preferred_element_type=jnp.float32)
                + rd * ew1c + eb1)                                          # (NN, 2E)
        h = _silu(pre1)
        m_ij = _silu(jnp.dot(h, ew2, preferred_element_type=jnp.float32) + eb2)   # (NN, M)

        # coors_mlp: Linear(M -> 4M), SiLU, Linear(-> 1)
        ch = _silu(jnp.dot(m_ij, cw1, preferred_element_type=jnp.float32) + cb1)  # (NN, 4M)
        cwt = jnp.dot(ch, cw2, preferred_element_type=jnp.float32) + cb2          # (NN, 1)

        w = pm * cwt                                                        # (NN, 1)
        rel_norm = rel / jnp.maximum(rd, 1e-8)                              # (NN, 3)
        # coords[i] += sum_j w[i,j] * rel_norm[i,j,:]   (reduce over j via EI^T matmul)
        coords = coords + jnp.dot(eit, w * rel_norm,
                                  preferred_element_type=jnp.float32)       # (N, 3)

        # m_i[i] = sum_j pair_mask[i,j] * m_ij[i,j,:] / sum(mask)
        m_i = jnp.dot(eit, pm * m_ij,
                      preferred_element_type=jnp.float32) * inv_msum        # (N, M)

        # node_mlp: Linear(D+M -> 2D), SiLU, Linear(-> D)   (concat folded into split W)
        nh = _silu(jnp.dot(feats, nw1f, preferred_element_type=jnp.float32)
                   + jnp.dot(m_i, nw1m, preferred_element_type=jnp.float32) + nb1)
        nd = jnp.dot(nh, nw2, preferred_element_type=jnp.float32) + nb2
        feats = feats + mask * nd

    geom_ref[...] = coords


# ----------------------------- wrapper -----------------------------

def mask_decoy_gen(node_features, coordinates, mask, params):
    """MaskDecoyGen forward. Returns geoms of shape (decoys, N, 3)."""
    feats0 = node_features[0]            # (N, D)
    coords0 = coordinates[0]             # (N, 3)
    mask2d = mask[0][:, None]            # (N, 1)
    n, d = feats0.shape
    decoys = len(params)

    # Stack params across decoys and layers (plain-JAX glue, fused under jit).
    def stack(name):
        return jnp.stack([jnp.stack([lp[name] for lp in blk], 0) for blk in params], 0)

    ew1 = stack("ew1"); eb1 = stack("eb1")
    ew2 = stack("ew2"); eb2 = stack("eb2")
    cw1 = stack("cw1"); cb1 = stack("cb1")
    cw2 = stack("cw2"); cb2 = stack("cb2")
    nw1 = stack("nw1"); nb1 = stack("nb1")
    nw2 = stack("nw2"); nb2 = stack("nb2")

    # Fold the torch concatenations into split weight matrices.
    ew1a = ew1[:, :, :d]                 # rows for feats_i
    ew1b = ew1[:, :, d:2 * d]            # rows for feats_j
    ew1c = ew1[:, :, 2 * d:2 * d + 1]    # row for rel_dist
    nw1f = nw1[:, :, :d]                 # rows for node_features
    nw1m = nw1[:, :, d:]                 # rows for m_i

    # Constant pair-expansion / pair-reduction selector matrices.
    nn = n * n
    ii = jnp.arange(nn) // n
    jj = jnp.arange(nn) % n
    ei = (ii[:, None] == jnp.arange(n)[None, :]).astype(jnp.float32)   # (NN, N)
    ej = (jj[:, None] == jnp.arange(n)[None, :]).astype(jnp.float32)   # (NN, N)
    eit = ei.T                                                         # (N, NN)

    def full(arr):
        # Grid-invariant input: constant index_map -> fetched once, stays resident.
        shape = arr.shape
        return pl.BlockSpec(shape, lambda dcy, _s=shape: (0,) * len(_s))

    def per_decoy(arr):
        # One decoy's weight slab per grid step (leading decoy dim squeezed away).
        nd_ = arr.ndim
        return pl.BlockSpec((None,) + arr.shape[1:],
                            lambda dcy, _nd=nd_: (dcy,) + (0,) * (_nd - 1))

    in_specs = [full(feats0), full(coords0), full(mask2d),
                full(ei), full(ej), full(eit),
                per_decoy(ew1a), per_decoy(ew1b), per_decoy(ew1c), per_decoy(eb1),
                per_decoy(ew2), per_decoy(eb2),
                per_decoy(cw1), per_decoy(cb1), per_decoy(cw2), per_decoy(cb2),
                per_decoy(nw1f), per_decoy(nw1m), per_decoy(nb1),
                per_decoy(nw2), per_decoy(nb2)]

    out_spec = pl.BlockSpec((None, n, 3), lambda dcy: (dcy, 0, 0))

    geoms = pl.pallas_call(
        fused_decoy_kernel,
        out_shape=jax.ShapeDtypeStruct((decoys, n, 3), jnp.float32),
        grid=(decoys,),
        in_specs=in_specs,
        out_specs=out_spec,
        compiler_params=pltpu.CompilerParams(
            dimension_semantics=("parallel",)),   # decoys sharded across TCs on v7x
    )(feats0, coords0, mask2d, ei, ej, eit,
      ew1a, ew1b, ew1c, eb1, ew2, eb2, cw1, cb1, cw2, cb2,
      nw1f, nw1m, nb1, nw2, nb2)
    return geoms


# ----------------------------- params -----------------------------

def _init_linear(key, fan_in, fan_out):
    kw, kb = jax.random.split(key)
    bound = 1.0 / math.sqrt(fan_in)
    w = jax.random.uniform(kw, (fan_in, fan_out), jnp.float32, -bound, bound)
    b = jax.random.uniform(kb, (1, fan_out), jnp.float32, -bound, bound)
    return w, b


def init_params(key, d, m, decoys, layers):
    e = 2 * d + 1
    params = []
    for _ in range(decoys):
        block = []
        for _ in range(layers):
            key, *ks = jax.random.split(key, 7)
            ew1, eb1 = _init_linear(ks[0], e, 2 * e)
            ew2, eb2 = _init_linear(ks[1], 2 * e, m)
            nw1, nb1 = _init_linear(ks[2], d + m, 2 * d)
            nw2, nb2 = _init_linear(ks[3], 2 * d, d)
            cw1, cb1 = _init_linear(ks[4], m, 4 * m)
            cw2, cb2 = _init_linear(ks[5], 4 * m, 1)
            block.append(dict(ew1=ew1, eb1=eb1, ew2=ew2, eb2=eb2,
                              nw1=nw1, nb1=nb1, nw2=nw2, nb2=nb2,
                              cw1=cw1, cb1=cb1, cw2=cw2, cb2=cb2))
        params.append(block)
    return params


# ----------------------------- pure-JAX reference -----------------------------

def _ref_layer(feats, coords, mask, p):
    n, d = feats.shape
    pm = mask[:, None, None] * mask[None, :, None]                # (i, j, 1)
    rel = coords[:, None, :] - coords[None, :, :]                 # (i, j, 3)
    rd = jnp.sum(rel ** 2, axis=-1, keepdims=True)                # (i, j, 1)
    fi = jnp.broadcast_to(feats[:, None, :], (n, n, d))
    fj = jnp.broadcast_to(feats[None, :, :], (n, n, d))
    ei = jnp.concatenate([fi, fj, rd], axis=-1)
    h = jax.nn.silu(ei @ p["ew1"] + p["eb1"][0])
    m_ij = jax.nn.silu(h @ p["ew2"] + p["eb2"][0])
    ch = jax.nn.silu(m_ij @ p["cw1"] + p["cb1"][0])
    cwt = ch @ p["cw2"] + p["cb2"][0]
    w = (pm * cwt)[..., 0]
    rel_norm = rel / jnp.maximum(rd, 1e-8)
    coors_out = coords + jnp.einsum('ij,ijc->ic', w, rel_norm)
    m_i = jnp.sum(pm * m_ij, axis=1) / jnp.sum(mask)
    ni = jnp.concatenate([feats, m_i], axis=-1)
    nd = jax.nn.silu(ni @ p["nw1"] + p["nb1"][0]) @ p["nw2"] + p["nb2"][0]
    node_out = feats + mask[:, None] * nd
    return node_out, coors_out


def mask_decoy_gen_ref(node_features, coordinates, mask, params):
    feats0, coords0, m = node_features[0], coordinates[0], mask[0]
    geoms = []
    for block_params in params:
        feats, coords = feats0, coords0
        for lp in block_params:
            feats, coords = _ref_layer(feats, coords, m, lp)
        geoms.append(coords)
    return jnp.stack(geoms, axis=0)


# ----------------------------- main -----------------------------

if __name__ == "__main__":
    B, N, D, M, DECOYS, LAYERS = 1, 8, 41, 32, 5, 4
    key = jax.random.PRNGKey(0)
    kf, kc, kp = jax.random.split(key, 3)

    node_features = jax.random.normal(kf, (B, N, D), jnp.float32)
    coordinates = jax.random.normal(kc, (B, N, 3), jnp.float32)
    mask = (jnp.arange(N) < 6).astype(jnp.float32)[None, :]       # (B, N), some padded nodes

    params = init_params(kp, D, M, DECOYS, LAYERS)

    fwd = jax.jit(mask_decoy_gen)
    geoms = fwd(node_features, coordinates, mask, params)
    geoms = jax.block_until_ready(geoms)
    assert geoms.shape == (DECOYS, N, 3)

    ref = mask_decoy_gen_ref(node_features, coordinates, mask, params)
    np.testing.assert_allclose(np.asarray(geoms), np.asarray(ref), rtol=2e-3, atol=2e-3)

    print("KERNEL_OK")
</pallas_src>

<mosaic_0001>
module attributes {stable_mosaic.version = 11 : i64} {
  func.func @fused_decoy_kernel(%arg0: i32, %arg1: memref<8x41xf32, #tpu.memory_space<vmem>>, %arg2: memref<8x3xf32, #tpu.memory_space<vmem>>, %arg3: memref<8x1xf32, #tpu.memory_space<vmem>>, %arg4: memref<64x8xf32, #tpu.memory_space<vmem>>, %arg5: memref<64x8xf32, #tpu.memory_space<vmem>>, %arg6: memref<8x64xf32, #tpu.memory_space<vmem>>, %arg7: memref<1x4x41x166xf32, #tpu.memory_space<vmem>>, %arg8: memref<1x4x41x166xf32, #tpu.memory_space<vmem>>, %arg9: memref<1x4x1x166xf32, #tpu.memory_space<vmem>>, %arg10: memref<1x4x1x166xf32, #tpu.memory_space<vmem>>, %arg11: memref<1x4x166x32xf32, #tpu.memory_space<vmem>>, %arg12: memref<1x4x1x32xf32, #tpu.memory_space<vmem>>, %arg13: memref<1x4x32x128xf32, #tpu.memory_space<vmem>>, %arg14: memref<1x4x1x128xf32, #tpu.memory_space<vmem>>, %arg15: memref<1x4x128x1xf32, #tpu.memory_space<vmem>>, %arg16: memref<1x4x1x1xf32, #tpu.memory_space<vmem>>, %arg17: memref<1x4x41x82xf32, #tpu.memory_space<vmem>>, %arg18: memref<1x4x32x82xf32, #tpu.memory_space<vmem>>, %arg19: memref<1x4x1x82xf32, #tpu.memory_space<vmem>>, %arg20: memref<1x4x82x41xf32, #tpu.memory_space<vmem>>, %arg21: memref<1x4x1x41xf32, #tpu.memory_space<vmem>>, %arg22: memref<1x8x3xf32, #tpu.memory_space<vmem>>) attributes {dimension_semantics = [#tpu.dimension_semantics<parallel>], iteration_bounds = array<i64: 5>, scalar_prefetch = 0 : i64, scratch_operands = 0 : i64, tpu.core_type = #tpu.core_type<tc>, window_params = [{pipeline_mode = #tpu.pipeline_mode<synchronous>, transform_indices = @transform_0, window_bounds = array<i64: 8, 41>}, {pipeline_mode = #tpu.pipeline_mode<synchronous>, transform_indices = @transform_1, window_bounds = array<i64: 8, 3>}, {pipeline_mode = #tpu.pipeline_mode<synchronous>, transform_indices = @transform_2, window_bounds = array<i64: 8, 1>}, {pipeline_mode = #tpu.pipeline_mode<synchronous>, transform_indices = @transform_3, window_bounds = array<i64: 64, 8>}, {pipeline_mode = #tpu.pipeline_mode<synchronous>, transform_indices = @transform_4, window_bounds = array<i64: 64, 8>}, {pipeline_mode = #tpu.pipeline_mode<synchronous>, transform_indices = @transform_5, window_bounds = array<i64: 8, 64>}, {transform_indices = @transform_6, window_bounds = array<i64: 1, 4, 41, 166>}, {transform_indices = @transform_7, window_bounds = array<i64: 1, 4, 41, 166>}, {transform_indices = @transform_8, window_bounds = array<i64: 1, 4, 1, 166>}, {transform_indices = @transform_9, window_bounds = array<i64: 1, 4, 1, 166>}, {transform_indices = @transform_10, window_bounds = array<i64: 1, 4, 166, 32>}, {transform_indices = @transform_11, window_bounds = array<i64: 1, 4, 1, 32>}, {transform_indices = @transform_12, window_bounds = array<i64: 1, 4, 32, 128>}, {transform_indices = @transform_13, window_bounds = array<i64: 1, 4, 1, 128>}, {transform_indices = @transform_14, window_bounds = array<i64: 1, 4, 128, 1>}, {transform_indices = @transform_15, window_bounds = array<i64: 1, 4, 1, 1>}, {transform_indices = @transform_16, window_bounds = array<i64: 1, 4, 41, 82>}, {transform_indices = @transform_17, window_bounds = array<i64: 1, 4, 32, 82>}, {transform_indices = @transform_18, window_bounds = array<i64: 1, 4, 1, 82>}, {transform_indices = @transform_19, window_bounds = array<i64: 1, 4, 82, 41>}, {transform_indices = @transform_20, window_bounds = array<i64: 1, 4, 1, 41>}, {transform_indices = @transform_21, window_bounds = array<i64: 1, 8, 3>}]} {
    %c0 = arith.constant 0 : index
    %c0_0 = arith.constant 0 : index
    %0 = vector.load %arg1[%c0, %c0_0] : memref<8x41xf32, #tpu.memory_space<vmem>>, vector<8x41xf32>
    %c0_1 = arith.constant 0 : index
    %c0_2 = arith.constant 0 : index
    %1 = vector.load %arg2[%c0_1, %c0_2] : memref<8x3xf32, #tpu.memory_space<vmem>>, vector<8x3xf32>
    %c0_3 = arith.constant 0 : index
    %c0_4 = arith.constant 0 : index
    %2 = vector.load %arg3[%c0_3, %c0_4] : memref<8x1xf32, #tpu.memory_space<vmem>>, vector<8x1xf32>
    %c0_5 = arith.constant 0 : index
    %c0_6 = arith.constant 0 : index
    %3 = vector.load %arg4[%c0_5, %c0_6] : memref<64x8xf32, #tpu.memory_space<vmem>>, vector<64x8xf32>
    %c0_7 = arith.constant 0 : index
    %c0_8 = arith.constant 0 : index
    %4 = vector.load %arg5[%c0_7, %c0_8] : memref<64x8xf32, #tpu.memory_space<vmem>>, vector<64x8xf32>
    %c0_9 = arith.constant 0 : index
    %c0_10 = arith.constant 0 : index
    %5 = vector.load %arg6[%c0_9, %c0_10] : memref<8x64xf32, #tpu.memory_space<vmem>>, vector<8x64xf32>
    %6 = vector.shape_cast %2 : vector<8x1xf32> to vector<1x8x1xf32>
    %cst = arith.constant dense<0.000000e+00> : vector<1xf32>
    %7 = vector.multi_reduction <add>, %6, %cst [1, 2] : vector<1x8x1xf32> to vector<1xf32>
    %8 = vector.shape_cast %7 : vector<1xf32> to vector<1x1x1xf32>
    %9 = vector.extract %8[0, 0, 0] : f32 from vector<1x1x1xf32>
    %10 = vector.broadcast %9 : f32 to vector<1x1xf32>
    %cst_11 = arith.constant 1.000000e+00 : f32
    %11 = vector.broadcast %cst_11 : f32 to vector<1x1xf32>
    %12 = arith.divf %11, %10 : vector<1x1xf32>
    %cst_12 = arith.constant dense<0.000000e+00> : vector<64x1xf32>
    %13 = tpu.matmul %3, %2, %cst_12 {dimension_numbers = #tpu.dot_dimension_numbers<[1], [0], [0], [1], [0, 0, 1, 1], [], []>} : vector<64x8xf32>, vector<8x1xf32>, vector<64x1xf32> -> vector<64x1xf32>
    %cst_13 = arith.constant dense<0.000000e+00> : vector<64x1xf32>
    %14 = tpu.matmul %4, %2, %cst_13 {dimension_numbers = #tpu.dot_dimension_numbers<[1], [0], [0], [1], [0, 0, 1, 1], [], []>} : vector<64x8xf32>, vector<8x1xf32>, vector<64x1xf32> -> vector<64x1xf32>
    %15 = arith.mulf %13, %14 : vector<64x1xf32>
    %c0_14 = arith.constant 0 : index
    %c0_15 = arith.constant 0 : index
    %c0_16 = arith.constant 0 : index
    %c0_17 = arith.constant 0 : index
    %16 = vector.load %arg7[%c0_14, %c0_15, %c0_16, %c0_17] : memref<1x4x41x166xf32, #tpu.memory_space<vmem>>, vector<1x1x41x166xf32>
    %17 = vector.shape_cast %16 : vector<1x1x41x166xf32> to vector<41x166xf32>
    %c0_18 = arith.constant 0 : index
    %c0_19 = arith.constant 0 : index
    %c0_20 = arith.constant 0 : index
    %c0_21 = arith.constant 0 : index
    %18 = vector.load %arg8[%c0_18, %c0_19, %c0_20, %c0_21] : memref<1x4x41x166xf32, #tpu.memory_space<vmem>>, vector<1x1x41x166xf32>
    %19 = vector.shape_cast %18 : vector<1x1x41x166xf32> to vector<41x166xf32>
    %c0_22 = arith.constant 0 : index
    %c0_23 = arith.constant 0 : index
    %c0_24 = arith.constant 0 : index
    %c0_25 = arith.constant 0 : index
    %20 = vector.load %arg9[%c0_22, %c0_23, %c0_24, %c0_25] : memref<1x4x1x166xf32, #tpu.memory_space<vmem>>, vector<1x1x1x166xf32>
    %21 = vector.shape_cast %20 : vector<1x1x1x166xf32> to vector<1x166xf32>
    %c0_26 = arith.constant 0 : index
    %c0_27 = arith.constant 0 : index
    %c0_28 = arith.constant 0 : index
    %c0_29 = arith.constant 0 : index
    %22 = vector.load %arg10[%c0_26, %c0_27, %c0_28, %c0_29] : memref<1x4x1x166xf32, #tpu.memory_space<vmem>>, vector<1x1x1x166xf32>
    %23 = vector.shape_cast %22 : vector<1x1x1x166xf32> to vector<1x166xf32>
    %c0_30 = arith.constant 0 : index
    %c0_31 = arith.constant 0 : index
    %c0_32 = arith.constant 0 : index
    %c0_33 = arith.constant 0 : index
    %24 = vector.load %arg11[%c0_30, %c0_31, %c0_32, %c0_33] : memref<1x4x166x32xf32, #tpu.memory_space<vmem>>, vector<1x1x166x32xf32>
    %25 = vector.shape_cast %24 : vector<1x1x166x32xf32> to vector<166x32xf32>
    %c0_34 = arith.constant 0 : index
    %c0_35 = arith.constant 0 : index
    %c0_36 = arith.constant 0 : index
    %c0_37 = arith.constant 0 : index
    %26 = vector.load %arg12[%c0_34, %c0_35, %c0_36, %c0_37] : memref<1x4x1x32xf32, #tpu.memory_space<vmem>>, vector<1x1x1x32xf32>
    %27 = vector.shape_cast %26 : vector<1x1x1x32xf32> to vector<1x32xf32>
    %c0_38 = arith.constant 0 : index
    %c0_39 = arith.constant 0 : index
    %c0_40 = arith.constant 0 : index
    %c0_41 = arith.constant 0 : index
    %28 = vector.load %arg13[%c0_38, %c0_39, %c0_40, %c0_41] : memref<1x4x32x128xf32, #tpu.memory_space<vmem>>, vector<1x1x32x128xf32>
    %29 = vector.shape_cast %28 : vector<1x1x32x128xf32> to vector<32x128xf32>
    %c0_42 = arith.constant 0 : index
    %c0_43 = arith.constant 0 : index
    %c0_44 = arith.constant 0 : index
    %c0_45 = arith.constant 0 : index
    %30 = vector.load %arg14[%c0_42, %c0_43, %c0_44, %c0_45] : memref<1x4x1x128xf32, #tpu.memory_space<vmem>>, vector<1x1x1x128xf32>
    %31 = vector.shape_cast %30 : vector<1x1x1x128xf32> to vector<1x128xf32>
    %c0_46 = arith.constant 0 : index
    %c0_47 = arith.constant 0 : index
    %c0_48 = arith.constant 0 : index
    %c0_49 = arith.constant 0 : index
    %32 = vector.load %arg15[%c0_46, %c0_47, %c0_48, %c0_49] : memref<1x4x128x1xf32, #tpu.memory_space<vmem>>, vector<1x1x128x1xf32>
    %33 = vector.shape_cast %32 : vector<1x1x128x1xf32> to vector<128x1xf32>
    %c0_50 = arith.constant 0 : index
    %c0_51 = arith.constant 0 : index
    %c0_52 = arith.constant 0 : index
    %c0_53 = arith.constant 0 : index
    %34 = vector.load %arg16[%c0_50, %c0_51, %c0_52, %c0_53] : memref<1x4x1x1xf32, #tpu.memory_space<vmem>>, vector<1x1x1x1xf32>
    %35 = vector.shape_cast %34 : vector<1x1x1x1xf32> to vector<1x1xf32>
    %c0_54 = arith.constant 0 : index
    %c0_55 = arith.constant 0 : index
    %c0_56 = arith.constant 0 : index
    %c0_57 = arith.constant 0 : index
    %36 = vector.load %arg17[%c0_54, %c0_55, %c0_56, %c0_57] : memref<1x4x41x82xf32, #tpu.memory_space<vmem>>, vector<1x1x41x82xf32>
    %37 = vector.shape_cast %36 : vector<1x1x41x82xf32> to vector<41x82xf32>
    %c0_58 = arith.constant 0 : index
    %c0_59 = arith.constant 0 : index
    %c0_60 = arith.constant 0 : index
    %c0_61 = arith.constant 0 : index
    %38 = vector.load %arg18[%c0_58, %c0_59, %c0_60, %c0_61] : memref<1x4x32x82xf32, #tpu.memory_space<vmem>>, vector<1x1x32x82xf32>
    %39 = vector.shape_cast %38 : vector<1x1x32x82xf32> to vector<32x82xf32>
    %c0_62 = arith.constant 0 : index
    %c0_63 = arith.constant 0 : index
    %c0_64 = arith.constant 0 : index
    %c0_65 = arith.constant 0 : index
    %40 = vector.load %arg19[%c0_62, %c0_63, %c0_64, %c0_65] : memref<1x4x1x82xf32, #tpu.memory_space<vmem>>, vector<1x1x1x82xf32>
    %41 = vector.shape_cast %40 : vector<1x1x1x82xf32> to vector<1x82xf32>
    %c0_66 = arith.constant 0 : index
    %c0_67 = arith.constant 0 : index
    %c0_68 = arith.constant 0 : index
    %c0_69 = arith.constant 0 : index
    %42 = vector.load %arg20[%c0_66, %c0_67, %c0_68, %c0_69] : memref<1x4x82x41xf32, #tpu.memory_space<vmem>>, vector<1x1x82x41xf32>
    %43 = vector.shape_cast %42 : vector<1x1x82x41xf32> to vector<82x41xf32>
    %c0_70 = arith.constant 0 : index
    %c0_71 = arith.constant 0 : index
    %c0_72 = arith.constant 0 : index
    %c0_73 = arith.constant 0 : index
    %44 = vector.load %arg21[%c0_70, %c0_71, %c0_72, %c0_73] : memref<1x4x1x41xf32, #tpu.memory_space<vmem>>, vector<1x1x1x41xf32>
    %45 = vector.shape_cast %44 : vector<1x1x1x41xf32> to vector<1x41xf32>
    %cst_74 = arith.constant dense<0.000000e+00> : vector<64x3xf32>
    %46 = tpu.matmul %3, %1, %cst_74 {dimension_numbers = #tpu.dot_dimension_numbers<[1], [0], [0], [1], [0, 0, 1, 1], [], []>} : vector<64x8xf32>, vector<8x3xf32>, vector<64x3xf32> -> vector<64x3xf32>
    %cst_75 = arith.constant dense<0.000000e+00> : vector<64x3xf32>
    %47 = tpu.matmul %4, %1, %cst_75 {dimension_numbers = #tpu.dot_dimension_numbers<[1], [0], [0], [1], [0, 0, 1, 1], [], []>} : vector<64x8xf32>, vector<8x3xf32>, vector<64x3xf32> -> vector<64x3xf32>
    %48 = arith.subf %46, %47 : vector<64x3xf32>
    %49 = arith.mulf %48, %48 : vector<64x3xf32>
    %cst_76 = arith.constant dense<0.000000e+00> : vector<64xf32>
    %50 = vector.multi_reduction <add>, %49, %cst_76 [1] : vector<64x3xf32> to vector<64xf32>
    %51 = vector.shape_cast %50 : vector<64xf32> to vector<64x1xf32>
    %cst_77 = arith.constant dense<0.000000e+00> : vector<8x166xf32>
    %52 = tpu.matmul %0, %17, %cst_77 {dimension_numbers = #tpu.dot_dimension_numbers<[1], [0], [0], [1], [0, 0, 1, 1], [], []>} : vector<8x41xf32>, vector<41x166xf32>, vector<8x166xf32> -> vector<8x166xf32>
    %cst_78 = arith.constant dense<0.000000e+00> : vector<8x166xf32>
    %53 = tpu.matmul %0, %19, %cst_78 {dimension_numbers = #tpu.dot_dimension_numbers<[1], [0], [0], [1], [0, 0, 1, 1], [], []>} : vector<8x41xf32>, vector<41x166xf32>, vector<8x166xf32> -> vector<8x166xf32>
    %cst_79 = arith.constant dense<0.000000e+00> : vector<64x166xf32>
    %54 = tpu.matmul %3, %52, %cst_79 {dimension_numbers = #tpu.dot_dimension_numbers<[1], [0], [0], [1], [0, 0, 1, 1], [], []>} : vector<64x8xf32>, vector<8x166xf32>, vector<64x166xf32> -> vector<64x166xf32>
    %cst_80 = arith.constant dense<0.000000e+00> : vector<64x166xf32>
    %55 = tpu.matmul %4, %53, %cst_80 {dimension_numbers = #tpu.dot_dimension_numbers<[1], [0], [0], [1], [0, 0, 1, 1], [], []>} : vector<64x8xf32>, vector<8x166xf32>, vector<64x166xf32> -> vector<64x166xf32>
    %56 = arith.addf %54, %55 : vector<64x166xf32>
    %57 = vector.broadcast %51 : vector<64x1xf32> to vector<64x166xf32>
    %58 = vector.broadcast %21 : vector<1x166xf32> to vector<64x166xf32>
    %59 = arith.mulf %57, %58 : vector<64x166xf32>
    %60 = arith.addf %56, %59 : vector<64x166xf32>
    %61 = vector.broadcast %23 : vector<1x166xf32> to vector<64x166xf32>
    %62 = arith.addf %60, %61 : vector<64x166xf32>
    %cst_81 = arith.constant 5.000000e-01 : f32
    %63 = vector.broadcast %cst_81 : f32 to vector<64x166xf32>
    %64 = arith.mulf %63, %62 : vector<64x166xf32>
    %65 = math.tanh %64 : vector<64x166xf32>
    %cst_82 = arith.constant 5.000000e-01 : f32
    %66 = vector.broadcast %cst_82 : f32 to vector<64x166xf32>
    %67 = arith.mulf %66, %65 : vector<64x166xf32>
    %cst_83 = arith.constant 5.000000e-01 : f32
    %68 = vector.broadcast %cst_83 : f32 to vector<64x166xf32>
    %69 = arith.addf %67, %68 : vector<64x166xf32>
    %70 = arith.mulf %62, %69 : vector<64x166xf32>
    %cst_84 = arith.constant dense<0.000000e+00> : vector<64x32xf32>
    %71 = tpu.matmul %70, %25, %cst_84 {dimension_numbers = #tpu.dot_dimension_numbers<[1], [0], [0], [1], [0, 0, 1, 1], [], []>} : vector<64x166xf32>, vector<166x32xf32>, vector<64x32xf32> -> vector<64x32xf32>
    %72 = vector.broadcast %27 : vector<1x32xf32> to vector<64x32xf32>
    %73 = arith.addf %71, %72 : vector<64x32xf32>
    %cst_85 = arith.constant 5.000000e-01 : f32
    %74 = vector.broadcast %cst_85 : f32 to vector<64x32xf32>
    %75 = arith.mulf %74, %73 : vector<64x32xf32>
    %76 = math.tanh %75 : vector<64x32xf32>
    %cst_86 = arith.constant 5.000000e-01 : f32
    %77 = vector.broadcast %cst_86 : f32 to vector<64x32xf32>
    %78 = arith.mulf %77, %76 : vector<64x32xf32>
    %cst_87 = arith.constant 5.000000e-01 : f32
    %79 = vector.broadcast %cst_87 : f32 to vector<64x32xf32>
    %80 = arith.addf %78, %79 : vector<64x32xf32>
    %81 = arith.mulf %73, %80 : vector<64x32xf32>
    %cst_88 = arith.constant dense<0.000000e+00> : vector<64x128xf32>
    %82 = tpu.matmul %81, %29, %cst_88 {dimension_numbers = #tpu.dot_dimension_numbers<[1], [0], [0], [1], [0, 0, 1, 1], [], []>} : vector<64x32xf32>, vector<32x128xf32>, vector<64x128xf32> -> vector<64x128xf32>
    %83 = vector.broadcast %31 : vector<1x128xf32> to vector<64x128xf32>
    %84 = arith.addf %82, %83 : vector<64x128xf32>
    %cst_89 = arith.constant 5.000000e-01 : f32
    %85 = vector.broadcast %cst_89 : f32 to vector<64x128xf32>
    %86 = arith.mulf %85, %84 : vector<64x128xf32>
    %87 = math.tanh %86 : vector<64x128xf32>
    %cst_90 = arith.constant 5.000000e-01 : f32
    %88 = vector.broadcast %cst_90 : f32 to vector<64x128xf32>
    %89 = arith.mulf %88, %87 : vector<64x128xf32>
    %cst_91 = arith.constant 5.000000e-01 : f32
    %90 = vector.broadcast %cst_91 : f32 to vector<64x128xf32>
    %91 = arith.addf %89, %90 : vector<64x128xf32>
    %92 = arith.mulf %84, %91 : vector<64x128xf32>
    %cst_92 = arith.constant dense<0.000000e+00> : vector<64x1xf32>
    %93 = tpu.matmul %92, %33, %cst_92 {dimension_numbers = #tpu.dot_dimension_numbers<[1], [0], [0], [1], [0, 0, 1, 1], [], []>} : vector<64x128xf32>, vector<128x1xf32>, vector<64x1xf32> -> vector<64x1xf32>
    %94 = vector.broadcast %35 : vector<1x1xf32> to vector<64x1xf32>
    %95 = arith.addf %93, %94 : vector<64x1xf32>
    %96 = arith.mulf %15, %95 : vector<64x1xf32>
    %cst_93 = arith.constant 9.99999993E-9 : f32
    %97 = vector.broadcast %cst_93 : f32 to vector<64x1xf32>
    %98 = arith.maximumf %51, %97 : vector<64x1xf32>
    %99 = vector.broadcast %98 : vector<64x1xf32> to vector<64x3xf32>
    %100 = arith.divf %48, %99 : vector<64x3xf32>
    %101 = vector.broadcast %96 : vector<64x1xf32> to vector<64x3xf32>
    %102 = arith.mulf %101, %100 : vector<64x3xf32>
    %cst_94 = arith.constant dense<0.000000e+00> : vector<8x3xf32>
    %103 = tpu.matmul %5, %102, %cst_94 {dimension_numbers = #tpu.dot_dimension_numbers<[1], [0], [0], [1], [0, 0, 1, 1], [], []>} : vector<8x64xf32>, vector<64x3xf32>, vector<8x3xf32> -> vector<8x3xf32>
    %104 = arith.addf %1, %103 : vector<8x3xf32>
    %105 = vector.broadcast %15 : vector<64x1xf32> to vector<64x32xf32>
    %106 = arith.mulf %105, %81 : vector<64x32xf32>
    %cst_95 = arith.constant dense<0.000000e+00> : vector<8x32xf32>
    %107 = tpu.matmul %5, %106, %cst_95 {dimension_numbers = #tpu.dot_dimension_numbers<[1], [0], [0], [1], [0, 0, 1, 1], [], []>} : vector<8x64xf32>, vector<64x32xf32>, vector<8x32xf32> -> vector<8x32xf32>
    %108 = vector.broadcast %12 : vector<1x1xf32> to vector<8x32xf32>
    %109 = arith.mulf %107, %108 : vector<8x32xf32>
    %cst_96 = arith.constant dense<0.000000e+00> : vector<8x82xf32>
    %110 = tpu.matmul %0, %37, %cst_96 {dimension_numbers = #tpu.dot_dimension_numbers<[1], [0], [0], [1], [0, 0, 1, 1], [], []>} : vector<8x41xf32>, vector<41x82xf32>, vector<8x82xf32> -> vector<8x82xf32>
    %cst_97 = arith.constant dense<0.000000e+00> : vector<8x82xf32>
    %111 = tpu.matmul %109, %39, %cst_97 {dimension_numbers = #tpu.dot_dimension_numbers<[1], [0], [0], [1], [0, 0, 1, 1], [], []>} : vector<8x32xf32>, vector<32x82xf32>, vector<8x82xf32> -> vector<8x82xf32>
    %112 = arith.addf %110, %111 : vector<8x82xf32>
    %113 = vector.broadcast %41 : vector<1x82xf32> to vector<8x82xf32>
    %114 = arith.addf %112, %113 : vector<8x82xf32>
    %cst_98 = arith.constant 5.000000e-01 : f32
    %115 = vector.broadcast %cst_98 : f32 to vector<8x82xf32>
    %116 = arith.mulf %115, %114 : vector<8x82xf32>
    %117 = math.tanh %116 : vector<8x82xf32>
    %cst_99 = arith.constant 5.000000e-01 : f32
    %118 = vector.broadcast %cst_99 : f32 to vector<8x82xf32>
    %119 = arith.mulf %118, %117 : vector<8x82xf32>
    %cst_100 = arith.constant 5.000000e-01 : f32
    %120 = vector.broadcast %cst_100 : f32 to vector<8x82xf32>
    %121 = arith.addf %119, %120 : vector<8x82xf32>
    %122 = arith.mulf %114, %121 : vector<8x82xf32>
    %cst_101 = arith.constant dense<0.000000e+00> : vector<8x41xf32>
    %123 = tpu.matmul %122, %43, %cst_101 {dimension_numbers = #tpu.dot_dimension_numbers<[1], [0], [0], [1], [0, 0, 1, 1], [], []>} : vector<8x82xf32>, vector<82x41xf32>, vector<8x41xf32> -> vector<8x41xf32>
    %124 = vector.broadcast %45 : vector<1x41xf32> to vector<8x41xf32>
    %125 = arith.addf %123, %124 : vector<8x41xf32>
    %126 = vector.broadcast %2 : vector<8x1xf32> to vector<8x41xf32>
    %127 = arith.mulf %126, %125 : vector<8x41xf32>
    %128 = arith.addf %0, %127 : vector<8x41xf32>
    %c0_102 = arith.constant 0 : index
    %c1 = arith.constant 1 : index
    %c0_103 = arith.constant 0 : index
    %c0_104 = arith.constant 0 : index
    %129 = vector.load %arg7[%c0_102, %c1, %c0_103, %c0_104] : memref<1x4x41x166xf32, #tpu.memory_space<vmem>>, vector<1x1x41x166xf32>
    %130 = vector.shape_cast %129 : vector<1x1x41x166xf32> to vector<41x166xf32>
    %c0_105 = arith.constant 0 : index
    %c1_106 = arith.constant 1 : index
    %c0_107 = arith.constant 0 : index
    %c0_108 = arith.constant 0 : index
    %131 = vector.load %arg8[%c0_105, %c1_106, %c0_107, %c0_108] : memref<1x4x41x166xf32, #tpu.memory_space<vmem>>, vector<1x1x41x166xf32>
    %132 = vector.shape_cast %131 : vector<1x1x41x166xf32> to vector<41x166xf32>
    %c0_109 = arith.constant 0 : index
    %c1_110 = arith.constant 1 : index
    %c0_111 = arith.constant 0 : index
    %c0_112 = arith.constant 0 : index
    %133 = vector.load %arg9[%c0_109, %c1_110, %c0_111, %c0_112] : memref<1x4x1x166xf32, #tpu.memory_space<vmem>>, vector<1x1x1x166xf32>
    %134 = vector.shape_cast %133 : vector<1x1x1x166xf32> to vector<1x166xf32>
    %c0_113 = arith.constant 0 : index
    %c1_114 = arith.constant 1 : index
    %c0_115 = arith.constant 0 : index
    %c0_116 = arith.constant 0 : index
    %135 = vector.load %arg10[%c0_113, %c1_114, %c0_115, %c0_116] : memref<1x4x1x166xf32, #tpu.memory_space<vmem>>, vector<1x1x1x166xf32>
    %136 = vector.shape_cast %135 : vector<1x1x1x166xf32> to vector<1x166xf32>
    %c0_117 = arith.constant 0 : index
    %c1_118 = arith.constant 1 : index
    %c0_119 = arith.constant 0 : index
    %c0_120 = arith.constant 0 : index
    %137 = vector.load %arg11[%c0_117, %c1_118, %c0_119, %c0_120] : memref<1x4x166x32xf32, #tpu.memory_space<vmem>>, vector<1x1x166x32xf32>
    %138 = vector.shape_cast %137 : vector<1x1x166x32xf32> to vector<166x32xf32>
    %c0_121 = arith.constant 0 : index
    %c1_122 = arith.constant 1 : index
    %c0_123 = arith.constant 0 : index
    %c0_124 = arith.constant 0 : index
    %139 = vector.load %arg12[%c0_121, %c1_122, %c0_123, %c0_124] : memref<1x4x1x32xf32, #tpu.memory_space<vmem>>, vector<1x1x1x32xf32>
    %140 = vector.shape_cast %139 : vector<1x1x1x32xf32> to vector<1x32xf32>
    %c0_125 = arith.constant 0 : index
    %c1_126 = arith.constant 1 : index
    %c0_127 = arith.constant 0 : index
    %c0_128 = arith.constant 0 : index
    %141 = vector.load %arg13[%c0_125, %c1_126, %c0_127, %c0_128] : memref<1x4x32x128xf32, #tpu.memory_space<vmem>>, vector<1x1x32x128xf32>
    %142 = vector.shape_cast %141 : vector<1x1x32x128xf32> to vector<32x128xf32>
    %c0_129 = arith.constant 0 : index
    %c1_130 = arith.constant 1 : index
    %c0_131 = arith.constant 0 : index
    %c0_132 = arith.constant 0 : index
    %143 = vector.load %arg14[%c0_129, %c1_130, %c0_131, %c0_132] : memref<1x4x1x128xf32, #tpu.memory_space<vmem>>, vector<1x1x1x128xf32>
    %144 = vector.shape_cast %143 : vector<1x1x1x128xf32> to vector<1x128xf32>
    %c0_133 = arith.constant 0 : index
    %c1_134 = arith.constant 1 : index
    %c0_135 = arith.constant 0 : index
    %c0_136 = arith.constant 0 : index
    %145 = vector.load %arg15[%c0_133, %c1_134, %c0_135, %c0_136] : memref<1x4x128x1xf32, #tpu.memory_space<vmem>>, vector<1x1x128x1xf32>
    %146 = vector.shape_cast %145 : vector<1x1x128x1xf32> to vector<128x1xf32>
    %c0_137 = arith.constant 0 : index
    %c1_138 = arith.constant 1 : index
    %c0_139 = arith.constant 0 : index
    %c0_140 = arith.constant 0 : index
    %147 = vector.load %arg16[%c0_137, %c1_138, %c0_139, %c0_140] : memref<1x4x1x1xf32, #tpu.memory_space<vmem>>, vector<1x1x1x1xf32>
    %148 = vector.shape_cast %147 : vector<1x1x1x1xf32> to vector<1x1xf32>
    %c0_141 = arith.constant 0 : index
    %c1_142 = arith.constant 1 : index
    %c0_143 = arith.constant 0 : index
    %c0_144 = arith.constant 0 : index
    %149 = vector.load %arg17[%c0_141, %c1_142, %c0_143, %c0_144] : memref<1x4x41x82xf32, #tpu.memory_space<vmem>>, vector<1x1x41x82xf32>
    %150 = vector.shape_cast %149 : vector<1x1x41x82xf32> to vector<41x82xf32>
    %c0_145 = arith.constant 0 : index
    %c1_146 = arith.constant 1 : index
    %c0_147 = arith.constant 0 : index
    %c0_148 = arith.constant 0 : index
    %151 = vector.load %arg18[%c0_145, %c1_146, %c0_147, %c0_148] : memref<1x4x32x82xf32, #tpu.memory_space<vmem>>, vector<1x1x32x82xf32>
    %152 = vector.shape_cast %151 : vector<1x1x32x82xf32> to vector<32x82xf32>
    %c0_149 = arith.constant 0 : index
    %c1_150 = arith.constant 1 : index
    %c0_151 = arith.constant 0 : index
    %c0_152 = arith.constant 0 : index
    %153 = vector.load %arg19[%c0_149, %c1_150, %c0_151, %c0_152] : memref<1x4x1x82xf32, #tpu.memory_space<vmem>>, vector<1x1x1x82xf32>
    %154 = vector.shape_cast %153 : vector<1x1x1x82xf32> to vector<1x82xf32>
    %c0_153 = arith.constant 0 : index
    %c1_154 = arith.constant 1 : index
    %c0_155 = arith.constant 0 : index
    %c0_156 = arith.constant 0 : index
    %155 = vector.load %arg20[%c0_153, %c1_154, %c0_155, %c0_156] : memref<1x4x82x41xf32, #tpu.memory_space<vmem>>, vector<1x1x82x41xf32>
    %156 = vector.shape_cast %155 : vector<1x1x82x41xf32> to vector<82x41xf32>
    %c0_157 = arith.constant 0 : index
    %c1_158 = arith.constant 1 : index
    %c0_159 = arith.constant 0 : index
    %c0_160 = arith.constant 0 : index
    %157 = vector.load %arg21[%c0_157, %c1_158, %c0_159, %c0_160] : memref<1x4x1x41xf32, #tpu.memory_space<vmem>>, vector<1x1x1x41xf32>
    %158 = vector.shape_cast %157 : vector<1x1x1x41xf32> to vector<1x41xf32>
    %cst_161 = arith.constant dense<0.000000e+00> : vector<64x3xf32>
    %159 = tpu.matmul %3, %104, %cst_161 {dimension_numbers = #tpu.dot_dimension_numbers<[1], [0], [0], [1], [0, 0, 1, 1], [], []>} : vector<64x8xf32>, vector<8x3xf32>, vector<64x3xf32> -> vector<64x3xf32>
    %cst_162 = arith.constant dense<0.000000e+00> : vector<64x3xf32>
    %160 = tpu.matmul %4, %104, %cst_162 {dimension_numbers = #tpu.dot_dimension_numbers<[1], [0], [0], [1], [0, 0, 1, 1], [], []>} : vector<64x8xf32>, vector<8x3xf32>, vector<64x3xf32> -> vector<64x3xf32>
    %161 = arith.subf %159, %160 : vector<64x3xf32>
    %162 = arith.mulf %161, %161 : vector<64x3xf32>
    %cst_163 = arith.constant dense<0.000000e+00> : vector<64xf32>
    %163 = vector.multi_reduction <add>, %162, %cst_163 [1] : vector<64x3xf32> to vector<64xf32>
    %164 = vector.shape_cast %163 : vector<64xf32> to vector<64x1xf32>
    %cst_164 = arith.constant dense<0.000000e+00> : vector<8x166xf32>
    %165 = tpu.matmul %128, %130, %cst_164 {dimension_numbers = #tpu.dot_dimension_numbers<[1], [0], [0], [1], [0, 0, 1, 1], [], []>} : vector<8x41xf32>, vector<41x166xf32>, vector<8x166xf32> -> vector<8x166xf32>
    %cst_165 = arith.constant dense<0.000000e+00> : vector<8x166xf32>
    %166 = tpu.matmul %128, %132, %cst_165 {dimension_numbers = #tpu.dot_dimension_numbers<[1], [0], [0], [1], [0, 0, 1, 1], [], []>} : vector<8x41xf32>, vector<41x166xf32>, vector<8x166xf32> -> vector<8x166xf32>
    %cst_166 = arith.constant dense<0.000000e+00> : vector<64x166xf32>
    %167 = tpu.matmul %3, %165, %cst_166 {dimension_numbers = #tpu.dot_dimension_numbers<[1], [0], [0], [1], [0, 0, 1, 1], [], []>} : vector<64x8xf32>, vector<8x166xf32>, vector<64x166xf32> -> vector<64x166xf32>
    %cst_167 = arith.constant dense<0.000000e+00> : vector<64x166xf32>
    %168 = tpu.matmul %4, %166, %cst_167 {dimension_numbers = #tpu.dot_dimension_numbers<[1], [0], [0], [1], [0, 0, 1, 1], [], []>} : vector<64x8xf32>, vector<8x166xf32>, vector<64x166xf32> -> vector<64x166xf32>
    %169 = arith.addf %167, %168 : vector<64x166xf32>
    %170 = vector.broadcast %164 : vector<64x1xf32> to vector<64x166xf32>
    %171 = vector.broadcast %134 : vector<1x166xf32> to vector<64x166xf32>
    %172 = arith.mulf %170, %171 : vector<64x166xf32>
    %173 = arith.addf %169, %172 : vector<64x166xf32>
    %174 = vector.broadcast %136 : vector<1x166xf32> to vector<64x166xf32>
    %175 = arith.addf %173, %174 : vector<64x166xf32>
    %cst_168 = arith.constant 5.000000e-01 : f32
    %176 = vector.broadcast %cst_168 : f32 to vector<64x166xf32>
    %177 = arith.mulf %176, %175 : vector<64x166xf32>
    %178 = math.tanh %177 : vector<64x166xf32>
    %cst_169 = arith.constant 5.000000e-01 : f32
    %179 = vector.broadcast %cst_169 : f32 to vector<64x166xf32>
    %180 = arith.mulf %179, %178 : vector<64x166xf32>
    %cst_170 = arith.constant 5.000000e-01 : f32
    %181 = vector.broadcast %cst_170 : f32 to vector<64x166xf32>
    %182 = arith.addf %180, %181 : vector<64x166xf32>
    %183 = arith.mulf %175, %182 : vector<64x166xf32>
    %cst_171 = arith.constant dense<0.000000e+00> : vector<64x32xf32>
    %184 = tpu.matmul %183, %138, %cst_171 {dimension_numbers = #tpu.dot_dimension_numbers<[1], [0], [0], [1], [0, 0, 1, 1], [], []>} : vector<64x166xf32>, vector<166x32xf32>, vector<64x32xf32> -> vector<64x32xf32>
    %185 = vector.broadcast %140 : vector<1x32xf32> to vector<64x32xf32>
    %186 = arith.addf %184, %185 : vector<64x32xf32>
    %cst_172 = arith.constant 5.000000e-01 : f32
    %187 = vector.broadcast %cst_172 : f32 to vector<64x32xf32>
    %188 = arith.mulf %187, %186 : vector<64x32xf32>
    %189 = math.tanh %188 : vector<64x32xf32>
    %cst_173 = arith.constant 5.000000e-01 : f32
    %190 = vector.broadcast %cst_173 : f32 to vector<64x32xf32>
    %191 = arith.mulf %190, %189 : vector<64x32xf32>
    %cst_174 = arith.constant 5.000000e-01 : f32
    %192 = vector.broadcast %cst_174 : f32 to vector<64x32xf32>
    %193 = arith.addf %191, %192 : vector<64x32xf32>
    %194 = arith.mulf %186, %193 : vector<64x32xf32>
    %cst_175 = arith.constant dense<0.000000e+00> : vector<64x128xf32>
    %195 = tpu.matmul %194, %142, %cst_175 {dimension_numbers = #tpu.dot_dimension_numbers<[1], [0], [0], [1], [0, 0, 1, 1], [], []>} : vector<64x32xf32>, vector<32x128xf32>, vector<64x128xf32> -> vector<64x128xf32>
    %196 = vector.broadcast %144 : vector<1x128xf32> to vector<64x128xf32>
    %197 = arith.addf %195, %196 : vector<64x128xf32>
    %cst_176 = arith.constant 5.000000e-01 : f32
    %198 = vector.broadcast %cst_176 : f32 to vector<64x128xf32>
    %199 = arith.mulf %198, %197 : vector<64x128xf32>
    %200 = math.tanh %199 : vector<64x128xf32>
    %cst_177 = arith.constant 5.000000e-01 : f32
    %201 = vector.broadcast %cst_177 : f32 to vector<64x128xf32>
    %202 = arith.mulf %201, %200 : vector<64x128xf32>
    %cst_178 = arith.constant 5.000000e-01 : f32
    %203 = vector.broadcast %cst_178 : f32 to vector<64x128xf32>
    %204 = arith.addf %202, %203 : vector<64x128xf32>
    %205 = arith.mulf %197, %204 : vector<64x128xf32>
    %cst_179 = arith.constant dense<0.000000e+00> : vector<64x1xf32>
    %206 = tpu.matmul %205, %146, %cst_179 {dimension_numbers = #tpu.dot_dimension_numbers<[1], [0], [0], [1], [0, 0, 1, 1], [], []>} : vector<64x128xf32>, vector<128x1xf32>, vector<64x1xf32> -> vector<64x1xf32>
    %207 = vector.broadcast %148 : vector<1x1xf32> to vector<64x1xf32>
    %208 = arith.addf %206, %207 : vector<64x1xf32>
    %209 = arith.mulf %15, %208 : vector<64x1xf32>
    %cst_180 = arith.constant 9.99999993E-9 : f32
    %210 = vector.broadcast %cst_180 : f32 to vector<64x1xf32>
    %211 = arith.maximumf %164, %210 : vector<64x1xf32>
    %212 = vector.broadcast %211 : vector<64x1xf32> to vector<64x3xf32>
    %213 = arith.divf %161, %212 : vector<64x3xf32>
    %214 = vector.broadcast %209 : vector<64x1xf32> to vector<64x3xf32>
    %215 = arith.mulf %214, %213 : vector<64x3xf32>
    %cst_181 = arith.constant dense<0.000000e+00> : vector<8x3xf32>
    %216 = tpu.matmul %5, %215, %cst_181 {dimension_numbers = #tpu.dot_dimension_numbers<[1], [0], [0], [1], [0, 0, 1, 1], [], []>} : vector<8x64xf32>, vector<64x3xf32>, vector<8x3xf32> -> vector<8x3xf32>
    %217 = arith.addf %104, %216 : vector<8x3xf32>
    %218 = vector.broadcast %15 : vector<64x1xf32> to vector<64x32xf32>
    %219 = arith.mulf %218, %194 : vector<64x32xf32>
    %cst_182 = arith.constant dense<0.000000e+00> : vector<8x32xf32>
    %220 = tpu.matmul %5, %219, %cst_182 {dimension_numbers = #tpu.dot_dimension_numbers<[1], [0], [0], [1], [0, 0, 1, 1], [], []>} : vector<8x64xf32>, vector<64x32xf32>, vector<8x32xf32> -> vector<8x32xf32>
    %221 = vector.broadcast %12 : vector<1x1xf32> to vector<8x32xf32>
    %222 = arith.mulf %220, %221 : vector<8x32xf32>
    %cst_183 = arith.constant dense<0.000000e+00> : vector<8x82xf32>
    %223 = tpu.matmul %128, %150, %cst_183 {dimension_numbers = #tpu.dot_dimension_numbers<[1], [0], [0], [1], [0, 0, 1, 1], [], []>} : vector<8x41xf32>, vector<41x82xf32>, vector<8x82xf32> -> vector<8x82xf32>
    %cst_184 = arith.constant dense<0.000000e+00> : vector<8x82xf32>
    %224 = tpu.matmul %222, %152, %cst_184 {dimension_numbers = #tpu.dot_dimension_numbers<[1], [0], [0], [1], [0, 0, 1, 1], [], []>} : vector<8x32xf32>, vector<32x82xf32>, vector<8x82xf32> -> vector<8x82xf32>
    %225 = arith.addf %223, %224 : vector<8x82xf32>
    %226 = vector.broadcast %154 : vector<1x82xf32> to vector<8x82xf32>
    %227 = arith.addf %225, %226 : vector<8x82xf32>
    %cst_185 = arith.constant 5.000000e-01 : f32
    %228 = vector.broadcast %cst_185 : f32 to vector<8x82xf32>
    %229 = arith.mulf %228, %227 : vector<8x82xf32>
    %230 = math.tanh %229 : vector<8x82xf32>
    %cst_186 = arith.constant 5.000000e-01 : f32
    %231 = vector.broadcast %cst_186 : f32 to vector<8x82xf32>
    %232 = arith.mulf %231, %230 : vector<8x82xf32>
    %cst_187 = arith.constant 5.000000e-01 : f32
    %233 = vector.broadcast %cst_187 : f32 to vector<8x82xf32>
    %234 = arith.addf %232, %233 : vector<8x82xf32>
    %235 = arith.mulf %227, %234 : vector<8x82xf32>
    %cst_188 = arith.constant dense<0.000000e+00> : vector<8x41xf32>
    %236 = tpu.matmul %235, %156, %cst_188 {dimension_numbers = #tpu.dot_dimension_numbers<[1], [0], [0], [1], [0, 0, 1, 1], [], []>} : vector<8x82xf32>, vector<82x41xf32>, vector<8x41xf32> -> vector<8x41xf32>
    %237 = vector.broadcast %158 : vector<1x41xf32> to vector<8x41xf32>
    %238 = arith.addf %236, %237 : vector<8x41xf32>
    %239 = vector.broadcast %2 : vector<8x1xf32> to vector<8x41xf32>
    %240 = arith.mulf %239, %238 : vector<8x41xf32>
    %241 = arith.addf %128, %240 : vector<8x41xf32>
    %c0_189 = arith.constant 0 : index
    %c2 = arith.constant 2 : index
    %c0_190 = arith.constant 0 : index
    %c0_191 = arith.constant 0 : index
    %242 = vector.load %arg7[%c0_189, %c2, %c0_190, %c0_191] : memref<1x4x41x166xf32, #tpu.memory_space<vmem>>, vector<1x1x41x166xf32>
    %243 = vector.shape_cast %242 : vector<1x1x41x166xf32> to vector<41x166xf32>
    %c0_192 = arith.constant 0 : index
    %c2_193 = arith.constant 2 : index
    %c0_194 = arith.constant 0 : index
    %c0_195 = arith.constant 0 : index
    %244 = vector.load %arg8[%c0_192, %c2_193, %c0_194, %c0_195] : memref<1x4x41x166xf32, #tpu.memory_space<vmem>>, vector<1x1x41x166xf32>
    %245 = vector.shape_cast %244 : vector<1x1x41x166xf32> to vector<41x166xf32>
    %c0_196 = arith.constant 0 : index
    %c2_197 = arith.constant 2 : index
    %c0_198 = arith.constant 0 : index
    %c0_199 = arith.constant 0 : index
    %246 = vector.load %arg9[%c0_196, %c2_197, %c0_198, %c0_199] : memref<1x4x1x166xf32, #tpu.memory_space<vmem>>, vector<1x1x1x166xf32>
    %247 = vector.shape_cast %246 : vector<1x1x1x166xf32> to vector<1x166xf32>
    %c0_200 = arith.constant 0 : index
    %c2_201 = arith.constant 2 : index
    %c0_202 = arith.constant 0 : index
    %c0_203 = arith.constant 0 : index
    %248 = vector.load %arg10[%c0_200, %c2_201, %c0_202, %c0_203] : memref<1x4x1x166xf32, #tpu.memory_space<vmem>>, vector<1x1x1x166xf32>
    %249 = vector.shape_cast %248 : vector<1x1x1x166xf32> to vector<1x166xf32>
    %c0_204 = arith.constant 0 : index
    %c2_205 = arith.constant 2 : index
    %c0_206 = arith.constant 0 : index
    %c0_207 = arith.constant 0 : index
    %250 = vector.load %arg11[%c0_204, %c2_205, %c0_206, %c0_207] : memref<1x4x166x32xf32, #tpu.memory_space<vmem>>, vector<1x1x166x32xf32>
    %251 = vector.shape_cast %250 : vector<1x1x166x32xf32> to vector<166x32xf32>
    %c0_208 = arith.constant 0 : index
    %c2_209 = arith.constant 2 : index
    %c0_210 = arith.constant 0 : index
    %c0_211 = arith.constant 0 : index
    %252 = vector.load %arg12[%c0_208, %c2_209, %c0_210, %c0_211] : memref<1x4x1x32xf32, #tpu.memory_space<vmem>>, vector<1x1x1x32xf32>
    %253 = vector.shape_cast %252 : vector<1x1x1x32xf32> to vector<1x32xf32>
    %c0_212 = arith.constant 0 : index
    %c2_213 = arith.constant 2 : index
    %c0_214 = arith.constant 0 : index
    %c0_215 = arith.constant 0 : index
    %254 = vector.load %arg13[%c0_212, %c2_213, %c0_214, %c0_215] : memref<1x4x32x128xf32, #tpu.memory_space<vmem>>, vector<1x1x32x128xf32>
    %255 = vector.shape_cast %254 : vector<1x1x32x128xf32> to vector<32x128xf32>
    %c0_216 = arith.constant 0 : index
    %c2_217 = arith.constant 2 : index
    %c0_218 = arith.constant 0 : index
    %c0_219 = arith.constant 0 : index
    %256 = vector.load %arg14[%c0_216, %c2_217, %c0_218, %c0_219] : memref<1x4x1x128xf32, #tpu.memory_space<vmem>>, vector<1x1x1x128xf32>
    %257 = vector.shape_cast %256 : vector<1x1x1x128xf32> to vector<1x128xf32>
    %c0_220 = arith.constant 0 : index
    %c2_221 = arith.constant 2 : index
    %c0_222 = arith.constant 0 : index
    %c0_223 = arith.constant 0 : index
    %258 = vector.load %arg15[%c0_220, %c2_221, %c0_222, %c0_223] : memref<1x4x128x1xf32, #tpu.memory_space<vmem>>, vector<1x1x128x1xf32>
    %259 = vector.shape_cast %258 : vector<1x1x128x1xf32> to vector<128x1xf32>
    %c0_224 = arith.constant 0 : index
    %c2_225 = arith.constant 2 : index
    %c0_226 = arith.constant 0 : index
    %c0_227 = arith.constant 0 : index
    %260 = vector.load %arg16[%c0_224, %c2_225, %c0_226, %c0_227] : memref<1x4x1x1xf32, #tpu.memory_space<vmem>>, vector<1x1x1x1xf32>
    %261 = vector.shape_cast %260 : vector<1x1x1x1xf32> to vector<1x1xf32>
    %c0_228 = arith.constant 0 : index
    %c2_229 = arith.constant 2 : index
    %c0_230 = arith.constant 0 : index
    %c0_231 = arith.constant 0 : index
    %262 = vector.load %arg17[%c0_228, %c2_229, %c0_230, %c0_231] : memref<1x4x41x82xf32, #tpu.memory_space<vmem>>, vector<1x1x41x82xf32>
    %263 = vector.shape_cast %262 : vector<1x1x41x82xf32> to vector<41x82xf32>
    %c0_232 = arith.constant 0 : index
    %c2_233 = arith.constant 2 : index
    %c0_234 = arith.constant 0 : index
    %c0_235 = arith.constant 0 : index
    %264 = vector.load %arg18[%c0_232, %c2_233, %c0_234, %c0_235] : memref<1x4x32x82xf32, #tpu.memory_space<vmem>>, vector<1x1x32x82xf32>
    %265 = vector.shape_cast %264 : vector<1x1x32x82xf32> to vector<32x82xf32>
    %c0_236 = arith.constant 0 : index
    %c2_237 = arith.constant 2 : index
    %c0_238 = arith.constant 0 : index
    %c0_239 = arith.constant 0 : index
    %266 = vector.load %arg19[%c0_236, %c2_237, %c0_238, %c0_239] : memref<1x4x1x82xf32, #tpu.memory_space<vmem>>, vector<1x1x1x82xf32>
    %267 = vector.shape_cast %266 : vector<1x1x1x82xf32> to vector<1x82xf32>
    %c0_240 = arith.constant 0 : index
    %c2_241 = arith.constant 2 : index
    %c0_242 = arith.constant 0 : index
    %c0_243 = arith.constant 0 : index
    %268 = vector.load %arg20[%c0_240, %c2_241, %c0_242, %c0_243] : memref<1x4x82x41xf32, #tpu.memory_space<vmem>>, vector<1x1x82x41xf32>
    %269 = vector.shape_cast %268 : vector<1x1x82x41xf32> to vector<82x41xf32>
    %c0_244 = arith.constant 0 : index
    %c2_245 = arith.constant 2 : index
    %c0_246 = arith.constant 0 : index
    %c0_247 = arith.constant 0 : index
    %270 = vector.load %arg21[%c0_244, %c2_245, %c0_246, %c0_247] : memref<1x4x1x41xf32, #tpu.memory_space<vmem>>, vector<1x1x1x41xf32>
    %271 = vector.shape_cast %270 : vector<1x1x1x41xf32> to vector<1x41xf32>
    %cst_248 = arith.constant dense<0.000000e+00> : vector<64x3xf32>
    %272 = tpu.matmul %3, %217, %cst_248 {dimension_numbers = #tpu.dot_dimension_numbers<[1], [0], [0], [1], [0, 0, 1, 1], [], []>} : vector<64x8xf32>, vector<8x3xf32>, vector<64x3xf32> -> vector<64x3xf32>
    %cst_249 = arith.constant dense<0.000000e+00> : vector<64x3xf32>
    %273 = tpu.matmul %4, %217, %cst_249 {dimension_numbers = #tpu.dot_dimension_numbers<[1], [0], [0], [1], [0, 0, 1, 1], [], []>} : vector<64x8xf32>, vector<8x3xf32>, vector<64x3xf32> -> vector<64x3xf32>
    %274 = arith.subf %272, %273 : vector<64x3xf32>
    %275 = arith.mulf %274, %274 : vector<64x3xf32>
    %cst_250 = arith.constant dense<0.000000e+00> : vector<64xf32>
    %276 = vector.multi_reduction <add>, %275, %cst_250 [1] : vector<64x3xf32> to vector<64xf32>
    %277 = vector.shape_cast %276 : vector<64xf32> to vector<64x1xf32>
    %cst_251 = arith.constant dense<0.000000e+00> : vector<8x166xf32>
    %278 = tpu.matmul %241, %243, %cst_251 {dimension_numbers = #tpu.dot_dimension_numbers<[1], [0], [0], [1], [0, 0, 1, 1], [], []>} : vector<8x41xf32>, vector<41x166xf32>, vector<8x166xf32> -> vector<8x166xf32>
    %cst_252 = arith.constant dense<0.000000e+00> : vector<8x166xf32>
    %279 = tpu.matmul %241, %245, %cst_252 {dimension_numbers = #tpu.dot_dimension_numbers<[1], [0], [0], [1], [0, 0, 1, 1], [], []>} : vector<8x41xf32>, vector<41x166xf32>, vector<8x166xf32> -> vector<8x166xf32>
    %cst_253 = arith.constant dense<0.000000e+00> : vector<64x166xf32>
    %280 = tpu.matmul %3, %278, %cst_253 {dimension_numbers = #tpu.dot_dimension_numbers<[1], [0], [0], [1], [0, 0, 1, 1], [], []>} : vector<64x8xf32>, vector<8x166xf32>, vector<64x166xf32> -> vector<64x166xf32>
    %cst_254 = arith.constant dense<0.000000e+00> : vector<64x166xf32>
    %281 = tpu.matmul %4, %279, %cst_254 {dimension_numbers = #tpu.dot_dimension_numbers<[1], [0], [0], [1], [0, 0, 1, 1], [], []>} : vector<64x8xf32>, vector<8x166xf32>, vector<64x166xf32> -> vector<64x166xf32>
    %282 = arith.addf %280, %281 : vector<64x166xf32>
    %283 = vector.broadcast %277 : vector<64x1xf32> to vector<64x166xf32>
    %284 = vector.broadcast %247 : vector<1x166xf32> to vector<64x166xf32>
    %285 = arith.mulf %283, %284 : vector<64x166xf32>
    %286 = arith.addf %282, %285 : vector<64x166xf32>
    %287 = vector.broadcast %249 : vector<1x166xf32> to vector<64x166xf32>
    %288 = arith.addf %286, %287 : vector<64x166xf32>
    %cst_255 = arith.constant 5.000000e-01 : f32
    %289 = vector.broadcast %cst_255 : f32 to vector<64x166xf32>
    %290 = arith.mulf %289, %288 : vector<64x166xf32>
    %291 = math.tanh %290 : vector<64x166xf32>
    %cst_256 = arith.constant 5.000000e-01 : f32
    %292 = vector.broadcast %cst_256 : f32 to vector<64x166xf32>
    %293 = arith.mulf %292, %291 : vector<64x166xf32>
    %cst_257 = arith.constant 5.000000e-01 : f32
    %294 = vector.broadcast %cst_257 : f32 to vector<64x166xf32>
    %295 = arith.addf %293, %294 : vector<64x166xf32>
    %296 = arith.mulf %288, %295 : vector<64x166xf32>
    %cst_258 = arith.constant dense<0.000000e+00> : vector<64x32xf32>
    %297 = tpu.matmul %296, %251, %cst_258 {dimension_numbers = #tpu.dot_dimension_numbers<[1], [0], [0], [1], [0, 0, 1, 1], [], []>} : vector<64x166xf32>, vector<166x32xf32>, vector<64x32xf32> -> vector<64x32xf32>
    %298 = vector.broadcast %253 : vector<1x32xf32> to vector<64x32xf32>
    %299 = arith.addf %297, %298 : vector<64x32xf32>
    %cst_259 = arith.constant 5.000000e-01 : f32
    %300 = vector.broadcast %cst_259 : f32 to vector<64x32xf32>
    %301 = arith.mulf %300, %299 : vector<64x32xf32>
    %302 = math.tanh %301 : vector<64x32xf32>
    %cst_260 = arith.constant 5.000000e-01 : f32
    %303 = vector.broadcast %cst_260 : f32 to vector<64x32xf32>
    %304 = arith.mulf %303, %302 : vector<64x32xf32>
    %cst_261 = arith.constant 5.000000e-01 : f32
    %305 = vector.broadcast %cst_261 : f32 to vector<64x32xf32>
    %306 = arith.addf %304, %305 : vector<64x32xf32>
    %307 = arith.mulf %299, %306 : vector<64x32xf32>
    %cst_262 = arith.constant dense<0.000000e+00> : vector<64x128xf32>
    %308 = tpu.matmul %307, %255, %cst_262 {dimension_numbers = #tpu.dot_dimension_numbers<[1], [0], [0], [1], [0, 0, 1, 1], [], []>} : vector<64x32xf32>, vector<32x128xf32>, vector<64x128xf32> -> vector<64x128xf32>
    %309 = vector.broadcast %257 : vector<1x128xf32> to vector<64x128xf32>
    %310 = arith.addf %308, %309 : vector<64x128xf32>
    %cst_263 = arith.constant 5.000000e-01 : f32
    %311 = vector.broadcast %cst_263 : f32 to vector<64x128xf32>
    %312 = arith.mulf %311, %310 : vector<64x128xf32>
    %313 = math.tanh %312 : vector<64x128xf32>
    %cst_264 = arith.constant 5.000000e-01 : f32
    %314 = vector.broadcast %cst_264 : f32 to vector<64x128xf32>
    %315 = arith.mulf %314, %313 : vector<64x128xf32>
    %cst_265 = arith.constant 5.000000e-01 : f32
    %316 = vector.broadcast %cst_265 : f32 to vector<64x128xf32>
    %317 = arith.addf %315, %316 : vector<64x128xf32>
    %318 = arith.mulf %310, %317 : vector<64x128xf32>
    %cst_266 = arith.constant dense<0.000000e+00> : vector<64x1xf32>
    %319 = tpu.matmul %318, %259, %cst_266 {dimension_numbers = #tpu.dot_dimension_numbers<[1], [0], [0], [1], [0, 0, 1, 1], [], []>} : vector<64x128xf32>, vector<128x1xf32>, vector<64x1xf32> -> vector<64x1xf32>
    %320 = vector.broadcast %261 : vector<1x1xf32> to vector<64x1xf32>
    %321 = arith.addf %319, %320 : vector<64x1xf32>
    %322 = arith.mulf %15, %321 : vector<64x1xf32>
    %cst_267 = arith.constant 9.99999993E-9 : f32
    %323 = vector.broadcast %cst_267 : f32 to vector<64x1xf32>
    %324 = arith.maximumf %277, %323 : vector<64x1xf32>
    %325 = vector.broadcast %324 : vector<64x1xf32> to vector<64x3xf32>
    %326 = arith.divf %274, %325 : vector<64x3xf32>
    %327 = vector.broadcast %322 : vector<64x1xf32> to vector<64x3xf32>
    %328 = arith.mulf %327, %326 : vector<64x3xf32>
    %cst_268 = arith.constant dense<0.000000e+00> : vector<8x3xf32>
    %329 = tpu.matmul %5, %328, %cst_268 {dimension_numbers = #tpu.dot_dimension_numbers<[1], [0], [0], [1], [0, 0, 1, 1], [], []>} : vector<8x64xf32>, vector<64x3xf32>, vector<8x3xf32> -> vector<8x3xf32>
    %330 = arith.addf %217, %329 : vector<8x3xf32>
    %331 = vector.broadcast %15 : vector<64x1xf32> to vector<64x32xf32>
    %332 = arith.mulf %331, %307 : vector<64x32xf32>
    %cst_269 = arith.constant dense<0.000000e+00> : vector<8x32xf32>
    %333 = tpu.matmul %5, %332, %cst_269 {dimension_numbers = #tpu.dot_dimension_numbers<[1], [0], [0], [1], [0, 0, 1, 1], [], []>} : vector<8x64xf32>, vector<64x32xf32>, vector<8x32xf32> -> vector<8x32xf32>
    %334 = vector.broadcast %12 : vector<1x1xf32> to vector<8x32xf32>
    %335 = arith.mulf %333, %334 : vector<8x32xf32>
    %cst_270 = arith.constant dense<0.000000e+00> : vector<8x82xf32>
    %336 = tpu.matmul %241, %263, %cst_270 {dimension_numbers = #tpu.dot_dimension_numbers<[1], [0], [0], [1], [0, 0, 1, 1], [], []>} : vector<8x41xf32>, vector<41x82xf32>, vector<8x82xf32> -> vector<8x82xf32>
    %cst_271 = arith.constant dense<0.000000e+00> : vector<8x82xf32>
    %337 = tpu.matmul %335, %265, %cst_271 {dimension_numbers = #tpu.dot_dimension_numbers<[1], [0], [0], [1], [0, 0, 1, 1], [], []>} : vector<8x32xf32>, vector<32x82xf32>, vector<8x82xf32> -> vector<8x82xf32>
    %338 = arith.addf %336, %337 : vector<8x82xf32>
    %339 = vector.broadcast %267 : vector<1x82xf32> to vector<8x82xf32>
    %340 = arith.addf %338, %339 : vector<8x82xf32>
    %cst_272 = arith.constant 5.000000e-01 : f32
    %341 = vector.broadcast %cst_272 : f32 to vector<8x82xf32>
    %342 = arith.mulf %341, %340 : vector<8x82xf32>
    %343 = math.tanh %342 : vector<8x82xf32>
    %cst_273 = arith.constant 5.000000e-01 : f32
    %344 = vector.broadcast %cst_273 : f32 to vector<8x82xf32>
    %345 = arith.mulf %344, %343 : vector<8x82xf32>
    %cst_274 = arith.constant 5.000000e-01 : f32
    %346 = vector.broadcast %cst_274 : f32 to vector<8x82xf32>
    %347 = arith.addf %345, %346 : vector<8x82xf32>
    %348 = arith.mulf %340, %347 : vector<8x82xf32>
    %cst_275 = arith.constant dense<0.000000e+00> : vector<8x41xf32>
    %349 = tpu.matmul %348, %269, %cst_275 {dimension_numbers = #tpu.dot_dimension_numbers<[1], [0], [0], [1], [0, 0, 1, 1], [], []>} : vector<8x82xf32>, vector<82x41xf32>, vector<8x41xf32> -> vector<8x41xf32>
    %350 = vector.broadcast %271 : vector<1x41xf32> to vector<8x41xf32>
    %351 = arith.addf %349, %350 : vector<8x41xf32>
    %352 = vector.broadcast %2 : vector<8x1xf32> to vector<8x41xf32>
    %353 = arith.mulf %352, %351 : vector<8x41xf32>
    %354 = arith.addf %241, %353 : vector<8x41xf32>
    %c0_276 = arith.constant 0 : index
    %c3 = arith.constant 3 : index
    %c0_277 = arith.constant 0 : index
    %c0_278 = arith.constant 0 : index
    %355 = vector.load %arg7[%c0_276, %c3, %c0_277, %c0_278] : memref<1x4x41x166xf32, #tpu.memory_space<vmem>>, vector<1x1x41x166xf32>
    %356 = vector.shape_cast %355 : vector<1x1x41x166xf32> to vector<41x166xf32>
    %c0_279 = arith.constant 0 : index
    %c3_280 = arith.constant 3 : index
    %c0_281 = arith.constant 0 : index
    %c0_282 = arith.constant 0 : index
    %357 = vector.load %arg8[%c0_279, %c3_280, %c0_281, %c0_282] : memref<1x4x41x166xf32, #tpu.memory_space<vmem>>, vector<1x1x41x166xf32>
    %358 = vector.shape_cast %357 : vector<1x1x41x166xf32> to vector<41x166xf32>
    %c0_283 = arith.constant 0 : index
    %c3_284 = arith.constant 3 : index
    %c0_285 = arith.constant 0 : index
    %c0_286 = arith.constant 0 : index
    %359 = vector.load %arg9[%c0_283, %c3_284, %c0_285, %c0_286] : memref<1x4x1x166xf32, #tpu.memory_space<vmem>>, vector<1x1x1x166xf32>
    %360 = vector.shape_cast %359 : vector<1x1x1x166xf32> to vector<1x166xf32>
    %c0_287 = arith.constant 0 : index
    %c3_288 = arith.constant 3 : index
    %c0_289 = arith.constant 0 : index
    %c0_290 = arith.constant 0 : index
    %361 = vector.load %arg10[%c0_287, %c3_288, %c0_289, %c0_290] : memref<1x4x1x166xf32, #tpu.memory_space<vmem>>, vector<1x1x1x166xf32>
    %362 = vector.shape_cast %361 : vector<1x1x1x166xf32> to vector<1x166xf32>
    %c0_291 = arith.constant 0 : index
    %c3_292 = arith.constant 3 : index
    %c0_293 = arith.constant 0 : index
    %c0_294 = arith.constant 0 : index
    %363 = vector.load %arg11[%c0_291, %c3_292, %c0_293, %c0_294] : memref<1x4x166x32xf32, #tpu.memory_space<vmem>>, vector<1x1x166x32xf32>
    %364 = vector.shape_cast %363 : vector<1x1x166x32xf32> to vector<166x32xf32>
    %c0_295 = arith.constant 0 : index
    %c3_296 = arith.constant 3 : index
    %c0_297 = arith.constant 0 : index
    %c0_298 = arith.constant 0 : index
    %365 = vector.load %arg12[%c0_295, %c3_296, %c0_297, %c0_298] : memref<1x4x1x32xf32, #tpu.memory_space<vmem>>, vector<1x1x1x32xf32>
    %366 = vector.shape_cast %365 : vector<1x1x1x32xf32> to vector<1x32xf32>
    %c0_299 = arith.constant 0 : index
    %c3_300 = arith.constant 3 : index
    %c0_301 = arith.constant 0 : index
    %c0_302 = arith.constant 0 : index
    %367 = vector.load %arg13[%c0_299, %c3_300, %c0_301, %c0_302] : memref<1x4x32x128xf32, #tpu.memory_space<vmem>>, vector<1x1x32x128xf32>
    %368 = vector.shape_cast %367 : vector<1x1x32x128xf32> to vector<32x128xf32>
    %c0_303 = arith.constant 0 : index
    %c3_304 = arith.constant 3 : index
    %c0_305 = arith.constant 0 : index
    %c0_306 = arith.constant 0 : index
    %369 = vector.load %arg14[%c0_303, %c3_304, %c0_305, %c0_306] : memref<1x4x1x128xf32, #tpu.memory_space<vmem>>, vector<1x1x1x128xf32>
    %370 = vector.shape_cast %369 : vector<1x1x1x128xf32> to vector<1x128xf32>
    %c0_307 = arith.constant 0 : index
    %c3_308 = arith.constant 3 : index
    %c0_309 = arith.constant 0 : index
    %c0_310 = arith.constant 0 : index
    %371 = vector.load %arg15[%c0_307, %c3_308, %c0_309, %c0_310] : memref<1x4x128x1xf32, #tpu.memory_space<vmem>>, vector<1x1x128x1xf32>
    %372 = vector.shape_cast %371 : vector<1x1x128x1xf32> to vector<128x1xf32>
    %c0_311 = arith.constant 0 : index
    %c3_312 = arith.constant 3 : index
    %c0_313 = arith.constant 0 : index
    %c0_314 = arith.constant 0 : index
    %373 = vector.load %arg16[%c0_311, %c3_312, %c0_313, %c0_314] : memref<1x4x1x1xf32, #tpu.memory_space<vmem>>, vector<1x1x1x1xf32>
    %374 = vector.shape_cast %373 : vector<1x1x1x1xf32> to vector<1x1xf32>
    %cst_315 = arith.constant dense<0.000000e+00> : vector<64x3xf32>
    %375 = tpu.matmul %3, %330, %cst_315 {dimension_numbers = #tpu.dot_dimension_numbers<[1], [0], [0], [1], [0, 0, 1, 1], [], []>} : vector<64x8xf32>, vector<8x3xf32>, vector<64x3xf32> -> vector<64x3xf32>
    %cst_316 = arith.constant dense<0.000000e+00> : vector<64x3xf32>
    %376 = tpu.matmul %4, %330, %cst_316 {dimension_numbers = #tpu.dot_dimension_numbers<[1], [0], [0], [1], [0, 0, 1, 1], [], []>} : vector<64x8xf32>, vector<8x3xf32>, vector<64x3xf32> -> vector<64x3xf32>
    %377 = arith.subf %375, %376 : vector<64x3xf32>
    %378 = arith.mulf %377, %377 : vector<64x3xf32>
    %cst_317 = arith.constant dense<0.000000e+00> : vector<64xf32>
    %379 = vector.multi_reduction <add>, %378, %cst_317 [1] : vector<64x3xf32> to vector<64xf32>
    %380 = vector.shape_cast %379 : vector<64xf32> to vector<64x1xf32>
    %cst_318 = arith.constant dense<0.000000e+00> : vector<8x166xf32>
    %381 = tpu.matmul %354, %356, %cst_318 {dimension_numbers = #tpu.dot_dimension_numbers<[1], [0], [0], [1], [0, 0, 1, 1], [], []>} : vector<8x41xf32>, vector<41x166xf32>, vector<8x166xf32> -> vector<8x166xf32>
    %cst_319 = arith.constant dense<0.000000e+00> : vector<8x166xf32>
    %382 = tpu.matmul %354, %358, %cst_319 {dimension_numbers = #tpu.dot_dimension_numbers<[1], [0], [0], [1], [0, 0, 1, 1], [], []>} : vector<8x41xf32>, vector<41x166xf32>, vector<8x166xf32> -> vector<8x166xf32>
    %cst_320 = arith.constant dense<0.000000e+00> : vector<64x166xf32>
    %383 = tpu.matmul %3, %381, %cst_320 {dimension_numbers = #tpu.dot_dimension_numbers<[1], [0], [0], [1], [0, 0, 1, 1], [], []>} : vector<64x8xf32>, vector<8x166xf32>, vector<64x166xf32> -> vector<64x166xf32>
    %cst_321 = arith.constant dense<0.000000e+00> : vector<64x166xf32>
    %384 = tpu.matmul %4, %382, %cst_321 {dimension_numbers = #tpu.dot_dimension_numbers<[1], [0], [0], [1], [0, 0, 1, 1], [], []>} : vector<64x8xf32>, vector<8x166xf32>, vector<64x166xf32> -> vector<64x166xf32>
    %385 = arith.addf %383, %384 : vector<64x166xf32>
    %386 = vector.broadcast %380 : vector<64x1xf32> to vector<64x166xf32>
    %387 = vector.broadcast %360 : vector<1x166xf32> to vector<64x166xf32>
    %388 = arith.mulf %386, %387 : vector<64x166xf32>
    %389 = arith.addf %385, %388 : vector<64x166xf32>
    %390 = vector.broadcast %362 : vector<1x166xf32> to vector<64x166xf32>
    %391 = arith.addf %389, %390 : vector<64x166xf32>
    %cst_322 = arith.constant 5.000000e-01 : f32
    %392 = vector.broadcast %cst_322 : f32 to vector<64x166xf32>
    %393 = arith.mulf %392, %391 : vector<64x166xf32>
    %394 = math.tanh %393 : vector<64x166xf32>
    %cst_323 = arith.constant 5.000000e-01 : f32
    %395 = vector.broadcast %cst_323 : f32 to vector<64x166xf32>
    %396 = arith.mulf %395, %394 : vector<64x166xf32>
    %cst_324 = arith.constant 5.000000e-01 : f32
    %397 = vector.broadcast %cst_324 : f32 to vector<64x166xf32>
    %398 = arith.addf %396, %397 : vector<64x166xf32>
    %399 = arith.mulf %391, %398 : vector<64x166xf32>
    %cst_325 = arith.constant dense<0.000000e+00> : vector<64x32xf32>
    %400 = tpu.matmul %399, %364, %cst_325 {dimension_numbers = #tpu.dot_dimension_numbers<[1], [0], [0], [1], [0, 0, 1, 1], [], []>} : vector<64x166xf32>, vector<166x32xf32>, vector<64x32xf32> -> vector<64x32xf32>
    %401 = vector.broadcast %366 : vector<1x32xf32> to vector<64x32xf32>
    %402 = arith.addf %400, %401 : vector<64x32xf32>
    %cst_326 = arith.constant 5.000000e-01 : f32
    %403 = vector.broadcast %cst_326 : f32 to vector<64x32xf32>
    %404 = arith.mulf %403, %402 : vector<64x32xf32>
    %405 = math.tanh %404 : vector<64x32xf32>
    %cst_327 = arith.constant 5.000000e-01 : f32
    %406 = vector.broadcast %cst_327 : f32 to vector<64x32xf32>
    %407 = arith.mulf %406, %405 : vector<64x32xf32>
    %cst_328 = arith.constant 5.000000e-01 : f32
    %408 = vector.broadcast %cst_328 : f32 to vector<64x32xf32>
    %409 = arith.addf %407, %408 : vector<64x32xf32>
    %410 = arith.mulf %402, %409 : vector<64x32xf32>
    %cst_329 = arith.constant dense<0.000000e+00> : vector<64x128xf32>
    %411 = tpu.matmul %410, %368, %cst_329 {dimension_numbers = #tpu.dot_dimension_numbers<[1], [0], [0], [1], [0, 0, 1, 1], [], []>} : vector<64x32xf32>, vector<32x128xf32>, vector<64x128xf32> -> vector<64x128xf32>
    %412 = vector.broadcast %370 : vector<1x128xf32> to vector<64x128xf32>
    %413 = arith.addf %411, %412 : vector<64x128xf32>
    %cst_330 = arith.constant 5.000000e-01 : f32
    %414 = vector.broadcast %cst_330 : f32 to vector<64x128xf32>
    %415 = arith.mulf %414, %413 : vector<64x128xf32>
    %416 = math.tanh %415 : vector<64x128xf32>
    %cst_331 = arith.constant 5.000000e-01 : f32
    %417 = vector.broadcast %cst_331 : f32 to vector<64x128xf32>
    %418 = arith.mulf %417, %416 : vector<64x128xf32>
    %cst_332 = arith.constant 5.000000e-01 : f32
    %419 = vector.broadcast %cst_332 : f32 to vector<64x128xf32>
    %420 = arith.addf %418, %419 : vector<64x128xf32>
    %421 = arith.mulf %413, %420 : vector<64x128xf32>
    %cst_333 = arith.constant dense<0.000000e+00> : vector<64x1xf32>
    %422 = tpu.matmul %421, %372, %cst_333 {dimension_numbers = #tpu.dot_dimension_numbers<[1], [0], [0], [1], [0, 0, 1, 1], [], []>} : vector<64x128xf32>, vector<128x1xf32>, vector<64x1xf32> -> vector<64x1xf32>
    %423 = vector.broadcast %374 : vector<1x1xf32> to vector<64x1xf32>
    %424 = arith.addf %422, %423 : vector<64x1xf32>
    %425 = arith.mulf %15, %424 : vector<64x1xf32>
    %cst_334 = arith.constant 9.99999993E-9 : f32
    %426 = vector.broadcast %cst_334 : f32 to vector<64x1xf32>
    %427 = arith.maximumf %380, %426 : vector<64x1xf32>
    %428 = vector.broadcast %427 : vector<64x1xf32> to vector<64x3xf32>
    %429 = arith.divf %377, %428 : vector<64x3xf32>
    %430 = vector.broadcast %425 : vector<64x1xf32> to vector<64x3xf32>
    %431 = arith.mulf %430, %429 : vector<64x3xf32>
    %cst_335 = arith.constant dense<0.000000e+00> : vector<8x3xf32>
    %432 = tpu.matmul %5, %431, %cst_335 {dimension_numbers = #tpu.dot_dimension_numbers<[1], [0], [0], [1], [0, 0, 1, 1], [], []>} : vector<8x64xf32>, vector<64x3xf32>, vector<8x3xf32> -> vector<8x3xf32>
    %433 = arith.addf %330, %432 : vector<8x3xf32>
    %c0_336 = arith.constant 0 : index
    %c0_337 = arith.constant 0 : index
    %c0_338 = arith.constant 0 : index
    %434 = vector.load %arg22[%c0_336, %c0_337, %c0_338] : memref<1x8x3xf32, #tpu.memory_space<vmem>>, vector<1x8x3xf32>
    %435 = vector.shape_cast %434 : vector<1x8x3xf32> to vector<8x3xf32>
    %436 = vector.shape_cast %433 : vector<8x3xf32> to vector<1x8x3xf32>
    tpu.vector_store %arg22[%c0_336, %c0_337, %c0_338], %436 {strides = array<i32>} : memref<1x8x3xf32, #tpu.memory_space<vmem>>, vector<1x8x3xf32>,
    return
  }
  func.func @transform_0(%arg0: i32) -> (i32, i32) {
    %c0_i32 = arith.constant 0 : i32
    %c0_i32_0 = arith.constant 0 : i32
    %c0_i32_1 = arith.constant 0 : i32
    return %c0_i32, %c0_i32_0 : i32, i32
  }
  func.func @transform_1(%arg0: i32) -> (i32, i32) {
    %c0_i32 = arith.constant 0 : i32
    %c0_i32_0 = arith.constant 0 : i32
    %c0_i32_1 = arith.constant 0 : i32
    return %c0_i32, %c0_i32_0 : i32, i32
  }
  func.func @transform_2(%arg0: i32) -> (i32, i32) {
    %c0_i32 = arith.constant 0 : i32
    %c0_i32_0 = arith.constant 0 : i32
    %c0_i32_1 = arith.constant 0 : i32
    return %c0_i32, %c0_i32_0 : i32, i32
  }
  func.func @transform_3(%arg0: i32) -> (i32, i32) {
    %c0_i32 = arith.constant 0 : i32
    %c0_i32_0 = arith.constant 0 : i32
    %c0_i32_1 = arith.constant 0 : i32
    return %c0_i32, %c0_i32_0 : i32, i32
  }
  func.func @transform_4(%arg0: i32) -> (i32, i32) {
    %c0_i32 = arith.constant 0 : i32
    %c0_i32_0 = arith.constant 0 : i32
    %c0_i32_1 = arith.constant 0 : i32
    return %c0_i32, %c0_i32_0 : i32, i32
  }
  func.func @transform_5(%arg0: i32) -> (i32, i32) {
    %c0_i32 = arith.constant 0 : i32
    %c0_i32_0 = arith.constant 0 : i32
    %c0_i32_1 = arith.constant 0 : i32
    return %c0_i32, %c0_i32_0 : i32, i32
  }
  func.func @transform_6(%arg0: i32) -> (i32, i32, i32, i32) {
    %c0_i32 = arith.constant 0 : i32
    %c0_i32_0 = arith.constant 0 : i32
    %c0_i32_1 = arith.constant 0 : i32
    %c0_i32_2 = arith.constant 0 : i32
    return %arg0, %c0_i32, %c0_i32_0, %c0_i32_1 : i32, i32, i32, i32
  }
  func.func @transform_7(%arg0: i32) -> (i32, i32, i32, i32) {
    %c0_i32 = arith.constant 0 : i32
    %c0_i32_0 = arith.constant 0 : i32
    %c0_i32_1 = arith.constant 0 : i32
    %c0_i32_2 = arith.constant 0 : i32
    return %arg0, %c0_i32, %c0_i32_0, %c0_i32_1 : i32, i32, i32, i32
  }
  func.func @transform_8(%arg0: i32) -> (i32, i32, i32, i32) {
    %c0_i32 = arith.constant 0 : i32
    %c0_i32_0 = arith.constant 0 : i32
    %c0_i32_1 = arith.constant 0 : i32
    %c0_i32_2 = arith.constant 0 : i32
    return %arg0, %c0_i32, %c0_i32_0, %c0_i32_1 : i32, i32, i32, i32
  }
  func.func @transform_9(%arg0: i32) -> (i32, i32, i32, i32) {
    %c0_i32 = arith.constant 0 : i32
    %c0_i32_0 = arith.constant 0 : i32
    %c0_i32_1 = arith.constant 0 : i32
    %c0_i32_2 = arith.constant 0 : i32
    return %arg0, %c0_i32, %c0_i32_0, %c0_i32_1 : i32, i32, i32, i32
  }
  func.func @transform_10(%arg0: i32) -> (i32, i32, i32, i32) {
    %c0_i32 = arith.constant 0 : i32
    %c0_i32_0 = arith.constant 0 : i32
    %c0_i32_1 = arith.constant 0 : i32
    %c0_i32_2 = arith.constant 0 : i32
    return %arg0, %c0_i32, %c0_i32_0, %c0_i32_1 : i32, i32, i32, i32
  }
  func.func @transform_11(%arg0: i32) -> (i32, i32, i32, i32) {
    %c0_i32 = arith.constant 0 : i32
    %c0_i32_0 = arith.constant 0 : i32
    %c0_i32_1 = arith.constant 0 : i32
    %c0_i32_2 = arith.constant 0 : i32
    return %arg0, %c0_i32, %c0_i32_0, %c0_i32_1 : i32, i32, i32, i32
  }
  func.func @transform_12(%arg0: i32) -> (i32, i32, i32, i32) {
    %c0_i32 = arith.constant 0 : i32
    %c0_i32_0 = arith.constant 0 : i32
    %c0_i32_1 = arith.constant 0 : i32
    %c0_i32_2 = arith.constant 0 : i32
    return %arg0, %c0_i32, %c0_i32_0, %c0_i32_1 : i32, i32, i32, i32
  }
  func.func @transform_13(%arg0: i32) -> (i32, i32, i32, i32) {
    %c0_i32 = arith.constant 0 : i32
    %c0_i32_0 = arith.constant 0 : i32
    %c0_i32_1 = arith.constant 0 : i32
    %c0_i32_2 = arith.constant 0 : i32
    return %arg0, %c0_i32, %c0_i32_0, %c0_i32_1 : i32, i32, i32, i32
  }
  func.func @transform_14(%arg0: i32) -> (i32, i32, i32, i32) {
    %c0_i32 = arith.constant 0 : i32
    %c0_i32_0 = arith.constant 0 : i32
    %c0_i32_1 = arith.constant 0 : i32
    %c0_i32_2 = arith.constant 0 : i32
    return %arg0, %c0_i32, %c0_i32_0, %c0_i32_1 : i32, i32, i32, i32
  }
  func.func @transform_15(%arg0: i32) -> (i32, i32, i32, i32) {
    %c0_i32 = arith.constant 0 : i32
    %c0_i32_0 = arith.constant 0 : i32
    %c0_i32_1 = arith.constant 0 : i32
    %c0_i32_2 = arith.constant 0 : i32
    return %arg0, %c0_i32, %c0_i32_0, %c0_i32_1 : i32, i32, i32, i32
  }
  func.func @transform_16(%arg0: i32) -> (i32, i32, i32, i32) {
    %c0_i32 = arith.constant 0 : i32
    %c0_i32_0 = arith.constant 0 : i32
    %c0_i32_1 = arith.constant 0 : i32
    %c0_i32_2 = arith.constant 0 : i32
    return %arg0, %c0_i32, %c0_i32_0, %c0_i32_1 : i32, i32, i32, i32
  }
  func.func @transform_17(%arg0: i32) -> (i32, i32, i32, i32) {
    %c0_i32 = arith.constant 0 : i32
    %c0_i32_0 = arith.constant 0 : i32
    %c0_i32_1 = arith.constant 0 : i32
    %c0_i32_2 = arith.constant 0 : i32
    return %arg0, %c0_i32, %c0_i32_0, %c0_i32_1 : i32, i32, i32, i32
  }
  func.func @transform_18(%arg0: i32) -> (i32, i32, i32, i32) {
    %c0_i32 = arith.constant 0 : i32
    %c0_i32_0 = arith.constant 0 : i32
    %c0_i32_1 = arith.constant 0 : i32
    %c0_i32_2 = arith.constant 0 : i32
    return %arg0, %c0_i32, %c0_i32_0, %c0_i32_1 : i32, i32, i32, i32
  }
  func.func @transform_19(%arg0: i32) -> (i32, i32, i32, i32) {
    %c0_i32 = arith.constant 0 : i32
    %c0_i32_0 = arith.constant 0 : i32
    %c0_i32_1 = arith.constant 0 : i32
    %c0_i32_2 = arith.constant 0 : i32
    return %arg0, %c0_i32, %c0_i32_0, %c0_i32_1 : i32, i32, i32, i32
  }
  func.func @transform_20(%arg0: i32) -> (i32, i32, i32, i32) {
    %c0_i32 = arith.constant 0 : i32
    %c0_i32_0 = arith.constant 0 : i32
    %c0_i32_1 = arith.constant 0 : i32
    %c0_i32_2 = arith.constant 0 : i32
    return %arg0, %c0_i32, %c0_i32_0, %c0_i32_1 : i32, i32, i32, i32
  }
  func.func @transform_21(%arg0: i32) -> (i32, i32, i32) {
    %c0_i32 = arith.constant 0 : i32
    %c0_i32_0 = arith.constant 0 : i32
    %c0_i32_1 = arith.constant 0 : i32
    return %arg0, %c0_i32, %c0_i32_0 : i32, i32, i32
  }
}

</mosaic_0001>

<llo_original>
// kernel: mask_decoy_gen.1
$region0: #{mask_decoy_gen.1}
  #allocation0 [shape = 'u32[]', space=smem, size = 0x4, offset = 0x4, fixed_abs, tag = 'smem constant byte address 0x4 - core index']
  #allocation1 [shape = 'u32[144,128]{1,0:T(1,128)}', space=vmem, size = 0x12000, scoped, tag = 'internal scratch']
  %s0 = inlined_call_operand.vmem [shape: f32[8,41], index: 0, kind: input, shape index: {}]
  %s1 = inlined_call_operand.vmem [shape: f32[8,3], index: 1, kind: input, shape index: {}]
  %s2 = inlined_call_operand.vmem [shape: f32[8,1], index: 2, kind: input, shape index: {}]
  %s3 = inlined_call_operand.vmem [shape: f32[64,8], index: 3, kind: input, shape index: {}]
  %s4 = inlined_call_operand.vmem [shape: f32[64,8], index: 4, kind: input, shape index: {}]
  %s5 = inlined_call_operand.vmem [shape: f32[8,64], index: 5, kind: input, shape index: {}]
  %s6 = inlined_call_operand.vmem [shape: f32[5,4,41,166], index: 6, kind: input, shape index: {}]
  %s7 = inlined_call_operand.vmem [shape: f32[5,4,41,166], index: 7, kind: input, shape index: {}]
  %s8 = inlined_call_operand.vmem [shape: f32[5,4,1,166], index: 8, kind: input, shape index: {}]
  %s9 = inlined_call_operand.vmem [shape: f32[5,4,1,166], index: 9, kind: input, shape index: {}]
  %s10 = inlined_call_operand.vmem [shape: f32[5,4,166,32], index: 10, kind: input, shape index: {}]
  %s11 = inlined_call_operand.vmem [shape: f32[5,4,1,32], index: 11, kind: input, shape index: {}]
  %s12 = inlined_call_operand.vmem [shape: f32[5,4,32,128], index: 12, kind: input, shape index: {}]
  %s13 = inlined_call_operand.vmem [shape: f32[5,4,1,128], index: 13, kind: input, shape index: {}]
  %s14 = inlined_call_operand.vmem [shape: f32[5,4,128,1], index: 14, kind: input, shape index: {}]
  %s15 = inlined_call_operand.vmem [shape: f32[5,4,1,1], index: 15, kind: input, shape index: {}]
  %s16 = inlined_call_operand.vmem [shape: f32[5,4,41,82], index: 16, kind: input, shape index: {}]
  %s17 = inlined_call_operand.vmem [shape: f32[5,4,32,82], index: 17, kind: input, shape index: {}]
  %s18 = inlined_call_operand.vmem [shape: f32[5,4,1,82], index: 18, kind: input, shape index: {}]
  %s19 = inlined_call_operand.vmem [shape: f32[5,4,82,41], index: 19, kind: input, shape index: {}]
  %s20 = inlined_call_operand.vmem [shape: f32[5,4,1,41], index: 20, kind: input, shape index: {}]
  %s21 = inlined_call_operand.vmem [shape: f32[5,8,3], index: 21, kind: output, shape index: {}]
  %s22 = sld [smem:[#allocation0]]
  $region117: #{mask_decoy_gen.1} parent=0
    _
  %s24 = ssub.s32 1, %s22
  %s25 = scalar_select 0, %s24, %s22
  loop: start=0, step=1, limit=7
  $region2: #{mask_decoy_gen.1} parent=0 // loop_pre_header
    _
  $region3: #{mask_decoy_gen.1} parent=0 // loop_header
    %s27 = sphi 0, %s31
    %p28 = scmp.ge.s32.totalorder %s27, 7
    %s35 = sphi 0, %s35
    %s37 = sphi 0, %s35
    %s38 = sphi 0, %s37
    %s52 = sphi 0, %s38
    %s56 = sphi 0, %s56
    %s58 = sphi 0, %s56
    %s59 = sphi 0, %s58
    %s73 = sphi 0, %s59
    %s77 = sphi 0, %s77
    %s79 = sphi 0, %s77
    %s80 = sphi 0, %s79
    %s94 = sphi 0, %s80
    %s98 = sphi 0, %s98
    %s100 = sphi 0, %s98
    %s101 = sphi 0, %s100
    %s115 = sphi 0, %s101
    %s119 = sphi 0, %s119
    %s121 = sphi 0, %s119
    %s122 = sphi 0, %s121
    %s136 = sphi 0, %s122
    %s140 = sphi 0, %s140
    %s142 = sphi 0, %s140
    %s143 = sphi 0, %s142
    %s157 = sphi 0, %s143
    %s163 = sphi 0, %s165
    %s166 = sphi 0, %s163
    %s167 = sphi 0, %s166
    %s183 = sphi 0, %s167
    %s189 = sphi 0, %s191
    %s192 = sphi 0, %s189
    %s193 = sphi 0, %s192
    %s209 = sphi 0, %s193
    %s215 = sphi 0, %s217
    %s218 = sphi 0, %s215
    %s219 = sphi 0, %s218
    %s235 = sphi 0, %s219
    %s241 = sphi 0, %s243
    %s244 = sphi 0, %s241
    %s245 = sphi 0, %s244
    %s261 = sphi 0, %s245
    %s267 = sphi 0, %s269
    %s270 = sphi 0, %s267
    %s271 = sphi 0, %s270
    %s287 = sphi 0, %s271
    %s293 = sphi 0, %s295
    %s296 = sphi 0, %s293
    %s297 = sphi 0, %s296
    %s313 = sphi 0, %s297
    %s319 = sphi 0, %s321
    %s322 = sphi 0, %s319
    %s323 = sphi 0, %s322
    %s339 = sphi 0, %s323
    %s345 = sphi 0, %s347
    %s348 = sphi 0, %s345
    %s349 = sphi 0, %s348
    %s365 = sphi 0, %s349
    %s371 = sphi 0, %s373
    %s374 = sphi 0, %s371
    %s375 = sphi 0, %s374
    %s391 = sphi 0, %s375
    %s397 = sphi 0, %s399
    %s400 = sphi 0, %s397
    %s401 = sphi 0, %s400
    %s417 = sphi 0, %s401
    %s423 = sphi 0, %s425
    %s426 = sphi 0, %s423
    %s427 = sphi 0, %s426
    %s443 = sphi 0, %s427
    %s449 = sphi 0, %s451
    %s452 = sphi 0, %s449
    %s453 = sphi 0, %s452
    %s469 = sphi 0, %s453
    %s475 = sphi 0, %s477
    %s478 = sphi 0, %s475
    %s479 = sphi 0, %s478
    %s495 = sphi 0, %s479
    %s501 = sphi 0, %s503
    %s504 = sphi 0, %s501
    %s505 = sphi 0, %s504
    %s521 = sphi 0, %s505
    %s527 = sphi 0, %s529
    %s530 = sphi 0, %s527
    %s531 = sphi 0, %s530
    %s547 = sphi 0, %s531
    %s553 = sphi 0, %s555
    %s556 = sphi 0, %s553
    %s557 = sphi 0, %s556
    %s573 = sphi 0, %s557
  $region4: #{mask_decoy_gen.1} parent=0 // loop_header_branch
    %30 = sbr.rel (%p28) target = $region8
  $region5: #{mask_decoy_gen.1} parent=0 // loop_body
    %s32 = ssub.s32 %s27, 1
    %s33 = ssub.s32 %s27, 2
    %s34 = sadd.s32 %s27, 1
    %s36 = sadd.s32 %s35, 1
    %p39 = scmp.eq.s32.totalorder %s27, 4
    %p40 = scmp.ne.s32.totalorder %s35, %s37
    %p41 = scmp.eq.s32.totalorder %s27, 0
    %p42 = por %p40, %p41
    %p43 = scmp.ne.s32.totalorder %s35, %s37
    %p44 = scmp.eq.s32.totalorder %s32, 4
    %p45 = por %p43, %p44
    %p46 = scmp.ne.s32.totalorder %s37, %s38
    %p47 = scmp.eq.s32.totalorder %s32, 0
    %p48 = por %p46, %p47
    %p49 = scmp.ne.s32.totalorder %s37, %s38
    %p50 = scmp.eq.s32.totalorder %s33, 4
    %p51 = por %p49, %p50
    %p53 = scmp.ne.s32.totalorder %s38, %s52
    %p54 = scmp.eq.s32.totalorder %s33, 0
    %p55 = por %p53, %p54
    %s57 = sadd.s32 %s56, 1
    %p60 = scmp.eq.s32.totalorder %s27, 4
    %p61 = scmp.ne.s32.totalorder %s56, %s58
    %p62 = scmp.eq.s32.totalorder %s27, 0
    %p63 = por %p61, %p62
    %p64 = scmp.ne.s32.totalorder %s56, %s58
    %p65 = scmp.eq.s32.totalorder %s32, 4
    %p66 = por %p64, %p65
    %p67 = scmp.ne.s32.totalorder %s58, %s59
    %p68 = scmp.eq.s32.totalorder %s32, 0
    %p69 = por %p67, %p68
    %p70 = scmp.ne.s32.totalorder %s58, %s59
    %p71 = scmp.eq.s32.totalorder %s33, 4
    %p72 = por %p70, %p71
    %p74 = scmp.ne.s32.totalorder %s59, %s73
    %p75 = scmp.eq.s32.totalorder %s33, 0
    %p76 = por %p74, %p75
    %s78 = sadd.s32 %s77, 1
    %p81 = scmp.eq.s32.totalorder %s27, 4
    %p82 = scmp.ne.s32.totalorder %s77, %s79
    %p83 = scmp.eq.s32.totalorder %s27, 0
    %p84 = por %p82, %p83
    %p85 = scmp.ne.s32.totalorder %s77, %s79
    %p86 = scmp.eq.s32.totalorder %s32, 4
    %p87 = por %p85, %p86
    %p88 = scmp.ne.s32.totalorder %s79, %s80
    %p89 = scmp.eq.s32.totalorder %s32, 0
    %p90 = por %p88, %p89
    %p91 = scmp.ne.s32.totalorder %s79, %s80
    %p92 = scmp.eq.s32.totalorder %s33, 4
    %p93 = por %p91, %p92
    %p95 = scmp.ne.s32.totalorder %s80, %s94
    %p96 = scmp.eq.s32.totalorder %s33, 0
    %p97 = por %p95, %p96
    %s99 = sadd.s32 %s98, 1
    %p102 = scmp.eq.s32.totalorder %s27, 4
    %p103 = scmp.ne.s32.totalorder %s98, %s100
    %p104 = scmp.eq.s32.totalorder %s27, 0
    %p105 = por %p103, %p104
    %p106 = scmp.ne.s32.totalorder %s98, %s100
    %p107 = scmp.eq.s32.totalorder %s32, 4
    %p108 = por %p106, %p107
    %p109 = scmp.ne.s32.totalorder %s100, %s101
    %p110 = scmp.eq.s32.totalorder %s32, 0
    %p111 = por %p109, %p110
    %p112 = scmp.ne.s32.totalorder %s100, %s101
    %p113 = scmp.eq.s32.totalorder %s33, 4
    %p114 = por %p112, %p113
    %p116 = scmp.ne.s32.totalorder %s101, %s115
    %p117 = scmp.eq.s32.totalorder %s33, 0
    %p118 = por %p116, %p117
    %s120 = sadd.s32 %s119, 1
    %p123 = scmp.eq.s32.totalorder %s27, 4
    %p124 = scmp.ne.s32.totalorder %s119, %s121
    %p125 = scmp.eq.s32.totalorder %s27, 0
    %p126 = por %p124, %p125
    %p127 = scmp.ne.s32.totalorder %s119, %s121
    %p128 = scmp.eq.s32.totalorder %s32, 4
    %p129 = por %p127, %p128
    %p130 = scmp.ne.s32.totalorder %s121, %s122
    %p131 = scmp.eq.s32.totalorder %s32, 0
    %p132 = por %p130, %p131
    %p133 = scmp.ne.s32.totalorder %s121, %s122
    %p134 = scmp.eq.s32.totalorder %s33, 4
    %p135 = por %p133, %p134
    %p137 = scmp.ne.s32.totalorder %s122, %s136
    %p138 = scmp.eq.s32.totalorder %s33, 0
    %p139 = por %p137, %p138
    %s141 = sadd.s32 %s140, 1
    %p144 = scmp.eq.s32.totalorder %s27, 4
    %p145 = scmp.ne.s32.totalorder %s140, %s142
    %p146 = scmp.eq.s32.totalorder %s27, 0
    %p147 = por %p145, %p146
    %p148 = scmp.ne.s32.totalorder %s140, %s142
    %p149 = scmp.eq.s32.totalorder %s32, 4
    %p150 = por %p148, %p149
    %p151 = scmp.ne.s32.totalorder %s142, %s143
    %p152 = scmp.eq.s32.totalorder %s32, 0
    %p153 = por %p151, %p152
    %p154 = scmp.ne.s32.totalorder %s142, %s143
    %p155 = scmp.eq.s32.totalorder %s33, 4
    %p156 = por %p154, %p155
    %p158 = scmp.ne.s32.totalorder %s143, %s157
    %p159 = scmp.eq.s32.totalorder %s33, 0
    %p160 = por %p158, %p159
    %s161 = ssub.s32 %s27, %s34
    %p162 = scmp.eq.s32.totalorder %s161, 0
    %s164 = sadd.s32 %s163, 1
    %s165 = scalar_select %p162, %s163, %s164
    %p168 = pneg %p162
    %p169 = scmp.eq.s32.totalorder %s27, 4
    %p170 = por %p168, %p169
    %p171 = scmp.ne.s32.totalorder %s163, %s166
    %p172 = scmp.eq.s32.totalorder %s27, 0
    %p173 = por %p171, %p172
    %p174 = scmp.ne.s32.totalorder %s163, %s166
    %p175 = scmp.eq.s32.totalorder %s32, 4
    %p176 = por %p174, %p175
    %p177 = scmp.ne.s32.totalorder %s166, %s167
    %p178 = scmp.eq.s32.totalorder %s32, 0
    %p179 = por %p177, %p178
    %p180 = scmp.ne.s32.totalorder %s166, %s167
    %p181 = scmp.eq.s32.totalorder %s33, 4
    %p182 = por %p180, %p181
    %p184 = scmp.ne.s32.totalorder %s167, %s183
    %p185 = scmp.eq.s32.totalorder %s33, 0
    %p186 = por %p184, %p185
    %s187 = ssub.s32 %s27, %s34
    %p188 = scmp.eq.s32.totalorder %s187, 0
    %s190 = sadd.s32 %s189, 1
    %s191 = scalar_select %p188, %s189, %s190
    %p194 = pneg %p188
    %p195 = scmp.eq.s32.totalorder %s27, 4
    %p196 = por %p194, %p195
    %p197 = scmp.ne.s32.totalorder %s189, %s192
    %p198 = scmp.eq.s32.totalorder %s27, 0
    %p199 = por %p197, %p198
    %p200 = scmp.ne.s32.totalorder %s189, %s192
    %p201 = scmp.eq.s32.totalorder %s32, 4
    %p202 = por %p200, %p201
    %p203 = scmp.ne.s32.totalorder %s192, %s193
    %p204 = scmp.eq.s32.totalorder %s32, 0
    %p205 = por %p203, %p204
    %p206 = scmp.ne.s32.totalorder %s192, %s193
    %p207 = scmp.eq.s32.totalorder %s33, 4
    %p208 = por %p206, %p207
    %p210 = scmp.ne.s32.totalorder %s193, %s209
    %p211 = scmp.eq.s32.totalorder %s33, 0
    %p212 = por %p210, %p211
    %s213 = ssub.s32 %s27, %s34
    %p214 = scmp.eq.s32.totalorder %s213, 0
    %s216 = sadd.s32 %s215, 1
    %s217 = scalar_select %p214, %s215, %s216
    %p220 = pneg %p214
    %p221 = scmp.eq.s32.totalorder %s27, 4
    %p222 = por %p220, %p221
    %p223 = scmp.ne.s32.totalorder %s215, %s218
    %p224 = scmp.eq.s32.totalorder %s27, 0
    %p225 = por %p223, %p224
    %p226 = scmp.ne.s32.totalorder %s215, %s218
    %p227 = scmp.eq.s32.totalorder %s32, 4
    %p228 = por %p226, %p227
    %p229 = scmp.ne.s32.totalorder %s218, %s219
    %p230 = scmp.eq.s32.totalorder %s32, 0
    %p231 = por %p229, %p230
    %p232 = scmp.ne.s32.totalorder %s218, %s219
    %p233 = scmp.eq.s32.totalorder %s33, 4
    %p234 = por %p232, %p233
    %p236 = scmp.ne.s32.totalorder %s219, %s235
    %p237 = scmp.eq.s32.totalorder %s33, 0
    %p238 = por %p236, %p237
    %s239 = ssub.s32 %s27, %s34
    %p240 = scmp.eq.s32.totalorder %s239, 0
    %s242 = sadd.s32 %s241, 1
    %s243 = scalar_select %p240, %s241, %s242
    %p246 = pneg %p240
    %p247 = scmp.eq.s32.totalorder %s27, 4
    %p248 = por %p246, %p247
    %p249 = scmp.ne.s32.totalorder %s241, %s244
    %p250 = scmp.eq.s32.totalorder %s27, 0
    %p251 = por %p249, %p250
    %p252 = scmp.ne.s32.totalorder %s241, %s244
    %p253 = scmp.eq.s32.totalorder %s32, 4
    %p254 = por %p252, %p253
    %p255 = scmp.ne.s32.totalorder %s244, %s245
    %p256 = scmp.eq.s32.totalorder %s32, 0
    %p257 = por %p255, %p256
    %p258 = scmp.ne.s32.totalorder %s244, %s245
    %p259 = scmp.eq.s32.totalorder %s33, 4
    %p260 = por %p258, %p259
    %p262 = scmp.ne.s32.totalorder %s245, %s261
    %p263 = scmp.eq.s32.totalorder %s33, 0
    %p264 = por %p262, %p263
    %s265 = ssub.s32 %s27, %s34
    %p266 = scmp.eq.s32.totalorder %s265, 0
    %s268 = sadd.s32 %s267, 1
    %s269 = scalar_select %p266, %s267, %s268
    %p272 = pneg %p266
    %p273 = scmp.eq.s32.totalorder %s27, 4
    %p274 = por %p272, %p273
    %p275 = scmp.ne.s32.totalorder %s267, %s270
    %p276 = scmp.eq.s32.totalorder %s27, 0
    %p277 = por %p275, %p276
    %p278 = scmp.ne.s32.totalorder %s267, %s270
    %p279 = scmp.eq.s32.totalorder %s32, 4
    %p280 = por %p278, %p279
    %p281 = scmp.ne.s32.totalorder %s270, %s271
    %p282 = scmp.eq.s32.totalorder %s32, 0
    %p283 = por %p281, %p282
    %p284 = scmp.ne.s32.totalorder %s270, %s271
    %p285 = scmp.eq.s32.totalorder %s33, 4
    %p286 = por %p284, %p285
    %p288 = scmp.ne.s32.totalorder %s271, %s287
    %p289 = scmp.eq.s32.totalorder %s33, 0
    %p290 = por %p288, %p289
    %s291 = ssub.s32 %s27, %s34
    %p292 = scmp.eq.s32.totalorder %s291, 0
    %s294 = sadd.s32 %s293, 1
    %s295 = scalar_select %p292, %s293, %s294
    %p298 = pneg %p292
    %p299 = scmp.eq.s32.totalorder %s27, 4
    %p300 = por %p298, %p299
    %p301 = scmp.ne.s32.totalorder %s293, %s296
    %p302 = scmp.eq.s32.totalorder %s27, 0
    %p303 = por %p301, %p302
    %p304 = scmp.ne.s32.totalorder %s293, %s296
    %p305 = scmp.eq.s32.totalorder %s32, 4
    %p306 = por %p304, %p305
    %p307 = scmp.ne.s32.totalorder %s296, %s297
    %p308 = scmp.eq.s32.totalorder %s32, 0
    %p309 = por %p307, %p308
    %p310 = scmp.ne.s32.totalorder %s296, %s297
    %p311 = scmp.eq.s32.totalorder %s33, 4
    %p312 = por %p310, %p311
    %p314 = scmp.ne.s32.totalorder %s297, %s313
    %p315 = scmp.eq.s32.totalorder %s33, 0
    %p316 = por %p314, %p315
    %s317 = ssub.s32 %s27, %s34
    %p318 = scmp.eq.s32.totalorder %s317, 0
    %s320 = sadd.s32 %s319, 1
    %s321 = scalar_select %p318, %s319, %s320
    %p324 = pneg %p318
    %p325 = scmp.eq.s32.totalorder %s27, 4
    %p326 = por %p324, %p325
    %p327 = scmp.ne.s32.totalorder %s319, %s322
    %p328 = scmp.eq.s32.totalorder %s27, 0
    %p329 = por %p327, %p328
    %p330 = scmp.ne.s32.totalorder %s319, %s322
    %p331 = scmp.eq.s32.totalorder %s32, 4
    %p332 = por %p330, %p331
    %p333 = scmp.ne.s32.totalorder %s322, %s323
    %p334 = scmp.eq.s32.totalorder %s32, 0
    %p335 = por %p333, %p334
    %p336 = scmp.ne.s32.totalorder %s322, %s323
    %p337 = scmp.eq.s32.totalorder %s33, 4
    %p338 = por %p336, %p337
    %p340 = scmp.ne.s32.totalorder %s323, %s339
    %p341 = scmp.eq.s32.totalorder %s33, 0
    %p342 = por %p340, %p341
    %s343 = ssub.s32 %s27, %s34
    %p344 = scmp.eq.s32.totalorder %s343, 0
    %s346 = sadd.s32 %s345, 1
    %s347 = scalar_select %p344, %s345, %s346
    %p350 = pneg %p344
    %p351 = scmp.eq.s32.totalorder %s27, 4
    %p352 = por %p350, %p351
    %p353 = scmp.ne.s32.totalorder %s345, %s348
    %p354 = scmp.eq.s32.totalorder %s27, 0
    %p355 = por %p353, %p354
    %p356 = scmp.ne.s32.totalorder %s345, %s348
    %p357 = scmp.eq.s32.totalorder %s32, 4
    %p358 = por %p356, %p357
    %p359 = scmp.ne.s32.totalorder %s348, %s349
    %p360 = scmp.eq.s32.totalorder %s32, 0
    %p361 = por %p359, %p360
    %p362 = scmp.ne.s32.totalorder %s348, %s349
    %p363 = scmp.eq.s32.totalorder %s33, 4
    %p364 = por %p362, %p363
    %p366 = scmp.ne.s32.totalorder %s349, %s365
    %p367 = scmp.eq.s32.totalorder %s33, 0
    %p368 = por %p366, %p367
    %s369 = ssub.s32 %s27, %s34
    %p370 = scmp.eq.s32.totalorder %s369, 0
    %s372 = sadd.s32 %s371, 1
    %s373 = scalar_select %p370, %s371, %s372
    %p376 = pneg %p370
    %p377 = scmp.eq.s32.totalorder %s27, 4
    %p378 = por %p376, %p377
    %p379 = scmp.ne.s32.totalorder %s371, %s374
    %p380 = scmp.eq.s32.totalorder %s27, 0
    %p381 = por %p379, %p380
    %p382 = scmp.ne.s32.totalorder %s371, %s374
    %p383 = scmp.eq.s32.totalorder %s32, 4
    %p384 = por %p382, %p383
    %p385 = scmp.ne.s32.totalorder %s374, %s375
    %p386 = scmp.eq.s32.totalorder %s32, 0
    %p387 = por %p385, %p386
    %p388 = scmp.ne.s32.totalorder %s374, %s375
    %p389 = scmp.eq.s32.totalorder %s33, 4
    %p390 = por %p388, %p389
    %p392 = scmp.ne.s32.totalorder %s375, %s391
    %p393 = scmp.eq.s32.totalorder %s33, 0
    %p394 = por %p392, %p393
    %s395 = ssub.s32 %s27, %s34
    %p396 = scmp.eq.s32.totalorder %s395, 0
    %s398 = sadd.s32 %s397, 1
    %s399 = scalar_select %p396, %s397, %s398
    %p402 = pneg %p396
    %p403 = scmp.eq.s32.totalorder %s27, 4
    %p404 = por %p402, %p403
    %p405 = scmp.ne.s32.totalorder %s397, %s400
    %p406 = scmp.eq.s32.totalorder %s27, 0
    %p407 = por %p405, %p406
    %p408 = scmp.ne.s32.totalorder %s397, %s400
    %p409 = scmp.eq.s32.totalorder %s32, 4
    %p410 = por %p408, %p409
    %p411 = scmp.ne.s32.totalorder %s400, %s401
    %p412 = scmp.eq.s32.totalorder %s32, 0
    %p413 = por %p411, %p412
    %p414 = scmp.ne.s32.totalorder %s400, %s401
    %p415 = scmp.eq.s32.totalorder %s33, 4
    %p416 = por %p414, %p415
    %p418 = scmp.ne.s32.totalorder %s401, %s417
    %p419 = scmp.eq.s32.totalorder %s33, 0
    %p420 = por %p418, %p419
    %s421 = ssub.s32 %s27, %s34
    %p422 = scmp.eq.s32.totalorder %s421, 0
    %s424 = sadd.s32 %s423, 1
    %s425 = scalar_select %p422, %s423, %s424
    %p428 = pneg %p422
    %p429 = scmp.eq.s32.totalorder %s27, 4
    %p430 = por %p428, %p429
    %p431 = scmp.ne.s32.totalorder %s423, %s426
    %p432 = scmp.eq.s32.totalorder %s27, 0
    %p433 = por %p431, %p432
    %p434 = scmp.ne.s32.totalorder %s423, %s426
    %p435 = scmp.eq.s32.totalorder %s32, 4
    %p436 = por %p434, %p435
    %p437 = scmp.ne.s32.totalorder %s426, %s427
    %p438 = scmp.eq.s32.totalorder %s32, 0
    %p439 = por %p437, %p438
    %p440 = scmp.ne.s32.totalorder %s426, %s427
    %p441 = scmp.eq.s32.totalorder %s33, 4
    %p442 = por %p440, %p441
    %p444 = scmp.ne.s32.totalorder %s427, %s443
    %p445 = scmp.eq.s32.totalorder %s33, 0
    %p446 = por %p444, %p445
    %s447 = ssub.s32 %s27, %s34
    %p448 = scmp.eq.s32.totalorder %s447, 0
    %s450 = sadd.s32 %s449, 1
    %s451 = scalar_select %p448, %s449, %s450
    %p454 = pneg %p448
    %p455 = scmp.eq.s32.totalorder %s27, 4
    %p456 = por %p454, %p455
    %p457 = scmp.ne.s32.totalorder %s449, %s452
    %p458 = scmp.eq.s32.totalorder %s27, 0
    %p459 = por %p457, %p458
    %p460 = scmp.ne.s32.totalorder %s449, %s452
    %p461 = scmp.eq.s32.totalorder %s32, 4
    %p462 = por %p460, %p461
    %p463 = scmp.ne.s32.totalorder %s452, %s453
    %p464 = scmp.eq.s32.totalorder %s32, 0
    %p465 = por %p463, %p464
    %p466 = scmp.ne.s32.totalorder %s452, %s453
    %p467 = scmp.eq.s32.totalorder %s33, 4
    %p468 = por %p466, %p467
    %p470 = scmp.ne.s32.totalorder %s453, %s469
    %p471 = scmp.eq.s32.totalorder %s33, 0
    %p472 = por %p470, %p471
    %s473 = ssub.s32 %s27, %s34
    %p474 = scmp.eq.s32.totalorder %s473, 0
    %s476 = sadd.s32 %s475, 1
    %s477 = scalar_select %p474, %s475, %s476
    %p480 = pneg %p474
    %p481 = scmp.eq.s32.totalorder %s27, 4
    %p482 = por %p480, %p481
    %p483 = scmp.ne.s32.totalorder %s475, %s478
    %p484 = scmp.eq.s32.totalorder %s27, 0
    %p485 = por %p483, %p484
    %p486 = scmp.ne.s32.totalorder %s475, %s478
    %p487 = scmp.eq.s32.totalorder %s32, 4
    %p488 = por %p486, %p487
    %p489 = scmp.ne.s32.totalorder %s478, %s479
    %p490 = scmp.eq.s32.totalorder %s32, 0
    %p491 = por %p489, %p490
    %p492 = scmp.ne.s32.totalorder %s478, %s479
    %p493 = scmp.eq.s32.totalorder %s33, 4
    %p494 = por %p492, %p493
    %p496 = scmp.ne.s32.totalorder %s479, %s495
    %p497 = scmp.eq.s32.totalorder %s33, 0
    %p498 = por %p496, %p497
    %s499 = ssub.s32 %s27, %s34
    %p500 = scmp.eq.s32.totalorder %s499, 0
    %s502 = sadd.s32 %s501, 1
    %s503 = scalar_select %p500, %s501, %s502
    %p506 = pneg %p500
    %p507 = scmp.eq.s32.totalorder %s27, 4
    %p508 = por %p506, %p507
    %p509 = scmp.ne.s32.totalorder %s501, %s504
    %p510 = scmp.eq.s32.totalorder %s27, 0
    %p511 = por %p509, %p510
    %p512 = scmp.ne.s32.totalorder %s501, %s504
    %p513 = scmp.eq.s32.totalorder %s32, 4
    %p514 = por %p512, %p513
    %p515 = scmp.ne.s32.totalorder %s504, %s505
    %p516 = scmp.eq.s32.totalorder %s32, 0
    %p517 = por %p515, %p516
    %p518 = scmp.ne.s32.totalorder %s504, %s505
    %p519 = scmp.eq.s32.totalorder %s33, 4
    %p520 = por %p518, %p519
    %p522 = scmp.ne.s32.totalorder %s505, %s521
    %p523 = scmp.eq.s32.totalorder %s33, 0
    %p524 = por %p522, %p523
    %s525 = ssub.s32 %s27, %s34
    %p526 = scmp.eq.s32.totalorder %s525, 0
    %s528 = sadd.s32 %s527, 1
    %s529 = scalar_select %p526, %s527, %s528
    %p532 = pneg %p526
    %p533 = scmp.eq.s32.totalorder %s27, 4
    %p534 = por %p532, %p533
    %p535 = scmp.ne.s32.totalorder %s527, %s530
    %p536 = scmp.eq.s32.totalorder %s27, 0
    %p537 = por %p535, %p536
    %p538 = scmp.ne.s32.totalorder %s527, %s530
    %p539 = scmp.eq.s32.totalorder %s32, 4
    %p540 = por %p538, %p539
    %p541 = scmp.ne.s32.totalorder %s530, %s531
    %p542 = scmp.eq.s32.totalorder %s32, 0
    %p543 = por %p541, %p542
    %p544 = scmp.ne.s32.totalorder %s530, %s531
    %p545 = scmp.eq.s32.totalorder %s33, 4
    %p546 = por %p544, %p545
    %p548 = scmp.ne.s32.totalorder %s531, %s547
    %p549 = scmp.eq.s32.totalorder %s33, 0
    %p550 = por %p548, %p549
    %s551 = ssub.s32 %s27, %s34
    %p552 = scmp.eq.s32.totalorder %s551, 0
    %s554 = sadd.s32 %s553, 1
    %s555 = scalar_select %p552, %s553, %s554
    %p558 = pneg %p552
    %p559 = scmp.eq.s32.totalorder %s27, 4
    %p560 = por %p558, %p559
    %p561 = scmp.ne.s32.totalorder %s553, %s556
    %p562 = scmp.eq.s32.totalorder %s27, 0
    %p563 = por %p561, %p562
    %p564 = scmp.ne.s32.totalorder %s553, %s556
    %p565 = scmp.eq.s32.totalorder %s32, 4
    %p566 = por %p564, %p565
    %p567 = scmp.ne.s32.totalorder %s556, %s557
    %p568 = scmp.eq.s32.totalorder %s32, 0
    %p569 = por %p567, %p568
    %p570 = scmp.ne.s32.totalorder %s556, %s557
    %p571 = scmp.eq.s32.totalorder %s33, 4
    %p572 = por %p570, %p571
    %p574 = scmp.ne.s32.totalorder %s557, %s573
    %p575 = scmp.eq.s32.totalorder %s33, 0
    %p576 = por %p574, %p575
    %p577 = scmp.le.s32.totalorder 1, %s27
    %p578 = scmp.lt.s32.totalorder %s27, 6
    %p579 = pnand %p577, %p578
    %p580 = pneg %p579
    // Predicated region
    $region9: #{mask_decoy_gen.1} parent=5 // pred_check
      _
    $region10: #{mask_decoy_gen.1} parent=5 // pred_check_branch
      %582 = sbr.rel (%p579) target = $region12
    $region11: #{mask_decoy_gen.1} parent=5 // pred_region
      %s583 = ssub.s32 %s27, 1
      // Predicated region
      $region13: #{mask_decoy_gen.1} parent=11 // pred_check
        %p584 = pneg %p48
      $region14: #{mask_decoy_gen.1} parent=11 // pred_check_branch
        %586 = sbr.rel (%p584) target = $region16
      $region15: #{mask_decoy_gen.1} parent=11 // pred_region
        _
      $region16: #{mask_decoy_gen.1} parent=11 // pred_fallthru
        _
      // Predicated region
      $region17: #{mask_decoy_gen.1} parent=11 // pred_check
        %p587 = pneg %p69
      $region18: #{mask_decoy_gen.1} parent=11 // pred_check_branch
        %589 = sbr.rel (%p587) target = $region20
      $region19: #{mask_decoy_gen.1} parent=11 // pred_region
        _
      $region20: #{mask_decoy_gen.1} parent=11 // pred_fallthru
        _
      // Predicated region
      $region21: #{mask_decoy_gen.1} parent=11 // pred_check
        %p590 = pneg %p90
      $region22: #{mask_decoy_gen.1} parent=11 // pred_check_branch
        %592 = sbr.rel (%p590) target = $region24
      $region23: #{mask_decoy_gen.1} parent=11 // pred_region
        _
      $region24: #{mask_decoy_gen.1} parent=11 // pred_fallthru
        _
      // Predicated region
      $region25: #{mask_decoy_gen.1} parent=11 // pred_check
        %p593 = pneg %p111
      $region26: #{mask_decoy_gen.1} parent=11 // pred_check_branch
        %595 = sbr.rel (%p593) target = $region28
      $region27: #{mask_decoy_gen.1} parent=11 // pred_region
        _
      $region28: #{mask_decoy_gen.1} parent=11 // pred_fallthru
        _
      // Predicated region
      $region29: #{mask_decoy_gen.1} parent=11 // pred_check
        %p596 = pneg %p132
      $region30: #{mask_decoy_gen.1} parent=11 // pred_check_branch
        %598 = sbr.rel (%p596) target = $region32
      $region31: #{mask_decoy_gen.1} parent=11 // pred_region
        _
      $region32: #{mask_decoy_gen.1} parent=11 // pred_fallthru
        _
      // Predicated region
      $region33: #{mask_decoy_gen.1} parent=11 // pred_check
        %p599 = pneg %p153
      $region34: #{mask_decoy_gen.1} parent=11 // pred_check_branch
        %601 = sbr.rel (%p599) target = $region36
      $region35: #{mask_decoy_gen.1} parent=11 // pred_region
        _
      $region36: #{mask_decoy_gen.1} parent=11 // pred_fallthru
        _
    $region12: #{mask_decoy_gen.1} parent=5 // pred_fallthru
      _
    %p602 = scmp.lt.s32.totalorder %s27, 5
    // Predicated region
    $region37: #{mask_decoy_gen.1} parent=5 // pred_check
      %p603 = pneg %p602
    $region38: #{mask_decoy_gen.1} parent=5 // pred_check_branch
      %605 = sbr.rel (%p603) target = $region40
    $region39: #{mask_decoy_gen.1} parent=5 // pred_region
      // Predicated region
      $region41: #{mask_decoy_gen.1} parent=39 // pred_check
        %p606 = pneg %p173
      $region42: #{mask_decoy_gen.1} parent=39 // pred_check_branch
        %608 = sbr.rel (%p606) target = $region44
      $region43: #{mask_decoy_gen.1} parent=39 // pred_region
        %p609 = scmp.lt.s32.totalorder %s27, 4
        %s610 = scalar_select %p609, %s27, 4
        %s611 = smul.addr %s610, 48
        %s612 = smul.addr %s611, 8
        %s613 = scalar_lea.vmem %s6, %s612
      $region44: #{mask_decoy_gen.1} parent=39 // pred_fallthru
        _
      // Predicated region
      $region45: #{mask_decoy_gen.1} parent=39 // pred_check
        %p614 = pneg %p199
      $region46: #{mask_decoy_gen.1} parent=39 // pred_check_branch
        %616 = sbr.rel (%p614) target = $region48
      $region47: #{mask_decoy_gen.1} parent=39 // pred_region
        %p617 = scmp.lt.s32.totalorder %s27, 4
        %s618 = scalar_select %p617, %s27, 4
        %s619 = smul.addr %s618, 48
        %s620 = smul.addr %s619, 8
        %s621 = scalar_lea.vmem %s7, %s620
      $region48: #{mask_decoy_gen.1} parent=39 // pred_fallthru
        _
      // Predicated region
      $region49: #{mask_decoy_gen.1} parent=39 // pred_check
        %p622 = pneg %p225
      $region50: #{mask_decoy_gen.1} parent=39 // pred_check_branch
        %624 = sbr.rel (%p622) target = $region52
      $region51: #{mask_decoy_gen.1} parent=39 // pred_region
        %p625 = scmp.lt.s32.totalorder %s27, 4
        %s626 = scalar_select %p625, %s27, 4
        %s627 = smul.addr %s626, 8
        %s628 = scalar_lea.vmem %s8, %s627
      $region52: #{mask_decoy_gen.1} parent=39 // pred_fallthru
        _
      // Predicated region
      $region53: #{mask_decoy_gen.1} parent=39 // pred_check
        %p629 = pneg %p251
      $region54: #{mask_decoy_gen.1} parent=39 // pred_check_branch
        %631 = sbr.rel (%p629) target = $region56
      $region55: #{mask_decoy_gen.1} parent=39 // pred_region
        %p632 = scmp.lt.s32.totalorder %s27, 4
        %s633 = scalar_select %p632, %s27, 4
        %s634 = smul.addr %s633, 8
        %s635 = scalar_lea.vmem %s9, %s634
      $region56: #{mask_decoy_gen.1} parent=39 // pred_fallthru
        _
      // Predicated region
      $region57: #{mask_decoy_gen.1} parent=39 // pred_check
        %p636 = pneg %p277
      $region58: #{mask_decoy_gen.1} parent=39 // pred_check_branch
        %638 = sbr.rel (%p636) target = $region60
      $region59: #{mask_decoy_gen.1} parent=39 // pred_region
        %p639 = scmp.lt.s32.totalorder %s27, 4
        %s640 = scalar_select %p639, %s27, 4
        %s641 = smul.addr %s640, 84
        %s642 = smul.addr %s641, 8
        %s643 = scalar_lea.vmem %s10, %s642
      $region60: #{mask_decoy_gen.1} parent=39 // pred_fallthru
        _
      // Predicated region
      $region61: #{mask_decoy_gen.1} parent=39 // pred_check
        %p644 = pneg %p303
      $region62: #{mask_decoy_gen.1} parent=39 // pred_check_branch
        %646 = sbr.rel (%p644) target = $region64
      $region63: #{mask_decoy_gen.1} parent=39 // pred_region
        %p647 = scmp.lt.s32.totalorder %s27, 4
        %s648 = scalar_select %p647, %s27, 4
        %s649 = smul.addr %s648, 4
        %s650 = scalar_lea.vmem %s11, %s649
      $region64: #{mask_decoy_gen.1} parent=39 // pred_fallthru
        _
      // Predicated region
      $region65: #{mask_decoy_gen.1} parent=39 // pred_check
        %p651 = pneg %p329
      $region66: #{mask_decoy_gen.1} parent=39 // pred_check_branch
        %653 = sbr.rel (%p651) target = $region68
      $region67: #{mask_decoy_gen.1} parent=39 // pred_region
        %p654 = scmp.lt.s32.totalorder %s27, 4
        %s655 = scalar_select %p654, %s27, 4
        %s656 = smul.addr %s655, 16
        %s657 = smul.addr %s656, 8
        %s658 = scalar_lea.vmem %s12, %s657
      $region68: #{mask_decoy_gen.1} parent=39 // pred_fallthru
        _
      // Predicated region
      $region69: #{mask_decoy_gen.1} parent=39 // pred_check
        %p659 = pneg %p355
      $region70: #{mask_decoy_gen.1} parent=39 // pred_check_branch
        %661 = sbr.rel (%p659) target = $region72
      $region71: #{mask_decoy_gen.1} parent=39 // pred_region
        %p662 = scmp.lt.s32.totalorder %s27, 4
        %s663 = scalar_select %p662, %s27, 4
        %s664 = smul.addr %s663, 4
        %s665 = scalar_lea.vmem %s13, %s664
      $region72: #{mask_decoy_gen.1} parent=39 // pred_fallthru
        _
      // Predicated region
      $region73: #{mask_decoy_gen.1} parent=39 // pred_check
        %p666 = pneg %p381
      $region74: #{mask_decoy_gen.1} parent=39 // pred_check_branch
        %668 = sbr.rel (%p666) target = $region76
      $region75: #{mask_decoy_gen.1} parent=39 // pred_region
        %p669 = scmp.lt.s32.totalorder %s27, 4
        %s670 = scalar_select %p669, %s27, 4
        %s671 = smul.addr %s670, 64
        %s672 = smul.addr %s671, 8
        %s673 = scalar_lea.vmem %s14, %s672
      $region76: #{mask_decoy_gen.1} parent=39 // pred_fallthru
        _
      // Predicated region
      $region77: #{mask_decoy_gen.1} parent=39 // pred_check
        %p674 = pneg %p407
      $region78: #{mask_decoy_gen.1} parent=39 // pred_check_branch
        %676 = sbr.rel (%p674) target = $region80
      $region79: #{mask_decoy_gen.1} parent=39 // pred_region
        %p677 = scmp.lt.s32.totalorder %s27, 4
        %s678 = scalar_select %p677, %s27, 4
        %s679 = smul.addr %s678, 4
        %s680 = scalar_lea.vmem %s15, %s679
      $region80: #{mask_decoy_gen.1} parent=39 // pred_fallthru
        _
      // Predicated region
      $region81: #{mask_decoy_gen.1} parent=39 // pred_check
        %p681 = pneg %p433
      $region82: #{mask_decoy_gen.1} parent=39 // pred_check_branch
        %683 = sbr.rel (%p681) target = $region84
      $region83: #{mask_decoy_gen.1} parent=39 // pred_region
        %p684 = scmp.lt.s32.totalorder %s27, 4
        %s685 = scalar_select %p684, %s27, 4
        %s686 = smul.addr %s685, 24
        %s687 = smul.addr %s686, 8
        %s688 = scalar_lea.vmem %s16, %s687
      $region84: #{mask_decoy_gen.1} parent=39 // pred_fallthru
        _
      // Predicated region
      $region85: #{mask_decoy_gen.1} parent=39 // pred_check
        %p689 = pneg %p459
      $region86: #{mask_decoy_gen.1} parent=39 // pred_check_branch
        %691 = sbr.rel (%p689) target = $region88
      $region87: #{mask_decoy_gen.1} parent=39 // pred_region
        %p692 = scmp.lt.s32.totalorder %s27, 4
        %s693 = scalar_select %p692, %s27, 4
        %s694 = smul.addr %s693, 16
        %s695 = smul.addr %s694, 8
        %s696 = scalar_lea.vmem %s17, %s695
      $region88: #{mask_decoy_gen.1} parent=39 // pred_fallthru
        _
      // Predicated region
      $region89: #{mask_decoy_gen.1} parent=39 // pred_check
        %p697 = pneg %p485
      $region90: #{mask_decoy_gen.1} parent=39 // pred_check_branch
        %699 = sbr.rel (%p697) target = $region92
      $region91: #{mask_decoy_gen.1} parent=39 // pred_region
        %p700 = scmp.lt.s32.totalorder %s27, 4
        %s701 = scalar_select %p700, %s27, 4
        %s702 = smul.addr %s701, 4
        %s703 = scalar_lea.vmem %s18, %s702
      $region92: #{mask_decoy_gen.1} parent=39 // pred_fallthru
        _
      // Predicated region
      $region93: #{mask_decoy_gen.1} parent=39 // pred_check
        %p704 = pneg %p511
      $region94: #{mask_decoy_gen.1} parent=39 // pred_check_branch
        %706 = sbr.rel (%p704) target = $region96
      $region95: #{mask_decoy_gen.1} parent=39 // pred_region
        %p707 = scmp.lt.s32.totalorder %s27, 4
        %s708 = scalar_select %p707, %s27, 4
        %s709 = smul.addr %s708, 44
        %s710 = smul.addr %s709, 8
        %s711 = scalar_lea.vmem %s19, %s710
      $region96: #{mask_decoy_gen.1} parent=39 // pred_fallthru
        _
      // Predicated region
      $region97: #{mask_decoy_gen.1} parent=39 // pred_check
        %p712 = pneg %p537
      $region98: #{mask_decoy_gen.1} parent=39 // pred_check_branch
        %714 = sbr.rel (%p712) target = $region100
      $region99: #{mask_decoy_gen.1} parent=39 // pred_region
        %p715 = scmp.lt.s32.totalorder %s27, 4
        %s716 = scalar_select %p715, %s27, 4
        %s717 = smul.addr %s716, 4
        %s718 = scalar_lea.vmem %s20, %s717
      $region100: #{mask_decoy_gen.1} parent=39 // pred_fallthru
        _
    $region40: #{mask_decoy_gen.1} parent=5 // pred_fallthru
      _
    %p719 = scmp.le.s32.totalorder 1, %s27
    %p720 = scmp.lt.s32.totalorder %s27, 6
    %p721 = pnand %p719, %p720
    %p722 = pneg %p721
    // Predicated region
    $region101: #{mask_decoy_gen.1} parent=5 // pred_check
      _
    $region102: #{mask_decoy_gen.1} parent=5 // pred_check_branch
      %724 = sbr.rel (%p721) target = $region104
    $region103: #{mask_decoy_gen.1} parent=5 // pred_region
      %s725 = ssub.s32 %s27, 1
      %p726 = pneg %p48
      %p727 = pneg %p45
      %p728 = pneg %p69
      %p729 = pneg %p66
      %p730 = pneg %p90
      %p731 = pneg %p87
      %p732 = pneg %p111
      %p733 = pneg %p108
      %p734 = pneg %p132
      %p735 = pneg %p129
      %p736 = pneg %p153
      %p737 = pneg %p150
      %p738 = scmp.lt.s32.totalorder %s32, 4
      %s739 = scalar_select %p738, %s32, 4
      %s740 = smul.addr %s739, 48
      %s741 = smul.addr %s740, 8
      %s742 = scalar_lea.vmem %s6, %s741
      %p743 = pneg %p179
      %p744 = pneg %p176
      %p745 = scmp.lt.s32.totalorder %s32, 4
      %s746 = scalar_select %p745, %s32, 4
      %s747 = smul.addr %s746, 48
      %s748 = smul.addr %s747, 8
      %s749 = scalar_lea.vmem %s7, %s748
      %p750 = pneg %p205
      %p751 = pneg %p202
      %p752 = scmp.lt.s32.totalorder %s32, 4
      %s753 = scalar_select %p752, %s32, 4
      %s754 = smul.addr %s753, 8
      %s755 = scalar_lea.vmem %s8, %s754
      %p756 = pneg %p231
      %p757 = pneg %p228
      %p758 = scmp.lt.s32.totalorder %s32, 4
      %s759 = scalar_select %p758, %s32, 4
      %s760 = smul.addr %s759, 8
      %s761 = scalar_lea.vmem %s9, %s760
      %p762 = pneg %p257
      %p763 = pneg %p254
      %p764 = scmp.lt.s32.totalorder %s32, 4
      %s765 = scalar_select %p764, %s32, 4
      %s766 = smul.addr %s765, 84
      %s767 = smul.addr %s766, 8
      %s768 = scalar_lea.vmem %s10, %s767
      %p769 = pneg %p283
      %p770 = pneg %p280
      %p771 = scmp.lt.s32.totalorder %s32, 4
      %s772 = scalar_select %p771, %s32, 4
      %s773 = smul.addr %s772, 4
      %s774 = scalar_lea.vmem %s11, %s773
      %p775 = pneg %p309
      %p776 = pneg %p306
      %p777 = scmp.lt.s32.totalorder %s32, 4
      %s778 = scalar_select %p777, %s32, 4
      %s779 = smul.addr %s778, 16
      %s780 = smul.addr %s779, 8
      %s781 = scalar_lea.vmem %s12, %s780
      %p782 = pneg %p335
      %p783 = pneg %p332
      %p784 = scmp.lt.s32.totalorder %s32, 4
      %s785 = scalar_select %p784, %s32, 4
      %s786 = smul.addr %s785, 4
      %s787 = scalar_lea.vmem %s13, %s786
      %p788 = pneg %p361
      %p789 = pneg %p358
      %p790 = scmp.lt.s32.totalorder %s32, 4
      %s791 = scalar_select %p790, %s32, 4
      %s792 = smul.addr %s791, 64
      %s793 = smul.addr %s792, 8
      %s794 = scalar_lea.vmem %s14, %s793
      %p795 = pneg %p387
      %p796 = pneg %p384
      %p797 = scmp.lt.s32.totalorder %s32, 4
      %s798 = scalar_select %p797, %s32, 4
      %s799 = smul.addr %s798, 4
      %s800 = scalar_lea.vmem %s15, %s799
      %p801 = pneg %p413
      %p802 = pneg %p410
      %p803 = scmp.lt.s32.totalorder %s32, 4
      %s804 = scalar_select %p803, %s32, 4
      %s805 = smul.addr %s804, 24
      %s806 = smul.addr %s805, 8
      %s807 = scalar_lea.vmem %s16, %s806
      %p808 = pneg %p439
      %p809 = pneg %p436
      %p810 = scmp.lt.s32.totalorder %s32, 4
      %s811 = scalar_select %p810, %s32, 4
      %s812 = smul.addr %s811, 16
      %s813 = smul.addr %s812, 8
      %s814 = scalar_lea.vmem %s17, %s813
      %p815 = pneg %p465
      %p816 = pneg %p462
      %p817 = scmp.lt.s32.totalorder %s32, 4
      %s818 = scalar_select %p817, %s32, 4
      %s819 = smul.addr %s818, 4
      %s820 = scalar_lea.vmem %s18, %s819
      %p821 = pneg %p491
      %p822 = pneg %p488
      %p823 = scmp.lt.s32.totalorder %s32, 4
      %s824 = scalar_select %p823, %s32, 4
      %s825 = smul.addr %s824, 44
      %s826 = smul.addr %s825, 8
      %s827 = scalar_lea.vmem %s19, %s826
      %p828 = pneg %p517
      %p829 = pneg %p514
      %p830 = scmp.lt.s32.totalorder %s32, 4
      %s831 = scalar_select %p830, %s32, 4
      %s832 = smul.addr %s831, 4
      %s833 = scalar_lea.vmem %s20, %s832
      %p834 = pneg %p543
      %p835 = pneg %p540
      %p836 = pneg %p569
      %p837 = pneg %p566
      %p838 = scmp.lt.s32.totalorder %s32, 4
      %s839 = scalar_select %p838, %s32, 4
      %s840 = smul.addr %s839, 8
      %s841 = scalar_lea.vmem %s21, %s840
      %p842 = scmp.lt.s32.totalorder %s32, 4
      %s843 = scalar_select %p842, %s32, 4
      %s844 = smul.addr %s843, 48
      %s845 = smul.addr %s844, 8
      %s846 = scalar_lea.vmem %s6, %s845
      %p847 = scmp.lt.s32.totalorder %s32, 4
      %s848 = scalar_select %p847, %s32, 4
      %s849 = smul.addr %s848, 48
      %s850 = smul.addr %s849, 8
      %s851 = scalar_lea.vmem %s7, %s850
      %p852 = scmp.lt.s32.totalorder %s32, 4
      %s853 = scalar_select %p852, %s32, 4
      %s854 = smul.addr %s853, 8
      %s855 = scalar_lea.vmem %s8, %s854
      %p856 = scmp.lt.s32.totalorder %s32, 4
      %s857 = scalar_select %p856, %s32, 4
      %s858 = smul.addr %s857, 8
      %s859 = scalar_lea.vmem %s9, %s858
      %p860 = scmp.lt.s32.totalorder %s32, 4
      %s861 = scalar_select %p860, %s32, 4
      %s862 = smul.addr %s861, 84
      %s863 = smul.addr %s862, 8
      %s864 = scalar_lea.vmem %s10, %s863
      %p865 = scmp.lt.s32.totalorder %s32, 4
      %s866 = scalar_select %p865, %s32, 4
      %s867 = smul.addr %s866, 4
      %s868 = scalar_lea.vmem %s11, %s867
      %p869 = scmp.lt.s32.totalorder %s32, 4
      %s870 = scalar_select %p869, %s32, 4
      %s871 = smul.addr %s870, 16
      %s872 = smul.addr %s871, 8
      %s873 = scalar_lea.vmem %s12, %s872
      %p874 = scmp.lt.s32.totalorder %s32, 4
      %s875 = scalar_select %p874, %s32, 4
      %s876 = smul.addr %s875, 4
      %s877 = scalar_lea.vmem %s13, %s876
      %p878 = scmp.lt.s32.totalorder %s32, 4
      %s879 = scalar_select %p878, %s32, 4
      %s880 = smul.addr %s879, 64
      %s881 = smul.addr %s880, 8
      %s882 = scalar_lea.vmem %s14, %s881
      %p883 = scmp.lt.s32.totalorder %s32, 4
      %s884 = scalar_select %p883, %s32, 4
      %s885 = smul.addr %s884, 4
      %s886 = scalar_lea.vmem %s15, %s885
      %p887 = scmp.lt.s32.totalorder %s32, 4
      %s888 = scalar_select %p887, %s32, 4
      %s889 = smul.addr %s888, 24
      %s890 = smul.addr %s889, 8
      %s891 = scalar_lea.vmem %s16, %s890
      %p892 = scmp.lt.s32.totalorder %s32, 4
      %s893 = scalar_select %p892, %s32, 4
      %s894 = smul.addr %s893, 16
      %s895 = smul.addr %s894, 8
      %s896 = scalar_lea.vmem %s17, %s895
      %p897 = scmp.lt.s32.totalorder %s32, 4
      %s898 = scalar_select %p897, %s32, 4
      %s899 = smul.addr %s898, 4
      %s900 = scalar_lea.vmem %s18, %s899
      %p901 = scmp.lt.s32.totalorder %s32, 4
      %s902 = scalar_select %p901, %s32, 4
      %s903 = smul.addr %s902, 44
      %s904 = smul.addr %s903, 8
      %s905 = scalar_lea.vmem %s19, %s904
      %p906 = scmp.lt.s32.totalorder %s32, 4
      %s907 = scalar_select %p906, %s32, 4
      %s908 = smul.addr %s907, 4
      %s909 = scalar_lea.vmem %s20, %s908
      %p910 = scmp.lt.s32.totalorder %s32, 4
      %s911 = scalar_select %p910, %s32, 4
      %s912 = smul.addr %s911, 8
      %s913 = scalar_lea.vmem %s21, %s912
      %v914 = vld [vmem:[%s0] sm:$0xff]
      %v915 = vld [vmem:[%s1] sm:$0xff]
      %v916 = vld [vmem:[%s2] sm:$0xff]
      %v917 = vld [vmem:[%s3] sm:$0xff]
      %v918 = vld [vmem:[%s3 + $0x8] sm:$0xff]
      %v919 = vld [vmem:[%s3 + $0x10] sm:$0xff]
      %v920 = vld [vmem:[%s3 + $0x18] sm:$0xff]
      %v921 = vld [vmem:[%s3 + $0x20] sm:$0xff]
      %v922 = vld [vmem:[%s3 + $0x28] sm:$0xff]
      %v923 = vld [vmem:[%s3 + $0x30] sm:$0xff]
      %v924 = vld [vmem:[%s3 + $0x38] sm:$0xff]
      %v925 = vld [vmem:[%s4] sm:$0xff]
      %v926 = vld [vmem:[%s4 + $0x8] sm:$0xff]
      %v927 = vld [vmem:[%s4 + $0x10] sm:$0xff]
      %v928 = vld [vmem:[%s4 + $0x18] sm:$0xff]
      %v929 = vld [vmem:[%s4 + $0x20] sm:$0xff]
      %v930 = vld [vmem:[%s4 + $0x28] sm:$0xff]
      %v931 = vld [vmem:[%s4 + $0x30] sm:$0xff]
      %v932 = vld [vmem:[%s4 + $0x38] sm:$0xff]
      %v933 = vld [vmem:[%s5] sm:$0xff]
      %vm934 = vcmask 7168
      %v935 = vsel %vm934, %v916, 0.0
      %936 = vadd.xlane.f32.xlu0 %v935
      %v937 = vpop.xlane.xlu0 %936
      %v938 = vrot.slane %v937, 4
      %v939 = vadd.f32 %v937, %v938
      %v940 = vrot.slane %v939, 2
      %v941 = vadd.f32 %v939, %v940
      %v942 = vrot.slane %v941, 1
      %v943 = vadd.f32 %v941, %v942
      %s944 = vtos %v943
      %v945 = vstv %s944
      %v946 = vrcp.pop %v945
      %v947 = vmul.f32 1.0, %v946
      %vm948 = vcmask 64512
      %v950 = vsel %vm948, %v917, 0
      %v953 = vsel %vm948, %v918, 0
      %v956 = vsel %vm948, %v919, 0
      %v959 = vsel %vm948, %v920, 0
      %v962 = vsel %vm948, %v921, 0
      %v965 = vsel %vm948, %v922, 0
      %v968 = vsel %vm948, %v923, 0
      %v971 = vsel %vm948, %v924, 0
      %973 = vmatprep.subr.mxu0 0.0
      %974 = vmatpush1.msra.mxu0 %v916
      %975 = vmatprep.subr.mxu0 0.0
      %976 = vmatpush1.msra.mxu0 0.0
      %977 = vmatprep.subr.mxu0 0.0
      %978 = vmatpush1.msra.mxu0 0.0
      %979 = vmatprep.subr.mxu0 0.0
      %980 = vmatpush1.msra.mxu0 0.0
      %981 = vmatprep.subr.mxu0 0.0
      %982 = vmatpush1.msra.mxu0 0.0
      %983 = vmatprep.subr.mxu0 0.0
      %984 = vmatpush1.msra.mxu0 0.0
      %985 = vmatprep.subr.mxu0 0.0
      %986 = vmatpush1.msra.mxu0 0.0
      %987 = vmatprep.subr.mxu0 0.0
      %988 = vmatpush1.msra.mxu0 0.0
      %989 = vmatprep.subr.mxu0 0.0
      %990 = vmatpush1.msra.mxu0 0.0
      %991 = vmatprep.subr.mxu0 0.0
      %992 = vmatpush1.msra.mxu0 0.0
      %993 = vmatprep.subr.mxu0 0.0
      %994 = vmatpush1.msra.mxu0 0.0
      %995 = vmatprep.subr.mxu0 0.0
      %996 = vmatpush1.msra.mxu0 0.0
      %997 = vmatprep.subr.mxu0 0.0
      %998 = vmatpush1.msra.mxu0 0.0
      %999 = vmatprep.subr.mxu0 0.0
      %1000 = vmatpush1.msra.mxu0 0.0
      %1001 = vmatprep.subr.mxu0 0.0
      %1002 = vmatpush1.msra.mxu0 0.0
      %1003 = vmatprep.subr.mxu0 0.0
      %1004 = vmatpush1.msra.mxu0 0.0
      %1005 = vmatprep.subr.mxu0 0.0
      %1006 = vmatpush1.msra.mxu0 0.0
      %1007 = vmatprep.subr.mxu0 0.0
      %1008 = vmatpush1.msra.mxu0 0.0
      %1009 = vmatprep.subr.mxu0 0.0
      %1010 = vmatpush1.msra.mxu0 0.0
      %1011 = vmatprep.subr.mxu0 0.0
      %1012 = vmatpush1.msra.mxu0 0.0
      %1013 = vmatprep.subr.mxu0 0.0
      %1014 = vmatpush1.msra.mxu0 0.0
      %1015 = vmatprep.subr.mxu0 0.0
      %1016 = vmatpush1.msra.mxu0 0.0
      %1017 = vmatprep.subr.mxu0 0.0
      %1018 = vmatpush1.msra.mxu0 0.0
      %1019 = vmatprep.subr.mxu0 0.0
      %1020 = vmatpush1.msra.mxu0 0.0
      %1021 = vmatprep.subr.mxu0 0.0
      %1022 = vmatpush1.msra.mxu0 0.0
      %1023 = vmatprep.subr.mxu0 0.0
      %1024 = vmatpush1.msra.mxu0 0.0
      %1025 = vmatprep.subr.mxu0 0.0
      %1026 = vmatpush1.msra.mxu0 0.0
      %1027 = vmatprep.subr.mxu0 0.0
      %1028 = vmatpush1.msra.mxu0 0.0
      %1029 = vmatprep.subr.mxu0 0.0
      %1030 = vmatpush1.msra.mxu0 0.0
      %1031 = vmatprep.subr.mxu0 0.0
      %1032 = vmatpush1.msra.mxu0 0.0
      %1033 = vmatprep.subr.mxu0 0.0
      %1034 = vmatpush1.msra.mxu0 0.0
      %1035 = vmatprep.subr.mxu0 0.0
      %1036 = vmatpush1.msra.mxu0 0.0
      %1037 = vmatprep.mubr.f32.mxu0 0.0
      %1038 = vmatmul.mubr.f32.gmra.mrb[0].mxu0 %v950
      %v1039 = vpop.f32.mrb[0].mxu0
      %v1040 = vadd.f32 0.0, %v1039
      %v1041 = vpop.f32.mrb[0].mxu0
      %1042 = vmatprep.mubr.f32.mxu0 0.0
      %1043 = vmatmul.mubr.f32.gmra.mrb[0].mxu0 %v953
      %v1044 = vpop.f32.mrb[0].mxu0
      %v1045 = vadd.f32 0.0, %v1044
      %v1046 = vpop.f32.mrb[0].mxu0
      %1047 = vmatprep.mubr.f32.mxu0 0.0
      %1048 = vmatmul.mubr.f32.gmra.mrb[0].mxu0 %v956
      %v1049 = vpop.f32.mrb[0].mxu0
      %v1050 = vadd.f32 0.0, %v1049
      %v1051 = vpop.f32.mrb[0].mxu0
      %1052 = vmatprep.mubr.f32.mxu0 0.0
      %1053 = vmatmul.mubr.f32.gmra.mrb[0].mxu0 %v959
      %v1054 = vpop.f32.mrb[0].mxu0
      %v1055 = vadd.f32 0.0, %v1054
      %v1056 = vpop.f32.mrb[0].mxu0
      %1057 = vmatprep.mubr.f32.mxu0 0.0
      %1058 = vmatmul.mubr.f32.gmra.mrb[0].mxu0 %v962
      %v1059 = vpop.f32.mrb[0].mxu0
      %v1060 = vadd.f32 0.0, %v1059
      %v1061 = vpop.f32.mrb[0].mxu0
      %1062 = vmatprep.mubr.f32.mxu0 0.0
      %1063 = vmatmul.mubr.f32.gmra.mrb[0].mxu0 %v965
      %v1064 = vpop.f32.mrb[0].mxu0
      %v1065 = vadd.f32 0.0, %v1064
      %v1066 = vpop.f32.mrb[0].mxu0
      %1067 = vmatprep.mubr.f32.mxu0 0.0
      %1068 = vmatmul.mubr.f32.gmra.mrb[0].mxu0 %v968
      %v1069 = vpop.f32.mrb[0].mxu0
      %v1070 = vadd.f32 0.0, %v1069
      %v1071 = vpop.f32.mrb[0].mxu0
      %1072 = vmatprep.mubr.f32.mxu0 0.0
      %1073 = vmatmul.mubr.f32.gmra.mrb[0].mxu0 %v971
      %v1074 = vpop.f32.mrb[0].mxu0
      %v1075 = vadd.f32 0.0, %v1074
      %v1076 = vpop.f32.mrb[0].mxu0
      %1077 = vdwg.mxu0
      %v1079 = vsel %vm948, %v925, 0
      %v1082 = vsel %vm948, %v926, 0
      %v1085 = vsel %vm948, %v927, 0
      %v1088 = vsel %vm948, %v928, 0
      %v1091 = vsel %vm948, %v929, 0
      %v1094 = vsel %vm948, %v930, 0
      %v1097 = vsel %vm948, %v931, 0
      %v1100 = vsel %vm948, %v932, 0
      %1102 = vmatprep.subr.mxu0 0.0
      %1103 = vmatpush1.msra.mxu0 %v916
      %1104 = vmatprep.subr.mxu0 0.0
      %1105 = vmatpush1.msra.mxu0 0.0
      %1106 = vmatprep.subr.mxu0 0.0
      %1107 = vmatpush1.msra.mxu0 0.0
      %1108 = vmatprep.subr.mxu0 0.0
      %1109 = vmatpush1.msra.mxu0 0.0
      %1110 = vmatprep.subr.mxu0 0.0
      %1111 = vmatpush1.msra.mxu0 0.0
      %1112 = vmatprep.subr.mxu0 0.0
      %1113 = vmatpush1.msra.mxu0 0.0
      %1114 = vmatprep.subr.mxu0 0.0
      %1115 = vmatpush1.msra.mxu0 0.0
      %1116 = vmatprep.subr.mxu0 0.0
      %1117 = vmatpush1.msra.mxu0 0.0
      %1118 = vmatprep.subr.mxu0 0.0
      %1119 = vmatpush1.msra.mxu0 0.0
      %1120 = vmatprep.subr.mxu0 0.0
      %1121 = vmatpush1.msra.mxu0 0.0
      %1122 = vmatprep.subr.mxu0 0.0
      %1123 = vmatpush1.msra.mxu0 0.0
      %1124 = vmatprep.subr.mxu0 0.0
      %1125 = vmatpush1.msra.mxu0 0.0
      %1126 = vmatprep.subr.mxu0 0.0
      %1127 = vmatpush1.msra.mxu0 0.0
      %1128 = vmatprep.subr.mxu0 0.0
      %1129 = vmatpush1.msra.mxu0 0.0
      %1130 = vmatprep.subr.mxu0 0.0
      %1131 = vmatpush1.msra.mxu0 0.0
      %1132 = vmatprep.subr.mxu0 0.0
      %1133 = vmatpush1.msra.mxu0 0.0
      %1134 = vmatprep.subr.mxu0 0.0
      %1135 = vmatpush1.msra.mxu0 0.0
      %1136 = vmatprep.subr.mxu0 0.0
      %1137 = vmatpush1.msra.mxu0 0.0
      %1138 = vmatprep.subr.mxu0 0.0
      %1139 = vmatpush1.msra.mxu0 0.0
      %1140 = vmatprep.subr.mxu0 0.0
      %1141 = vmatpush1.msra.mxu0 0.0
      %1142 = vmatprep.subr.mxu0 0.0
      %1143 = vmatpush1.msra.mxu0 0.0
      %1144 = vmatprep.subr.mxu0 0.0
      %1145 = vmatpush1.msra.mxu0 0.0
      %1146 = vmatprep.subr.mxu0 0.0
      %1147 = vmatpush1.msra.mxu0 0.0
      %1148 = vmatprep.subr.mxu0 0.0
      %1149 = vmatpush1.msra.mxu0 0.0
      %1150 = vmatprep.subr.mxu0 0.0
      %1151 = vmatpush1.msra.mxu0 0.0
      %1152 = vmatprep.subr.mxu0 0.0
      %1153 = vmatpush1.msra.mxu0 0.0
      %1154 = vmatprep.subr.mxu0 0.0
      %1155 = vmatpush1.msra.mxu0 0.0
      %1156 = vmatprep.subr.mxu0 0.0
      %1157 = vmatpush1.msra.mxu0 0.0
      %1158 = vmatprep.subr.mxu0 0.0
      %1159 = vmatpush1.msra.mxu0 0.0
      %1160 = vmatprep.subr.mxu0 0.0
      %1161 = vmatpush1.msra.mxu0 0.0
      %1162 = vmatprep.subr.mxu0 0.0
      %1163 = vmatpush1.msra.mxu0 0.0
      %1164 = vmatprep.subr.mxu0 0.0
      %1165 = vmatpush1.msra.mxu0 0.0
      %1166 = vmatprep.mubr.f32.mxu0 0.0
      %1167 = vmatmul.mubr.f32.gmra.mrb[0].mxu0 %v1079
      %v1168 = vpop.f32.mrb[0].mxu0
      %v1169 = vadd.f32 0.0, %v1168
      %v1170 = vpop.f32.mrb[0].mxu0
      %1171 = vmatprep.mubr.f32.mxu0 0.0
      %1172 = vmatmul.mubr.f32.gmra.mrb[0].mxu0 %v1082
      %v1173 = vpop.f32.mrb[0].mxu0
      %v1174 = vadd.f32 0.0, %v1173
      %v1175 = vpop.f32.mrb[0].mxu0
      %1176 = vmatprep.mubr.f32.mxu0 0.0
      %1177 = vmatmul.mubr.f32.gmra.mrb[0].mxu0 %v1085
      %v1178 = vpop.f32.mrb[0].mxu0
      %v1179 = vadd.f32 0.0, %v1178
      %v1180 = vpop.f32.mrb[0].mxu0
      %1181 = vmatprep.mubr.f32.mxu0 0.0
      %1182 = vmatmul.mubr.f32.gmra.mrb[0].mxu0 %v1088
      %v1183 = vpop.f32.mrb[0].mxu0
      %v1184 = vadd.f32 0.0, %v1183
      %v1185 = vpop.f32.mrb[0].mxu0
      %1186 = vmatprep.mubr.f32.mxu0 0.0
      %1187 = vmatmul.mubr.f32.gmra.mrb[0].mxu0 %v1091
      %v1188 = vpop.f32.mrb[0].mxu0
      %v1189 = vadd.f32 0.0, %v1188
      %v1190 = vpop.f32.mrb[0].mxu0
      %1191 = vmatprep.mubr.f32.mxu0 0.0
      %1192 = vmatmul.mubr.f32.gmra.mrb[0].mxu0 %v1094
      %v1193 = vpop.f32.mrb[0].mxu0
      %v1194 = vadd.f32 0.0, %v1193
      %v1195 = vpop.f32.mrb[0].mxu0
      %1196 = vmatprep.mubr.f32.mxu0 0.0
      %1197 = vmatmul.mubr.f32.gmra.mrb[0].mxu0 %v1097
      %v1198 = vpop.f32.mrb[0].mxu0
      %v1199 = vadd.f32 0.0, %v1198
      %v1200 = vpop.f32.mrb[0].mxu0
      %1201 = vmatprep.mubr.f32.mxu0 0.0
      %1202 = vmatmul.mubr.f32.gmra.mrb[0].mxu0 %v1100
      %v1203 = vpop.f32.mrb[0].mxu0
      %v1204 = vadd.f32 0.0, %v1203
      %v1205 = vpop.f32.mrb[0].mxu0
      %1206 = vdwg.mxu0
      %v1207 = vmul.f32 %v1040, %v1169
      %v1208 = vmul.f32 %v1045, %v1174
      %v1209 = vmul.f32 %v1050, %v1179
      %v1210 = vmul.f32 %v1055, %v1184
      %v1211 = vmul.f32 %v1060, %v1189
      %v1212 = vmul.f32 %v1065, %v1194
      %v1213 = vmul.f32 %v1070, %v1199
      %v1214 = vmul.f32 %v1075, %v1204
      %v1215 = vld [vmem:[%s846] sm:$0xff]
      %v1216 = vld [vmem:[%s846 + $0x8] sm:$0xff]
      %v1217 = vld [vmem:[%s846 + $0x10] sm:$0xff]
      %v1218 = vld [vmem:[%s846 + $0x18] sm:$0xff]
      %v1219 = vld [vmem:[%s846 + $0x20] sm:$0xff]
      %v1220 = vld [vmem:[%s846 + $0x28] sm:$0xff]
      %v1221 = vld [vmem:[%s846 + $0x30] sm:$0xff]
      %v1222 = vld [vmem:[%s846 + $0x38] sm:$0xff]
      %v1223 = vld [vmem:[%s846 + $0x40] sm:$0xff]
      %v1224 = vld [vmem:[%s846 + $0x48] sm:$0xff]
      %v1225 = vld [vmem:[%s846 + $0x50] sm:$0x1]
      %v1226 = vld [vmem:[%s846 + $0x58] sm:$0x1]
      %v1227 = vld [vmem:[%s851] sm:$0xff]
      %v1228 = vld [vmem:[%s851 + $0x8] sm:$0xff]
      %v1229 = vld [vmem:[%s851 + $0x10] sm:$0xff]
      %v1230 = vld [vmem:[%s851 + $0x18] sm:$0xff]
      %v1231 = vld [vmem:[%s851 + $0x20] sm:$0xff]
      %v1232 = vld [vmem:[%s851 + $0x28] sm:$0xff]
      %v1233 = vld [vmem:[%s851 + $0x30] sm:$0xff]
      %v1234 = vld [vmem:[%s851 + $0x38] sm:$0xff]
      %v1235 = vld [vmem:[%s851 + $0x40] sm:$0xff]
      %v1236 = vld [vmem:[%s851 + $0x48] sm:$0xff]
      %v1237 = vld [vmem:[%s851 + $0x50] sm:$0x1]
      %v1238 = vld [vmem:[%s851 + $0x58] sm:$0x1]
      %v1239 = vld [vmem:[%s855] sm:$0x3]
      %v1240 = vld [vmem:[%s859] sm:$0x3]
      %v1241 = vld [vmem:[%s864] sm:$0xff]
      %v1242 = vld [vmem:[%s864 + $0x8] sm:$0xff]
      %v1243 = vld [vmem:[%s864 + $0x10] sm:$0xff]
      %v1244 = vld [vmem:[%s864 + $0x18] sm:$0xff]
      %v1245 = vld [vmem:[%s864 + $0x20] sm:$0xff]
      %v1246 = vld [vmem:[%s864 + $0x28] sm:$0xff]
      %v1247 = vld [vmem:[%s864 + $0x30] sm:$0xff]
      %v1248 = vld [vmem:[%s864 + $0x38] sm:$0xff]
      %v1249 = vld [vmem:[%s864 + $0x40] sm:$0xff]
      %v1250 = vld [vmem:[%s864 + $0x48] sm:$0xff]
      %v1251 = vld [vmem:[%s864 + $0x50] sm:$0xff]
      %v1252 = vld [vmem:[%s864 + $0x58] sm:$0xff]
      %v1253 = vld [vmem:[%s864 + $0x60] sm:$0xff]
      %v1254 = vld [vmem:[%s864 + $0x68] sm:$0xff]
      %v1255 = vld [vmem:[%s864 + $0x70] sm:$0xff]
      %v1256 = vld [vmem:[%s864 + $0x78] sm:$0xff]
      %v1257 = vld [vmem:[%s864 + $0x80] sm:$0xff]
      %v1258 = vld [vmem:[%s864 + $0x88] sm:$0xff]
      %v1259 = vld [vmem:[%s864 + $0x90] sm:$0xff]
      %v1260 = vld [vmem:[%s864 + $0x98] sm:$0xff]
      %v1261 = vld [vmem:[%s864 + $0xa0] sm:$0x3f]
      %v1262 = vld [vmem:[%s868] sm:$0x1]
      %v1263 = vld [vmem:[%s873] sm:$0xff]
      %v1264 = vld [vmem:[%s873 + $0x8] sm:$0xff]
      %v1265 = vld [vmem:[%s873 + $0x10] sm:$0xff]
      %v1266 = vld [vmem:[%s873 + $0x18] sm:$0xff]
      %v1267 = vld [vmem:[%s877] sm:$0x1]
      %v1268 = vld [vmem:[%s882] sm:$0xff]
      %v1269 = vld [vmem:[%s882 + $0x8] sm:$0xff]
      %v1270 = vld [vmem:[%s882 + $0x10] sm:$0xff]
      %v1271 = vld [vmem:[%s882 + $0x18] sm:$0xff]
      %v1272 = vld [vmem:[%s882 + $0x20] sm:$0xff]
      %v1273 = vld [vmem:[%s882 + $0x28] sm:$0xff]
      %v1274 = vld [vmem:[%s882 + $0x30] sm:$0xff]
      %v1275 = vld [vmem:[%s882 + $0x38] sm:$0xff]
      %v1276 = vld [vmem:[%s882 + $0x40] sm:$0xff]
      %v1277 = vld [vmem:[%s882 + $0x48] sm:$0xff]
      %v1278 = vld [vmem:[%s882 + $0x50] sm:$0xff]
      %v1279 = vld [vmem:[%s882 + $0x58] sm:$0xff]
      %v1280 = vld [vmem:[%s882 + $0x60] sm:$0xff]
      %v1281 = vld [vmem:[%s882 + $0x68] sm:$0xff]
      %v1282 = vld [vmem:[%s882 + $0x70] sm:$0xff]
      %v1283 = vld [vmem:[%s882 + $0x78] sm:$0xff]
      %v1284 = vld [vmem:[%s886] sm:$0x1]
      %v1285 = vld [vmem:[%s891] sm:$0xff]
      %v1286 = vld [vmem:[%s891 + $0x8] sm:$0xff]
      %v1287 = vld [vmem:[%s891 + $0x10] sm:$0xff]
      %v1288 = vld [vmem:[%s891 + $0x18] sm:$0xff]
      %v1289 = vld [vmem:[%s891 + $0x20] sm:$0xff]
      %v1290 = vld [vmem:[%s891 + $0x28] sm:$0x1]
      %v1291 = vld [vmem:[%s896] sm:$0xff]
      %v1292 = vld [vmem:[%s896 + $0x8] sm:$0xff]
      %v1293 = vld [vmem:[%s896 + $0x10] sm:$0xff]
      %v1294 = vld [vmem:[%s896 + $0x18] sm:$0xff]
      %v1295 = vld [vmem:[%s900] sm:$0x1]
      %v1296 = vld [vmem:[%s905] sm:$0xff]
      %v1297 = vld [vmem:[%s905 + $0x8] sm:$0xff]
      %v1298 = vld [vmem:[%s905 + $0x10] sm:$0xff]
      %v1299 = vld [vmem:[%s905 + $0x18] sm:$0xff]
      %v1300 = vld [vmem:[%s905 + $0x20] sm:$0xff]
      %v1301 = vld [vmem:[%s905 + $0x28] sm:$0xff]
      %v1302 = vld [vmem:[%s905 + $0x30] sm:$0xff]
      %v1303 = vld [vmem:[%s905 + $0x38] sm:$0xff]
      %v1304 = vld [vmem:[%s905 + $0x40] sm:$0xff]
      %v1305 = vld [vmem:[%s905 + $0x48] sm:$0xff]
      %v1306 = vld [vmem:[%s905 + $0x50] sm:$0x3]
      %v1307 = vld [vmem:[%s909] sm:$0x1]
      %1308 = vmatprep.subr.mxu0 0.0
      %1309 = vmatpush1.msra.mxu0 %v915
      %1310 = vmatprep.subr.mxu0 0.0
      %1311 = vmatpush1.msra.mxu0 0.0
      %1312 = vmatprep.subr.mxu0 0.0
      %1313 = vmatpush1.msra.mxu0 0.0
      %1314 = vmatprep.subr.mxu0 0.0
      %1315 = vmatpush1.msra.mxu0 0.0
      %1316 = vmatprep.subr.mxu0 0.0
      %1317 = vmatpush1.msra.mxu0 0.0
      %1318 = vmatprep.subr.mxu0 0.0
      %1319 = vmatpush1.msra.mxu0 0.0
      %1320 = vmatprep.subr.mxu0 0.0
      %1321 = vmatpush1.msra.mxu0 0.0
      %1322 = vmatprep.subr.mxu0 0.0
      %1323 = vmatpush1.msra.mxu0 0.0
      %1324 = vmatprep.subr.mxu0 0.0
      %1325 = vmatpush1.msra.mxu0 0.0
      %1326 = vmatprep.subr.mxu0 0.0
      %1327 = vmatpush1.msra.mxu0 0.0
      %1328 = vmatprep.subr.mxu0 0.0
      %1329 = vmatpush1.msra.mxu0 0.0
      %1330 = vmatprep.subr.mxu0 0.0
      %1331 = vmatpush1.msra.mxu0 0.0
      %1332 = vmatprep.subr.mxu0 0.0
      %1333 = vmatpush1.msra.mxu0 0.0
      %1334 = vmatprep.subr.mxu0 0.0
      %1335 = vmatpush1.msra.mxu0 0.0
      %1336 = vmatprep.subr.mxu0 0.0
      %1337 = vmatpush1.msra.mxu0 0.0
      %1338 = vmatprep.subr.mxu0 0.0
      %1339 = vmatpush1.msra.mxu0 0.0
      %1340 = vmatprep.subr.mxu0 0.0
      %1341 = vmatpush1.msra.mxu0 0.0
      %1342 = vmatprep.subr.mxu0 0.0
      %1343 = vmatpush1.msra.mxu0 0.0
      %1344 = vmatprep.subr.mxu0 0.0
      %1345 = vmatpush1.msra.mxu0 0.0
      %1346 = vmatprep.subr.mxu0 0.0
      %1347 = vmatpush1.msra.mxu0 0.0
      %1348 = vmatprep.subr.mxu0 0.0
      %1349 = vmatpush1.msra.mxu0 0.0
      %1350 = vmatprep.subr.mxu0 0.0
      %1351 = vmatpush1.msra.mxu0 0.0
      %1352 = vmatprep.subr.mxu0 0.0
      %1353 = vmatpush1.msra.mxu0 0.0
      %1354 = vmatprep.subr.mxu0 0.0
      %1355 = vmatpush1.msra.mxu0 0.0
      %1356 = vmatprep.subr.mxu0 0.0
      %1357 = vmatpush1.msra.mxu0 0.0
      %1358 = vmatprep.subr.mxu0 0.0
      %1359 = vmatpush1.msra.mxu0 0.0
      %1360 = vmatprep.subr.mxu0 0.0
      %1361 = vmatpush1.msra.mxu0 0.0
      %1362 = vmatprep.subr.mxu0 0.0
      %1363 = vmatpush1.msra.mxu0 0.0
      %1364 = vmatprep.subr.mxu0 0.0
      %1365 = vmatpush1.msra.mxu0 0.0
      %1366 = vmatprep.subr.mxu0 0.0
      %1367 = vmatpush1.msra.mxu0 0.0
      %1368 = vmatprep.subr.mxu0 0.0
      %1369 = vmatpush1.msra.mxu0 0.0
      %1370 = vmatprep.subr.mxu0 0.0
      %1371 = vmatpush1.msra.mxu0 0.0
      %1372 = vmatprep.mubr.f32.mxu0 0.0
      %1373 = vmatmul.mubr.f32.gmra.mrb[0].mxu0 %v950
      %v1374 = vpop.f32.mrb[0].mxu0
      %v1375 = vadd.f32 0.0, %v1374
      %v1376 = vpop.f32.mrb[0].mxu0
      %1377 = vmatprep.mubr.f32.mxu0 0.0
      %1378 = vmatmul.mubr.f32.gmra.mrb[0].mxu0 %v953
      %v1379 = vpop.f32.mrb[0].mxu0
      %v1380 = vadd.f32 0.0, %v1379
      %v1381 = vpop.f32.mrb[0].mxu0
      %1382 = vmatprep.mubr.f32.mxu0 0.0
      %1383 = vmatmul.mubr.f32.gmra.mrb[0].mxu0 %v956
      %v1384 = vpop.f32.mrb[0].mxu0
      %v1385 = vadd.f32 0.0, %v1384
      %v1386 = vpop.f32.mrb[0].mxu0
      %1387 = vmatprep.mubr.f32.mxu0 0.0
      %1388 = vmatmul.mubr.f32.gmra.mrb[0].mxu0 %v959
      %v1389 = vpop.f32.mrb[0].mxu0
      %v1390 = vadd.f32 0.0, %v1389
      %v1391 = vpop.f32.mrb[0].mxu0
      %1392 = vmatprep.mubr.f32.mxu0 0.0
      %1393 = vmatmul.mubr.f32.gmra.mrb[0].mxu0 %v962
      %v1394 = vpop.f32.mrb[0].mxu0
      %v1395 = vadd.f32 0.0, %v1394
      %v1396 = vpop.f32.mrb[0].mxu0
      %1397 = vmatprep.mubr.f32.mxu0 0.0
      %1398 = vmatmul.mubr.f32.gmra.mrb[0].mxu0 %v965
      %v1399 = vpop.f32.mrb[0].mxu0
      %v1400 = vadd.f32 0.0, %v1399
      %v1401 = vpop.f32.mrb[0].mxu0
      %1402 = vmatprep.mubr.f32.mxu0 0.0
      %1403 = vmatmul.mubr.f32.gmra.mrb[0].mxu0 %v968
      %v1404 = vpop.f32.mrb[0].mxu0
      %v1405 = vadd.f32 0.0, %v1404
      %v1406 = vpop.f32.mrb[0].mxu0
      %1407 = vmatprep.mubr.f32.mxu0 0.0
      %1408 = vmatmul.mubr.f32.gmra.mrb[0].mxu0 %v971
      %v1409 = vpop.f32.mrb[0].mxu0
      %v1410 = vadd.f32 0.0, %v1409
      %v1411 = vpop.f32.mrb[0].mxu0
      %1412 = vdwg.mxu0
      %1413 = vmatprep.subr.mxu0 0.0
      %1414 = vmatpush1.msra.mxu0 %v915
      %1415 = vmatprep.subr.mxu0 0.0
      %1416 = vmatpush1.msra.mxu0 0.0
      %1417 = vmatprep.subr.mxu0 0.0
      %1418 = vmatpush1.msra.mxu0 0.0
      %1419 = vmatprep.subr.mxu0 0.0
      %1420 = vmatpush1.msra.mxu0 0.0
      %1421 = vmatprep.subr.mxu0 0.0
      %1422 = vmatpush1.msra.mxu0 0.0
      %1423 = vmatprep.subr.mxu0 0.0
      %1424 = vmatpush1.msra.mxu0 0.0
      %1425 = vmatprep.subr.mxu0 0.0
      %1426 = vmatpush1.msra.mxu0 0.0
      %1427 = vmatprep.subr.mxu0 0.0
      %1428 = vmatpush1.msra.mxu0 0.0
      %1429 = vmatprep.subr.mxu0 0.0
      %1430 = vmatpush1.msra.mxu0 0.0
      %1431 = vmatprep.subr.mxu0 0.0
      %1432 = vmatpush1.msra.mxu0 0.0
      %1433 = vmatprep.subr.mxu0 0.0
      %1434 = vmatpush1.msra.mxu0 0.0
      %1435 = vmatprep.subr.mxu0 0.0
      %1436 = vmatpush1.msra.mxu0 0.0
      %1437 = vmatprep.subr.mxu0 0.0
      %1438 = vmatpush1.msra.mxu0 0.0
      %1439 = vmatprep.subr.mxu0 0.0
      %1440 = vmatpush1.msra.mxu0 0.0
      %1441 = vmatprep.subr.mxu0 0.0
      %1442 = vmatpush1.msra.mxu0 0.0
      %1443 = vmatprep.subr.mxu0 0.0
      %1444 = vmatpush1.msra.mxu0 0.0
      %1445 = vmatprep.subr.mxu0 0.0
      %1446 = vmatpush1.msra.mxu0 0.0
      %1447 = vmatprep.subr.mxu0 0.0
      %1448 = vmatpush1.msra.mxu0 0.0
      %1449 = vmatprep.subr.mxu0 0.0
      %1450 = vmatpush1.msra.mxu0 0.0
      %1451 = vmatprep.subr.mxu0 0.0
      %1452 = vmatpush1.msra.mxu0 0.0
      %1453 = vmatprep.subr.mxu0 0.0
      %1454 = vmatpush1.msra.mxu0 0.0
      %1455 = vmatprep.subr.mxu0 0.0
      %1456 = vmatpush1.msra.mxu0 0.0
      %1457 = vmatprep.subr.mxu0 0.0
      %1458 = vmatpush1.msra.mxu0 0.0
      %1459 = vmatprep.subr.mxu0 0.0
      %1460 = vmatpush1.msra.mxu0 0.0
      %1461 = vmatprep.subr.mxu0 0.0
      %1462 = vmatpush1.msra.mxu0 0.0
      %1463 = vmatprep.subr.mxu0 0.0
      %1464 = vmatpush1.msra.mxu0 0.0
      %1465 = vmatprep.subr.mxu0 0.0
      %1466 = vmatpush1.msra.mxu0 0.0
      %1467 = vmatprep.subr.mxu0 0.0
      %1468 = vmatpush1.msra.mxu0 0.0
      %1469 = vmatprep.subr.mxu0 0.0
      %1470 = vmatpush1.msra.mxu0 0.0
      %1471 = vmatprep.subr.mxu0 0.0
      %1472 = vmatpush1.msra.mxu0 0.0
      %1473 = vmatprep.subr.mxu0 0.0
      %1474 = vmatpush1.msra.mxu0 0.0
      %1475 = vmatprep.subr.mxu0 0.0
      %1476 = vmatpush1.msra.mxu0 0.0
      %1477 = vmatprep.mubr.f32.mxu0 0.0
      %1478 = vmatmul.mubr.f32.gmra.mrb[0].mxu0 %v1079
      %v1479 = vpop.f32.mrb[0].mxu0
      %v1480 = vadd.f32 0.0, %v1479
      %v1481 = vpop.f32.mrb[0].mxu0
      %1482 = vmatprep.mubr.f32.mxu0 0.0
      %1483 = vmatmul.mubr.f32.gmra.mrb[0].mxu0 %v1082
      %v1484 = vpop.f32.mrb[0].mxu0
      %v1485 = vadd.f32 0.0, %v1484
      %v1486 = vpop.f32.mrb[0].mxu0
      %1487 = vmatprep.mubr.f32.mxu0 0.0
      %1488 = vmatmul.mubr.f32.gmra.mrb[0].mxu0 %v1085
      %v1489 = vpop.f32.mrb[0].mxu0
      %v1490 = vadd.f32 0.0, %v1489
      %v1491 = vpop.f32.mrb[0].mxu0
      %1492 = vmatprep.mubr.f32.mxu0 0.0
      %1493 = vmatmul.mubr.f32.gmra.mrb[0].mxu0 %v1088
      %v1494 = vpop.f32.mrb[0].mxu0
      %v1495 = vadd.f32 0.0, %v1494
      %v1496 = vpop.f32.mrb[0].mxu0
      %1497 = vmatprep.mubr.f32.mxu0 0.0
      %1498 = vmatmul.mubr.f32.gmra.mrb[0].mxu0 %v1091
      %v1499 = vpop.f32.mrb[0].mxu0
      %v1500 = vadd.f32 0.0, %v1499
      %v1501 = vpop.f32.mrb[0].mxu0
      %1502 = vmatprep.mubr.f32.mxu0 0.0
      %1503 = vmatmul.mubr.f32.gmra.mrb[0].mxu0 %v1094
      %v1504 = vpop.f32.mrb[0].mxu0
      %v1505 = vadd.f32 0.0, %v1504
      %v1506 = vpop.f32.mrb[0].mxu0
      %1507 = vmatprep.mubr.f32.mxu0 0.0
      %1508 = vmatmul.mubr.f32.gmra.mrb[0].mxu0 %v1097
      %v1509 = vpop.f32.mrb[0].mxu0
      %v1510 = vadd.f32 0.0, %v1509
      %v1511 = vpop.f32.mrb[0].mxu0
      %1512 = vmatprep.mubr.f32.mxu0 0.0
      %1513 = vmatmul.mubr.f32.gmra.mrb[0].mxu0 %v1100
      %v1514 = vpop.f32.mrb[0].mxu0
      %v1515 = vadd.f32 0.0, %v1514
      %v1516 = vpop.f32.mrb[0].mxu0
      %1517 = vdwg.mxu0
      %v1518 = vsub.f32 %v1375, %v1480
      %v1519 = vsub.f32 %v1380, %v1485
      %v1520 = vsub.f32 %v1385, %v1490
      %v1521 = vsub.f32 %v1390, %v1495
      %v1522 = vsub.f32 %v1395, %v1500
      %v1523 = vsub.f32 %v1400, %v1505
      %v1524 = vsub.f32 %v1405, %v1510
      %v1525 = vsub.f32 %v1410, %v1515
      %v1526 = vmul.f32 %v1518, %v1518
      %v1527 = vmul.f32 %v1519, %v1519
      %v1528 = vmul.f32 %v1520, %v1520
      %v1529 = vmul.f32 %v1521, %v1521
      %v1530 = vmul.f32 %v1522, %v1522
      %v1531 = vmul.f32 %v1523, %v1523
      %v1532 = vmul.f32 %v1524, %v1524
      %v1533 = vmul.f32 %v1525, %v1525
      %vm1534 = vcmask 23552
      %v1535 = vsel %vm1534, %v1526, 0.0
      %1536 = vadd.xlane.f32.xlu0 %v1535
      %v1537 = vpop.xlane.xlu0 %1536
      %v1538 = vsel %vm1534, %v1527, 0.0
      %1539 = vadd.xlane.f32.xlu0 %v1538
      %v1540 = vpop.xlane.xlu0 %1539
      %v1541 = vsel %vm1534, %v1528, 0.0
      %1542 = vadd.xlane.f32.xlu0 %v1541
      %v1543 = vpop.xlane.xlu0 %1542
      %v1544 = vsel %vm1534, %v1529, 0.0
      %1545 = vadd.xlane.f32.xlu0 %v1544
      %v1546 = vpop.xlane.xlu0 %1545
      %v1547 = vsel %vm1534, %v1530, 0.0
      %1548 = vadd.xlane.f32.xlu0 %v1547
      %v1549 = vpop.xlane.xlu0 %1548
      %v1550 = vsel %vm1534, %v1531, 0.0
      %1551 = vadd.xlane.f32.xlu0 %v1550
      %v1552 = vpop.xlane.xlu0 %1551
      %v1553 = vsel %vm1534, %v1532, 0.0
      %1554 = vadd.xlane.f32.xlu0 %v1553
      %v1555 = vpop.xlane.xlu0 %1554
      %v1556 = vsel %vm1534, %v1533, 0.0
      %1557 = vadd.xlane.f32.xlu0 %v1556
      %v1558 = vpop.xlane.xlu0 %1557
      %vm1559 = vcmask 334848
      %v1561 = vsel %vm1559, %v914, 0
      %vm1563 = vcmask 1040384
      %v1565 = vsel %vm1563, %v1225, 0
      %v1568 = vsel %vm1563, %v1226, 0
      %1570 = vmatprep.subr.mxu0 %v1216
      %1571 = vmatpush1.msra.mxu0 %v1215
      %1572 = vmatprep.subr.mxu0 %v1218
      %1573 = vmatpush1.msra.mxu0 %v1217
      %1574 = vmatprep.subr.mxu0 %v1220
      %1575 = vmatpush1.msra.mxu0 %v1219
      %1576 = vmatprep.subr.mxu0 %v1222
      %1577 = vmatpush1.msra.mxu0 %v1221
      %1578 = vmatprep.subr.mxu0 %v1224
      %1579 = vmatpush1.msra.mxu0 %v1223
      %1580 = vmatprep.subr.mxu0 %v1568
      %1581 = vmatpush1.msra.mxu0 %v1565
      %1582 = vmatprep.subr.mxu0 0.0
      %1583 = vmatpush1.msra.mxu0 0.0
      %1584 = vmatprep.subr.mxu0 0.0
      %1585 = vmatpush1.msra.mxu0 0.0
      %1586 = vmatprep.subr.mxu0 0.0
      %1587 = vmatpush1.msra.mxu0 0.0
      %1588 = vmatprep.subr.mxu0 0.0
      %1589 = vmatpush1.msra.mxu0 0.0
      %1590 = vmatprep.subr.mxu0 0.0
      %1591 = vmatpush1.msra.mxu0 0.0
      %1592 = vmatprep.subr.mxu0 0.0
      %1593 = vmatpush1.msra.mxu0 0.0
      %1594 = vmatprep.subr.mxu0 0.0
      %1595 = vmatpush1.msra.mxu0 0.0
      %1596 = vmatprep.subr.mxu0 0.0
      %1597 = vmatpush1.msra.mxu0 0.0
      %1598 = vmatprep.subr.mxu0 0.0
      %1599 = vmatpush1.msra.mxu0 0.0
      %1600 = vmatprep.subr.mxu0 0.0
      %1601 = vmatpush1.msra.mxu0 0.0
      %1602 = vmatprep.subr.mxu0 0.0
      %1603 = vmatpush1.msra.mxu0 0.0
      %1604 = vmatprep.subr.mxu0 0.0
      %1605 = vmatpush1.msra.mxu0 0.0
      %1606 = vmatprep.subr.mxu0 0.0
      %1607 = vmatpush1.msra.mxu0 0.0
      %1608 = vmatprep.subr.mxu0 0.0
      %1609 = vmatpush1.msra.mxu0 0.0
      %1610 = vmatprep.subr.mxu0 0.0
      %1611 = vmatpush1.msra.mxu0 0.0
      %1612 = vmatprep.subr.mxu0 0.0
      %1613 = vmatpush1.msra.mxu0 0.0
      %1614 = vmatprep.subr.mxu0 0.0
      %1615 = vmatpush1.msra.mxu0 0.0
      %1616 = vmatprep.subr.mxu0 0.0
      %1617 = vmatpush1.msra.mxu0 0.0
      %1618 = vmatprep.subr.mxu0 0.0
      %1619 = vmatpush1.msra.mxu0 0.0
      %1620 = vmatprep.subr.mxu0 0.0
      %1621 = vmatpush1.msra.mxu0 0.0
      %1622 = vmatprep.subr.mxu0 0.0
      %1623 = vmatpush1.msra.mxu0 0.0
      %1624 = vmatprep.subr.mxu0 0.0
      %1625 = vmatpush1.msra.mxu0 0.0
      %1626 = vmatprep.subr.mxu0 0.0
      %1627 = vmatpush1.msra.mxu0 0.0
      %1628 = vmatprep.subr.mxu0 0.0
      %1629 = vmatpush1.msra.mxu0 0.0
      %1630 = vmatprep.subr.mxu0 0.0
      %1631 = vmatpush1.msra.mxu0 0.0
      %1632 = vmatprep.subr.mxu0 0.0
      %1633 = vmatpush1.msra.mxu0 0.0
      %1634 = vmatprep.mubr.f32.mxu0 0.0
      %1635 = vmatmul.mubr.f32.gmra.mrb[0].mxu0 %v1561
      %v1636 = vpop.f32.mrb[0].mxu0
      %v1637 = vadd.f32 0.0, %v1636
      %v1638 = vpop.f32.mrb[0].mxu0
      %v1639 = vadd.f32 0.0, %v1638
      %1640 = vdwg.mxu0
      %v1642 = vsel %vm1563, %v1237, 0
      %v1645 = vsel %vm1563, %v1238, 0
      %1647 = vmatprep.subr.mxu0 %v1228
      %1648 = vmatpush1.msra.mxu0 %v1227
      %1649 = vmatprep.subr.mxu0 %v1230
      %1650 = vmatpush1.msra.mxu0 %v1229
      %1651 = vmatprep.subr.mxu0 %v1232
      %1652 = vmatpush1.msra.mxu0 %v1231
      %1653 = vmatprep.subr.mxu0 %v1234
      %1654 = vmatpush1.msra.mxu0 %v1233
      %1655 = vmatprep.subr.mxu0 %v1236
      %1656 = vmatpush1.msra.mxu0 %v1235
      %1657 = vmatprep.subr.mxu0 %v1645
      %1658 = vmatpush1.msra.mxu0 %v1642
      %1659 = vmatprep.subr.mxu0 0.0
      %1660 = vmatpush1.msra.mxu0 0.0
      %1661 = vmatprep.subr.mxu0 0.0
      %1662 = vmatpush1.msra.mxu0 0.0
      %1663 = vmatprep.subr.mxu0 0.0
      %1664 = vmatpush1.msra.mxu0 0.0
      %1665 = vmatprep.subr.mxu0 0.0
      %1666 = vmatpush1.msra.mxu0 0.0
      %1667 = vmatprep.subr.mxu0 0.0
      %1668 = vmatpush1.msra.mxu0 0.0
      %1669 = vmatprep.subr.mxu0 0.0
      %1670 = vmatpush1.msra.mxu0 0.0
      %1671 = vmatprep.subr.mxu0 0.0
      %1672 = vmatpush1.msra.mxu0 0.0
      %1673 = vmatprep.subr.mxu0 0.0
      %1674 = vmatpush1.msra.mxu0 0.0
      %1675 = vmatprep.subr.mxu0 0.0
      %1676 = vmatpush1.msra.mxu0 0.0
      %1677 = vmatprep.subr.mxu0 0.0
      %1678 = vmatpush1.msra.mxu0 0.0
      %1679 = vmatprep.subr.mxu0 0.0
      %1680 = vmatpush1.msra.mxu0 0.0
      %1681 = vmatprep.subr.mxu0 0.0
      %1682 = vmatpush1.msra.mxu0 0.0
      %1683 = vmatprep.subr.mxu0 0.0
      %1684 = vmatpush1.msra.mxu0 0.0
      %1685 = vmatprep.subr.mxu0 0.0
      %1686 = vmatpush1.msra.mxu0 0.0
      %1687 = vmatprep.subr.mxu0 0.0
      %1688 = vmatpush1.msra.mxu0 0.0
      %1689 = vmatprep.subr.mxu0 0.0
      %1690 = vmatpush1.msra.mxu0 0.0
      %1691 = vmatprep.subr.mxu0 0.0
      %1692 = vmatpush1.msra.mxu0 0.0
      %1693 = vmatprep.subr.mxu0 0.0
      %1694 = vmatpush1.msra.mxu0 0.0
      %1695 = vmatprep.subr.mxu0 0.0
      %1696 = vmatpush1.msra.mxu0 0.0
      %1697 = vmatprep.subr.mxu0 0.0
      %1698 = vmatpush1.msra.mxu0 0.0
      %1699 = vmatprep.subr.mxu0 0.0
      %1700 = vmatpush1.msra.mxu0 0.0
      %1701 = vmatprep.subr.mxu0 0.0
      %1702 = vmatpush1.msra.mxu0 0.0
      %1703 = vmatprep.subr.mxu0 0.0
      %1704 = vmatpush1.msra.mxu0 0.0
      %1705 = vmatprep.subr.mxu0 0.0
      %1706 = vmatpush1.msra.mxu0 0.0
      %1707 = vmatprep.subr.mxu0 0.0
      %1708 = vmatpush1.msra.mxu0 0.0
      %1709 = vmatprep.subr.mxu0 0.0
      %1710 = vmatpush1.msra.mxu0 0.0
      %1711 = vmatprep.mubr.f32.mxu0 0.0
      %1712 = vmatmul.mubr.f32.gmra.mrb[0].mxu0 %v1561
      %v1713 = vpop.f32.mrb[0].mxu0
      %v1714 = vadd.f32 0.0, %v1713
      %v1715 = vpop.f32.mrb[0].mxu0
      %v1716 = vadd.f32 0.0, %v1715
      %1717 = vdwg.mxu0
      %1718 = vmatprep.subr.mxu0 %v1716
      %1719 = vmatpush1.msra.mxu0 %v1714
      %1720 = vmatprep.subr.mxu0 0.0
      %1721 = vmatpush1.msra.mxu0 0.0
      %1722 = vmatprep.subr.mxu0 0.0
      %1723 = vmatpush1.msra.mxu0 0.0
      %1724 = vmatprep.subr.mxu0 0.0
      %1725 = vmatpush1.msra.mxu0 0.0
      %1726 = vmatprep.subr.mxu0 0.0
      %1727 = vmatpush1.msra.mxu0 0.0
      %1728 = vmatprep.subr.mxu0 0.0
      %1729 = vmatpush1.msra.mxu0 0.0
      %1730 = vmatprep.subr.mxu0 0.0
      %1731 = vmatpush1.msra.mxu0 0.0
      %1732 = vmatprep.subr.mxu0 0.0
      %1733 = vmatpush1.msra.mxu0 0.0
      %1734 = vmatprep.subr.mxu0 0.0
      %1735 = vmatpush1.msra.mxu0 0.0
      %1736 = vmatprep.subr.mxu0 0.0
      %1737 = vmatpush1.msra.mxu0 0.0
      %1738 = vmatprep.subr.mxu0 0.0
      %1739 = vmatpush1.msra.mxu0 0.0
      %1740 = vmatprep.subr.mxu0 0.0
      %1741 = vmatpush1.msra.mxu0 0.0
      %1742 = vmatprep.subr.mxu0 0.0
      %1743 = vmatpush1.msra.mxu0 0.0
      %1744 = vmatprep.subr.mxu0 0.0
      %1745 = vmatpush1.msra.mxu0 0.0
      %1746 = vmatprep.subr.mxu0 0.0
      %1747 = vmatpush1.msra.mxu0 0.0
      %1748 = vmatprep.subr.mxu0 0.0
      %1749 = vmatpush1.msra.mxu0 0.0
      %1750 = vmatprep.subr.mxu0 0.0
      %1751 = vmatpush1.msra.mxu0 0.0
      %1752 = vmatprep.subr.mxu0 0.0
      %1753 = vmatpush1.msra.mxu0 0.0
      %1754 = vmatprep.subr.mxu0 0.0
      %1755 = vmatpush1.msra.mxu0 0.0
      %1756 = vmatprep.subr.mxu0 0.0
      %1757 = vmatpush1.msra.mxu0 0.0
      %1758 = vmatprep.subr.mxu0 0.0
      %1759 = vmatpush1.msra.mxu0 0.0
      %1760 = vmatprep.subr.mxu0 0.0
      %1761 = vmatpush1.msra.mxu0 0.0
      %1762 = vmatprep.subr.mxu0 0.0
      %1763 = vmatpush1.msra.mxu0 0.0
      %1764 = vmatprep.subr.mxu0 0.0
      %1765 = vmatpush1.msra.mxu0 0.0
      %1766 = vmatprep.subr.mxu0 0.0
      %1767 = vmatpush1.msra.mxu0 0.0
      %1768 = vmatprep.subr.mxu0 0.0
      %1769 = vmatpush1.msra.mxu0 0.0
      %1770 = vmatprep.subr.mxu0 0.0
      %1771 = vmatpush1.msra.mxu0 0.0
      %1772 = vmatprep.subr.mxu0 0.0
      %1773 = vmatpush1.msra.mxu0 0.0
      %1774 = vmatprep.subr.mxu0 0.0
      %1775 = vmatpush1.msra.mxu0 0.0
      %1776 = vmatprep.subr.mxu0 0.0
      %1777 = vmatpush1.msra.mxu0 0.0
      %1778 = vmatprep.subr.mxu0 0.0
      %1779 = vmatpush1.msra.mxu0 0.0
      %1780 = vmatprep.subr.mxu0 0.0
      %1781 = vmatpush1.msra.mxu0 0.0
      %1782 = vmatprep.mubr.f32.mxu0 0.0
      %1783 = vmatmul.mubr.f32.gmra.mrb[0].mxu0 %v1079
      %v1784 = vpop.f32.mrb[0].mxu0
      %v1785 = vadd.f32 0.0, %v1784
      %v1786 = vpop.f32.mrb[0].mxu0
      %v1787 = vadd.f32 0.0, %v1786
      %1788 = vmatprep.mubr.f32.mxu0 0.0
      %1789 = vmatmul.mubr.f32.gmra.mrb[0].mxu0 %v1082
      %v1790 = vpop.f32.mrb[0].mxu0
      %v1791 = vadd.f32 0.0, %v1790
      %v1792 = vpop.f32.mrb[0].mxu0
      %v1793 = vadd.f32 0.0, %v1792
      %1794 = vmatprep.mubr.f32.mxu0 0.0
      %1795 = vmatmul.mubr.f32.gmra.mrb[0].mxu0 %v1085
      %v1796 = vpop.f32.mrb[0].mxu0
      %v1797 = vadd.f32 0.0, %v1796
      %v1798 = vpop.f32.mrb[0].mxu0
      %v1799 = vadd.f32 0.0, %v1798
      %1800 = vmatprep.mubr.f32.mxu0 0.0
      %1801 = vmatmul.mubr.f32.gmra.mrb[0].mxu0 %v1088
      %v1802 = vpop.f32.mrb[0].mxu0
      %v1803 = vadd.f32 0.0, %v1802
      %v1804 = vpop.f32.mrb[0].mxu0
      %v1805 = vadd.f32 0.0, %v1804
      %1806 = vmatprep.mubr.f32.mxu0 0.0
      %1807 = vmatmul.mubr.f32.gmra.mrb[0].mxu0 %v1091
      %v1808 = vpop.f32.mrb[0].mxu0
      %v1809 = vadd.f32 0.0, %v1808
      %v1810 = vpop.f32.mrb[0].mxu0
      %v1811 = vadd.f32 0.0, %v1810
      %1812 = vmatprep.mubr.f32.mxu0 0.0
      %1813 = vmatmul.mubr.f32.gmra.mrb[0].mxu0 %v1094
      %v1814 = vpop.f32.mrb[0].mxu0
      %v1815 = vadd.f32 0.0, %v1814
      %v1816 = vpop.f32.mrb[0].mxu0
      %v1817 = vadd.f32 0.0, %v1816
      %1818 = vmatprep.mubr.f32.mxu0 0.0
      %1819 = vmatmul.mubr.f32.gmra.mrb[0].mxu0 %v1097
      %v1820 = vpop.f32.mrb[0].mxu0
      %v1821 = vadd.f32 0.0, %v1820
      %v1822 = vpop.f32.mrb[0].mxu0
      %v1823 = vadd.f32 0.0, %v1822
      %1824 = vmatprep.mubr.f32.mxu0 0.0
      %1825 = vmatmul.mubr.f32.gmra.mrb[0].mxu0 %v1100
      %v1826 = vpop.f32.mrb[0].mxu0
      %v1827 = vadd.f32 0.0, %v1826
      %v1828 = vpop.f32.mrb[0].mxu0
      %v1829 = vadd.f32 0.0, %v1828
      %1830 = vdwg.mxu0
      %1831 = vmatprep.subr.mxu0 %v1639
      %1832 = vmatpush1.msra.mxu0 %v1637
      %1833 = vmatprep.subr.mxu0 0.0
      %1834 = vmatpush1.msra.mxu0 0.0
      %1835 = vmatprep.subr.mxu0 0.0
      %1836 = vmatpush1.msra.mxu0 0.0
      %1837 = vmatprep.subr.mxu0 0.0
      %1838 = vmatpush1.msra.mxu0 0.0
      %1839 = vmatprep.subr.mxu0 0.0
      %1840 = vmatpush1.msra.mxu0 0.0
      %1841 = vmatprep.subr.mxu0 0.0
      %1842 = vmatpush1.msra.mxu0 0.0
      %1843 = vmatprep.subr.mxu0 0.0
      %1844 = vmatpush1.msra.mxu0 0.0
      %1845 = vmatprep.subr.mxu0 0.0
      %1846 = vmatpush1.msra.mxu0 0.0
      %1847 = vmatprep.subr.mxu0 0.0
      %1848 = vmatpush1.msra.mxu0 0.0
      %1849 = vmatprep.subr.mxu0 0.0
      %1850 = vmatpush1.msra.mxu0 0.0
      %1851 = vmatprep.subr.mxu0 0.0
      %1852 = vmatpush1.msra.mxu0 0.0
      %1853 = vmatprep.subr.mxu0 0.0
      %1854 = vmatpush1.msra.mxu0 0.0
      %1855 = vmatprep.subr.mxu0 0.0
      %1856 = vmatpush1.msra.mxu0 0.0
      %1857 = vmatprep.subr.mxu0 0.0
      %1858 = vmatpush1.msra.mxu0 0.0
      %1859 = vmatprep.subr.mxu0 0.0
      %1860 = vmatpush1.msra.mxu0 0.0
      %1861 = vmatprep.subr.mxu0 0.0
      %1862 = vmatpush1.msra.mxu0 0.0
      %1863 = vmatprep.subr.mxu0 0.0
      %1864 = vmatpush1.msra.mxu0 0.0
      %1865 = vmatprep.subr.mxu0 0.0
      %1866 = vmatpush1.msra.mxu0 0.0
      %1867 = vmatprep.subr.mxu0 0.0
      %1868 = vmatpush1.msra.mxu0 0.0
      %1869 = vmatprep.subr.mxu0 0.0
      %1870 = vmatpush1.msra.mxu0 0.0
      %1871 = vmatprep.subr.mxu0 0.0
      %1872 = vmatpush1.msra.mxu0 0.0
      %1873 = vmatprep.subr.mxu0 0.0
      %1874 = vmatpush1.msra.mxu0 0.0
      %1875 = vmatprep.subr.mxu0 0.0
      %1876 = vmatpush1.msra.mxu0 0.0
      %1877 = vmatprep.subr.mxu0 0.0
      %1878 = vmatpush1.msra.mxu0 0.0
      %1879 = vmatprep.subr.mxu0 0.0
      %1880 = vmatpush1.msra.mxu0 0.0
      %1881 = vmatprep.subr.mxu0 0.0
      %1882 = vmatpush1.msra.mxu0 0.0
      %1883 = vmatprep.subr.mxu0 0.0
      %1884 = vmatpush1.msra.mxu0 0.0
      %1885 = vmatprep.subr.mxu0 0.0
      %1886 = vmatpush1.msra.mxu0 0.0
      %1887 = vmatprep.subr.mxu0 0.0
      %1888 = vmatpush1.msra.mxu0 0.0
      %1889 = vmatprep.subr.mxu0 0.0
      %1890 = vmatpush1.msra.mxu0 0.0
      %1891 = vmatprep.subr.mxu0 0.0
      %1892 = vmatpush1.msra.mxu0 0.0
      %1893 = vmatprep.subr.mxu0 0.0
      %1894 = vmatpush1.msra.mxu0 0.0
      %1895 = vmatprep.mubr.f32.mxu0 0.0
      %1896 = vmatmul.mubr.f32.gmra.mrb[0].mxu0 %v950
      %v1897 = vpop.f32.mrb[0].mxu0
      %v1898 = vadd.f32 %v1785, %v1897
      %v1899 = vpop.f32.mrb[0].mxu0
      %v1900 = vadd.f32 %v1787, %v1899
      %1901 = vmatprep.mubr.f32.mxu0 0.0
      %1902 = vmatmul.mubr.f32.gmra.mrb[0].mxu0 %v953
      %v1903 = vpop.f32.mrb[0].mxu0
      %v1904 = vadd.f32 %v1791, %v1903
      %v1905 = vpop.f32.mrb[0].mxu0
      %v1906 = vadd.f32 %v1793, %v1905
      %1907 = vmatprep.mubr.f32.mxu0 0.0
      %1908 = vmatmul.mubr.f32.gmra.mrb[0].mxu0 %v956
      %v1909 = vpop.f32.mrb[0].mxu0
      %v1910 = vadd.f32 %v1797, %v1909
      %v1911 = vpop.f32.mrb[0].mxu0
      %v1912 = vadd.f32 %v1799, %v1911
      %1913 = vmatprep.mubr.f32.mxu0 0.0
      %1914 = vmatmul.mubr.f32.gmra.mrb[0].mxu0 %v959
      %v1915 = vpop.f32.mrb[0].mxu0
      %v1916 = vadd.f32 %v1803, %v1915
      %v1917 = vpop.f32.mrb[0].mxu0
      %v1918 = vadd.f32 %v1805, %v1917
      %1919 = vmatprep.mubr.f32.mxu0 0.0
      %1920 = vmatmul.mubr.f32.gmra.mrb[0].mxu0 %v962
      %v1921 = vpop.f32.mrb[0].mxu0
      %v1922 = vadd.f32 %v1809, %v1921
      %v1923 = vpop.f32.mrb[0].mxu0
      %v1924 = vadd.f32 %v1811, %v1923
      %1925 = vmatprep.mubr.f32.mxu0 0.0
      %1926 = vmatmul.mubr.f32.gmra.mrb[0].mxu0 %v965
      %v1927 = vpop.f32.mrb[0].mxu0
      %v1928 = vadd.f32 %v1815, %v1927
      %v1929 = vpop.f32.mrb[0].mxu0
      %v1930 = vadd.f32 %v1817, %v1929
      %1931 = vmatprep.mubr.f32.mxu0 0.0
      %1932 = vmatmul.mubr.f32.gmra.mrb[0].mxu0 %v968
      %v1933 = vpop.f32.mrb[0].mxu0
      %v1934 = vadd.f32 %v1821, %v1933
      %v1935 = vpop.f32.mrb[0].mxu0
      %v1936 = vadd.f32 %v1823, %v1935
      %1937 = vmatprep.mubr.f32.mxu0 0.0
      %1938 = vmatmul.mubr.f32.gmra.mrb[0].mxu0 %v971
      %v1939 = vpop.f32.mrb[0].mxu0
      %v1940 = vadd.f32 %v1827, %v1939
      %v1941 = vpop.f32.mrb[0].mxu0
      %v1942 = vadd.f32 %v1829, %v1941
      %1943 = vdwg.mxu0
      %v1945 = vlaneseq
      %v1946 = vshrl.u32 %v1945, 7
      %v1947 = vsub.s32 0, %v1946
      %v1948 = vrot.slane %v1239, %v1947
      %v1949 = vlaneseq
      %v1950 = vshrl.u32 %v1949, 7
      %v1951 = vsub.s32 1, %v1950
      %v1952 = vrot.slane %v1239, %v1951
      %v1955 = vmul.f32 %v1537, %v1948
      %v1956 = vmul.f32 %v1537, %v1952
      %v1957 = vmul.f32 %v1540, %v1948
      %v1958 = vmul.f32 %v1540, %v1952
      %v1959 = vmul.f32 %v1543, %v1948
      %v1960 = vmul.f32 %v1543, %v1952
      %v1961 = vmul.f32 %v1546, %v1948
      %v1962 = vmul.f32 %v1546, %v1952
      %v1963 = vmul.f32 %v1549, %v1948
      %v1964 = vmul.f32 %v1549, %v1952
      %v1965 = vmul.f32 %v1552, %v1948
      %v1966 = vmul.f32 %v1552, %v1952
      %v1967 = vmul.f32 %v1555, %v1948
      %v1968 = vmul.f32 %v1555, %v1952
      %v1969 = vmul.f32 %v1558, %v1948
      %v1970 = vmul.f32 %v1558, %v1952
      %v1971 = vadd.f32 %v1898, %v1955
      %v1972 = vadd.f32 %v1900, %v1956
      %v1973 = vadd.f32 %v1904, %v1957
      %v1974 = vadd.f32 %v1906, %v1958
      %v1975 = vadd.f32 %v1910, %v1959
      %v1976 = vadd.f32 %v1912, %v1960
      %v1977 = vadd.f32 %v1916, %v1961
      %v1978 = vadd.f32 %v1918, %v1962
      %v1979 = vadd.f32 %v1922, %v1963
      %v1980 = vadd.f32 %v1924, %v1964
      %v1981 = vadd.f32 %v1928, %v1965
      %v1982 = vadd.f32 %v1930, %v1966
      %v1983 = vadd.f32 %v1934, %v1967
      %v1984 = vadd.f32 %v1936, %v1968
      %v1985 = vadd.f32 %v1940, %v1969
      %v1986 = vadd.f32 %v1942, %v1970
      %v1988 = vlaneseq
      %v1989 = vshrl.u32 %v1988, 7
      %v1990 = vsub.s32 0, %v1989
      %v1991 = vrot.slane %v1240, %v1990
      %v1992 = vlaneseq
      %v1993 = vshrl.u32 %v1992, 7
      %v1994 = vsub.s32 1, %v1993
      %v1995 = vrot.slane %v1240, %v1994
      %v1998 = vadd.f32 %v1971, %v1991
      %v1999 = vadd.f32 %v1972, %v1995
      %v2000 = vadd.f32 %v1973, %v1991
      %v2001 = vadd.f32 %v1974, %v1995
      %v2002 = vadd.f32 %v1975, %v1991
      %v2003 = vadd.f32 %v1976, %v1995
      %v2004 = vadd.f32 %v1977, %v1991
      %v2005 = vadd.f32 %v1978, %v1995
      %v2006 = vadd.f32 %v1979, %v1991
      %v2007 = vadd.f32 %v1980, %v1995
      %v2008 = vadd.f32 %v1981, %v1991
      %v2009 = vadd.f32 %v1982, %v1995
      %v2010 = vadd.f32 %v1983, %v1991
      %v2011 = vadd.f32 %v1984, %v1995
      %v2012 = vadd.f32 %v1985, %v1991
      %v2013 = vadd.f32 %v1986, %v1995
      %v2014 = vmul.f32 %v1998, 0.5
      %v2015 = vmul.f32 %v1999, 0.5
      %v2016 = vmul.f32 %v2000, 0.5
      %v2017 = vmul.f32 %v2001, 0.5
      %v2018 = vmul.f32 %v2002, 0.5
      %v2019 = vmul.f32 %v2003, 0.5
      %v2020 = vmul.f32 %v2004, 0.5
      %v2021 = vmul.f32 %v2005, 0.5
      %v2022 = vmul.f32 %v2006, 0.5
      %v2023 = vmul.f32 %v2007, 0.5
      %v2024 = vmul.f32 %v2008, 0.5
      %v2025 = vmul.f32 %v2009, 0.5
      %v2026 = vmul.f32 %v2010, 0.5
      %v2027 = vmul.f32 %v2011, 0.5
      %v2028 = vmul.f32 %v2012, 0.5
      %v2029 = vmul.f32 %v2013, 0.5
      %v2030 = vtanh.pop %v2014
      %v2031 = vtanh.pop %v2015
      %v2032 = vtanh.pop %v2016
      %v2033 = vtanh.pop %v2017
      %v2034 = vtanh.pop %v2018
      %v2035 = vtanh.pop %v2019
      %v2036 = vtanh.pop %v2020
      %v2037 = vtanh.pop %v2021
      %v2038 = vtanh.pop %v2022
      %v2039 = vtanh.pop %v2023
      %v2040 = vtanh.pop %v2024
      %v2041 = vtanh.pop %v2025
      %v2042 = vtanh.pop %v2026
      %v2043 = vtanh.pop %v2027
      %v2044 = vtanh.pop %v2028
      %v2045 = vtanh.pop %v2029
      %v2046 = vmul.f32 %v2030, 0.5
      %v2047 = vmul.f32 %v2031, 0.5
      %v2048 = vmul.f32 %v2032, 0.5
      %v2049 = vmul.f32 %v2033, 0.5
      %v2050 = vmul.f32 %v2034, 0.5
      %v2051 = vmul.f32 %v2035, 0.5
      %v2052 = vmul.f32 %v2036, 0.5
      %v2053 = vmul.f32 %v2037, 0.5
      %v2054 = vmul.f32 %v2038, 0.5
      %v2055 = vmul.f32 %v2039, 0.5
      %v2056 = vmul.f32 %v2040, 0.5
      %v2057 = vmul.f32 %v2041, 0.5
      %v2058 = vmul.f32 %v2042, 0.5
      %v2059 = vmul.f32 %v2043, 0.5
      %v2060 = vmul.f32 %v2044, 0.5
      %v2061 = vmul.f32 %v2045, 0.5
      %v2062 = vadd.f32 %v2046, 0.5
      %v2063 = vadd.f32 %v2047, 0.5
      %v2064 = vadd.f32 %v2048, 0.5
      %v2065 = vadd.f32 %v2049, 0.5
      %v2066 = vadd.f32 %v2050, 0.5
      %v2067 = vadd.f32 %v2051, 0.5
      %v2068 = vadd.f32 %v2052, 0.5
      %v2069 = vadd.f32 %v2053, 0.5
      %v2070 = vadd.f32 %v2054, 0.5
      %v2071 = vadd.f32 %v2055, 0.5
      %v2072 = vadd.f32 %v2056, 0.5
      %v2073 = vadd.f32 %v2057, 0.5
      %v2074 = vadd.f32 %v2058, 0.5
      %v2075 = vadd.f32 %v2059, 0.5
      %v2076 = vadd.f32 %v2060, 0.5
      %v2077 = vadd.f32 %v2061, 0.5
      %v2078 = vmul.f32 %v1998, %v2062
      %v2079 = vmul.f32 %v1999, %v2063
      %v2080 = vmul.f32 %v2000, %v2064
      %v2081 = vmul.f32 %v2001, %v2065
      %v2082 = vmul.f32 %v2002, %v2066
      %v2083 = vmul.f32 %v2003, %v2067
      %v2084 = vmul.f32 %v2004, %v2068
      %v2085 = vmul.f32 %v2005, %v2069
      %v2086 = vmul.f32 %v2006, %v2070
      %v2087 = vmul.f32 %v2007, %v2071
      %v2088 = vmul.f32 %v2008, %v2072
      %v2089 = vmul.f32 %v2009, %v2073
      %v2090 = vmul.f32 %v2010, %v2074
      %v2091 = vmul.f32 %v2011, %v2075
      %v2092 = vmul.f32 %v2012, %v2076
      %v2093 = vmul.f32 %v2013, %v2077
      %v2095 = vlaneseq
      %v2096 = vshrl.u32 %v2095, 7
      %v2097 = vsub.s32 0, %v2096
      %v2098 = vrot.slane %v1262, %v2097
      %vm2100 = vcmask 310272
      %v2102 = vsel %vm2100, %v2079, 0
      %v2105 = vsel %vm2100, %v2081, 0
      %v2108 = vsel %vm2100, %v2083, 0
      %v2111 = vsel %vm2100, %v2085, 0
      %v2114 = vsel %vm2100, %v2087, 0
      %v2117 = vsel %vm2100, %v2089, 0
      %v2120 = vsel %vm2100, %v2091, 0
      %v2123 = vsel %vm2100, %v2093, 0
      %vm2125 = vcmask 1045504
      %v2127 = vsel %vm2125, %v1261, 0
      %2129 = vmatprep.subr.mxu0 0.0
      %2130 = vmatpush1.msra.mxu0 %v1241
      %2131 = vmatprep.subr.mxu0 0.0
      %2132 = vmatpush1.msra.mxu0 %v1242
      %2133 = vmatprep.subr.mxu0 0.0
      %2134 = vmatpush1.msra.mxu0 %v1243
      %2135 = vmatprep.subr.mxu0 0.0
      %2136 = vmatpush1.msra.mxu0 %v1244
      %2137 = vmatprep.subr.mxu0 0.0
      %2138 = vmatpush1.msra.mxu0 %v1245
      %2139 = vmatprep.subr.mxu0 0.0
      %2140 = vmatpush1.msra.mxu0 %v1246
      %2141 = vmatprep.subr.mxu0 0.0
      %2142 = vmatpush1.msra.mxu0 %v1247
      %2143 = vmatprep.subr.mxu0 0.0
      %2144 = vmatpush1.msra.mxu0 %v1248
      %2145 = vmatprep.subr.mxu0 0.0
      %2146 = vmatpush1.msra.mxu0 %v1249
      %2147 = vmatprep.subr.mxu0 0.0
      %2148 = vmatpush1.msra.mxu0 %v1250
      %2149 = vmatprep.subr.mxu0 0.0
      %2150 = vmatpush1.msra.mxu0 %v1251
      %2151 = vmatprep.subr.mxu0 0.0
      %2152 = vmatpush1.msra.mxu0 %v1252
      %2153 = vmatprep.subr.mxu0 0.0
      %2154 = vmatpush1.msra.mxu0 %v1253
      %2155 = vmatprep.subr.mxu0 0.0
      %2156 = vmatpush1.msra.mxu0 %v1254
      %2157 = vmatprep.subr.mxu0 0.0
      %2158 = vmatpush1.msra.mxu0 %v1255
      %2159 = vmatprep.subr.mxu0 0.0
      %2160 = vmatpush1.msra.mxu0 %v1256
      %2161 = vmatprep.subr.mxu0 0.0
      %2162 = vmatpush1.msra.mxu0 %v1257
      %2163 = vmatprep.subr.mxu0 0.0
      %2164 = vmatpush1.msra.mxu0 %v1258
      %2165 = vmatprep.subr.mxu0 0.0
      %2166 = vmatpush1.msra.mxu0 %v1259
      %2167 = vmatprep.subr.mxu0 0.0
      %2168 = vmatpush1.msra.mxu0 %v1260
      %2169 = vmatprep.subr.mxu0 0.0
      %2170 = vmatpush1.msra.mxu0 %v2127
      %2171 = vmatprep.subr.mxu0 0.0
      %2172 = vmatpush1.msra.mxu0 0.0
      %2173 = vmatprep.subr.mxu0 0.0
      %2174 = vmatpush1.msra.mxu0 0.0
      %2175 = vmatprep.subr.mxu0 0.0
      %2176 = vmatpush1.msra.mxu0 0.0
      %2177 = vmatprep.subr.mxu0 0.0
      %2178 = vmatpush1.msra.mxu0 0.0
      %2179 = vmatprep.subr.mxu0 0.0
      %2180 = vmatpush1.msra.mxu0 0.0
      %2181 = vmatprep.subr.mxu0 0.0
      %2182 = vmatpush1.msra.mxu0 0.0
      %2183 = vmatprep.subr.mxu0 0.0
      %2184 = vmatpush1.msra.mxu0 0.0
      %2185 = vmatprep.subr.mxu0 0.0
      %2186 = vmatpush1.msra.mxu0 0.0
      %2187 = vmatprep.subr.mxu0 0.0
      %2188 = vmatpush1.msra.mxu0 0.0
      %2189 = vmatprep.subr.mxu0 0.0
      %2190 = vmatpush1.msra.mxu0 0.0
      %2191 = vmatprep.subr.mxu0 0.0
      %2192 = vmatpush1.msra.mxu0 0.0
      %2193 = vmatprep.mubr.f32.mxu0 %v2102
      %2194 = vmatmul.mubr.f32.gmra.mrb[0].mxu0 %v2078
      %v2195 = vpop.f32.mrb[0].mxu0
      %v2196 = vadd.f32 %v2098, %v2195
      %v2197 = vpop.f32.mrb[0].mxu0
      %2198 = vmatprep.mubr.f32.mxu0 %v2105
      %2199 = vmatmul.mubr.f32.gmra.mrb[0].mxu0 %v2080
      %v2200 = vpop.f32.mrb[0].mxu0
      %v2201 = vadd.f32 %v2098, %v2200
      %v2202 = vpop.f32.mrb[0].mxu0
      %2203 = vmatprep.mubr.f32.mxu0 %v2108
      %2204 = vmatmul.mubr.f32.gmra.mrb[0].mxu0 %v2082
      %v2205 = vpop.f32.mrb[0].mxu0
      %v2206 = vadd.f32 %v2098, %v2205
      %v2207 = vpop.f32.mrb[0].mxu0
      %2208 = vmatprep.mubr.f32.mxu0 %v2111
      %2209 = vmatmul.mubr.f32.gmra.mrb[0].mxu0 %v2084
      %v2210 = vpop.f32.mrb[0].mxu0
      %v2211 = vadd.f32 %v2098, %v2210
      %v2212 = vpop.f32.mrb[0].mxu0
      %2213 = vmatprep.mubr.f32.mxu0 %v2114
      %2214 = vmatmul.mubr.f32.gmra.mrb[0].mxu0 %v2086
      %v2215 = vpop.f32.mrb[0].mxu0
      %v2216 = vadd.f32 %v2098, %v2215
      %v2217 = vpop.f32.mrb[0].mxu0
      %2218 = vmatprep.mubr.f32.mxu0 %v2117
      %2219 = vmatmul.mubr.f32.gmra.mrb[0].mxu0 %v2088
      %v2220 = vpop.f32.mrb[0].mxu0
      %v2221 = vadd.f32 %v2098, %v2220
      %v2222 = vpop.f32.mrb[0].mxu0
      %2223 = vmatprep.mubr.f32.mxu0 %v2120
      %2224 = vmatmul.mubr.f32.gmra.mrb[0].mxu0 %v2090
      %v2225 = vpop.f32.mrb[0].mxu0
      %v2226 = vadd.f32 %v2098, %v2225
      %v2227 = vpop.f32.mrb[0].mxu0
      %2228 = vmatprep.mubr.f32.mxu0 %v2123
      %2229 = vmatmul.mubr.f32.gmra.mrb[0].mxu0 %v2092
      %v2230 = vpop.f32.mrb[0].mxu0
      %v2231 = vadd.f32 %v2098, %v2230
      %v2232 = vpop.f32.mrb[0].mxu0
      %2233 = vdwg.mxu0
      %v2234 = vmul.f32 %v2196, 0.5
      %v2235 = vmul.f32 %v2201, 0.5
      %v2236 = vmul.f32 %v2206, 0.5
      %v2237 = vmul.f32 %v2211, 0.5
      %v2238 = vmul.f32 %v2216, 0.5
      %v2239 = vmul.f32 %v2221, 0.5
      %v2240 = vmul.f32 %v2226, 0.5
      %v2241 = vmul.f32 %v2231, 0.5
      %v2242 = vtanh.pop %v2234
      %v2243 = vtanh.pop %v2235
      %v2244 = vtanh.pop %v2236
      %v2245 = vtanh.pop %v2237
      %v2246 = vtanh.pop %v2238
      %v2247 = vtanh.pop %v2239
      %v2248 = vtanh.pop %v2240
      %v2249 = vtanh.pop %v2241
      %v2250 = vmul.f32 %v2242, 0.5
      %v2251 = vmul.f32 %v2243, 0.5
      %v2252 = vmul.f32 %v2244, 0.5
      %v2253 = vmul.f32 %v2245, 0.5
      %v2254 = vmul.f32 %v2246, 0.5
      %v2255 = vmul.f32 %v2247, 0.5
      %v2256 = vmul.f32 %v2248, 0.5
      %v2257 = vmul.f32 %v2249, 0.5
      %v2258 = vadd.f32 %v2250, 0.5
      %v2259 = vadd.f32 %v2251, 0.5
      %v2260 = vadd.f32 %v2252, 0.5
      %v2261 = vadd.f32 %v2253, 0.5
      %v2262 = vadd.f32 %v2254, 0.5
      %v2263 = vadd.f32 %v2255, 0.5
      %v2264 = vadd.f32 %v2256, 0.5
      %v2265 = vadd.f32 %v2257, 0.5
      %v2266 = vmul.f32 %v2196, %v2258
      %v2267 = vmul.f32 %v2201, %v2259
      %v2268 = vmul.f32 %v2206, %v2260
      %v2269 = vmul.f32 %v2211, %v2261
      %v2270 = vmul.f32 %v2216, %v2262
      %v2271 = vmul.f32 %v2221, %v2263
      %v2272 = vmul.f32 %v2226, %v2264
      %v2273 = vmul.f32 %v2231, %v2265
      %v2275 = vlaneseq
      %v2276 = vshrl.u32 %v2275, 7
      %v2277 = vsub.s32 0, %v2276
      %v2278 = vrot.slane %v1267, %v2277
      %vm2280 = vcmask 261120
      %v2282 = vsel %vm2280, %v2266, 0
      %v2285 = vsel %vm2280, %v2267, 0
      %v2288 = vsel %vm2280, %v2268, 0
      %v2291 = vsel %vm2280, %v2269, 0
      %v2294 = vsel %vm2280, %v2270, 0
      %v2297 = vsel %vm2280, %v2271, 0
      %v2300 = vsel %vm2280, %v2272, 0
      %v2303 = vsel %vm2280, %v2273, 0
      %2305 = vmatprep.subr.mxu0 0.0
      %2306 = vmatpush1.msra.mxu0 %v1263
      %2307 = vmatprep.subr.mxu0 0.0
      %2308 = vmatpush1.msra.mxu0 %v1264
      %2309 = vmatprep.subr.mxu0 0.0
      %2310 = vmatpush1.msra.mxu0 %v1265
      %2311 = vmatprep.subr.mxu0 0.0
      %2312 = vmatpush1.msra.mxu0 %v1266
      %2313 = vmatprep.subr.mxu0 0.0
      %2314 = vmatpush1.msra.mxu0 0.0
      %2315 = vmatprep.subr.mxu0 0.0
      %2316 = vmatpush1.msra.mxu0 0.0
      %2317 = vmatprep.subr.mxu0 0.0
      %2318 = vmatpush1.msra.mxu0 0.0
      %2319 = vmatprep.subr.mxu0 0.0
      %2320 = vmatpush1.msra.mxu0 0.0
      %2321 = vmatprep.subr.mxu0 0.0
      %2322 = vmatpush1.msra.mxu0 0.0
      %2323 = vmatprep.subr.mxu0 0.0
      %2324 = vmatpush1.msra.mxu0 0.0
      %2325 = vmatprep.subr.mxu0 0.0
      %2326 = vmatpush1.msra.mxu0 0.0
      %2327 = vmatprep.subr.mxu0 0.0
      %2328 = vmatpush1.msra.mxu0 0.0
      %2329 = vmatprep.subr.mxu0 0.0
      %2330 = vmatpush1.msra.mxu0 0.0
      %2331 = vmatprep.subr.mxu0 0.0
      %2332 = vmatpush1.msra.mxu0 0.0
      %2333 = vmatprep.subr.mxu0 0.0
      %2334 = vmatpush1.msra.mxu0 0.0
      %2335 = vmatprep.subr.mxu0 0.0
      %2336 = vmatpush1.msra.mxu0 0.0
      %2337 = vmatprep.subr.mxu0 0.0
      %2338 = vmatpush1.msra.mxu0 0.0
      %2339 = vmatprep.subr.mxu0 0.0
      %2340 = vmatpush1.msra.mxu0 0.0
      %2341 = vmatprep.subr.mxu0 0.0
      %2342 = vmatpush1.msra.mxu0 0.0
      %2343 = vmatprep.subr.mxu0 0.0
      %2344 = vmatpush1.msra.mxu0 0.0
      %2345 = vmatprep.subr.mxu0 0.0
      %2346 = vmatpush1.msra.mxu0 0.0
      %2347 = vmatprep.subr.mxu0 0.0
      %2348 = vmatpush1.msra.mxu0 0.0
      %2349 = vmatprep.subr.mxu0 0.0
      %2350 = vmatpush1.msra.mxu0 0.0
      %2351 = vmatprep.subr.mxu0 0.0
      %2352 = vmatpush1.msra.mxu0 0.0
      %2353 = vmatprep.subr.mxu0 0.0
      %2354 = vmatpush1.msra.mxu0 0.0
      %2355 = vmatprep.subr.mxu0 0.0
      %2356 = vmatpush1.msra.mxu0 0.0
      %2357 = vmatprep.subr.mxu0 0.0
      %2358 = vmatpush1.msra.mxu0 0.0
      %2359 = vmatprep.subr.mxu0 0.0
      %2360 = vmatpush1.msra.mxu0 0.0
      %2361 = vmatprep.subr.mxu0 0.0
      %2362 = vmatpush1.msra.mxu0 0.0
      %2363 = vmatprep.subr.mxu0 0.0
      %2364 = vmatpush1.msra.mxu0 0.0
      %2365 = vmatprep.subr.mxu0 0.0
      %2366 = vmatpush1.msra.mxu0 0.0
      %2367 = vmatprep.subr.mxu0 0.0
      %2368 = vmatpush1.msra.mxu0 0.0
      %2369 = vmatprep.mubr.f32.mxu0 0.0
      %2370 = vmatmul.mubr.f32.gmra.mrb[0].mxu0 %v2282
      %v2371 = vpop.f32.mrb[0].mxu0
      %v2372 = vadd.f32 %v2278, %v2371
      %v2373 = vpop.f32.mrb[0].mxu0
      %2374 = vmatprep.mubr.f32.mxu0 0.0
      %2375 = vmatmul.mubr.f32.gmra.mrb[0].mxu0 %v2285
      %v2376 = vpop.f32.mrb[0].mxu0
      %v2377 = vadd.f32 %v2278, %v2376
      %v2378 = vpop.f32.mrb[0].mxu0
      %2379 = vmatprep.mubr.f32.mxu0 0.0
      %2380 = vmatmul.mubr.f32.gmra.mrb[0].mxu0 %v2288
      %v2381 = vpop.f32.mrb[0].mxu0
      %v2382 = vadd.f32 %v2278, %v2381
      %v2383 = vpop.f32.mrb[0].mxu0
      %2384 = vmatprep.mubr.f32.mxu0 0.0
      %2385 = vmatmul.mubr.f32.gmra.mrb[0].mxu0 %v2291
      %v2386 = vpop.f32.mrb[0].mxu0
      %v2387 = vadd.f32 %v2278, %v2386
      %v2388 = vpop.f32.mrb[0].mxu0
      %2389 = vmatprep.mubr.f32.mxu0 0.0
      %2390 = vmatmul.mubr.f32.gmra.mrb[0].mxu0 %v2294
      %v2391 = vpop.f32.mrb[0].mxu0
      %v2392 = vadd.f32 %v2278, %v2391
      %v2393 = vpop.f32.mrb[0].mxu0
      %2394 = vmatprep.mubr.f32.mxu0 0.0
      %2395 = vmatmul.mubr.f32.gmra.mrb[0].mxu0 %v2297
      %v2396 = vpop.f32.mrb[0].mxu0
      %v2397 = vadd.f32 %v2278, %v2396
      %v2398 = vpop.f32.mrb[0].mxu0
      %2399 = vmatprep.mubr.f32.mxu0 0.0
      %2400 = vmatmul.mubr.f32.gmra.mrb[0].mxu0 %v2300
      %v2401 = vpop.f32.mrb[0].mxu0
      %v2402 = vadd.f32 %v2278, %v2401
      %v2403 = vpop.f32.mrb[0].mxu0
      %2404 = vmatprep.mubr.f32.mxu0 0.0
      %2405 = vmatmul.mubr.f32.gmra.mrb[0].mxu0 %v2303
      %v2406 = vpop.f32.mrb[0].mxu0
      %v2407 = vadd.f32 %v2278, %v2406
      %v2408 = vpop.f32.mrb[0].mxu0
      %2409 = vdwg.mxu0
      %v2410 = vmul.f32 %v2372, 0.5
      %v2411 = vmul.f32 %v2377, 0.5
      %v2412 = vmul.f32 %v2382, 0.5
      %v2413 = vmul.f32 %v2387, 0.5
      %v2414 = vmul.f32 %v2392, 0.5
      %v2415 = vmul.f32 %v2397, 0.5
      %v2416 = vmul.f32 %v2402, 0.5
      %v2417 = vmul.f32 %v2407, 0.5
      %v2418 = vtanh.pop %v2410
      %v2419 = vtanh.pop %v2411
      %v2420 = vtanh.pop %v2412
      %v2421 = vtanh.pop %v2413
      %v2422 = vtanh.pop %v2414
      %v2423 = vtanh.pop %v2415
      %v2424 = vtanh.pop %v2416
      %v2425 = vtanh.pop %v2417
      %v2426 = vmul.f32 %v2418, 0.5
      %v2427 = vmul.f32 %v2419, 0.5
      %v2428 = vmul.f32 %v2420, 0.5
      %v2429 = vmul.f32 %v2421, 0.5
      %v2430 = vmul.f32 %v2422, 0.5
      %v2431 = vmul.f32 %v2423, 0.5
      %v2432 = vmul.f32 %v2424, 0.5
      %v2433 = vmul.f32 %v2425, 0.5
      %v2434 = vadd.f32 %v2426, 0.5
      %v2435 = vadd.f32 %v2427, 0.5
      %v2436 = vadd.f32 %v2428, 0.5
      %v2437 = vadd.f32 %v2429, 0.5
      %v2438 = vadd.f32 %v2430, 0.5
      %v2439 = vadd.f32 %v2431, 0.5
      %v2440 = vadd.f32 %v2432, 0.5
      %v2441 = vadd.f32 %v2433, 0.5
      %v2442 = vmul.f32 %v2372, %v2434
      %v2443 = vmul.f32 %v2377, %v2435
      %v2444 = vmul.f32 %v2382, %v2436
      %v2445 = vmul.f32 %v2387, %v2437
      %v2446 = vmul.f32 %v2392, %v2438
      %v2447 = vmul.f32 %v2397, %v2439
      %v2448 = vmul.f32 %v2402, %v2440
      %v2449 = vmul.f32 %v2407, %v2441
      %v2451 = vlaneseq
      %v2452 = vshrl.u32 %v2451, 7
      %v2453 = vsub.s32 0, %v2452
      %v2454 = vrot.slane %v1284, %v2453
      %2456 = vmatprep.subr.mxu0 0.0
      %2457 = vmatpush1.msra.mxu0 %v1268
      %2458 = vmatprep.subr.mxu0 0.0
      %2459 = vmatpush1.msra.mxu0 %v1269
      %2460 = vmatprep.subr.mxu0 0.0
      %2461 = vmatpush1.msra.mxu0 %v1270
      %2462 = vmatprep.subr.mxu0 0.0
      %2463 = vmatpush1.msra.mxu0 %v1271
      %2464 = vmatprep.subr.mxu0 0.0
      %2465 = vmatpush1.msra.mxu0 %v1272
      %2466 = vmatprep.subr.mxu0 0.0
      %2467 = vmatpush1.msra.mxu0 %v1273
      %2468 = vmatprep.subr.mxu0 0.0
      %2469 = vmatpush1.msra.mxu0 %v1274
      %2470 = vmatprep.subr.mxu0 0.0
      %2471 = vmatpush1.msra.mxu0 %v1275
      %2472 = vmatprep.subr.mxu0 0.0
      %2473 = vmatpush1.msra.mxu0 %v1276
      %2474 = vmatprep.subr.mxu0 0.0
      %2475 = vmatpush1.msra.mxu0 %v1277
      %2476 = vmatprep.subr.mxu0 0.0
      %2477 = vmatpush1.msra.mxu0 %v1278
      %2478 = vmatprep.subr.mxu0 0.0
      %2479 = vmatpush1.msra.mxu0 %v1279
      %2480 = vmatprep.subr.mxu0 0.0
      %2481 = vmatpush1.msra.mxu0 %v1280
      %2482 = vmatprep.subr.mxu0 0.0
      %2483 = vmatpush1.msra.mxu0 %v1281
      %2484 = vmatprep.subr.mxu0 0.0
      %2485 = vmatpush1.msra.mxu0 %v1282
      %2486 = vmatprep.subr.mxu0 0.0
      %2487 = vmatpush1.msra.mxu0 %v1283
      %2488 = vmatprep.subr.mxu0 0.0
      %2489 = vmatpush1.msra.mxu0 0.0
      %2490 = vmatprep.subr.mxu0 0.0
      %2491 = vmatpush1.msra.mxu0 0.0
      %2492 = vmatprep.subr.mxu0 0.0
      %2493 = vmatpush1.msra.mxu0 0.0
      %2494 = vmatprep.subr.mxu0 0.0
      %2495 = vmatpush1.msra.mxu0 0.0
      %2496 = vmatprep.subr.mxu0 0.0
      %2497 = vmatpush1.msra.mxu0 0.0
      %2498 = vmatprep.subr.mxu0 0.0
      %2499 = vmatpush1.msra.mxu0 0.0
      %2500 = vmatprep.subr.mxu0 0.0
      %2501 = vmatpush1.msra.mxu0 0.0
      %2502 = vmatprep.subr.mxu0 0.0
      %2503 = vmatpush1.msra.mxu0 0.0
      %2504 = vmatprep.subr.mxu0 0.0
      %2505 = vmatpush1.msra.mxu0 0.0
      %2506 = vmatprep.subr.mxu0 0.0
      %2507 = vmatpush1.msra.mxu0 0.0
      %2508 = vmatprep.subr.mxu0 0.0
      %2509 = vmatpush1.msra.mxu0 0.0
      %2510 = vmatprep.subr.mxu0 0.0
      %2511 = vmatpush1.msra.mxu0 0.0
      %2512 = vmatprep.subr.mxu0 0.0
      %2513 = vmatpush1.msra.mxu0 0.0
      %2514 = vmatprep.subr.mxu0 0.0
      %2515 = vmatpush1.msra.mxu0 0.0
      %2516 = vmatprep.subr.mxu0 0.0
      %2517 = vmatpush1.msra.mxu0 0.0
      %2518 = vmatprep.subr.mxu0 0.0
      %2519 = vmatpush1.msra.mxu0 0.0
      %2520 = vmatprep.mubr.f32.mxu0 0.0
      %2521 = vmatmul.mubr.f32.gmra.mrb[0].mxu0 %v2442
      %v2522 = vpop.f32.mrb[0].mxu0
      %v2523 = vadd.f32 %v2454, %v2522
      %v2524 = vpop.f32.mrb[0].mxu0
      %2525 = vmatprep.mubr.f32.mxu0 0.0
      %2526 = vmatmul.mubr.f32.gmra.mrb[0].mxu0 %v2443
      %v2527 = vpop.f32.mrb[0].mxu0
      %v2528 = vadd.f32 %v2454, %v2527
      %v2529 = vpop.f32.mrb[0].mxu0
      %2530 = vmatprep.mubr.f32.mxu0 0.0
      %2531 = vmatmul.mubr.f32.gmra.mrb[0].mxu0 %v2444
      %v2532 = vpop.f32.mrb[0].mxu0
      %v2533 = vadd.f32 %v2454, %v2532
      %v2534 = vpop.f32.mrb[0].mxu0
      %2535 = vmatprep.mubr.f32.mxu0 0.0
      %2536 = vmatmul.mubr.f32.gmra.mrb[0].mxu0 %v2445
      %v2537 = vpop.f32.mrb[0].mxu0
      %v2538 = vadd.f32 %v2454, %v2537
      %v2539 = vpop.f32.mrb[0].mxu0
      %2540 = vmatprep.mubr.f32.mxu0 0.0
      %2541 = vmatmul.mubr.f32.gmra.mrb[0].mxu0 %v2446
      %v2542 = vpop.f32.mrb[0].mxu0
      %v2543 = vadd.f32 %v2454, %v2542
      %v2544 = vpop.f32.mrb[0].mxu0
      %2545 = vmatprep.mubr.f32.mxu0 0.0
      %2546 = vmatmul.mubr.f32.gmra.mrb[0].mxu0 %v2447
      %v2547 = vpop.f32.mrb[0].mxu0
      %v2548 = vadd.f32 %v2454, %v2547
      %v2549 = vpop.f32.mrb[0].mxu0
      %2550 = vmatprep.mubr.f32.mxu0 0.0
      %2551 = vmatmul.mubr.f32.gmra.mrb[0].mxu0 %v2448
      %v2552 = vpop.f32.mrb[0].mxu0
      %v2553 = vadd.f32 %v2454, %v2552
      %v2554 = vpop.f32.mrb[0].mxu0
      %2555 = vmatprep.mubr.f32.mxu0 0.0
      %2556 = vmatmul.mubr.f32.gmra.mrb[0].mxu0 %v2449
      %v2557 = vpop.f32.mrb[0].mxu0
      %v2558 = vadd.f32 %v2454, %v2557
      %v2559 = vpop.f32.mrb[0].mxu0
      %2560 = vdwg.mxu0
      %v2561 = vmul.f32 %v1207, %v2523
      %v2562 = vmul.f32 %v1208, %v2528
      %v2563 = vmul.f32 %v1209, %v2533
      %v2564 = vmul.f32 %v1210, %v2538
      %v2565 = vmul.f32 %v1211, %v2543
      %v2566 = vmul.f32 %v1212, %v2548
      %v2567 = vmul.f32 %v1213, %v2553
      %v2568 = vmul.f32 %v1214, %v2558
      %v2569 = vmax.f32 %v1537, 1e-08
      %v2570 = vmax.f32 %v1540, 1e-08
      %v2571 = vmax.f32 %v1543, 1e-08
      %v2572 = vmax.f32 %v1546, 1e-08
      %v2573 = vmax.f32 %v1549, 1e-08
      %v2574 = vmax.f32 %v1552, 1e-08
      %v2575 = vmax.f32 %v1555, 1e-08
      %v2576 = vmax.f32 %v1558, 1e-08
      %v2577 = vrcp.pop %v2569
      %v2578 = vmul.f32 %v1518, %v2577
      %v2579 = vrcp.pop %v2570
      %v2580 = vmul.f32 %v1519, %v2579
      %v2581 = vrcp.pop %v2571
      %v2582 = vmul.f32 %v1520, %v2581
      %v2583 = vrcp.pop %v2572
      %v2584 = vmul.f32 %v1521, %v2583
      %v2585 = vrcp.pop %v2573
      %v2586 = vmul.f32 %v1522, %v2585
      %v2587 = vrcp.pop %v2574
      %v2588 = vmul.f32 %v1523, %v2587
      %v2589 = vrcp.pop %v2575
      %v2590 = vmul.f32 %v1524, %v2589
      %v2591 = vrcp.pop %v2576
      %v2592 = vmul.f32 %v1525, %v2591
      %2594 = vset.pattern.permute.xlu0 0
      %2595 = vperm.xlu0 %2594, %v2561
      %v2596 = vpop.permute.xlu0 %2595
      %2599 = vset.pattern.permute.xlu0 0
      %2600 = vperm.xlu0 %2599, %v2562
      %v2601 = vpop.permute.xlu0 %2600
      %2604 = vset.pattern.permute.xlu0 0
      %2605 = vperm.xlu0 %2604, %v2563
      %v2606 = vpop.permute.xlu0 %2605
      %2609 = vset.pattern.permute.xlu0 0
      %2610 = vperm.xlu0 %2609, %v2564
      %v2611 = vpop.permute.xlu0 %2610
      %2614 = vset.pattern.permute.xlu0 0
      %2615 = vperm.xlu0 %2614, %v2565
      %v2616 = vpop.permute.xlu0 %2615
      %2619 = vset.pattern.permute.xlu0 0
      %2620 = vperm.xlu0 %2619, %v2566
      %v2621 = vpop.permute.xlu0 %2620
      %2624 = vset.pattern.permute.xlu0 0
      %2625 = vperm.xlu0 %2624, %v2567
      %v2626 = vpop.permute.xlu0 %2625
      %2629 = vset.pattern.permute.xlu0 0
      %2630 = vperm.xlu0 %2629, %v2568
      %v2631 = vpop.permute.xlu0 %2630
      %v2633 = vmul.f32 %v2596, %v2578
      %v2634 = vmul.f32 %v2601, %v2580
      %v2635 = vmul.f32 %v2606, %v2582
      %v2636 = vmul.f32 %v2611, %v2584
      %v2637 = vmul.f32 %v2616, %v2586
      %v2638 = vmul.f32 %v2621, %v2588
      %v2639 = vmul.f32 %v2626, %v2590
      %v2640 = vmul.f32 %v2631, %v2592
      %vm2641 = vcmask 523264
      %v2643 = vsel %vm2641, %v933, 0
      %2645 = vmatprep.subr.mxu0 0.0
      %2646 = vmatpush1.msra.mxu0 %v2633
      %2647 = vmatprep.subr.mxu0 0.0
      %2648 = vmatpush1.msra.mxu0 %v2634
      %2649 = vmatprep.subr.mxu0 0.0
      %2650 = vmatpush1.msra.mxu0 %v2635
      %2651 = vmatprep.subr.mxu0 0.0
      %2652 = vmatpush1.msra.mxu0 %v2636
      %2653 = vmatprep.subr.mxu0 0.0
      %2654 = vmatpush1.msra.mxu0 %v2637
      %2655 = vmatprep.subr.mxu0 0.0
      %2656 = vmatpush1.msra.mxu0 %v2638
      %2657 = vmatprep.subr.mxu0 0.0
      %2658 = vmatpush1.msra.mxu0 %v2639
      %2659 = vmatprep.subr.mxu0 0.0
      %2660 = vmatpush1.msra.mxu0 %v2640
      %2661 = vmatprep.subr.mxu0 0.0
      %2662 = vmatpush1.msra.mxu0 0.0
      %2663 = vmatprep.subr.mxu0 0.0
      %2664 = vmatpush1.msra.mxu0 0.0
      %2665 = vmatprep.subr.mxu0 0.0
      %2666 = vmatpush1.msra.mxu0 0.0
      %2667 = vmatprep.subr.mxu0 0.0
      %2668 = vmatpush1.msra.mxu0 0.0
      %2669 = vmatprep.subr.mxu0 0.0
      %2670 = vmatpush1.msra.mxu0 0.0
      %2671 = vmatprep.subr.mxu0 0.0
      %2672 = vmatpush1.msra.mxu0 0.0
      %2673 = vmatprep.subr.mxu0 0.0
      %2674 = vmatpush1.msra.mxu0 0.0
      %2675 = vmatprep.subr.mxu0 0.0
      %2676 = vmatpush1.msra.mxu0 0.0
      %2677 = vmatprep.subr.mxu0 0.0
      %2678 = vmatpush1.msra.mxu0 0.0
      %2679 = vmatprep.subr.mxu0 0.0
      %2680 = vmatpush1.msra.mxu0 0.0
      %2681 = vmatprep.subr.mxu0 0.0
      %2682 = vmatpush1.msra.mxu0 0.0
      %2683 = vmatprep.subr.mxu0 0.0
      %2684 = vmatpush1.msra.mxu0 0.0
      %2685 = vmatprep.subr.mxu0 0.0
      %2686 = vmatpush1.msra.mxu0 0.0
      %2687 = vmatprep.subr.mxu0 0.0
      %2688 = vmatpush1.msra.mxu0 0.0
      %2689 = vmatprep.subr.mxu0 0.0
      %2690 = vmatpush1.msra.mxu0 0.0
      %2691 = vmatprep.subr.mxu0 0.0
      %2692 = vmatpush1.msra.mxu0 0.0
      %2693 = vmatprep.subr.mxu0 0.0
      %2694 = vmatpush1.msra.mxu0 0.0
      %2695 = vmatprep.subr.mxu0 0.0
      %2696 = vmatpush1.msra.mxu0 0.0
      %2697 = vmatprep.subr.mxu0 0.0
      %2698 = vmatpush1.msra.mxu0 0.0
      %2699 = vmatprep.subr.mxu0 0.0
      %2700 = vmatpush1.msra.mxu0 0.0
      %2701 = vmatprep.subr.mxu0 0.0
      %2702 = vmatpush1.msra.mxu0 0.0
      %2703 = vmatprep.subr.mxu0 0.0
      %2704 = vmatpush1.msra.mxu0 0.0
      %2705 = vmatprep.subr.mxu0 0.0
      %2706 = vmatpush1.msra.mxu0 0.0
      %2707 = vmatprep.subr.mxu0 0.0
      %2708 = vmatpush1.msra.mxu0 0.0
      %2709 = vmatprep.mubr.f32.mxu0 0.0
      %2710 = vmatmul.mubr.f32.gmra.mrb[0].mxu0 %v2643
      %v2711 = vpop.f32.mrb[0].mxu0
      %v2712 = vadd.f32 0.0, %v2711
      %v2713 = vpop.f32.mrb[0].mxu0
      %2714 = vdwg.mxu0
      %v2715 = vadd.f32 %v915, %v2712
      %2717 = vset.pattern.permute.xlu0 0
      %2718 = vperm.xlu0 %2717, %v1207
      %v2719 = vpop.permute.xlu0 %2718
      %2722 = vset.pattern.permute.xlu0 0
      %2723 = vperm.xlu0 %2722, %v1208
      %v2724 = vpop.permute.xlu0 %2723
      %2727 = vset.pattern.permute.xlu0 0
      %2728 = vperm.xlu0 %2727, %v1209
      %v2729 = vpop.permute.xlu0 %2728
      %2732 = vset.pattern.permute.xlu0 0
      %2733 = vperm.xlu0 %2732, %v1210
      %v2734 = vpop.permute.xlu0 %2733
      %2737 = vset.pattern.permute.xlu0 0
      %2738 = vperm.xlu0 %2737, %v1211
      %v2739 = vpop.permute.xlu0 %2738
      %2742 = vset.pattern.permute.xlu0 0
      %2743 = vperm.xlu0 %2742, %v1212
      %v2744 = vpop.permute.xlu0 %2743
      %2747 = vset.pattern.permute.xlu0 0
      %2748 = vperm.xlu0 %2747, %v1213
      %v2749 = vpop.permute.xlu0 %2748
      %2752 = vset.pattern.permute.xlu0 0
      %2753 = vperm.xlu0 %2752, %v1214
      %v2754 = vpop.permute.xlu0 %2753
      %v2756 = vmul.f32 %v2719, %v2266
      %v2757 = vmul.f32 %v2724, %v2267
      %v2758 = vmul.f32 %v2729, %v2268
      %v2759 = vmul.f32 %v2734, %v2269
      %v2760 = vmul.f32 %v2739, %v2270
      %v2761 = vmul.f32 %v2744, %v2271
      %v2762 = vmul.f32 %v2749, %v2272
      %v2763 = vmul.f32 %v2754, %v2273
      %2764 = vmatprep.subr.mxu0 0.0
      %2765 = vmatpush1.msra.mxu0 %v2756
      %2766 = vmatprep.subr.mxu0 0.0
      %2767 = vmatpush1.msra.mxu0 %v2757
      %2768 = vmatprep.subr.mxu0 0.0
      %2769 = vmatpush1.msra.mxu0 %v2758
      %2770 = vmatprep.subr.mxu0 0.0
      %2771 = vmatpush1.msra.mxu0 %v2759
      %2772 = vmatprep.subr.mxu0 0.0
      %2773 = vmatpush1.msra.mxu0 %v2760
      %2774 = vmatprep.subr.mxu0 0.0
      %2775 = vmatpush1.msra.mxu0 %v2761
      %2776 = vmatprep.subr.mxu0 0.0
      %2777 = vmatpush1.msra.mxu0 %v2762
      %2778 = vmatprep.subr.mxu0 0.0
      %2779 = vmatpush1.msra.mxu0 %v2763
      %2780 = vmatprep.subr.mxu0 0.0
      %2781 = vmatpush1.msra.mxu0 0.0
      %2782 = vmatprep.subr.mxu0 0.0
      %2783 = vmatpush1.msra.mxu0 0.0
      %2784 = vmatprep.subr.mxu0 0.0
      %2785 = vmatpush1.msra.mxu0 0.0
      %2786 = vmatprep.subr.mxu0 0.0
      %2787 = vmatpush1.msra.mxu0 0.0
      %2788 = vmatprep.subr.mxu0 0.0
      %2789 = vmatpush1.msra.mxu0 0.0
      %2790 = vmatprep.subr.mxu0 0.0
      %2791 = vmatpush1.msra.mxu0 0.0
      %2792 = vmatprep.subr.mxu0 0.0
      %2793 = vmatpush1.msra.mxu0 0.0
      %2794 = vmatprep.subr.mxu0 0.0
      %2795 = vmatpush1.msra.mxu0 0.0
      %2796 = vmatprep.subr.mxu0 0.0
      %2797 = vmatpush1.msra.mxu0 0.0
      %2798 = vmatprep.subr.mxu0 0.0
      %2799 = vmatpush1.msra.mxu0 0.0
      %2800 = vmatprep.subr.mxu0 0.0
      %2801 = vmatpush1.msra.mxu0 0.0
      %2802 = vmatprep.subr.mxu0 0.0
      %2803 = vmatpush1.msra.mxu0 0.0
      %2804 = vmatprep.subr.mxu0 0.0
      %2805 = vmatpush1.msra.mxu0 0.0
      %2806 = vmatprep.subr.mxu0 0.0
      %2807 = vmatpush1.msra.mxu0 0.0
      %2808 = vmatprep.subr.mxu0 0.0
      %2809 = vmatpush1.msra.mxu0 0.0
      %2810 = vmatprep.subr.mxu0 0.0
      %2811 = vmatpush1.msra.mxu0 0.0
      %2812 = vmatprep.subr.mxu0 0.0
      %2813 = vmatpush1.msra.mxu0 0.0
      %2814 = vmatprep.subr.mxu0 0.0
      %2815 = vmatpush1.msra.mxu0 0.0
      %2816 = vmatprep.subr.mxu0 0.0
      %2817 = vmatpush1.msra.mxu0 0.0
      %2818 = vmatprep.subr.mxu0 0.0
      %2819 = vmatpush1.msra.mxu0 0.0
      %2820 = vmatprep.subr.mxu0 0.0
      %2821 = vmatpush1.msra.mxu0 0.0
      %2822 = vmatprep.subr.mxu0 0.0
      %2823 = vmatpush1.msra.mxu0 0.0
      %2824 = vmatprep.subr.mxu0 0.0
      %2825 = vmatpush1.msra.mxu0 0.0
      %2826 = vmatprep.subr.mxu0 0.0
      %2827 = vmatpush1.msra.mxu0 0.0
      %2828 = vmatprep.mubr.f32.mxu0 0.0
      %2829 = vmatmul.mubr.f32.gmra.mrb[0].mxu0 %v2643
      %v2830 = vpop.f32.mrb[0].mxu0
      %v2831 = vadd.f32 0.0, %v2830
      %v2832 = vpop.f32.mrb[0].mxu0
      %2833 = vdwg.mxu0
      %v2834 = vmul.f32 %v2831, %v947
      %v2836 = vsel %vm2280, %v2834, 0
      %2838 = vmatprep.subr.mxu0 0.0
      %2839 = vmatpush1.msra.mxu0 %v1291
      %2840 = vmatprep.subr.mxu0 0.0
      %2841 = vmatpush1.msra.mxu0 %v1292
      %2842 = vmatprep.subr.mxu0 0.0
      %2843 = vmatpush1.msra.mxu0 %v1293
      %2844 = vmatprep.subr.mxu0 0.0
      %2845 = vmatpush1.msra.mxu0 %v1294
      %2846 = vmatprep.subr.mxu0 0.0
      %2847 = vmatpush1.msra.mxu0 0.0
      %2848 = vmatprep.subr.mxu0 0.0
      %2849 = vmatpush1.msra.mxu0 0.0
      %2850 = vmatprep.subr.mxu0 0.0
      %2851 = vmatpush1.msra.mxu0 0.0
      %2852 = vmatprep.subr.mxu0 0.0
      %2853 = vmatpush1.msra.mxu0 0.0
      %2854 = vmatprep.subr.mxu0 0.0
      %2855 = vmatpush1.msra.mxu0 0.0
      %2856 = vmatprep.subr.mxu0 0.0
      %2857 = vmatpush1.msra.mxu0 0.0
      %2858 = vmatprep.subr.mxu0 0.0
      %2859 = vmatpush1.msra.mxu0 0.0
      %2860 = vmatprep.subr.mxu0 0.0
      %2861 = vmatpush1.msra.mxu0 0.0
      %2862 = vmatprep.subr.mxu0 0.0
      %2863 = vmatpush1.msra.mxu0 0.0
      %2864 = vmatprep.subr.mxu0 0.0
      %2865 = vmatpush1.msra.mxu0 0.0
      %2866 = vmatprep.subr.mxu0 0.0
      %2867 = vmatpush1.msra.mxu0 0.0
      %2868 = vmatprep.subr.mxu0 0.0
      %2869 = vmatpush1.msra.mxu0 0.0
      %2870 = vmatprep.subr.mxu0 0.0
      %2871 = vmatpush1.msra.mxu0 0.0
      %2872 = vmatprep.subr.mxu0 0.0
      %2873 = vmatpush1.msra.mxu0 0.0
      %2874 = vmatprep.subr.mxu0 0.0
      %2875 = vmatpush1.msra.mxu0 0.0
      %2876 = vmatprep.subr.mxu0 0.0
      %2877 = vmatpush1.msra.mxu0 0.0
      %2878 = vmatprep.subr.mxu0 0.0
      %2879 = vmatpush1.msra.mxu0 0.0
      %2880 = vmatprep.subr.mxu0 0.0
      %2881 = vmatpush1.msra.mxu0 0.0
      %2882 = vmatprep.subr.mxu0 0.0
      %2883 = vmatpush1.msra.mxu0 0.0
      %2884 = vmatprep.subr.mxu0 0.0
      %2885 = vmatpush1.msra.mxu0 0.0
      %2886 = vmatprep.subr.mxu0 0.0
      %2887 = vmatpush1.msra.mxu0 0.0
      %2888 = vmatprep.subr.mxu0 0.0
      %2889 = vmatpush1.msra.mxu0 0.0
      %2890 = vmatprep.subr.mxu0 0.0
      %2891 = vmatpush1.msra.mxu0 0.0
      %2892 = vmatprep.subr.mxu0 0.0
      %2893 = vmatpush1.msra.mxu0 0.0
      %2894 = vmatprep.subr.mxu0 0.0
      %2895 = vmatpush1.msra.mxu0 0.0
      %2896 = vmatprep.subr.mxu0 0.0
      %2897 = vmatpush1.msra.mxu0 0.0
      %2898 = vmatprep.subr.mxu0 0.0
      %2899 = vmatpush1.msra.mxu0 0.0
      %2900 = vmatprep.subr.mxu0 0.0
      %2901 = vmatpush1.msra.mxu0 0.0
      %2902 = vmatprep.mubr.f32.mxu0 0.0
      %2903 = vmatmul.mubr.f32.gmra.mrb[0].mxu0 %v2836
      %v2904 = vpop.f32.mrb[0].mxu0
      %v2905 = vadd.f32 0.0, %v2904
      %v2906 = vpop.f32.mrb[0].mxu0
      %2907 = vdwg.mxu0
      %v2909 = vsel %vm1563, %v1290, 0
      %2911 = vmatprep.subr.mxu0 0.0
      %2912 = vmatpush1.msra.mxu0 %v1285
      %2913 = vmatprep.subr.mxu0 0.0
      %2914 = vmatpush1.msra.mxu0 %v1286
      %2915 = vmatprep.subr.mxu0 0.0
      %2916 = vmatpush1.msra.mxu0 %v1287
      %2917 = vmatprep.subr.mxu0 0.0
      %2918 = vmatpush1.msra.mxu0 %v1288
      %2919 = vmatprep.subr.mxu0 0.0
      %2920 = vmatpush1.msra.mxu0 %v1289
      %2921 = vmatprep.subr.mxu0 0.0
      %2922 = vmatpush1.msra.mxu0 %v2909
      %2923 = vmatprep.subr.mxu0 0.0
      %2924 = vmatpush1.msra.mxu0 0.0
      %2925 = vmatprep.subr.mxu0 0.0
      %2926 = vmatpush1.msra.mxu0 0.0
      %2927 = vmatprep.subr.mxu0 0.0
      %2928 = vmatpush1.msra.mxu0 0.0
      %2929 = vmatprep.subr.mxu0 0.0
      %2930 = vmatpush1.msra.mxu0 0.0
      %2931 = vmatprep.subr.mxu0 0.0
      %2932 = vmatpush1.msra.mxu0 0.0
      %2933 = vmatprep.subr.mxu0 0.0
      %2934 = vmatpush1.msra.mxu0 0.0
      %2935 = vmatprep.subr.mxu0 0.0
      %2936 = vmatpush1.msra.mxu0 0.0
      %2937 = vmatprep.subr.mxu0 0.0
      %2938 = vmatpush1.msra.mxu0 0.0
      %2939 = vmatprep.subr.mxu0 0.0
      %2940 = vmatpush1.msra.mxu0 0.0
      %2941 = vmatprep.subr.mxu0 0.0
      %2942 = vmatpush1.msra.mxu0 0.0
      %2943 = vmatprep.subr.mxu0 0.0
      %2944 = vmatpush1.msra.mxu0 0.0
      %2945 = vmatprep.subr.mxu0 0.0
      %2946 = vmatpush1.msra.mxu0 0.0
      %2947 = vmatprep.subr.mxu0 0.0
      %2948 = vmatpush1.msra.mxu0 0.0
      %2949 = vmatprep.subr.mxu0 0.0
      %2950 = vmatpush1.msra.mxu0 0.0
      %2951 = vmatprep.subr.mxu0 0.0
      %2952 = vmatpush1.msra.mxu0 0.0
      %2953 = vmatprep.subr.mxu0 0.0
      %2954 = vmatpush1.msra.mxu0 0.0
      %2955 = vmatprep.subr.mxu0 0.0
      %2956 = vmatpush1.msra.mxu0 0.0
      %2957 = vmatprep.subr.mxu0 0.0
      %2958 = vmatpush1.msra.mxu0 0.0
      %2959 = vmatprep.subr.mxu0 0.0
      %2960 = vmatpush1.msra.mxu0 0.0
      %2961 = vmatprep.subr.mxu0 0.0
      %2962 = vmatpush1.msra.mxu0 0.0
      %2963 = vmatprep.subr.mxu0 0.0
      %2964 = vmatpush1.msra.mxu0 0.0
      %2965 = vmatprep.subr.mxu0 0.0
      %2966 = vmatpush1.msra.mxu0 0.0
      %2967 = vmatprep.subr.mxu0 0.0
      %2968 = vmatpush1.msra.mxu0 0.0
      %2969 = vmatprep.subr.mxu0 0.0
      %2970 = vmatpush1.msra.mxu0 0.0
      %2971 = vmatprep.subr.mxu0 0.0
      %2972 = vmatpush1.msra.mxu0 0.0
      %2973 = vmatprep.subr.mxu0 0.0
      %2974 = vmatpush1.msra.mxu0 0.0
      %2975 = vmatprep.mubr.f32.mxu0 0.0
      %2976 = vmatmul.mubr.f32.gmra.mrb[0].mxu0 %v1561
      %v2977 = vpop.f32.mrb[0].mxu0
      %v2978 = vadd.f32 %v2905, %v2977
      %v2979 = vpop.f32.mrb[0].mxu0
      %2980 = vdwg.mxu0
      %v2982 = vlaneseq
      %v2983 = vshrl.u32 %v2982, 7
      %v2984 = vsub.s32 0, %v2983
      %v2985 = vrot.slane %v1295, %v2984
      %v2987 = vadd.f32 %v2978, %v2985
      %v2988 = vmul.f32 %v2987, 0.5
      %v2989 = vtanh.pop %v2988
      %v2990 = vmul.f32 %v2989, 0.5
      %v2991 = vadd.f32 %v2990, 0.5
      %v2992 = vmul.f32 %v2987, %v2991
      %v2994 = vlaneseq
      %v2995 = vshrl.u32 %v2994, 7
      %v2996 = vsub.s32 0, %v2995
      %v2997 = vrot.slane %v1307, %v2996
      %vm2999 = vcmask 670720
      %v3001 = vsel %vm2999, %v2992, 0
      %vm3003 = vcmask 1041408
      %v3005 = vsel %vm3003, %v1306, 0
      %3007 = vmatprep.subr.mxu0 0.0
      %3008 = vmatpush1.msra.mxu0 %v1296
      %3009 = vmatprep.subr.mxu0 0.0
      %3010 = vmatpush1.msra.mxu0 %v1297
      %3011 = vmatprep.subr.mxu0 0.0
      %3012 = vmatpush1.msra.mxu0 %v1298
      %3013 = vmatprep.subr.mxu0 0.0
      %3014 = vmatpush1.msra.mxu0 %v1299
      %3015 = vmatprep.subr.mxu0 0.0
      %3016 = vmatpush1.msra.mxu0 %v1300
      %3017 = vmatprep.subr.mxu0 0.0
      %3018 = vmatpush1.msra.mxu0 %v1301
      %3019 = vmatprep.subr.mxu0 0.0
      %3020 = vmatpush1.msra.mxu0 %v1302
      %3021 = vmatprep.subr.mxu0 0.0
      %3022 = vmatpush1.msra.mxu0 %v1303
      %3023 = vmatprep.subr.mxu0 0.0
      %3024 = vmatpush1.msra.mxu0 %v1304
      %3025 = vmatprep.subr.mxu0 0.0
      %3026 = vmatpush1.msra.mxu0 %v1305
      %3027 = vmatprep.subr.mxu0 0.0
      %3028 = vmatpush1.msra.mxu0 %v3005
      %3029 = vmatprep.subr.mxu0 0.0
      %3030 = vmatpush1.msra.mxu0 0.0
      %3031 = vmatprep.subr.mxu0 0.0
      %3032 = vmatpush1.msra.mxu0 0.0
      %3033 = vmatprep.subr.mxu0 0.0
      %3034 = vmatpush1.msra.mxu0 0.0
      %3035 = vmatprep.subr.mxu0 0.0
      %3036 = vmatpush1.msra.mxu0 0.0
      %3037 = vmatprep.subr.mxu0 0.0
      %3038 = vmatpush1.msra.mxu0 0.0
      %3039 = vmatprep.subr.mxu0 0.0
      %3040 = vmatpush1.msra.mxu0 0.0
      %3041 = vmatprep.subr.mxu0 0.0
      %3042 = vmatpush1.msra.mxu0 0.0
      %3043 = vmatprep.subr.mxu0 0.0
      %3044 = vmatpush1.msra.mxu0 0.0
      %3045 = vmatprep.subr.mxu0 0.0
      %3046 = vmatpush1.msra.mxu0 0.0
      %3047 = vmatprep.subr.mxu0 0.0
      %3048 = vmatpush1.msra.mxu0 0.0
      %3049 = vmatprep.subr.mxu0 0.0
      %3050 = vmatpush1.msra.mxu0 0.0
      %3051 = vmatprep.subr.mxu0 0.0
      %3052 = vmatpush1.msra.mxu0 0.0
      %3053 = vmatprep.subr.mxu0 0.0
      %3054 = vmatpush1.msra.mxu0 0.0
      %3055 = vmatprep.subr.mxu0 0.0
      %3056 = vmatpush1.msra.mxu0 0.0
      %3057 = vmatprep.subr.mxu0 0.0
      %3058 = vmatpush1.msra.mxu0 0.0
      %3059 = vmatprep.subr.mxu0 0.0
      %3060 = vmatpush1.msra.mxu0 0.0
      %3061 = vmatprep.subr.mxu0 0.0
      %3062 = vmatpush1.msra.mxu0 0.0
      %3063 = vmatprep.subr.mxu0 0.0
      %3064 = vmatpush1.msra.mxu0 0.0
      %3065 = vmatprep.subr.mxu0 0.0
      %3066 = vmatpush1.msra.mxu0 0.0
      %3067 = vmatprep.subr.mxu0 0.0
      %3068 = vmatpush1.msra.mxu0 0.0
      %3069 = vmatprep.subr.mxu0 0.0
      %3070 = vmatpush1.msra.mxu0 0.0
      %3071 = vmatprep.mubr.f32.mxu0 0.0
      %3072 = vmatmul.mubr.f32.gmra.mrb[0].mxu0 %v3001
      %v3073 = vpop.f32.mrb[0].mxu0
      %v3074 = vadd.f32 %v2997, %v3073
      %v3075 = vpop.f32.mrb[0].mxu0
      %3076 = vdwg.mxu0
      %3078 = vset.pattern.permute.xlu0 0
      %3079 = vperm.xlu0 %3078, %v916
      %v3080 = vpop.permute.xlu0 %3079
      %v3082 = vmul.f32 %v3080, %v3074
      %v3083 = vadd.f32 %v914, %v3082
      %s3084 = scalar_lea.vmem %s846, 96
      %v3085 = vld [vmem:[%s3084] sm:$0xff]
      %v3086 = vld [vmem:[%s3084 + $0x8] sm:$0xff]
      %v3087 = vld [vmem:[%s3084 + $0x10] sm:$0xff]
      %v3088 = vld [vmem:[%s3084 + $0x18] sm:$0xff]
      %v3089 = vld [vmem:[%s3084 + $0x20] sm:$0xff]
      %v3090 = vld [vmem:[%s3084 + $0x28] sm:$0xff]
      %v3091 = vld [vmem:[%s3084 + $0x30] sm:$0xff]
      %v3092 = vld [vmem:[%s3084 + $0x38] sm:$0xff]
      %v3093 = vld [vmem:[%s3084 + $0x40] sm:$0xff]
      %v3094 = vld [vmem:[%s3084 + $0x48] sm:$0xff]
      %v3095 = vld [vmem:[%s3084 + $0x50] sm:$0x1]
      %v3096 = vld [vmem:[%s3084 + $0x58] sm:$0x1]
      %s3097 = scalar_lea.vmem %s851, 96
      %v3098 = vld [vmem:[%s3097] sm:$0xff]
      %v3099 = vld [vmem:[%s3097 + $0x8] sm:$0xff]
      %v3100 = vld [vmem:[%s3097 + $0x10] sm:$0xff]
      %v3101 = vld [vmem:[%s3097 + $0x18] sm:$0xff]
      %v3102 = vld [vmem:[%s3097 + $0x20] sm:$0xff]
      %v3103 = vld [vmem:[%s3097 + $0x28] sm:$0xff]
      %v3104 = vld [vmem:[%s3097 + $0x30] sm:$0xff]
      %v3105 = vld [vmem:[%s3097 + $0x38] sm:$0xff]
      %v3106 = vld [vmem:[%s3097 + $0x40] sm:$0xff]
      %v3107 = vld [vmem:[%s3097 + $0x48] sm:$0xff]
      %v3108 = vld [vmem:[%s3097 + $0x50] sm:$0x1]
      %v3109 = vld [vmem:[%s3097 + $0x58] sm:$0x1]
      %s3110 = scalar_lea.vmem %s855, 2
      %v3111 = vld [vmem:[%s3110] sm:$0x3]
      %s3112 = scalar_lea.vmem %s859, 2
      %v3113 = vld [vmem:[%s3112] sm:$0x3]
      %s3114 = scalar_lea.vmem %s864, 168
      %v3115 = vld [vmem:[%s3114] sm:$0xff]
      %v3116 = vld [vmem:[%s3114 + $0x8] sm:$0xff]
      %v3117 = vld [vmem:[%s3114 + $0x10] sm:$0xff]
      %v3118 = vld [vmem:[%s3114 + $0x18] sm:$0xff]
      %v3119 = vld [vmem:[%s3114 + $0x20] sm:$0xff]
      %v3120 = vld [vmem:[%s3114 + $0x28] sm:$0xff]
      %v3121 = vld [vmem:[%s3114 + $0x30] sm:$0xff]
      %v3122 = vld [vmem:[%s3114 + $0x38] sm:$0xff]
      %v3123 = vld [vmem:[%s3114 + $0x40] sm:$0xff]
      %v3124 = vld [vmem:[%s3114 + $0x48] sm:$0xff]
      %v3125 = vld [vmem:[%s3114 + $0x50] sm:$0xff]
      %v3126 = vld [vmem:[%s3114 + $0x58] sm:$0xff]
      %v3127 = vld [vmem:[%s3114 + $0x60] sm:$0xff]
      %v3128 = vld [vmem:[%s3114 + $0x68] sm:$0xff]
      %v3129 = vld [vmem:[%s3114 + $0x70] sm:$0xff]
      %v3130 = vld [vmem:[%s3114 + $0x78] sm:$0xff]
      %v3131 = vld [vmem:[%s3114 + $0x80] sm:$0xff]
      %v3132 = vld [vmem:[%s3114 + $0x88] sm:$0xff]
      %v3133 = vld [vmem:[%s3114 + $0x90] sm:$0xff]
      %v3134 = vld [vmem:[%s3114 + $0x98] sm:$0xff]
      %v3135 = vld [vmem:[%s3114 + $0xa0] sm:$0x3f]
      %s3136 = scalar_lea.vmem %s868, 1
      %v3137 = vld [vmem:[%s3136] sm:$0x1]
      %s3138 = scalar_lea.vmem %s873, 32
      %v3139 = vld [vmem:[%s3138] sm:$0xff]
      %v3140 = vld [vmem:[%s3138 + $0x8] sm:$0xff]
      %v3141 = vld [vmem:[%s3138 + $0x10] sm:$0xff]
      %v3142 = vld [vmem:[%s3138 + $0x18] sm:$0xff]
      %s3143 = scalar_lea.vmem %s877, 1
      %v3144 = vld [vmem:[%s3143] sm:$0x1]
      %s3145 = scalar_lea.vmem %s882, 128
      %v3146 = vld [vmem:[%s3145] sm:$0xff]
      %v3147 = vld [vmem:[%s3145 + $0x8] sm:$0xff]
      %v3148 = vld [vmem:[%s3145 + $0x10] sm:$0xff]
      %v3149 = vld [vmem:[%s3145 + $0x18] sm:$0xff]
      %v3150 = vld [vmem:[%s3145 + $0x20] sm:$0xff]
      %v3151 = vld [vmem:[%s3145 + $0x28] sm:$0xff]
      %v3152 = vld [vmem:[%s3145 + $0x30] sm:$0xff]
      %v3153 = vld [vmem:[%s3145 + $0x38] sm:$0xff]
      %v3154 = vld [vmem:[%s3145 + $0x40] sm:$0xff]
      %v3155 = vld [vmem:[%s3145 + $0x48] sm:$0xff]
      %v3156 = vld [vmem:[%s3145 + $0x50] sm:$0xff]
      %v3157 = vld [vmem:[%s3145 + $0x58] sm:$0xff]
      %v3158 = vld [vmem:[%s3145 + $0x60] sm:$0xff]
      %v3159 = vld [vmem:[%s3145 + $0x68] sm:$0xff]
      %v3160 = vld [vmem:[%s3145 + $0x70] sm:$0xff]
      %v3161 = vld [vmem:[%s3145 + $0x78] sm:$0xff]
      %s3162 = scalar_lea.vmem %s886, 1
      %v3163 = vld [vmem:[%s3162] sm:$0x1]
      %s3164 = scalar_lea.vmem %s891, 48
      %v3165 = vld [vmem:[%s3164] sm:$0xff]
      %v3166 = vld [vmem:[%s3164 + $0x8] sm:$0xff]
      %v3167 = vld [vmem:[%s3164 + $0x10] sm:$0xff]
      %v3168 = vld [vmem:[%s3164 + $0x18] sm:$0xff]
      %v3169 = vld [vmem:[%s3164 + $0x20] sm:$0xff]
      %v3170 = vld [vmem:[%s3164 + $0x28] sm:$0x1]
      %s3171 = scalar_lea.vmem %s896, 32
      %v3172 = vld [vmem:[%s3171] sm:$0xff]
      %v3173 = vld [vmem:[%s3171 + $0x8] sm:$0xff]
      %v3174 = vld [vmem:[%s3171 + $0x10] sm:$0xff]
      %v3175 = vld [vmem:[%s3171 + $0x18] sm:$0xff]
      %s3176 = scalar_lea.vmem %s900, 1
      %v3177 = vld [vmem:[%s3176] sm:$0x1]
      %s3178 = scalar_lea.vmem %s905, 88
      %v3179 = vld [vmem:[%s3178] sm:$0xff]
      %v3180 = vld [vmem:[%s3178 + $0x8] sm:$0xff]
      %v3181 = vld [vmem:[%s3178 + $0x10] sm:$0xff]
      %v3182 = vld [vmem:[%s3178 + $0x18] sm:$0xff]
      %v3183 = vld [vmem:[%s3178 + $0x20] sm:$0xff]
      %v3184 = vld [vmem:[%s3178 + $0x28] sm:$0xff]
      %v3185 = vld [vmem:[%s3178 + $0x30] sm:$0xff]
      %v3186 = vld [vmem:[%s3178 + $0x38] sm:$0xff]
      %v3187 = vld [vmem:[%s3178 + $0x40] sm:$0xff]
      %v3188 = vld [vmem:[%s3178 + $0x48] sm:$0xff]
      %v3189 = vld [vmem:[%s3178 + $0x50] sm:$0x3]
      %s3190 = scalar_lea.vmem %s909, 1
      %v3191 = vld [vmem:[%s3190] sm:$0x1]
      %3192 = vmatprep.subr.mxu0 0.0
      %3193 = vmatpush1.msra.mxu0 %v2715
      %3194 = vmatprep.subr.mxu0 0.0
      %3195 = vmatpush1.msra.mxu0 0.0
      %3196 = vmatprep.subr.mxu0 0.0
      %3197 = vmatpush1.msra.mxu0 0.0
      %3198 = vmatprep.subr.mxu0 0.0
      %3199 = vmatpush1.msra.mxu0 0.0
      %3200 = vmatprep.subr.mxu0 0.0
      %3201 = vmatpush1.msra.mxu0 0.0
      %3202 = vmatprep.subr.mxu0 0.0
      %3203 = vmatpush1.msra.mxu0 0.0
      %3204 = vmatprep.subr.mxu0 0.0
      %3205 = vmatpush1.msra.mxu0 0.0
      %3206 = vmatprep.subr.mxu0 0.0
      %3207 = vmatpush1.msra.mxu0 0.0
      %3208 = vmatprep.subr.mxu0 0.0
      %3209 = vmatpush1.msra.mxu0 0.0
      %3210 = vmatprep.subr.mxu0 0.0
      %3211 = vmatpush1.msra.mxu0 0.0
      %3212 = vmatprep.subr.mxu0 0.0
      %3213 = vmatpush1.msra.mxu0 0.0
      %3214 = vmatprep.subr.mxu0 0.0
      %3215 = vmatpush1.msra.mxu0 0.0
      %3216 = vmatprep.subr.mxu0 0.0
      %3217 = vmatpush1.msra.mxu0 0.0
      %3218 = vmatprep.subr.mxu0 0.0
      %3219 = vmatpush1.msra.mxu0 0.0
      %3220 = vmatprep.subr.mxu0 0.0
      %3221 = vmatpush1.msra.mxu0 0.0
      %3222 = vmatprep.subr.mxu0 0.0
      %3223 = vmatpush1.msra.mxu0 0.0
      %3224 = vmatprep.subr.mxu0 0.0
      %3225 = vmatpush1.msra.mxu0 0.0
      %3226 = vmatprep.subr.mxu0 0.0
      %3227 = vmatpush1.msra.mxu0 0.0
      %3228 = vmatprep.subr.mxu0 0.0
      %3229 = vmatpush1.msra.mxu0 0.0
      %3230 = vmatprep.subr.mxu0 0.0
      %3231 = vmatpush1.msra.mxu0 0.0
      %3232 = vmatprep.subr.mxu0 0.0
      %3233 = vmatpush1.msra.mxu0 0.0
      %3234 = vmatprep.subr.mxu0 0.0
      %3235 = vmatpush1.msra.mxu0 0.0
      %3236 = vmatprep.subr.mxu0 0.0
      %3237 = vmatpush1.msra.mxu0 0.0
      %3238 = vmatprep.subr.mxu0 0.0
      %3239 = vmatpush1.msra.mxu0 0.0
      %3240 = vmatprep.subr.mxu0 0.0
      %3241 = vmatpush1.msra.mxu0 0.0
      %3242 = vmatprep.subr.mxu0 0.0
      %3243 = vmatpush1.msra.mxu0 0.0
      %3244 = vmatprep.subr.mxu0 0.0
      %3245 = vmatpush1.msra.mxu0 0.0
      %3246 = vmatprep.subr.mxu0 0.0
      %3247 = vmatpush1.msra.mxu0 0.0
      %3248 = vmatprep.subr.mxu0 0.0
      %3249 = vmatpush1.msra.mxu0 0.0
      %3250 = vmatprep.subr.mxu0 0.0
      %3251 = vmatpush1.msra.mxu0 0.0
      %3252 = vmatprep.subr.mxu0 0.0
      %3253 = vmatpush1.msra.mxu0 0.0
      %3254 = vmatprep.subr.mxu0 0.0
      %3255 = vmatpush1.msra.mxu0 0.0
      %3256 = vmatprep.mubr.f32.mxu0 0.0
      %3257 = vmatmul.mubr.f32.gmra.mrb[0].mxu0 %v950
      %v3258 = vpop.f32.mrb[0].mxu0
      %v3259 = vadd.f32 0.0, %v3258
      %v3260 = vpop.f32.mrb[0].mxu0
      %3261 = vmatprep.mubr.f32.mxu0 0.0
      %3262 = vmatmul.mubr.f32.gmra.mrb[0].mxu0 %v953
      %v3263 = vpop.f32.mrb[0].mxu0
      %v3264 = vadd.f32 0.0, %v3263
      %v3265 = vpop.f32.mrb[0].mxu0
      %3266 = vmatprep.mubr.f32.mxu0 0.0
      %3267 = vmatmul.mubr.f32.gmra.mrb[0].mxu0 %v956
      %v3268 = vpop.f32.mrb[0].mxu0
      %v3269 = vadd.f32 0.0, %v3268
      %v3270 = vpop.f32.mrb[0].mxu0
      %3271 = vmatprep.mubr.f32.mxu0 0.0
      %3272 = vmatmul.mubr.f32.gmra.mrb[0].mxu0 %v959
      %v3273 = vpop.f32.mrb[0].mxu0
      %v3274 = vadd.f32 0.0, %v3273
      %v3275 = vpop.f32.mrb[0].mxu0
      %3276 = vmatprep.mubr.f32.mxu0 0.0
      %3277 = vmatmul.mubr.f32.gmra.mrb[0].mxu0 %v962
      %v3278 = vpop.f32.mrb[0].mxu0
      %v3279 = vadd.f32 0.0, %v3278
      %v3280 = vpop.f32.mrb[0].mxu0
      %3281 = vmatprep.mubr.f32.mxu0 0.0
      %3282 = vmatmul.mubr.f32.gmra.mrb[0].mxu0 %v965
      %v3283 = vpop.f32.mrb[0].mxu0
      %v3284 = vadd.f32 0.0, %v3283
      %v3285 = vpop.f32.mrb[0].mxu0
      %3286 = vmatprep.mubr.f32.mxu0 0.0
      %3287 = vmatmul.mubr.f32.gmra.mrb[0].mxu0 %v968
      %v3288 = vpop.f32.mrb[0].mxu0
      %v3289 = vadd.f32 0.0, %v3288
      %v3290 = vpop.f32.mrb[0].mxu0
      %3291 = vmatprep.mubr.f32.mxu0 0.0
      %3292 = vmatmul.mubr.f32.gmra.mrb[0].mxu0 %v971
      %v3293 = vpop.f32.mrb[0].mxu0
      %v3294 = vadd.f32 0.0, %v3293
      %v3295 = vpop.f32.mrb[0].mxu0
      %3296 = vdwg.mxu0
      %3297 = vmatprep.subr.mxu0 0.0
      %3298 = vmatpush1.msra.mxu0 %v2715
      %3299 = vmatprep.subr.mxu0 0.0
      %3300 = vmatpush1.msra.mxu0 0.0
      %3301 = vmatprep.subr.mxu0 0.0
      %3302 = vmatpush1.msra.mxu0 0.0
      %3303 = vmatprep.subr.mxu0 0.0
      %3304 = vmatpush1.msra.mxu0 0.0
      %3305 = vmatprep.subr.mxu0 0.0
      %3306 = vmatpush1.msra.mxu0 0.0
      %3307 = vmatprep.subr.mxu0 0.0
      %3308 = vmatpush1.msra.mxu0 0.0
      %3309 = vmatprep.subr.mxu0 0.0
      %3310 = vmatpush1.msra.mxu0 0.0
      %3311 = vmatprep.subr.mxu0 0.0
      %3312 = vmatpush1.msra.mxu0 0.0
      %3313 = vmatprep.subr.mxu0 0.0
      %3314 = vmatpush1.msra.mxu0 0.0
      %3315 = vmatprep.subr.mxu0 0.0
      %3316 = vmatpush1.msra.mxu0 0.0
      %3317 = vmatprep.subr.mxu0 0.0
      %3318 = vmatpush1.msra.mxu0 0.0
      %3319 = vmatprep.subr.mxu0 0.0
      %3320 = vmatpush1.msra.mxu0 0.0
      %3321 = vmatprep.subr.mxu0 0.0
      %3322 = vmatpush1.msra.mxu0 0.0
      %3323 = vmatprep.subr.mxu0 0.0
      %3324 = vmatpush1.msra.mxu0 0.0
      %3325 = vmatprep.subr.mxu0 0.0
      %3326 = vmatpush1.msra.mxu0 0.0
      %3327 = vmatprep.subr.mxu0 0.0
      %3328 = vmatpush1.msra.mxu0 0.0
      %3329 = vmatprep.subr.mxu0 0.0
      %3330 = vmatpush1.msra.mxu0 0.0
      %3331 = vmatprep.subr.mxu0 0.0
      %3332 = vmatpush1.msra.mxu0 0.0
      %3333 = vmatprep.subr.mxu0 0.0
      %3334 = vmatpush1.msra.mxu0 0.0
      %3335 = vmatprep.subr.mxu0 0.0
      %3336 = vmatpush1.msra.mxu0 0.0
      %3337 = vmatprep.subr.mxu0 0.0
      %3338 = vmatpush1.msra.mxu0 0.0
      %3339 = vmatprep.subr.mxu0 0.0
      %3340 = vmatpush1.msra.mxu0 0.0
      %3341 = vmatprep.subr.mxu0 0.0
      %3342 = vmatpush1.msra.mxu0 0.0
      %3343 = vmatprep.subr.mxu0 0.0
      %3344 = vmatpush1.msra.mxu0 0.0
      %3345 = vmatprep.subr.mxu0 0.0
      %3346 = vmatpush1.msra.mxu0 0.0
      %3347 = vmatprep.subr.mxu0 0.0
      %3348 = vmatpush1.msra.mxu0 0.0
      %3349 = vmatprep.subr.mxu0 0.0
      %3350 = vmatpush1.msra.mxu0 0.0
      %3351 = vmatprep.subr.mxu0 0.0
      %3352 = vmatpush1.msra.mxu0 0.0
      %3353 = vmatprep.subr.mxu0 0.0
      %3354 = vmatpush1.msra.mxu0 0.0
      %3355 = vmatprep.subr.mxu0 0.0
      %3356 = vmatpush1.msra.mxu0 0.0
      %3357 = vmatprep.subr.mxu0 0.0
      %3358 = vmatpush1.msra.mxu0 0.0
      %3359 = vmatprep.subr.mxu0 0.0
      %3360 = vmatpush1.msra.mxu0 0.0
      %3361 = vmatprep.mubr.f32.mxu0 0.0
      %3362 = vmatmul.mubr.f32.gmra.mrb[0].mxu0 %v1079
      %v3363 = vpop.f32.mrb[0].mxu0
      %v3364 = vadd.f32 0.0, %v3363
      %v3365 = vpop.f32.mrb[0].mxu0
      %3366 = vmatprep.mubr.f32.mxu0 0.0
      %3367 = vmatmul.mubr.f32.gmra.mrb[0].mxu0 %v1082
      %v3368 = vpop.f32.mrb[0].mxu0
      %v3369 = vadd.f32 0.0, %v3368
      %v3370 = vpop.f32.mrb[0].mxu0
      %3371 = vmatprep.mubr.f32.mxu0 0.0
      %3372 = vmatmul.mubr.f32.gmra.mrb[0].mxu0 %v1085
      %v3373 = vpop.f32.mrb[0].mxu0
      %v3374 = vadd.f32 0.0, %v3373
      %v3375 = vpop.f32.mrb[0].mxu0
      %3376 = vmatprep.mubr.f32.mxu0 0.0
      %3377 = vmatmul.mubr.f32.gmra.mrb[0].mxu0 %v1088
      %v3378 = vpop.f32.mrb[0].mxu0
      %v3379 = vadd.f32 0.0, %v3378
      %v3380 = vpop.f32.mrb[0].mxu0
      %3381 = vmatprep.mubr.f32.mxu0 0.0
      %3382 = vmatmul.mubr.f32.gmra.mrb[0].mxu0 %v1091
      %v3383 = vpop.f32.mrb[0].mxu0
      %v3384 = vadd.f32 0.0, %v3383
      %v3385 = vpop.f32.mrb[0].mxu0
      %3386 = vmatprep.mubr.f32.mxu0 0.0
      %3387 = vmatmul.mubr.f32.gmra.mrb[0].mxu0 %v1094
      %v3388 = vpop.f32.mrb[0].mxu0
      %v3389 = vadd.f32 0.0, %v3388
      %v3390 = vpop.f32.mrb[0].mxu0
      %3391 = vmatprep.mubr.f32.mxu0 0.0
      %3392 = vmatmul.mubr.f32.gmra.mrb[0].mxu0 %v1097
      %v3393 = vpop.f32.mrb[0].mxu0
      %v3394 = vadd.f32 0.0, %v3393
      %v3395 = vpop.f32.mrb[0].mxu0
      %3396 = vmatprep.mubr.f32.mxu0 0.0
      %3397 = vmatmul.mubr.f32.gmra.mrb[0].mxu0 %v1100
      %v3398 = vpop.f32.mrb[0].mxu0
      %v3399 = vadd.f32 0.0, %v3398
      %v3400 = vpop.f32.mrb[0].mxu0
      %3401 = vdwg.mxu0
      %v3402 = vsub.f32 %v3259, %v3364
      %v3403 = vsub.f32 %v3264, %v3369
      %v3404 = vsub.f32 %v3269, %v3374
      %v3405 = vsub.f32 %v3274, %v3379
      %v3406 = vsub.f32 %v3279, %v3384
      %v3407 = vsub.f32 %v3284, %v3389
      %v3408 = vsub.f32 %v3289, %v3394
      %v3409 = vsub.f32 %v3294, %v3399
      %v3410 = vmul.f32 %v3402, %v3402
      %v3411 = vmul.f32 %v3403, %v3403
      %v3412 = vmul.f32 %v3404, %v3404
      %v3413 = vmul.f32 %v3405, %v3405
      %v3414 = vmul.f32 %v3406, %v3406
      %v3415 = vmul.f32 %v3407, %v3407
      %v3416 = vmul.f32 %v3408, %v3408
      %v3417 = vmul.f32 %v3409, %v3409
      %v3418 = vsel %vm1534, %v3410, 0.0
      %3419 = vadd.xlane.f32.xlu0 %v3418
      %v3420 = vpop.xlane.xlu0 %3419
      %v3421 = vsel %vm1534, %v3411, 0.0
      %3422 = vadd.xlane.f32.xlu0 %v3421
      %v3423 = vpop.xlane.xlu0 %3422
      %v3424 = vsel %vm1534, %v3412, 0.0
      %3425 = vadd.xlane.f32.xlu0 %v3424
      %v3426 = vpop.xlane.xlu0 %3425
      %v3427 = vsel %vm1534, %v3413, 0.0
      %3428 = vadd.xlane.f32.xlu0 %v3427
      %v3429 = vpop.xlane.xlu0 %3428
      %v3430 = vsel %vm1534, %v3414, 0.0
      %3431 = vadd.xlane.f32.xlu0 %v3430
      %v3432 = vpop.xlane.xlu0 %3431
      %v3433 = vsel %vm1534, %v3415, 0.0
      %3434 = vadd.xlane.f32.xlu0 %v3433
      %v3435 = vpop.xlane.xlu0 %3434
      %v3436 = vsel %vm1534, %v3416, 0.0
      %3437 = vadd.xlane.f32.xlu0 %v3436
      %v3438 = vpop.xlane.xlu0 %3437
      %v3439 = vsel %vm1534, %v3417, 0.0
      %3440 = vadd.xlane.f32.xlu0 %v3439
      %v3441 = vpop.xlane.xlu0 %3440
      %v3443 = vsel %vm1559, %v3083, 0
      %v3446 = vsel %vm1563, %v3095, 0
      %v3449 = vsel %vm1563, %v3096, 0
      %3451 = vmatprep.subr.mxu0 %v3086
      %3452 = vmatpush1.msra.mxu0 %v3085
      %3453 = vmatprep.subr.mxu0 %v3088
      %3454 = vmatpush1.msra.mxu0 %v3087
      %3455 = vmatprep.subr.mxu0 %v3090
      %3456 = vmatpush1.msra.mxu0 %v3089
      %3457 = vmatprep.subr.mxu0 %v3092
      %3458 = vmatpush1.msra.mxu0 %v3091
      %3459 = vmatprep.subr.mxu0 %v3094
      %3460 = vmatpush1.msra.mxu0 %v3093
      %3461 = vmatprep.subr.mxu0 %v3449
      %3462 = vmatpush1.msra.mxu0 %v3446
      %3463 = vmatprep.subr.mxu0 0.0
      %3464 = vmatpush1.msra.mxu0 0.0
      %3465 = vmatprep.subr.mxu0 0.0
      %3466 = vmatpush1.msra.mxu0 0.0
      %3467 = vmatprep.subr.mxu0 0.0
      %3468 = vmatpush1.msra.mxu0 0.0
      %3469 = vmatprep.subr.mxu0 0.0
      %3470 = vmatpush1.msra.mxu0 0.0
      %3471 = vmatprep.subr.mxu0 0.0
      %3472 = vmatpush1.msra.mxu0 0.0
      %3473 = vmatprep.subr.mxu0 0.0
      %3474 = vmatpush1.msra.mxu0 0.0
      %3475 = vmatprep.subr.mxu0 0.0
      %3476 = vmatpush1.msra.mxu0 0.0
      %3477 = vmatprep.subr.mxu0 0.0
      %3478 = vmatpush1.msra.mxu0 0.0
      %3479 = vmatprep.subr.mxu0 0.0
      %3480 = vmatpush1.msra.mxu0 0.0
      %3481 = vmatprep.subr.mxu0 0.0
      %3482 = vmatpush1.msra.mxu0 0.0
      %3483 = vmatprep.subr.mxu0 0.0
      %3484 = vmatpush1.msra.mxu0 0.0
      %3485 = vmatprep.subr.mxu0 0.0
      %3486 = vmatpush1.msra.mxu0 0.0
      %3487 = vmatprep.subr.mxu0 0.0
      %3488 = vmatpush1.msra.mxu0 0.0
      %3489 = vmatprep.subr.mxu0 0.0
      %3490 = vmatpush1.msra.mxu0 0.0
      %3491 = vmatprep.subr.mxu0 0.0
      %3492 = vmatpush1.msra.mxu0 0.0
      %3493 = vmatprep.subr.mxu0 0.0
      %3494 = vmatpush1.msra.mxu0 0.0
      %3495 = vmatprep.subr.mxu0 0.0
      %3496 = vmatpush1.msra.mxu0 0.0
      %3497 = vmatprep.subr.mxu0 0.0
      %3498 = vmatpush1.msra.mxu0 0.0
      %3499 = vmatprep.subr.mxu0 0.0
      %3500 = vmatpush1.msra.mxu0 0.0
      %3501 = vmatprep.subr.mxu0 0.0
      %3502 = vmatpush1.msra.mxu0 0.0
      %3503 = vmatprep.subr.mxu0 0.0
      %3504 = vmatpush1.msra.mxu0 0.0
      %3505 = vmatprep.subr.mxu0 0.0
      %3506 = vmatpush1.msra.mxu0 0.0
      %3507 = vmatprep.subr.mxu0 0.0
      %3508 = vmatpush1.msra.mxu0 0.0
      %3509 = vmatprep.subr.mxu0 0.0
      %3510 = vmatpush1.msra.mxu0 0.0
      %3511 = vmatprep.subr.mxu0 0.0
      %3512 = vmatpush1.msra.mxu0 0.0
      %3513 = vmatprep.subr.mxu0 0.0
      %3514 = vmatpush1.msra.mxu0 0.0
      %3515 = vmatprep.mubr.f32.mxu0 0.0
      %3516 = vmatmul.mubr.f32.gmra.mrb[0].mxu0 %v3443
      %v3517 = vpop.f32.mrb[0].mxu0
      %v3518 = vadd.f32 0.0, %v3517
      %v3519 = vpop.f32.mrb[0].mxu0
      %v3520 = vadd.f32 0.0, %v3519
      %3521 = vdwg.mxu0
      %v3523 = vsel %vm1563, %v3108, 0
      %v3526 = vsel %vm1563, %v3109, 0
      %3528 = vmatprep.subr.mxu0 %v3099
      %3529 = vmatpush1.msra.mxu0 %v3098
      %3530 = vmatprep.subr.mxu0 %v3101
      %3531 = vmatpush1.msra.mxu0 %v3100
      %3532 = vmatprep.subr.mxu0 %v3103
      %3533 = vmatpush1.msra.mxu0 %v3102
      %3534 = vmatprep.subr.mxu0 %v3105
      %3535 = vmatpush1.msra.mxu0 %v3104
      %3536 = vmatprep.subr.mxu0 %v3107
      %3537 = vmatpush1.msra.mxu0 %v3106
      %3538 = vmatprep.subr.mxu0 %v3526
      %3539 = vmatpush1.msra.mxu0 %v3523
      %3540 = vmatprep.subr.mxu0 0.0
      %3541 = vmatpush1.msra.mxu0 0.0
      %3542 = vmatprep.subr.mxu0 0.0
      %3543 = vmatpush1.msra.mxu0 0.0
      %3544 = vmatprep.subr.mxu0 0.0
      %3545 = vmatpush1.msra.mxu0 0.0
      %3546 = vmatprep.subr.mxu0 0.0
      %3547 = vmatpush1.msra.mxu0 0.0
      %3548 = vmatprep.subr.mxu0 0.0
      %3549 = vmatpush1.msra.mxu0 0.0
      %3550 = vmatprep.subr.mxu0 0.0
      %3551 = vmatpush1.msra.mxu0 0.0
      %3552 = vmatprep.subr.mxu0 0.0
      %3553 = vmatpush1.msra.mxu0 0.0
      %3554 = vmatprep.subr.mxu0 0.0
      %3555 = vmatpush1.msra.mxu0 0.0
      %3556 = vmatprep.subr.mxu0 0.0
      %3557 = vmatpush1.msra.mxu0 0.0
      %3558 = vmatprep.subr.mxu0 0.0
      %3559 = vmatpush1.msra.mxu0 0.0
      %3560 = vmatprep.subr.mxu0 0.0
      %3561 = vmatpush1.msra.mxu0 0.0
      %3562 = vmatprep.subr.mxu0 0.0
      %3563 = vmatpush1.msra.mxu0 0.0
      %3564 = vmatprep.subr.mxu0 0.0
      %3565 = vmatpush1.msra.mxu0 0.0
      %3566 = vmatprep.subr.mxu0 0.0
      %3567 = vmatpush1.msra.mxu0 0.0
      %3568 = vmatprep.subr.mxu0 0.0
      %3569 = vmatpush1.msra.mxu0 0.0
      %3570 = vmatprep.subr.mxu0 0.0
      %3571 = vmatpush1.msra.mxu0 0.0
      %3572 = vmatprep.subr.mxu0 0.0
      %3573 = vmatpush1.msra.mxu0 0.0
      %3574 = vmatprep.subr.mxu0 0.0
      %3575 = vmatpush1.msra.mxu0 0.0
      %3576 = vmatprep.subr.mxu0 0.0
      %3577 = vmatpush1.msra.mxu0 0.0
      %3578 = vmatprep.subr.mxu0 0.0
      %3579 = vmatpush1.msra.mxu0 0.0
      %3580 = vmatprep.subr.mxu0 0.0
      %3581 = vmatpush1.msra.mxu0 0.0
      %3582 = vmatprep.subr.mxu0 0.0
      %3583 = vmatpush1.msra.mxu0 0.0
      %3584 = vmatprep.subr.mxu0 0.0
      %3585 = vmatpush1.msra.mxu0 0.0
      %3586 = vmatprep.subr.mxu0 0.0
      %3587 = vmatpush1.msra.mxu0 0.0
      %3588 = vmatprep.subr.mxu0 0.0
      %3589 = vmatpush1.msra.mxu0 0.0
      %3590 = vmatprep.subr.mxu0 0.0
      %3591 = vmatpush1.msra.mxu0 0.0
      %3592 = vmatprep.mubr.f32.mxu0 0.0
      %3593 = vmatmul.mubr.f32.gmra.mrb[0].mxu0 %v3443
      %v3594 = vpop.f32.mrb[0].mxu0
      %v3595 = vadd.f32 0.0, %v3594
      %v3596 = vpop.f32.mrb[0].mxu0
      %v3597 = vadd.f32 0.0, %v3596
      %3598 = vdwg.mxu0
      %3599 = vmatprep.subr.mxu0 %v3597
      %3600 = vmatpush1.msra.mxu0 %v3595
      %3601 = vmatprep.subr.mxu0 0.0
      %3602 = vmatpush1.msra.mxu0 0.0
      %3603 = vmatprep.subr.mxu0 0.0
      %3604 = vmatpush1.msra.mxu0 0.0
      %3605 = vmatprep.subr.mxu0 0.0
      %3606 = vmatpush1.msra.mxu0 0.0
      %3607 = vmatprep.subr.mxu0 0.0
      %3608 = vmatpush1.msra.mxu0 0.0
      %3609 = vmatprep.subr.mxu0 0.0
      %3610 = vmatpush1.msra.mxu0 0.0
      %3611 = vmatprep.subr.mxu0 0.0
      %3612 = vmatpush1.msra.mxu0 0.0
      %3613 = vmatprep.subr.mxu0 0.0
      %3614 = vmatpush1.msra.mxu0 0.0
      %3615 = vmatprep.subr.mxu0 0.0
      %3616 = vmatpush1.msra.mxu0 0.0
      %3617 = vmatprep.subr.mxu0 0.0
      %3618 = vmatpush1.msra.mxu0 0.0
      %3619 = vmatprep.subr.mxu0 0.0
      %3620 = vmatpush1.msra.mxu0 0.0
      %3621 = vmatprep.subr.mxu0 0.0
      %3622 = vmatpush1.msra.mxu0 0.0
      %3623 = vmatprep.subr.mxu0 0.0
      %3624 = vmatpush1.msra.mxu0 0.0
      %3625 = vmatprep.subr.mxu0 0.0
      %3626 = vmatpush1.msra.mxu0 0.0
      %3627 = vmatprep.subr.mxu0 0.0
      %3628 = vmatpush1.msra.mxu0 0.0
      %3629 = vmatprep.subr.mxu0 0.0
      %3630 = vmatpush1.msra.mxu0 0.0
      %3631 = vmatprep.subr.mxu0 0.0
      %3632 = vmatpush1.msra.mxu0 0.0
      %3633 = vmatprep.subr.mxu0 0.0
      %3634 = vmatpush1.msra.mxu0 0.0
      %3635 = vmatprep.subr.mxu0 0.0
      %3636 = vmatpush1.msra.mxu0 0.0
      %3637 = vmatprep.subr.mxu0 0.0
      %3638 = vmatpush1.msra.mxu0 0.0
      %3639 = vmatprep.subr.mxu0 0.0
      %3640 = vmatpush1.msra.mxu0 0.0
      %3641 = vmatprep.subr.mxu0 0.0
      %3642 = vmatpush1.msra.mxu0 0.0
      %3643 = vmatprep.subr.mxu0 0.0
      %3644 = vmatpush1.msra.mxu0 0.0
      %3645 = vmatprep.subr.mxu0 0.0
      %3646 = vmatpush1.msra.mxu0 0.0
      %3647 = vmatprep.subr.mxu0 0.0
      %3648 = vmatpush1.msra.mxu0 0.0
      %3649 = vmatprep.subr.mxu0 0.0
      %3650 = vmatpush1.msra.mxu0 0.0
      %3651 = vmatprep.subr.mxu0 0.0
      %3652 = vmatpush1.msra.mxu0 0.0
      %3653 = vmatprep.subr.mxu0 0.0
      %3654 = vmatpush1.msra.mxu0 0.0
      %3655 = vmatprep.subr.mxu0 0.0
      %3656 = vmatpush1.msra.mxu0 0.0
      %3657 = vmatprep.subr.mxu0 0.0
      %3658 = vmatpush1.msra.mxu0 0.0
      %3659 = vmatprep.subr.mxu0 0.0
      %3660 = vmatpush1.msra.mxu0 0.0
      %3661 = vmatprep.subr.mxu0 0.0
      %3662 = vmatpush1.msra.mxu0 0.0
      %3663 = vmatprep.mubr.f32.mxu0 0.0
      %3664 = vmatmul.mubr.f32.gmra.mrb[0].mxu0 %v1079
      %v3665 = vpop.f32.mrb[0].mxu0
      %v3666 = vadd.f32 0.0, %v3665
      %v3667 = vpop.f32.mrb[0].mxu0
      %v3668 = vadd.f32 0.0, %v3667
      %3669 = vmatprep.mubr.f32.mxu0 0.0
      %3670 = vmatmul.mubr.f32.gmra.mrb[0].mxu0 %v1082
      %v3671 = vpop.f32.mrb[0].mxu0
      %v3672 = vadd.f32 0.0, %v3671
      %v3673 = vpop.f32.mrb[0].mxu0
      %v3674 = vadd.f32 0.0, %v3673
      %3675 = vmatprep.mubr.f32.mxu0 0.0
      %3676 = vmatmul.mubr.f32.gmra.mrb[0].mxu0 %v1085
      %v3677 = vpop.f32.mrb[0].mxu0
      %v3678 = vadd.f32 0.0, %v3677
      %v3679 = vpop.f32.mrb[0].mxu0
      %v3680 = vadd.f32 0.0, %v3679
      %3681 = vmatprep.mubr.f32.mxu0 0.0
      %3682 = vmatmul.mubr.f32.gmra.mrb[0].mxu0 %v1088
      %v3683 = vpop.f32.mrb[0].mxu0
      %v3684 = vadd.f32 0.0, %v3683
      %v3685 = vpop.f32.mrb[0].mxu0
      %v3686 = vadd.f32 0.0, %v3685
      %3687 = vmatprep.mubr.f32.mxu0 0.0
      %3688 = vmatmul.mubr.f32.gmra.mrb[0].mxu0 %v1091
      %v3689 = vpop.f32.mrb[0].mxu0
      %v3690 = vadd.f32 0.0, %v3689
      %v3691 = vpop.f32.mrb[0].mxu0
      %v3692 = vadd.f32 0.0, %v3691
      %3693 = vmatprep.mubr.f32.mxu0 0.0
      %3694 = vmatmul.mubr.f32.gmra.mrb[0].mxu0 %v1094
      %v3695 = vpop.f32.mrb[0].mxu0
      %v3696 = vadd.f32 0.0, %v3695
      %v3697 = vpop.f32.mrb[0].mxu0
      %v3698 = vadd.f32 0.0, %v3697
      %3699 = vmatprep.mubr.f32.mxu0 0.0
      %3700 = vmatmul.mubr.f32.gmra.mrb[0].mxu0 %v1097
      %v3701 = vpop.f32.mrb[0].mxu0
      %v3702 = vadd.f32 0.0, %v3701
      %v3703 = vpop.f32.mrb[0].mxu0
      %v3704 = vadd.f32 0.0, %v3703
      %3705 = vmatprep.mubr.f32.mxu0 0.0
      %3706 = vmatmul.mubr.f32.gmra.mrb[0].mxu0 %v1100
      %v3707 = vpop.f32.mrb[0].mxu0
      %v3708 = vadd.f32 0.0, %v3707
      %v3709 = vpop.f32.mrb[0].mxu0
      %v3710 = vadd.f32 0.0, %v3709
      %3711 = vdwg.mxu0
      %3712 = vmatprep.subr.mxu0 %v3520
      %3713 = vmatpush1.msra.mxu0 %v3518
      %3714 = vmatprep.subr.mxu0 0.0
      %3715 = vmatpush1.msra.mxu0 0.0
      %3716 = vmatprep.subr.mxu0 0.0
      %3717 = vmatpush1.msra.mxu0 0.0
      %3718 = vmatprep.subr.mxu0 0.0
      %3719 = vmatpush1.msra.mxu0 0.0
      %3720 = vmatprep.subr.mxu0 0.0
      %3721 = vmatpush1.msra.mxu0 0.0
      %3722 = vmatprep.subr.mxu0 0.0
      %3723 = vmatpush1.msra.mxu0 0.0
      %3724 = vmatprep.subr.mxu0 0.0
      %3725 = vmatpush1.msra.mxu0 0.0
      %3726 = vmatprep.subr.mxu0 0.0
      %3727 = vmatpush1.msra.mxu0 0.0
      %3728 = vmatprep.subr.mxu0 0.0
      %3729 = vmatpush1.msra.mxu0 0.0
      %3730 = vmatprep.subr.mxu0 0.0
      %3731 = vmatpush1.msra.mxu0 0.0
      %3732 = vmatprep.subr.mxu0 0.0
      %3733 = vmatpush1.msra.mxu0 0.0
      %3734 = vmatprep.subr.mxu0 0.0
      %3735 = vmatpush1.msra.mxu0 0.0
      %3736 = vmatprep.subr.mxu0 0.0
      %3737 = vmatpush1.msra.mxu0 0.0
      %3738 = vmatprep.subr.mxu0 0.0
      %3739 = vmatpush1.msra.mxu0 0.0
      %3740 = vmatprep.subr.mxu0 0.0
      %3741 = vmatpush1.msra.mxu0 0.0
      %3742 = vmatprep.subr.mxu0 0.0
      %3743 = vmatpush1.msra.mxu0 0.0
      %3744 = vmatprep.subr.mxu0 0.0
      %3745 = vmatpush1.msra.mxu0 0.0
      %3746 = vmatprep.subr.mxu0 0.0
      %3747 = vmatpush1.msra.mxu0 0.0
      %3748 = vmatprep.subr.mxu0 0.0
      %3749 = vmatpush1.msra.mxu0 0.0
      %3750 = vmatprep.subr.mxu0 0.0
      %3751 = vmatpush1.msra.mxu0 0.0
      %3752 = vmatprep.subr.mxu0 0.0
      %3753 = vmatpush1.msra.mxu0 0.0
      %3754 = vmatprep.subr.mxu0 0.0
      %3755 = vmatpush1.msra.mxu0 0.0
      %3756 = vmatprep.subr.mxu0 0.0
      %3757 = vmatpush1.msra.mxu0 0.0
      %3758 = vmatprep.subr.mxu0 0.0
      %3759 = vmatpush1.msra.mxu0 0.0
      %3760 = vmatprep.subr.mxu0 0.0
      %3761 = vmatpush1.msra.mxu0 0.0
      %3762 = vmatprep.subr.mxu0 0.0
      %3763 = vmatpush1.msra.mxu0 0.0
      %3764 = vmatprep.subr.mxu0 0.0
      %3765 = vmatpush1.msra.mxu0 0.0
      %3766 = vmatprep.subr.mxu0 0.0
      %3767 = vmatpush1.msra.mxu0 0.0
      %3768 = vmatprep.subr.mxu0 0.0
      %3769 = vmatpush1.msra.mxu0 0.0
      %3770 = vmatprep.subr.mxu0 0.0
      %3771 = vmatpush1.msra.mxu0 0.0
      %3772 = vmatprep.subr.mxu0 0.0
      %3773 = vmatpush1.msra.mxu0 0.0
      %3774 = vmatprep.subr.mxu0 0.0
      %3775 = vmatpush1.msra.mxu0 0.0
      %3776 = vmatprep.mubr.f32.mxu0 0.0
      %3777 = vmatmul.mubr.f32.gmra.mrb[0].mxu0 %v950
      %v3778 = vpop.f32.mrb[0].mxu0
      %v3779 = vadd.f32 %v3666, %v3778
      %v3780 = vpop.f32.mrb[0].mxu0
      %v3781 = vadd.f32 %v3668, %v3780
      %3782 = vmatprep.mubr.f32.mxu0 0.0
      %3783 = vmatmul.mubr.f32.gmra.mrb[0].mxu0 %v953
      %v3784 = vpop.f32.mrb[0].mxu0
      %v3785 = vadd.f32 %v3672, %v3784
      %v3786 = vpop.f32.mrb[0].mxu0
      %v3787 = vadd.f32 %v3674, %v3786
      %3788 = vmatprep.mubr.f32.mxu0 0.0
      %3789 = vmatmul.mubr.f32.gmra.mrb[0].mxu0 %v956
      %v3790 = vpop.f32.mrb[0].mxu0
      %v3791 = vadd.f32 %v3678, %v3790
      %v3792 = vpop.f32.mrb[0].mxu0
      %v3793 = vadd.f32 %v3680, %v3792
      %3794 = vmatprep.mubr.f32.mxu0 0.0
      %3795 = vmatmul.mubr.f32.gmra.mrb[0].mxu0 %v959
      %v3796 = vpop.f32.mrb[0].mxu0
      %v3797 = vadd.f32 %v3684, %v3796
      %v3798 = vpop.f32.mrb[0].mxu0
      %v3799 = vadd.f32 %v3686, %v3798
      %3800 = vmatprep.mubr.f32.mxu0 0.0
      %3801 = vmatmul.mubr.f32.gmra.mrb[0].mxu0 %v962
      %v3802 = vpop.f32.mrb[0].mxu0
      %v3803 = vadd.f32 %v3690, %v3802
      %v3804 = vpop.f32.mrb[0].mxu0
      %v3805 = vadd.f32 %v3692, %v3804
      %3806 = vmatprep.mubr.f32.mxu0 0.0
      %3807 = vmatmul.mubr.f32.gmra.mrb[0].mxu0 %v965
      %v3808 = vpop.f32.mrb[0].mxu0
      %v3809 = vadd.f32 %v3696, %v3808
      %v3810 = vpop.f32.mrb[0].mxu0
      %v3811 = vadd.f32 %v3698, %v3810
      %3812 = vmatprep.mubr.f32.mxu0 0.0
      %3813 = vmatmul.mubr.f32.gmra.mrb[0].mxu0 %v968
      %v3814 = vpop.f32.mrb[0].mxu0
      %v3815 = vadd.f32 %v3702, %v3814
      %v3816 = vpop.f32.mrb[0].mxu0
      %v3817 = vadd.f32 %v3704, %v3816
      %3818 = vmatprep.mubr.f32.mxu0 0.0
      %3819 = vmatmul.mubr.f32.gmra.mrb[0].mxu0 %v971
      %v3820 = vpop.f32.mrb[0].mxu0
      %v3821 = vadd.f32 %v3708, %v3820
      %v3822 = vpop.f32.mrb[0].mxu0
      %v3823 = vadd.f32 %v3710, %v3822
      %3824 = vdwg.mxu0
      %v3826 = vlaneseq
      %v3827 = vshrl.u32 %v3826, 7
      %v3828 = vsub.s32 0, %v3827
      %v3829 = vrot.slane %v3111, %v3828
      %v3830 = vlaneseq
      %v3831 = vshrl.u32 %v3830, 7
      %v3832 = vsub.s32 1, %v3831
      %v3833 = vrot.slane %v3111, %v3832
      %v3836 = vmul.f32 %v3420, %v3829
      %v3837 = vmul.f32 %v3420, %v3833
      %v3838 = vmul.f32 %v3423, %v3829
      %v3839 = vmul.f32 %v3423, %v3833
      %v3840 = vmul.f32 %v3426, %v3829
      %v3841 = vmul.f32 %v3426, %v3833
      %v3842 = vmul.f32 %v3429, %v3829
      %v3843 = vmul.f32 %v3429, %v3833
      %v3844 = vmul.f32 %v3432, %v3829
      %v3845 = vmul.f32 %v3432, %v3833
      %v3846 = vmul.f32 %v3435, %v3829
      %v3847 = vmul.f32 %v3435, %v3833
      %v3848 = vmul.f32 %v3438, %v3829
      %v3849 = vmul.f32 %v3438, %v3833
      %v3850 = vmul.f32 %v3441, %v3829
      %v3851 = vmul.f32 %v3441, %v3833
      %v3852 = vadd.f32 %v3779, %v3836
      %v3853 = vadd.f32 %v3781, %v3837
      %v3854 = vadd.f32 %v3785, %v3838
      %v3855 = vadd.f32 %v3787, %v3839
      %v3856 = vadd.f32 %v3791, %v3840
      %v3857 = vadd.f32 %v3793, %v3841
      %v3858 = vadd.f32 %v3797, %v3842
      %v3859 = vadd.f32 %v3799, %v3843
      %v3860 = vadd.f32 %v3803, %v3844
      %v3861 = vadd.f32 %v3805, %v3845
      %v3862 = vadd.f32 %v3809, %v3846
      %v3863 = vadd.f32 %v3811, %v3847
      %v3864 = vadd.f32 %v3815, %v3848
      %v3865 = vadd.f32 %v3817, %v3849
      %v3866 = vadd.f32 %v3821, %v3850
      %v3867 = vadd.f32 %v3823, %v3851
      %v3869 = vlaneseq
      %v3870 = vshrl.u32 %v3869, 7
      %v3871 = vsub.s32 0, %v3870
      %v3872 = vrot.slane %v3113, %v3871
      %v3873 = vlaneseq
      %v3874 = vshrl.u32 %v3873, 7
      %v3875 = vsub.s32 1, %v3874
      %v3876 = vrot.slane %v3113, %v3875
      %v3879 = vadd.f32 %v3852, %v3872
      %v3880 = vadd.f32 %v3853, %v3876
      %v3881 = vadd.f32 %v3854, %v3872
      %v3882 = vadd.f32 %v3855, %v3876
      %v3883 = vadd.f32 %v3856, %v3872
      %v3884 = vadd.f32 %v3857, %v3876
      %v3885 = vadd.f32 %v3858, %v3872
      %v3886 = vadd.f32 %v3859, %v3876
      %v3887 = vadd.f32 %v3860, %v3872
      %v3888 = vadd.f32 %v3861, %v3876
      %v3889 = vadd.f32 %v3862, %v3872
      %v3890 = vadd.f32 %v3863, %v3876
      %v3891 = vadd.f32 %v3864, %v3872
      %v3892 = vadd.f32 %v3865, %v3876
      %v3893 = vadd.f32 %v3866, %v3872
      %v3894 = vadd.f32 %v3867, %v3876
      %v3895 = vmul.f32 %v3879, 0.5
      %v3896 = vmul.f32 %v3880, 0.5
      %v3897 = vmul.f32 %v3881, 0.5
      %v3898 = vmul.f32 %v3882, 0.5
      %v3899 = vmul.f32 %v3883, 0.5
      %v3900 = vmul.f32 %v3884, 0.5
      %v3901 = vmul.f32 %v3885, 0.5
      %v3902 = vmul.f32 %v3886, 0.5
      %v3903 = vmul.f32 %v3887, 0.5
      %v3904 = vmul.f32 %v3888, 0.5
      %v3905 = vmul.f32 %v3889, 0.5
      %v3906 = vmul.f32 %v3890, 0.5
      %v3907 = vmul.f32 %v3891, 0.5
      %v3908 = vmul.f32 %v3892, 0.5
      %v3909 = vmul.f32 %v3893, 0.5
      %v3910 = vmul.f32 %v3894, 0.5
      %v3911 = vtanh.pop %v3895
      %v3912 = vtanh.pop %v3896
      %v3913 = vtanh.pop %v3897
      %v3914 = vtanh.pop %v3898
      %v3915 = vtanh.pop %v3899
      %v3916 = vtanh.pop %v3900
      %v3917 = vtanh.pop %v3901
      %v3918 = vtanh.pop %v3902
      %v3919 = vtanh.pop %v3903
      %v3920 = vtanh.pop %v3904
      %v3921 = vtanh.pop %v3905
      %v3922 = vtanh.pop %v3906
      %v3923 = vtanh.pop %v3907
      %v3924 = vtanh.pop %v3908
      %v3925 = vtanh.pop %v3909
      %v3926 = vtanh.pop %v3910
      %v3927 = vmul.f32 %v3911, 0.5
      %v3928 = vmul.f32 %v3912, 0.5
      %v3929 = vmul.f32 %v3913, 0.5
      %v3930 = vmul.f32 %v3914, 0.5
      %v3931 = vmul.f32 %v3915, 0.5
      %v3932 = vmul.f32 %v3916, 0.5
      %v3933 = vmul.f32 %v3917, 0.5
      %v3934 = vmul.f32 %v3918, 0.5
      %v3935 = vmul.f32 %v3919, 0.5
      %v3936 = vmul.f32 %v3920, 0.5
      %v3937 = vmul.f32 %v3921, 0.5
      %v3938 = vmul.f32 %v3922, 0.5
      %v3939 = vmul.f32 %v3923, 0.5
      %v3940 = vmul.f32 %v3924, 0.5
      %v3941 = vmul.f32 %v3925, 0.5
      %v3942 = vmul.f32 %v3926, 0.5
      %v3943 = vadd.f32 %v3927, 0.5
      %v3944 = vadd.f32 %v3928, 0.5
      %v3945 = vadd.f32 %v3929, 0.5
      %v3946 = vadd.f32 %v3930, 0.5
      %v3947 = vadd.f32 %v3931, 0.5
      %v3948 = vadd.f32 %v3932, 0.5
      %v3949 = vadd.f32 %v3933, 0.5
      %v3950 = vadd.f32 %v3934, 0.5
      %v3951 = vadd.f32 %v3935, 0.5
      %v3952 = vadd.f32 %v3936, 0.5
      %v3953 = vadd.f32 %v3937, 0.5
      %v3954 = vadd.f32 %v3938, 0.5
      %v3955 = vadd.f32 %v3939, 0.5
      %v3956 = vadd.f32 %v3940, 0.5
      %v3957 = vadd.f32 %v3941, 0.5
      %v3958 = vadd.f32 %v3942, 0.5
      %v3959 = vmul.f32 %v3879, %v3943
      %v3960 = vmul.f32 %v3880, %v3944
      %v3961 = vmul.f32 %v3881, %v3945
      %v3962 = vmul.f32 %v3882, %v3946
      %v3963 = vmul.f32 %v3883, %v3947
      %v3964 = vmul.f32 %v3884, %v3948
      %v3965 = vmul.f32 %v3885, %v3949
      %v3966 = vmul.f32 %v3886, %v3950
      %v3967 = vmul.f32 %v3887, %v3951
      %v3968 = vmul.f32 %v3888, %v3952
      %v3969 = vmul.f32 %v3889, %v3953
      %v3970 = vmul.f32 %v3890, %v3954
      %v3971 = vmul.f32 %v3891, %v3955
      %v3972 = vmul.f32 %v3892, %v3956
      %v3973 = vmul.f32 %v3893, %v3957
      %v3974 = vmul.f32 %v3894, %v3958
      %v3976 = vlaneseq
      %v3977 = vshrl.u32 %v3976, 7
      %v3978 = vsub.s32 0, %v3977
      %v3979 = vrot.slane %v3137, %v3978
      %v3982 = vsel %vm2100, %v3960, 0
      %v3985 = vsel %vm2100, %v3962, 0
      %v3988 = vsel %vm2100, %v3964, 0
      %v3991 = vsel %vm2100, %v3966, 0
      %v3994 = vsel %vm2100, %v3968, 0
      %v3997 = vsel %vm2100, %v3970, 0
      %v4000 = vsel %vm2100, %v3972, 0
      %v4003 = vsel %vm2100, %v3974, 0
      %v4006 = vsel %vm2125, %v3135, 0
      %4008 = vmatprep.subr.mxu0 0.0
      %4009 = vmatpush1.msra.mxu0 %v3115
      %4010 = vmatprep.subr.mxu0 0.0
      %4011 = vmatpush1.msra.mxu0 %v3116
      %4012 = vmatprep.subr.mxu0 0.0
      %4013 = vmatpush1.msra.mxu0 %v3117
      %4014 = vmatprep.subr.mxu0 0.0
      %4015 = vmatpush1.msra.mxu0 %v3118
      %4016 = vmatprep.subr.mxu0 0.0
      %4017 = vmatpush1.msra.mxu0 %v3119
      %4018 = vmatprep.subr.mxu0 0.0
      %4019 = vmatpush1.msra.mxu0 %v3120
      %4020 = vmatprep.subr.mxu0 0.0
      %4021 = vmatpush1.msra.mxu0 %v3121
      %4022 = vmatprep.subr.mxu0 0.0
      %4023 = vmatpush1.msra.mxu0 %v3122
      %4024 = vmatprep.subr.mxu0 0.0
      %4025 = vmatpush1.msra.mxu0 %v3123
      %4026 = vmatprep.subr.mxu0 0.0
      %4027 = vmatpush1.msra.mxu0 %v3124
      %4028 = vmatprep.subr.mxu0 0.0
      %4029 = vmatpush1.msra.mxu0 %v3125
      %4030 = vmatprep.subr.mxu0 0.0
      %4031 = vmatpush1.msra.mxu0 %v3126
      %4032 = vmatprep.subr.mxu0 0.0
      %4033 = vmatpush1.msra.mxu0 %v3127
      %4034 = vmatprep.subr.mxu0 0.0
      %4035 = vmatpush1.msra.mxu0 %v3128
      %4036 = vmatprep.subr.mxu0 0.0
      %4037 = vmatpush1.msra.mxu0 %v3129
      %4038 = vmatprep.subr.mxu0 0.0
      %4039 = vmatpush1.msra.mxu0 %v3130
      %4040 = vmatprep.subr.mxu0 0.0
      %4041 = vmatpush1.msra.mxu0 %v3131
      %4042 = vmatprep.subr.mxu0 0.0
      %4043 = vmatpush1.msra.mxu0 %v3132
      %4044 = vmatprep.subr.mxu0 0.0
      %4045 = vmatpush1.msra.mxu0 %v3133
      %4046 = vmatprep.subr.mxu0 0.0
      %4047 = vmatpush1.msra.mxu0 %v3134
      %4048 = vmatprep.subr.mxu0 0.0
      %4049 = vmatpush1.msra.mxu0 %v4006
      %4050 = vmatprep.subr.mxu0 0.0
      %4051 = vmatpush1.msra.mxu0 0.0
      %4052 = vmatprep.subr.mxu0 0.0
      %4053 = vmatpush1.msra.mxu0 0.0
      %4054 = vmatprep.subr.mxu0 0.0
      %4055 = vmatpush1.msra.mxu0 0.0
      %4056 = vmatprep.subr.mxu0 0.0
      %4057 = vmatpush1.msra.mxu0 0.0
      %4058 = vmatprep.subr.mxu0 0.0
      %4059 = vmatpush1.msra.mxu0 0.0
      %4060 = vmatprep.subr.mxu0 0.0
      %4061 = vmatpush1.msra.mxu0 0.0
      %4062 = vmatprep.subr.mxu0 0.0
      %4063 = vmatpush1.msra.mxu0 0.0
      %4064 = vmatprep.subr.mxu0 0.0
      %4065 = vmatpush1.msra.mxu0 0.0
      %4066 = vmatprep.subr.mxu0 0.0
      %4067 = vmatpush1.msra.mxu0 0.0
      %4068 = vmatprep.subr.mxu0 0.0
      %4069 = vmatpush1.msra.mxu0 0.0
      %4070 = vmatprep.subr.mxu0 0.0
      %4071 = vmatpush1.msra.mxu0 0.0
      %4072 = vmatprep.mubr.f32.mxu0 %v3982
      %4073 = vmatmul.mubr.f32.gmra.mrb[0].mxu0 %v3959
      %v4074 = vpop.f32.mrb[0].mxu0
      %v4075 = vadd.f32 %v3979, %v4074
      %v4076 = vpop.f32.mrb[0].mxu0
      %4077 = vmatprep.mubr.f32.mxu0 %v3985
      %4078 = vmatmul.mubr.f32.gmra.mrb[0].mxu0 %v3961
      %v4079 = vpop.f32.mrb[0].mxu0
      %v4080 = vadd.f32 %v3979, %v4079
      %v4081 = vpop.f32.mrb[0].mxu0
      %4082 = vmatprep.mubr.f32.mxu0 %v3988
      %4083 = vmatmul.mubr.f32.gmra.mrb[0].mxu0 %v3963
      %v4084 = vpop.f32.mrb[0].mxu0
      %v4085 = vadd.f32 %v3979, %v4084
      %v4086 = vpop.f32.mrb[0].mxu0
      %4087 = vmatprep.mubr.f32.mxu0 %v3991
      %4088 = vmatmul.mubr.f32.gmra.mrb[0].mxu0 %v3965
      %v4089 = vpop.f32.mrb[0].mxu0
      %v4090 = vadd.f32 %v3979, %v4089
      %v4091 = vpop.f32.mrb[0].mxu0
      %4092 = vmatprep.mubr.f32.mxu0 %v3994
      %4093 = vmatmul.mubr.f32.gmra.mrb[0].mxu0 %v3967
      %v4094 = vpop.f32.mrb[0].mxu0
      %v4095 = vadd.f32 %v3979, %v4094
      %v4096 = vpop.f32.mrb[0].mxu0
      %4097 = vmatprep.mubr.f32.mxu0 %v3997
      %4098 = vmatmul.mubr.f32.gmra.mrb[0].mxu0 %v3969
      %v4099 = vpop.f32.mrb[0].mxu0
      %v4100 = vadd.f32 %v3979, %v4099
      %v4101 = vpop.f32.mrb[0].mxu0
      %4102 = vmatprep.mubr.f32.mxu0 %v4000
      %4103 = vmatmul.mubr.f32.gmra.mrb[0].mxu0 %v3971
      %v4104 = vpop.f32.mrb[0].mxu0
      %v4105 = vadd.f32 %v3979, %v4104
      %v4106 = vpop.f32.mrb[0].mxu0
      %4107 = vmatprep.mubr.f32.mxu0 %v4003
      %4108 = vmatmul.mubr.f32.gmra.mrb[0].mxu0 %v3973
      %v4109 = vpop.f32.mrb[0].mxu0
      %v4110 = vadd.f32 %v3979, %v4109
      %v4111 = vpop.f32.mrb[0].mxu0
      %4112 = vdwg.mxu0
      %v4113 = vmul.f32 %v4075, 0.5
      %v4114 = vmul.f32 %v4080, 0.5
      %v4115 = vmul.f32 %v4085, 0.5
      %v4116 = vmul.f32 %v4090, 0.5
      %v4117 = vmul.f32 %v4095, 0.5
      %v4118 = vmul.f32 %v4100, 0.5
      %v4119 = vmul.f32 %v4105, 0.5
      %v4120 = vmul.f32 %v4110, 0.5
      %v4121 = vtanh.pop %v4113
      %v4122 = vtanh.pop %v4114
      %v4123 = vtanh.pop %v4115
      %v4124 = vtanh.pop %v4116
      %v4125 = vtanh.pop %v4117
      %v4126 = vtanh.pop %v4118
      %v4127 = vtanh.pop %v4119
      %v4128 = vtanh.pop %v4120
      %v4129 = vmul.f32 %v4121, 0.5
      %v4130 = vmul.f32 %v4122, 0.5
      %v4131 = vmul.f32 %v4123, 0.5
      %v4132 = vmul.f32 %v4124, 0.5
      %v4133 = vmul.f32 %v4125, 0.5
      %v4134 = vmul.f32 %v4126, 0.5
      %v4135 = vmul.f32 %v4127, 0.5
      %v4136 = vmul.f32 %v4128, 0.5
      %v4137 = vadd.f32 %v4129, 0.5
      %v4138 = vadd.f32 %v4130, 0.5
      %v4139 = vadd.f32 %v4131, 0.5
      %v4140 = vadd.f32 %v4132, 0.5
      %v4141 = vadd.f32 %v4133, 0.5
      %v4142 = vadd.f32 %v4134, 0.5
      %v4143 = vadd.f32 %v4135, 0.5
      %v4144 = vadd.f32 %v4136, 0.5
      %v4145 = vmul.f32 %v4075, %v4137
      %v4146 = vmul.f32 %v4080, %v4138
      %v4147 = vmul.f32 %v4085, %v4139
      %v4148 = vmul.f32 %v4090, %v4140
      %v4149 = vmul.f32 %v4095, %v4141
      %v4150 = vmul.f32 %v4100, %v4142
      %v4151 = vmul.f32 %v4105, %v4143
      %v4152 = vmul.f32 %v4110, %v4144
      %v4154 = vlaneseq
      %v4155 = vshrl.u32 %v4154, 7
      %v4156 = vsub.s32 0, %v4155
      %v4157 = vrot.slane %v3144, %v4156
      %v4160 = vsel %vm2280, %v4145, 0
      %v4163 = vsel %vm2280, %v4146, 0
      %v4166 = vsel %vm2280, %v4147, 0
      %v4169 = vsel %vm2280, %v4148, 0
      %v4172 = vsel %vm2280, %v4149, 0
      %v4175 = vsel %vm2280, %v4150, 0
      %v4178 = vsel %vm2280, %v4151, 0
      %v4181 = vsel %vm2280, %v4152, 0
      %4183 = vmatprep.subr.mxu0 0.0
      %4184 = vmatpush1.msra.mxu0 %v3139
      %4185 = vmatprep.subr.mxu0 0.0
      %4186 = vmatpush1.msra.mxu0 %v3140
      %4187 = vmatprep.subr.mxu0 0.0
      %4188 = vmatpush1.msra.mxu0 %v3141
      %4189 = vmatprep.subr.mxu0 0.0
      %4190 = vmatpush1.msra.mxu0 %v3142
      %4191 = vmatprep.subr.mxu0 0.0
      %4192 = vmatpush1.msra.mxu0 0.0
      %4193 = vmatprep.subr.mxu0 0.0
      %4194 = vmatpush1.msra.mxu0 0.0
      %4195 = vmatprep.subr.mxu0 0.0
      %4196 = vmatpush1.msra.mxu0 0.0
      %4197 = vmatprep.subr.mxu0 0.0
      %4198 = vmatpush1.msra.mxu0 0.0
      %4199 = vmatprep.subr.mxu0 0.0
      %4200 = vmatpush1.msra.mxu0 0.0
      %4201 = vmatprep.subr.mxu0 0.0
      %4202 = vmatpush1.msra.mxu0 0.0
      %4203 = vmatprep.subr.mxu0 0.0
      %4204 = vmatpush1.msra.mxu0 0.0
      %4205 = vmatprep.subr.mxu0 0.0
      %4206 = vmatpush1.msra.mxu0 0.0
      %4207 = vmatprep.subr.mxu0 0.0
      %4208 = vmatpush1.msra.mxu0 0.0
      %4209 = vmatprep.subr.mxu0 0.0
      %4210 = vmatpush1.msra.mxu0 0.0
      %4211 = vmatprep.subr.mxu0 0.0
      %4212 = vmatpush1.msra.mxu0 0.0
      %4213 = vmatprep.subr.mxu0 0.0
      %4214 = vmatpush1.msra.mxu0 0.0
      %4215 = vmatprep.subr.mxu0 0.0
      %4216 = vmatpush1.msra.mxu0 0.0
      %4217 = vmatprep.subr.mxu0 0.0
      %4218 = vmatpush1.msra.mxu0 0.0
      %4219 = vmatprep.subr.mxu0 0.0
      %4220 = vmatpush1.msra.mxu0 0.0
      %4221 = vmatprep.subr.mxu0 0.0
      %4222 = vmatpush1.msra.mxu0 0.0
      %4223 = vmatprep.subr.mxu0 0.0
      %4224 = vmatpush1.msra.mxu0 0.0
      %4225 = vmatprep.subr.mxu0 0.0
      %4226 = vmatpush1.msra.mxu0 0.0
      %4227 = vmatprep.subr.mxu0 0.0
      %4228 = vmatpush1.msra.mxu0 0.0
      %4229 = vmatprep.subr.mxu0 0.0
      %4230 = vmatpush1.msra.mxu0 0.0
      %4231 = vmatprep.subr.mxu0 0.0
      %4232 = vmatpush1.msra.mxu0 0.0
      %4233 = vmatprep.subr.mxu0 0.0
      %4234 = vmatpush1.msra.mxu0 0.0
      %4235 = vmatprep.subr.mxu0 0.0
      %4236 = vmatpush1.msra.mxu0 0.0
      %4237 = vmatprep.subr.mxu0 0.0
      %4238 = vmatpush1.msra.mxu0 0.0
      %4239 = vmatprep.subr.mxu0 0.0
      %4240 = vmatpush1.msra.mxu0 0.0
      %4241 = vmatprep.subr.mxu0 0.0
      %4242 = vmatpush1.msra.mxu0 0.0
      %4243 = vmatprep.subr.mxu0 0.0
      %4244 = vmatpush1.msra.mxu0 0.0
      %4245 = vmatprep.subr.mxu0 0.0
      %4246 = vmatpush1.msra.mxu0 0.0
      %4247 = vmatprep.mubr.f32.mxu0 0.0
      %4248 = vmatmul.mubr.f32.gmra.mrb[0].mxu0 %v4160
      %v4249 = vpop.f32.mrb[0].mxu0
      %v4250 = vadd.f32 %v4157, %v4249
      %v4251 = vpop.f32.mrb[0].mxu0
      %4252 = vmatprep.mubr.f32.mxu0 0.0
      %4253 = vmatmul.mubr.f32.gmra.mrb[0].mxu0 %v4163
      %v4254 = vpop.f32.mrb[0].mxu0
      %v4255 = vadd.f32 %v4157, %v4254
      %v4256 = vpop.f32.mrb[0].mxu0
      %4257 = vmatprep.mubr.f32.mxu0 0.0
      %4258 = vmatmul.mubr.f32.gmra.mrb[0].mxu0 %v4166
      %v4259 = vpop.f32.mrb[0].mxu0
      %v4260 = vadd.f32 %v4157, %v4259
      %v4261 = vpop.f32.mrb[0].mxu0
      %4262 = vmatprep.mubr.f32.mxu0 0.0
      %4263 = vmatmul.mubr.f32.gmra.mrb[0].mxu0 %v4169
      %v4264 = vpop.f32.mrb[0].mxu0
      %v4265 = vadd.f32 %v4157, %v4264
      %v4266 = vpop.f32.mrb[0].mxu0
      %4267 = vmatprep.mubr.f32.mxu0 0.0
      %4268 = vmatmul.mubr.f32.gmra.mrb[0].mxu0 %v4172
      %v4269 = vpop.f32.mrb[0].mxu0
      %v4270 = vadd.f32 %v4157, %v4269
      %v4271 = vpop.f32.mrb[0].mxu0
      %4272 = vmatprep.mubr.f32.mxu0 0.0
      %4273 = vmatmul.mubr.f32.gmra.mrb[0].mxu0 %v4175
      %v4274 = vpop.f32.mrb[0].mxu0
      %v4275 = vadd.f32 %v4157, %v4274
      %v4276 = vpop.f32.mrb[0].mxu0
      %4277 = vmatprep.mubr.f32.mxu0 0.0
      %4278 = vmatmul.mubr.f32.gmra.mrb[0].mxu0 %v4178
      %v4279 = vpop.f32.mrb[0].mxu0
      %v4280 = vadd.f32 %v4157, %v4279
      %v4281 = vpop.f32.mrb[0].mxu0
      %4282 = vmatprep.mubr.f32.mxu0 0.0
      %4283 = vmatmul.mubr.f32.gmra.mrb[0].mxu0 %v4181
      %v4284 = vpop.f32.mrb[0].mxu0
      %v4285 = vadd.f32 %v4157, %v4284
      %v4286 = vpop.f32.mrb[0].mxu0
      %4287 = vdwg.mxu0
      %v4288 = vmul.f32 %v4250, 0.5
      %v4289 = vmul.f32 %v4255, 0.5
      %v4290 = vmul.f32 %v4260, 0.5
      %v4291 = vmul.f32 %v4265, 0.5
      %v4292 = vmul.f32 %v4270, 0.5
      %v4293 = vmul.f32 %v4275, 0.5
      %v4294 = vmul.f32 %v4280, 0.5
      %v4295 = vmul.f32 %v4285, 0.5
      %v4296 = vtanh.pop %v4288
      %v4297 = vtanh.pop %v4289
      %v4298 = vtanh.pop %v4290
      %v4299 = vtanh.pop %v4291
      %v4300 = vtanh.pop %v4292
      %v4301 = vtanh.pop %v4293
      %v4302 = vtanh.pop %v4294
      %v4303 = vtanh.pop %v4295
      %v4304 = vmul.f32 %v4296, 0.5
      %v4305 = vmul.f32 %v4297, 0.5
      %v4306 = vmul.f32 %v4298, 0.5
      %v4307 = vmul.f32 %v4299, 0.5
      %v4308 = vmul.f32 %v4300, 0.5
      %v4309 = vmul.f32 %v4301, 0.5
      %v4310 = vmul.f32 %v4302, 0.5
      %v4311 = vmul.f32 %v4303, 0.5
      %v4312 = vadd.f32 %v4304, 0.5
      %v4313 = vadd.f32 %v4305, 0.5
      %v4314 = vadd.f32 %v4306, 0.5
      %v4315 = vadd.f32 %v4307, 0.5
      %v4316 = vadd.f32 %v4308, 0.5
      %v4317 = vadd.f32 %v4309, 0.5
      %v4318 = vadd.f32 %v4310, 0.5
      %v4319 = vadd.f32 %v4311, 0.5
      %v4320 = vmul.f32 %v4250, %v4312
      %v4321 = vmul.f32 %v4255, %v4313
      %v4322 = vmul.f32 %v4260, %v4314
      %v4323 = vmul.f32 %v4265, %v4315
      %v4324 = vmul.f32 %v4270, %v4316
      %v4325 = vmul.f32 %v4275, %v4317
      %v4326 = vmul.f32 %v4280, %v4318
      %v4327 = vmul.f32 %v4285, %v4319
      %v4329 = vlaneseq
      %v4330 = vshrl.u32 %v4329, 7
      %v4331 = vsub.s32 0, %v4330
      %v4332 = vrot.slane %v3163, %v4331
      %4334 = vmatprep.subr.mxu0 0.0
      %4335 = vmatpush1.msra.mxu0 %v3146
      %4336 = vmatprep.subr.mxu0 0.0
      %4337 = vmatpush1.msra.mxu0 %v3147
      %4338 = vmatprep.subr.mxu0 0.0
      %4339 = vmatpush1.msra.mxu0 %v3148
      %4340 = vmatprep.subr.mxu0 0.0
      %4341 = vmatpush1.msra.mxu0 %v3149
      %4342 = vmatprep.subr.mxu0 0.0
      %4343 = vmatpush1.msra.mxu0 %v3150
      %4344 = vmatprep.subr.mxu0 0.0
      %4345 = vmatpush1.msra.mxu0 %v3151
      %4346 = vmatprep.subr.mxu0 0.0
      %4347 = vmatpush1.msra.mxu0 %v3152
      %4348 = vmatprep.subr.mxu0 0.0
      %4349 = vmatpush1.msra.mxu0 %v3153
      %4350 = vmatprep.subr.mxu0 0.0
      %4351 = vmatpush1.msra.mxu0 %v3154
      %4352 = vmatprep.subr.mxu0 0.0
      %4353 = vmatpush1.msra.mxu0 %v3155
      %4354 = vmatprep.subr.mxu0 0.0
      %4355 = vmatpush1.msra.mxu0 %v3156
      %4356 = vmatprep.subr.mxu0 0.0
      %4357 = vmatpush1.msra.mxu0 %v3157
      %4358 = vmatprep.subr.mxu0 0.0
      %4359 = vmatpush1.msra.mxu0 %v3158
      %4360 = vmatprep.subr.mxu0 0.0
      %4361 = vmatpush1.msra.mxu0 %v3159
      %4362 = vmatprep.subr.mxu0 0.0
      %4363 = vmatpush1.msra.mxu0 %v3160
      %4364 = vmatprep.subr.mxu0 0.0
      %4365 = vmatpush1.msra.mxu0 %v3161
      %4366 = vmatprep.subr.mxu0 0.0
      %4367 = vmatpush1.msra.mxu0 0.0
      %4368 = vmatprep.subr.mxu0 0.0
      %4369 = vmatpush1.msra.mxu0 0.0
      %4370 = vmatprep.subr.mxu0 0.0
      %4371 = vmatpush1.msra.mxu0 0.0
      %4372 = vmatprep.subr.mxu0 0.0
      %4373 = vmatpush1.msra.mxu0 0.0
      %4374 = vmatprep.subr.mxu0 0.0
      %4375 = vmatpush1.msra.mxu0 0.0
      %4376 = vmatprep.subr.mxu0 0.0
      %4377 = vmatpush1.msra.mxu0 0.0
      %4378 = vmatprep.subr.mxu0 0.0
      %4379 = vmatpush1.msra.mxu0 0.0
      %4380 = vmatprep.subr.mxu0 0.0
      %4381 = vmatpush1.msra.mxu0 0.0
      %4382 = vmatprep.subr.mxu0 0.0
      %4383 = vmatpush1.msra.mxu0 0.0
      %4384 = vmatprep.subr.mxu0 0.0
      %4385 = vmatpush1.msra.mxu0 0.0
      %4386 = vmatprep.subr.mxu0 0.0
      %4387 = vmatpush1.msra.mxu0 0.0
      %4388 = vmatprep.subr.mxu0 0.0
      %4389 = vmatpush1.msra.mxu0 0.0
      %4390 = vmatprep.subr.mxu0 0.0
      %4391 = vmatpush1.msra.mxu0 0.0
      %4392 = vmatprep.subr.mxu0 0.0
      %4393 = vmatpush1.msra.mxu0 0.0
      %4394 = vmatprep.subr.mxu0 0.0
      %4395 = vmatpush1.msra.mxu0 0.0
      %4396 = vmatprep.subr.mxu0 0.0
      %4397 = vmatpush1.msra.mxu0 0.0
      %4398 = vmatprep.mubr.f32.mxu0 0.0
      %4399 = vmatmul.mubr.f32.gmra.mrb[0].mxu0 %v4320
      %v4400 = vpop.f32.mrb[0].mxu0
      %v4401 = vadd.f32 %v4332, %v4400
      %v4402 = vpop.f32.mrb[0].mxu0
      %4403 = vmatprep.mubr.f32.mxu0 0.0
      %4404 = vmatmul.mubr.f32.gmra.mrb[0].mxu0 %v4321
      %v4405 = vpop.f32.mrb[0].mxu0
      %v4406 = vadd.f32 %v4332, %v4405
      %v4407 = vpop.f32.mrb[0].mxu0
      %4408 = vmatprep.mubr.f32.mxu0 0.0
      %4409 = vmatmul.mubr.f32.gmra.mrb[0].mxu0 %v4322
      %v4410 = vpop.f32.mrb[0].mxu0
      %v4411 = vadd.f32 %v4332, %v4410
      %v4412 = vpop.f32.mrb[0].mxu0
      %4413 = vmatprep.mubr.f32.mxu0 0.0
      %4414 = vmatmul.mubr.f32.gmra.mrb[0].mxu0 %v4323
      %v4415 = vpop.f32.mrb[0].mxu0
      %v4416 = vadd.f32 %v4332, %v4415
      %v4417 = vpop.f32.mrb[0].mxu0
      %4418 = vmatprep.mubr.f32.mxu0 0.0
      %4419 = vmatmul.mubr.f32.gmra.mrb[0].mxu0 %v4324
      %v4420 = vpop.f32.mrb[0].mxu0
      %v4421 = vadd.f32 %v4332, %v4420
      %v4422 = vpop.f32.mrb[0].mxu0
      %4423 = vmatprep.mubr.f32.mxu0 0.0
      %4424 = vmatmul.mubr.f32.gmra.mrb[0].mxu0 %v4325
      %v4425 = vpop.f32.mrb[0].mxu0
      %v4426 = vadd.f32 %v4332, %v4425
      %v4427 = vpop.f32.mrb[0].mxu0
      %4428 = vmatprep.mubr.f32.mxu0 0.0
      %4429 = vmatmul.mubr.f32.gmra.mrb[0].mxu0 %v4326
      %v4430 = vpop.f32.mrb[0].mxu0
      %v4431 = vadd.f32 %v4332, %v4430
      %v4432 = vpop.f32.mrb[0].mxu0
      %4433 = vmatprep.mubr.f32.mxu0 0.0
      %4434 = vmatmul.mubr.f32.gmra.mrb[0].mxu0 %v4327
      %v4435 = vpop.f32.mrb[0].mxu0
      %v4436 = vadd.f32 %v4332, %v4435
      %v4437 = vpop.f32.mrb[0].mxu0
      %4438 = vdwg.mxu0
      %v4439 = vmul.f32 %v1207, %v4401
      %v4440 = vmul.f32 %v1208, %v4406
      %v4441 = vmul.f32 %v1209, %v4411
      %v4442 = vmul.f32 %v1210, %v4416
      %v4443 = vmul.f32 %v1211, %v4421
      %v4444 = vmul.f32 %v1212, %v4426
      %v4445 = vmul.f32 %v1213, %v4431
      %v4446 = vmul.f32 %v1214, %v4436
      %v4447 = vmax.f32 %v3420, 1e-08
      %v4448 = vmax.f32 %v3423, 1e-08
      %v4449 = vmax.f32 %v3426, 1e-08
      %v4450 = vmax.f32 %v3429, 1e-08
      %v4451 = vmax.f32 %v3432, 1e-08
      %v4452 = vmax.f32 %v3435, 1e-08
      %v4453 = vmax.f32 %v3438, 1e-08
      %v4454 = vmax.f32 %v3441, 1e-08
      %v4455 = vrcp.pop %v4447
      %v4456 = vmul.f32 %v3402, %v4455
      %v4457 = vrcp.pop %v4448
      %v4458 = vmul.f32 %v3403, %v4457
      %v4459 = vrcp.pop %v4449
      %v4460 = vmul.f32 %v3404, %v4459
      %v4461 = vrcp.pop %v4450
      %v4462 = vmul.f32 %v3405, %v4461
      %v4463 = vrcp.pop %v4451
      %v4464 = vmul.f32 %v3406, %v4463
      %v4465 = vrcp.pop %v4452
      %v4466 = vmul.f32 %v3407, %v4465
      %v4467 = vrcp.pop %v4453
      %v4468 = vmul.f32 %v3408, %v4467
      %v4469 = vrcp.pop %v4454
      %v4470 = vmul.f32 %v3409, %v4469
      %4472 = vset.pattern.permute.xlu0 0
      %4473 = vperm.xlu0 %4472, %v4439
      %v4474 = vpop.permute.xlu0 %4473
      %4477 = vset.pattern.permute.xlu0 0
      %4478 = vperm.xlu0 %4477, %v4440
      %v4479 = vpop.permute.xlu0 %4478
      %4482 = vset.pattern.permute.xlu0 0
      %4483 = vperm.xlu0 %4482, %v4441
      %v4484 = vpop.permute.xlu0 %4483
      %4487 = vset.pattern.permute.xlu0 0
      %4488 = vperm.xlu0 %4487, %v4442
      %v4489 = vpop.permute.xlu0 %4488
      %4492 = vset.pattern.permute.xlu0 0
      %4493 = vperm.xlu0 %4492, %v4443
      %v4494 = vpop.permute.xlu0 %4493
      %4497 = vset.pattern.permute.xlu0 0
      %4498 = vperm.xlu0 %4497, %v4444
      %v4499 = vpop.permute.xlu0 %4498
      %4502 = vset.pattern.permute.xlu0 0
      %4503 = vperm.xlu0 %4502, %v4445
      %v4504 = vpop.permute.xlu0 %4503
      %4507 = vset.pattern.permute.xlu0 0
      %4508 = vperm.xlu0 %4507, %v4446
      %v4509 = vpop.permute.xlu0 %4508
      %v4511 = vmul.f32 %v4474, %v4456
      %v4512 = vmul.f32 %v4479, %v4458
      %v4513 = vmul.f32 %v4484, %v4460
      %v4514 = vmul.f32 %v4489, %v4462
      %v4515 = vmul.f32 %v4494, %v4464
      %v4516 = vmul.f32 %v4499, %v4466
      %v4517 = vmul.f32 %v4504, %v4468
      %v4518 = vmul.f32 %v4509, %v4470
      %4519 = vmatprep.subr.mxu0 0.0
      %4520 = vmatpush1.msra.mxu0 %v4511
      %4521 = vmatprep.subr.mxu0 0.0
      %4522 = vmatpush1.msra.mxu0 %v4512
      %4523 = vmatprep.subr.mxu0 0.0
      %4524 = vmatpush1.msra.mxu0 %v4513
      %4525 = vmatprep.subr.mxu0 0.0
      %4526 = vmatpush1.msra.mxu0 %v4514
      %4527 = vmatprep.subr.mxu0 0.0
      %4528 = vmatpush1.msra.mxu0 %v4515
      %4529 = vmatprep.subr.mxu0 0.0
      %4530 = vmatpush1.msra.mxu0 %v4516
      %4531 = vmatprep.subr.mxu0 0.0
      %4532 = vmatpush1.msra.mxu0 %v4517
      %4533 = vmatprep.subr.mxu0 0.0
      %4534 = vmatpush1.msra.mxu0 %v4518
      %4535 = vmatprep.subr.mxu0 0.0
      %4536 = vmatpush1.msra.mxu0 0.0
      %4537 = vmatprep.subr.mxu0 0.0
      %4538 = vmatpush1.msra.mxu0 0.0
      %4539 = vmatprep.subr.mxu0 0.0
      %4540 = vmatpush1.msra.mxu0 0.0
      %4541 = vmatprep.subr.mxu0 0.0
      %4542 = vmatpush1.msra.mxu0 0.0
      %4543 = vmatprep.subr.mxu0 0.0
      %4544 = vmatpush1.msra.mxu0 0.0
      %4545 = vmatprep.subr.mxu0 0.0
      %4546 = vmatpush1.msra.mxu0 0.0
      %4547 = vmatprep.subr.mxu0 0.0
      %4548 = vmatpush1.msra.mxu0 0.0
      %4549 = vmatprep.subr.mxu0 0.0
      %4550 = vmatpush1.msra.mxu0 0.0
      %4551 = vmatprep.subr.mxu0 0.0
      %4552 = vmatpush1.msra.mxu0 0.0
      %4553 = vmatprep.subr.mxu0 0.0
      %4554 = vmatpush1.msra.mxu0 0.0
      %4555 = vmatprep.subr.mxu0 0.0
      %4556 = vmatpush1.msra.mxu0 0.0
      %4557 = vmatprep.subr.mxu0 0.0
      %4558 = vmatpush1.msra.mxu0 0.0
      %4559 = vmatprep.subr.mxu0 0.0
      %4560 = vmatpush1.msra.mxu0 0.0
      %4561 = vmatprep.subr.mxu0 0.0
      %4562 = vmatpush1.msra.mxu0 0.0
      %4563 = vmatprep.subr.mxu0 0.0
      %4564 = vmatpush1.msra.mxu0 0.0
      %4565 = vmatprep.subr.mxu0 0.0
      %4566 = vmatpush1.msra.mxu0 0.0
      %4567 = vmatprep.subr.mxu0 0.0
      %4568 = vmatpush1.msra.mxu0 0.0
      %4569 = vmatprep.subr.mxu0 0.0
      %4570 = vmatpush1.msra.mxu0 0.0
      %4571 = vmatprep.subr.mxu0 0.0
      %4572 = vmatpush1.msra.mxu0 0.0
      %4573 = vmatprep.subr.mxu0 0.0
      %4574 = vmatpush1.msra.mxu0 0.0
      %4575 = vmatprep.subr.mxu0 0.0
      %4576 = vmatpush1.msra.mxu0 0.0
      %4577 = vmatprep.subr.mxu0 0.0
      %4578 = vmatpush1.msra.mxu0 0.0
      %4579 = vmatprep.subr.mxu0 0.0
      %4580 = vmatpush1.msra.mxu0 0.0
      %4581 = vmatprep.subr.mxu0 0.0
      %4582 = vmatpush1.msra.mxu0 0.0
      %4583 = vmatprep.mubr.f32.mxu0 0.0
      %4584 = vmatmul.mubr.f32.gmra.mrb[0].mxu0 %v2643
      %v4585 = vpop.f32.mrb[0].mxu0
      %v4586 = vadd.f32 0.0, %v4585
      %v4587 = vpop.f32.mrb[0].mxu0
      %4588 = vdwg.mxu0
      %v4589 = vadd.f32 %v2715, %v4586
      %v4590 = vmul.f32 %v2719, %v4145
      %v4591 = vmul.f32 %v2724, %v4146
      %v4592 = vmul.f32 %v2729, %v4147
      %v4593 = vmul.f32 %v2734, %v4148
      %v4594 = vmul.f32 %v2739, %v4149
      %v4595 = vmul.f32 %v2744, %v4150
      %v4596 = vmul.f32 %v2749, %v4151
      %v4597 = vmul.f32 %v2754, %v4152
      %4598 = vmatprep.subr.mxu0 0.0
      %4599 = vmatpush1.msra.mxu0 %v4590
      %4600 = vmatprep.subr.mxu0 0.0
      %4601 = vmatpush1.msra.mxu0 %v4591
      %4602 = vmatprep.subr.mxu0 0.0
      %4603 = vmatpush1.msra.mxu0 %v4592
      %4604 = vmatprep.subr.mxu0 0.0
      %4605 = vmatpush1.msra.mxu0 %v4593
      %4606 = vmatprep.subr.mxu0 0.0
      %4607 = vmatpush1.msra.mxu0 %v4594
      %4608 = vmatprep.subr.mxu0 0.0
      %4609 = vmatpush1.msra.mxu0 %v4595
      %4610 = vmatprep.subr.mxu0 0.0
      %4611 = vmatpush1.msra.mxu0 %v4596
      %4612 = vmatprep.subr.mxu0 0.0
      %4613 = vmatpush1.msra.mxu0 %v4597
      %4614 = vmatprep.subr.mxu0 0.0
      %4615 = vmatpush1.msra.mxu0 0.0
      %4616 = vmatprep.subr.mxu0 0.0
      %4617 = vmatpush1.msra.mxu0 0.0
      %4618 = vmatprep.subr.mxu0 0.0
      %4619 = vmatpush1.msra.mxu0 0.0
      %4620 = vmatprep.subr.mxu0 0.0
      %4621 = vmatpush1.msra.mxu0 0.0
      %4622 = vmatprep.subr.mxu0 0.0
      %4623 = vmatpush1.msra.mxu0 0.0
      %4624 = vmatprep.subr.mxu0 0.0
      %4625 = vmatpush1.msra.mxu0 0.0
      %4626 = vmatprep.subr.mxu0 0.0
      %4627 = vmatpush1.msra.mxu0 0.0
      %4628 = vmatprep.subr.mxu0 0.0
      %4629 = vmatpush1.msra.mxu0 0.0
      %4630 = vmatprep.subr.mxu0 0.0
      %4631 = vmatpush1.msra.mxu0 0.0
      %4632 = vmatprep.subr.mxu0 0.0
      %4633 = vmatpush1.msra.mxu0 0.0
      %4634 = vmatprep.subr.mxu0 0.0
      %4635 = vmatpush1.msra.mxu0 0.0
      %4636 = vmatprep.subr.mxu0 0.0
      %4637 = vmatpush1.msra.mxu0 0.0
      %4638 = vmatprep.subr.mxu0 0.0
      %4639 = vmatpush1.msra.mxu0 0.0
      %4640 = vmatprep.subr.mxu0 0.0
      %4641 = vmatpush1.msra.mxu0 0.0
      %4642 = vmatprep.subr.mxu0 0.0
      %4643 = vmatpush1.msra.mxu0 0.0
      %4644 = vmatprep.subr.mxu0 0.0
      %4645 = vmatpush1.msra.mxu0 0.0
      %4646 = vmatprep.subr.mxu0 0.0
      %4647 = vmatpush1.msra.mxu0 0.0
      %4648 = vmatprep.subr.mxu0 0.0
      %4649 = vmatpush1.msra.mxu0 0.0
      %4650 = vmatprep.subr.mxu0 0.0
      %4651 = vmatpush1.msra.mxu0 0.0
      %4652 = vmatprep.subr.mxu0 0.0
      %4653 = vmatpush1.msra.mxu0 0.0
      %4654 = vmatprep.subr.mxu0 0.0
      %4655 = vmatpush1.msra.mxu0 0.0
      %4656 = vmatprep.subr.mxu0 0.0
      %4657 = vmatpush1.msra.mxu0 0.0
      %4658 = vmatprep.subr.mxu0 0.0
      %4659 = vmatpush1.msra.mxu0 0.0
      %4660 = vmatprep.subr.mxu0 0.0
      %4661 = vmatpush1.msra.mxu0 0.0
      %4662 = vmatprep.mubr.f32.mxu0 0.0
      %4663 = vmatmul.mubr.f32.gmra.mrb[0].mxu0 %v2643
      %v4664 = vpop.f32.mrb[0].mxu0
      %v4665 = vadd.f32 0.0, %v4664
      %v4666 = vpop.f32.mrb[0].mxu0
      %4667 = vdwg.mxu0
      %v4668 = vmul.f32 %v4665, %v947
      %v4670 = vsel %vm2280, %v4668, 0
      %4672 = vmatprep.subr.mxu0 0.0
      %4673 = vmatpush1.msra.mxu0 %v3172
      %4674 = vmatprep.subr.mxu0 0.0
      %4675 = vmatpush1.msra.mxu0 %v3173
      %4676 = vmatprep.subr.mxu0 0.0
      %4677 = vmatpush1.msra.mxu0 %v3174
      %4678 = vmatprep.subr.mxu0 0.0
      %4679 = vmatpush1.msra.mxu0 %v3175
      %4680 = vmatprep.subr.mxu0 0.0
      %4681 = vmatpush1.msra.mxu0 0.0
      %4682 = vmatprep.subr.mxu0 0.0
      %4683 = vmatpush1.msra.mxu0 0.0
      %4684 = vmatprep.subr.mxu0 0.0
      %4685 = vmatpush1.msra.mxu0 0.0
      %4686 = vmatprep.subr.mxu0 0.0
      %4687 = vmatpush1.msra.mxu0 0.0
      %4688 = vmatprep.subr.mxu0 0.0
      %4689 = vmatpush1.msra.mxu0 0.0
      %4690 = vmatprep.subr.mxu0 0.0
      %4691 = vmatpush1.msra.mxu0 0.0
      %4692 = vmatprep.subr.mxu0 0.0
      %4693 = vmatpush1.msra.mxu0 0.0
      %4694 = vmatprep.subr.mxu0 0.0
      %4695 = vmatpush1.msra.mxu0 0.0
      %4696 = vmatprep.subr.mxu0 0.0
      %4697 = vmatpush1.msra.mxu0 0.0
      %4698 = vmatprep.subr.mxu0 0.0
      %4699 = vmatpush1.msra.mxu0 0.0
      %4700 = vmatprep.subr.mxu0 0.0
      %4701 = vmatpush1.msra.mxu0 0.0
      %4702 = vmatprep.subr.mxu0 0.0
      %4703 = vmatpush1.msra.mxu0 0.0
      %4704 = vmatprep.subr.mxu0 0.0
      %4705 = vmatpush1.msra.mxu0 0.0
      %4706 = vmatprep.subr.mxu0 0.0
      %4707 = vmatpush1.msra.mxu0 0.0
      %4708 = vmatprep.subr.mxu0 0.0
      %4709 = vmatpush1.msra.mxu0 0.0
      %4710 = vmatprep.subr.mxu0 0.0
      %4711 = vmatpush1.msra.mxu0 0.0
      %4712 = vmatprep.subr.mxu0 0.0
      %4713 = vmatpush1.msra.mxu0 0.0
      %4714 = vmatprep.subr.mxu0 0.0
      %4715 = vmatpush1.msra.mxu0 0.0
      %4716 = vmatprep.subr.mxu0 0.0
      %4717 = vmatpush1.msra.mxu0 0.0
      %4718 = vmatprep.subr.mxu0 0.0
      %4719 = vmatpush1.msra.mxu0 0.0
      %4720 = vmatprep.subr.mxu0 0.0
      %4721 = vmatpush1.msra.mxu0 0.0
      %4722 = vmatprep.subr.mxu0 0.0
      %4723 = vmatpush1.msra.mxu0 0.0
      %4724 = vmatprep.subr.mxu0 0.0
      %4725 = vmatpush1.msra.mxu0 0.0
      %4726 = vmatprep.subr.mxu0 0.0
      %4727 = vmatpush1.msra.mxu0 0.0
      %4728 = vmatprep.subr.mxu0 0.0
      %4729 = vmatpush1.msra.mxu0 0.0
      %4730 = vmatprep.subr.mxu0 0.0
      %4731 = vmatpush1.msra.mxu0 0.0
      %4732 = vmatprep.subr.mxu0 0.0
      %4733 = vmatpush1.msra.mxu0 0.0
      %4734 = vmatprep.subr.mxu0 0.0
      %4735 = vmatpush1.msra.mxu0 0.0
      %4736 = vmatprep.mubr.f32.mxu0 0.0
      %4737 = vmatmul.mubr.f32.gmra.mrb[0].mxu0 %v4670
      %v4738 = vpop.f32.mrb[0].mxu0
      %v4739 = vadd.f32 0.0, %v4738
      %v4740 = vpop.f32.mrb[0].mxu0
      %4741 = vdwg.mxu0
      %v4743 = vsel %vm1563, %v3170, 0
      %4745 = vmatprep.subr.mxu0 0.0
      %4746 = vmatpush1.msra.mxu0 %v3165
      %4747 = vmatprep.subr.mxu0 0.0
      %4748 = vmatpush1.msra.mxu0 %v3166
      %4749 = vmatprep.subr.mxu0 0.0
      %4750 = vmatpush1.msra.mxu0 %v3167
      %4751 = vmatprep.subr.mxu0 0.0
      %4752 = vmatpush1.msra.mxu0 %v3168
      %4753 = vmatprep.subr.mxu0 0.0
      %4754 = vmatpush1.msra.mxu0 %v3169
      %4755 = vmatprep.subr.mxu0 0.0
      %4756 = vmatpush1.msra.mxu0 %v4743
      %4757 = vmatprep.subr.mxu0 0.0
      %4758 = vmatpush1.msra.mxu0 0.0
      %4759 = vmatprep.subr.mxu0 0.0
      %4760 = vmatpush1.msra.mxu0 0.0
      %4761 = vmatprep.subr.mxu0 0.0
      %4762 = vmatpush1.msra.mxu0 0.0
      %4763 = vmatprep.subr.mxu0 0.0
      %4764 = vmatpush1.msra.mxu0 0.0
      %4765 = vmatprep.subr.mxu0 0.0
      %4766 = vmatpush1.msra.mxu0 0.0
      %4767 = vmatprep.subr.mxu0 0.0
      %4768 = vmatpush1.msra.mxu0 0.0
      %4769 = vmatprep.subr.mxu0 0.0
      %4770 = vmatpush1.msra.mxu0 0.0
      %4771 = vmatprep.subr.mxu0 0.0
      %4772 = vmatpush1.msra.mxu0 0.0
      %4773 = vmatprep.subr.mxu0 0.0
      %4774 = vmatpush1.msra.mxu0 0.0
      %4775 = vmatprep.subr.mxu0 0.0
      %4776 = vmatpush1.msra.mxu0 0.0
      %4777 = vmatprep.subr.mxu0 0.0
      %4778 = vmatpush1.msra.mxu0 0.0
      %4779 = vmatprep.subr.mxu0 0.0
      %4780 = vmatpush1.msra.mxu0 0.0
      %4781 = vmatprep.subr.mxu0 0.0
      %4782 = vmatpush1.msra.mxu0 0.0
      %4783 = vmatprep.subr.mxu0 0.0
      %4784 = vmatpush1.msra.mxu0 0.0
      %4785 = vmatprep.subr.mxu0 0.0
      %4786 = vmatpush1.msra.mxu0 0.0
      %4787 = vmatprep.subr.mxu0 0.0
      %4788 = vmatpush1.msra.mxu0 0.0
      %4789 = vmatprep.subr.mxu0 0.0
      %4790 = vmatpush1.msra.mxu0 0.0
      %4791 = vmatprep.subr.mxu0 0.0
      %4792 = vmatpush1.msra.mxu0 0.0
      %4793 = vmatprep.subr.mxu0 0.0
      %4794 = vmatpush1.msra.mxu0 0.0
      %4795 = vmatprep.subr.mxu0 0.0
      %4796 = vmatpush1.msra.mxu0 0.0
      %4797 = vmatprep.subr.mxu0 0.0
      %4798 = vmatpush1.msra.mxu0 0.0
      %4799 = vmatprep.subr.mxu0 0.0
      %4800 = vmatpush1.msra.mxu0 0.0
      %4801 = vmatprep.subr.mxu0 0.0
      %4802 = vmatpush1.msra.mxu0 0.0
      %4803 = vmatprep.subr.mxu0 0.0
      %4804 = vmatpush1.msra.mxu0 0.0
      %4805 = vmatprep.subr.mxu0 0.0
      %4806 = vmatpush1.msra.mxu0 0.0
      %4807 = vmatprep.subr.mxu0 0.0
      %4808 = vmatpush1.msra.mxu0 0.0
      %4809 = vmatprep.mubr.f32.mxu0 0.0
      %4810 = vmatmul.mubr.f32.gmra.mrb[0].mxu0 %v3443
      %v4811 = vpop.f32.mrb[0].mxu0
      %v4812 = vadd.f32 %v4739, %v4811
      %v4813 = vpop.f32.mrb[0].mxu0
      %4814 = vdwg.mxu0
      %v4816 = vlaneseq
      %v4817 = vshrl.u32 %v4816, 7
      %v4818 = vsub.s32 0, %v4817
      %v4819 = vrot.slane %v3177, %v4818
      %v4821 = vadd.f32 %v4812, %v4819
      %v4822 = vmul.f32 %v4821, 0.5
      %v4823 = vtanh.pop %v4822
      %v4824 = vmul.f32 %v4823, 0.5
      %v4825 = vadd.f32 %v4824, 0.5
      %v4826 = vmul.f32 %v4821, %v4825
      %v4828 = vlaneseq
      %v4829 = vshrl.u32 %v4828, 7
      %v4830 = vsub.s32 0, %v4829
      %v4831 = vrot.slane %v3191, %v4830
      %v4834 = vsel %vm2999, %v4826, 0
      %v4837 = vsel %vm3003, %v3189, 0
      %4839 = vmatprep.subr.mxu0 0.0
      %4840 = vmatpush1.msra.mxu0 %v3179
      %4841 = vmatprep.subr.mxu0 0.0
      %4842 = vmatpush1.msra.mxu0 %v3180
      %4843 = vmatprep.subr.mxu0 0.0
      %4844 = vmatpush1.msra.mxu0 %v3181
      %4845 = vmatprep.subr.mxu0 0.0
      %4846 = vmatpush1.msra.mxu0 %v3182
      %4847 = vmatprep.subr.mxu0 0.0
      %4848 = vmatpush1.msra.mxu0 %v3183
      %4849 = vmatprep.subr.mxu0 0.0
      %4850 = vmatpush1.msra.mxu0 %v3184
      %4851 = vmatprep.subr.mxu0 0.0
      %4852 = vmatpush1.msra.mxu0 %v3185
      %4853 = vmatprep.subr.mxu0 0.0
      %4854 = vmatpush1.msra.mxu0 %v3186
      %4855 = vmatprep.subr.mxu0 0.0
      %4856 = vmatpush1.msra.mxu0 %v3187
      %4857 = vmatprep.subr.mxu0 0.0
      %4858 = vmatpush1.msra.mxu0 %v3188
      %4859 = vmatprep.subr.mxu0 0.0
      %4860 = vmatpush1.msra.mxu0 %v4837
      %4861 = vmatprep.subr.mxu0 0.0
      %4862 = vmatpush1.msra.mxu0 0.0
      %4863 = vmatprep.subr.mxu0 0.0
      %4864 = vmatpush1.msra.mxu0 0.0
      %4865 = vmatprep.subr.mxu0 0.0
      %4866 = vmatpush1.msra.mxu0 0.0
      %4867 = vmatprep.subr.mxu0 0.0
      %4868 = vmatpush1.msra.mxu0 0.0
      %4869 = vmatprep.subr.mxu0 0.0
      %4870 = vmatpush1.msra.mxu0 0.0
      %4871 = vmatprep.subr.mxu0 0.0
      %4872 = vmatpush1.msra.mxu0 0.0
      %4873 = vmatprep.subr.mxu0 0.0
      %4874 = vmatpush1.msra.mxu0 0.0
      %4875 = vmatprep.subr.mxu0 0.0
      %4876 = vmatpush1.msra.mxu0 0.0
      %4877 = vmatprep.subr.mxu0 0.0
      %4878 = vmatpush1.msra.mxu0 0.0
      %4879 = vmatprep.subr.mxu0 0.0
      %4880 = vmatpush1.msra.mxu0 0.0
      %4881 = vmatprep.subr.mxu0 0.0
      %4882 = vmatpush1.msra.mxu0 0.0
      %4883 = vmatprep.subr.mxu0 0.0
      %4884 = vmatpush1.msra.mxu0 0.0
      %4885 = vmatprep.subr.mxu0 0.0
      %4886 = vmatpush1.msra.mxu0 0.0
      %4887 = vmatprep.subr.mxu0 0.0
      %4888 = vmatpush1.msra.mxu0 0.0
      %4889 = vmatprep.subr.mxu0 0.0
      %4890 = vmatpush1.msra.mxu0 0.0
      %4891 = vmatprep.subr.mxu0 0.0
      %4892 = vmatpush1.msra.mxu0 0.0
      %4893 = vmatprep.subr.mxu0 0.0
      %4894 = vmatpush1.msra.mxu0 0.0
      %4895 = vmatprep.subr.mxu0 0.0
      %4896 = vmatpush1.msra.mxu0 0.0
      %4897 = vmatprep.subr.mxu0 0.0
      %4898 = vmatpush1.msra.mxu0 0.0
      %4899 = vmatprep.subr.mxu0 0.0
      %4900 = vmatpush1.msra.mxu0 0.0
      %4901 = vmatprep.subr.mxu0 0.0
      %4902 = vmatpush1.msra.mxu0 0.0
      %4903 = vmatprep.mubr.f32.mxu0 0.0
      %4904 = vmatmul.mubr.f32.gmra.mrb[0].mxu0 %v4834
      %v4905 = vpop.f32.mrb[0].mxu0
      %v4906 = vadd.f32 %v4831, %v4905
      %v4907 = vpop.f32.mrb[0].mxu0
      %4908 = vdwg.mxu0
      %v4909 = vmul.f32 %v3080, %v4906
      %v4910 = vadd.f32 %v3083, %v4909
      %s4911 = scalar_lea.vmem %s846, 192
      %v4912 = vld [vmem:[%s4911] sm:$0xff]
      %v4913 = vld [vmem:[%s4911 + $0x8] sm:$0xff]
      %v4914 = vld [vmem:[%s4911 + $0x10] sm:$0xff]
      %v4915 = vld [vmem:[%s4911 + $0x18] sm:$0xff]
      %v4916 = vld [vmem:[%s4911 + $0x20] sm:$0xff]
      %v4917 = vld [vmem:[%s4911 + $0x28] sm:$0xff]
      %v4918 = vld [vmem:[%s4911 + $0x30] sm:$0xff]
      %v4919 = vld [vmem:[%s4911 + $0x38] sm:$0xff]
      %v4920 = vld [vmem:[%s4911 + $0x40] sm:$0xff]
      %v4921 = vld [vmem:[%s4911 + $0x48] sm:$0xff]
      %v4922 = vld [vmem:[%s4911 + $0x50] sm:$0x1]
      %v4923 = vld [vmem:[%s4911 + $0x58] sm:$0x1]
      %s4924 = scalar_lea.vmem %s851, 192
      %v4925 = vld [vmem:[%s4924] sm:$0xff]
      %v4926 = vld [vmem:[%s4924 + $0x8] sm:$0xff]
      %v4927 = vld [vmem:[%s4924 + $0x10] sm:$0xff]
      %v4928 = vld [vmem:[%s4924 + $0x18] sm:$0xff]
      %v4929 = vld [vmem:[%s4924 + $0x20] sm:$0xff]
      %v4930 = vld [vmem:[%s4924 + $0x28] sm:$0xff]
      %v4931 = vld [vmem:[%s4924 + $0x30] sm:$0xff]
      %v4932 = vld [vmem:[%s4924 + $0x38] sm:$0xff]
      %v4933 = vld [vmem:[%s4924 + $0x40] sm:$0xff]
      %v4934 = vld [vmem:[%s4924 + $0x48] sm:$0xff]
      %v4935 = vld [vmem:[%s4924 + $0x50] sm:$0x1]
      %v4936 = vld [vmem:[%s4924 + $0x58] sm:$0x1]
      %s4937 = scalar_lea.vmem %s855, 4
      %v4938 = vld [vmem:[%s4937] sm:$0x3]
      %s4939 = scalar_lea.vmem %s859, 4
      %v4940 = vld [vmem:[%s4939] sm:$0x3]
      %s4941 = scalar_lea.vmem %s864, 336
      %v4942 = vld [vmem:[%s4941] sm:$0xff]
      %v4943 = vld [vmem:[%s4941 + $0x8] sm:$0xff]
      %v4944 = vld [vmem:[%s4941 + $0x10] sm:$0xff]
      %v4945 = vld [vmem:[%s4941 + $0x18] sm:$0xff]
      %v4946 = vld [vmem:[%s4941 + $0x20] sm:$0xff]
      %v4947 = vld [vmem:[%s4941 + $0x28] sm:$0xff]
      %v4948 = vld [vmem:[%s4941 + $0x30] sm:$0xff]
      %v4949 = vld [vmem:[%s4941 + $0x38] sm:$0xff]
      %v4950 = vld [vmem:[%s4941 + $0x40] sm:$0xff]
      %v4951 = vld [vmem:[%s4941 + $0x48] sm:$0xff]
      %v4952 = vld [vmem:[%s4941 + $0x50] sm:$0xff]
      %v4953 = vld [vmem:[%s4941 + $0x58] sm:$0xff]
      %v4954 = vld [vmem:[%s4941 + $0x60] sm:$0xff]
      %v4955 = vld [vmem:[%s4941 + $0x68] sm:$0xff]
      %v4956 = vld [vmem:[%s4941 + $0x70] sm:$0xff]
      %v4957 = vld [vmem:[%s4941 + $0x78] sm:$0xff]
      %v4958 = vld [vmem:[%s4941 + $0x80] sm:$0xff]
      %v4959 = vld [vmem:[%s4941 + $0x88] sm:$0xff]
      %v4960 = vld [vmem:[%s4941 + $0x90] sm:$0xff]
      %v4961 = vld [vmem:[%s4941 + $0x98] sm:$0xff]
      %v4962 = vld [vmem:[%s4941 + $0xa0] sm:$0x3f]
      %s4963 = scalar_lea.vmem %s868, 2
      %v4964 = vld [vmem:[%s4963] sm:$0x1]
      %s4965 = scalar_lea.vmem %s873, 64
      %v4966 = vld [vmem:[%s4965] sm:$0xff]
      %v4967 = vld [vmem:[%s4965 + $0x8] sm:$0xff]
      %v4968 = vld [vmem:[%s4965 + $0x10] sm:$0xff]
      %v4969 = vld [vmem:[%s4965 + $0x18] sm:$0xff]
      %s4970 = scalar_lea.vmem %s877, 2
      %v4971 = vld [vmem:[%s4970] sm:$0x1]
      %s4972 = scalar_lea.vmem %s882, 256
      %v4973 = vld [vmem:[%s4972] sm:$0xff]
      %v4974 = vld [vmem:[%s4972 + $0x8] sm:$0xff]
      %v4975 = vld [vmem:[%s4972 + $0x10] sm:$0xff]
      %v4976 = vld [vmem:[%s4972 + $0x18] sm:$0xff]
      %v4977 = vld [vmem:[%s4972 + $0x20] sm:$0xff]
      %v4978 = vld [vmem:[%s4972 + $0x28] sm:$0xff]
      %v4979 = vld [vmem:[%s4972 + $0x30] sm:$0xff]
      %v4980 = vld [vmem:[%s4972 + $0x38] sm:$0xff]
      %v4981 = vld [vmem:[%s4972 + $0x40] sm:$0xff]
      %v4982 = vld [vmem:[%s4972 + $0x48] sm:$0xff]
      %v4983 = vld [vmem:[%s4972 + $0x50] sm:$0xff]
      %v4984 = vld [vmem:[%s4972 + $0x58] sm:$0xff]
      %v4985 = vld [vmem:[%s4972 + $0x60] sm:$0xff]
      %v4986 = vld [vmem:[%s4972 + $0x68] sm:$0xff]
      %v4987 = vld [vmem:[%s4972 + $0x70] sm:$0xff]
      %v4988 = vld [vmem:[%s4972 + $0x78] sm:$0xff]
      %s4989 = scalar_lea.vmem %s886, 2
      %v4990 = vld [vmem:[%s4989] sm:$0x1]
      %s4991 = scalar_lea.vmem %s891, 96
      %v4992 = vld [vmem:[%s4991] sm:$0xff]
      %v4993 = vld [vmem:[%s4991 + $0x8] sm:$0xff]
      %v4994 = vld [vmem:[%s4991 + $0x10] sm:$0xff]
      %v4995 = vld [vmem:[%s4991 + $0x18] sm:$0xff]
      %v4996 = vld [vmem:[%s4991 + $0x20] sm:$0xff]
      %v4997 = vld [vmem:[%s4991 + $0x28] sm:$0x1]
      %s4998 = scalar_lea.vmem %s896, 64
      %v4999 = vld [vmem:[%s4998] sm:$0xff]
      %v5000 = vld [vmem:[%s4998 + $0x8] sm:$0xff]
      %v5001 = vld [vmem:[%s4998 + $0x10] sm:$0xff]
      %v5002 = vld [vmem:[%s4998 + $0x18] sm:$0xff]
      %s5003 = scalar_lea.vmem %s900, 2
      %v5004 = vld [vmem:[%s5003] sm:$0x1]
      %s5005 = scalar_lea.vmem %s905, 176
      %v5006 = vld [vmem:[%s5005] sm:$0xff]
      %v5007 = vld [vmem:[%s5005 + $0x8] sm:$0xff]
      %v5008 = vld [vmem:[%s5005 + $0x10] sm:$0xff]
      %v5009 = vld [vmem:[%s5005 + $0x18] sm:$0xff]
      %v5010 = vld [vmem:[%s5005 + $0x20] sm:$0xff]
      %v5011 = vld [vmem:[%s5005 + $0x28] sm:$0xff]
      %v5012 = vld [vmem:[%s5005 + $0x30] sm:$0xff]
      %v5013 = vld [vmem:[%s5005 + $0x38] sm:$0xff]
      %v5014 = vld [vmem:[%s5005 + $0x40] sm:$0xff]
      %v5015 = vld [vmem:[%s5005 + $0x48] sm:$0xff]
      %v5016 = vld [vmem:[%s5005 + $0x50] sm:$0x3]
      %s5017 = scalar_lea.vmem %s909, 2
      %v5018 = vld [vmem:[%s5017] sm:$0x1]
      %5019 = vmatprep.subr.mxu0 0.0
      %5020 = vmatpush1.msra.mxu0 %v4589
      %5021 = vmatprep.subr.mxu0 0.0
      %5022 = vmatpush1.msra.mxu0 0.0
      %5023 = vmatprep.subr.mxu0 0.0
      %5024 = vmatpush1.msra.mxu0 0.0
      %5025 = vmatprep.subr.mxu0 0.0
      %5026 = vmatpush1.msra.mxu0 0.0
      %5027 = vmatprep.subr.mxu0 0.0
      %5028 = vmatpush1.msra.mxu0 0.0
      %5029 = vmatprep.subr.mxu0 0.0
      %5030 = vmatpush1.msra.mxu0 0.0
      %5031 = vmatprep.subr.mxu0 0.0
      %5032 = vmatpush1.msra.mxu0 0.0
      %5033 = vmatprep.subr.mxu0 0.0
      %5034 = vmatpush1.msra.mxu0 0.0
      %5035 = vmatprep.subr.mxu0 0.0
      %5036 = vmatpush1.msra.mxu0 0.0
      %5037 = vmatprep.subr.mxu0 0.0
      %5038 = vmatpush1.msra.mxu0 0.0
      %5039 = vmatprep.subr.mxu0 0.0
      %5040 = vmatpush1.msra.mxu0 0.0
      %5041 = vmatprep.subr.mxu0 0.0
      %5042 = vmatpush1.msra.mxu0 0.0
      %5043 = vmatprep.subr.mxu0 0.0
      %5044 = vmatpush1.msra.mxu0 0.0
      %5045 = vmatprep.subr.mxu0 0.0
      %5046 = vmatpush1.msra.mxu0 0.0
      %5047 = vmatprep.subr.mxu0 0.0
      %5048 = vmatpush1.msra.mxu0 0.0
      %5049 = vmatprep.subr.mxu0 0.0
      %5050 = vmatpush1.msra.mxu0 0.0
      %5051 = vmatprep.subr.mxu0 0.0
      %5052 = vmatpush1.msra.mxu0 0.0
      %5053 = vmatprep.subr.mxu0 0.0
      %5054 = vmatpush1.msra.mxu0 0.0
      %5055 = vmatprep.subr.mxu0 0.0
      %5056 = vmatpush1.msra.mxu0 0.0
      %5057 = vmatprep.subr.mxu0 0.0
      %5058 = vmatpush1.msra.mxu0 0.0
      %5059 = vmatprep.subr.mxu0 0.0
      %5060 = vmatpush1.msra.mxu0 0.0
      %5061 = vmatprep.subr.mxu0 0.0
      %5062 = vmatpush1.msra.mxu0 0.0
      %5063 = vmatprep.subr.mxu0 0.0
      %5064 = vmatpush1.msra.mxu0 0.0
      %5065 = vmatprep.subr.mxu0 0.0
      %5066 = vmatpush1.msra.mxu0 0.0
      %5067 = vmatprep.subr.mxu0 0.0
      %5068 = vmatpush1.msra.mxu0 0.0
      %5069 = vmatprep.subr.mxu0 0.0
      %5070 = vmatpush1.msra.mxu0 0.0
      %5071 = vmatprep.subr.mxu0 0.0
      %5072 = vmatpush1.msra.mxu0 0.0
      %5073 = vmatprep.subr.mxu0 0.0
      %5074 = vmatpush1.msra.mxu0 0.0
      %5075 = vmatprep.subr.mxu0 0.0
      %5076 = vmatpush1.msra.mxu0 0.0
      %5077 = vmatprep.subr.mxu0 0.0
      %5078 = vmatpush1.msra.mxu0 0.0
      %5079 = vmatprep.subr.mxu0 0.0
      %5080 = vmatpush1.msra.mxu0 0.0
      %5081 = vmatprep.subr.mxu0 0.0
      %5082 = vmatpush1.msra.mxu0 0.0
      %5083 = vmatprep.mubr.f32.mxu0 0.0
      %5084 = vmatmul.mubr.f32.gmra.mrb[0].mxu0 %v950
      %v5085 = vpop.f32.mrb[0].mxu0
      %v5086 = vadd.f32 0.0, %v5085
      %v5087 = vpop.f32.mrb[0].mxu0
      %5088 = vmatprep.mubr.f32.mxu0 0.0
      %5089 = vmatmul.mubr.f32.gmra.mrb[0].mxu0 %v953
      %v5090 = vpop.f32.mrb[0].mxu0
      %v5091 = vadd.f32 0.0, %v5090
      %v5092 = vpop.f32.mrb[0].mxu0
      %5093 = vmatprep.mubr.f32.mxu0 0.0
      %5094 = vmatmul.mubr.f32.gmra.mrb[0].mxu0 %v956
      %v5095 = vpop.f32.mrb[0].mxu0
      %v5096 = vadd.f32 0.0, %v5095
      %v5097 = vpop.f32.mrb[0].mxu0
      %5098 = vmatprep.mubr.f32.mxu0 0.0
      %5099 = vmatmul.mubr.f32.gmra.mrb[0].mxu0 %v959
      %v5100 = vpop.f32.mrb[0].mxu0
      %v5101 = vadd.f32 0.0, %v5100
      %v5102 = vpop.f32.mrb[0].mxu0
      %5103 = vmatprep.mubr.f32.mxu0 0.0
      %5104 = vmatmul.mubr.f32.gmra.mrb[0].mxu0 %v962
      %v5105 = vpop.f32.mrb[0].mxu0
      %v5106 = vadd.f32 0.0, %v5105
      %v5107 = vpop.f32.mrb[0].mxu0
      %5108 = vmatprep.mubr.f32.mxu0 0.0
      %5109 = vmatmul.mubr.f32.gmra.mrb[0].mxu0 %v965
      %v5110 = vpop.f32.mrb[0].mxu0
      %v5111 = vadd.f32 0.0, %v5110
      %v5112 = vpop.f32.mrb[0].mxu0
      %5113 = vmatprep.mubr.f32.mxu0 0.0
      %5114 = vmatmul.mubr.f32.gmra.mrb[0].mxu0 %v968
      %v5115 = vpop.f32.mrb[0].mxu0
      %v5116 = vadd.f32 0.0, %v5115
      %v5117 = vpop.f32.mrb[0].mxu0
      %5118 = vmatprep.mubr.f32.mxu0 0.0
      %5119 = vmatmul.mubr.f32.gmra.mrb[0].mxu0 %v971
      %v5120 = vpop.f32.mrb[0].mxu0
      %v5121 = vadd.f32 0.0, %v5120
      %v5122 = vpop.f32.mrb[0].mxu0
      %5123 = vdwg.mxu0
      %5124 = vmatprep.subr.mxu0 0.0
      %5125 = vmatpush1.msra.mxu0 %v4589
      %5126 = vmatprep.subr.mxu0 0.0
      %5127 = vmatpush1.msra.mxu0 0.0
      %5128 = vmatprep.subr.mxu0 0.0
      %5129 = vmatpush1.msra.mxu0 0.0
      %5130 = vmatprep.subr.mxu0 0.0
      %5131 = vmatpush1.msra.mxu0 0.0
      %5132 = vmatprep.subr.mxu0 0.0
      %5133 = vmatpush1.msra.mxu0 0.0
      %5134 = vmatprep.subr.mxu0 0.0
      %5135 = vmatpush1.msra.mxu0 0.0
      %5136 = vmatprep.subr.mxu0 0.0
      %5137 = vmatpush1.msra.mxu0 0.0
      %5138 = vmatprep.subr.mxu0 0.0
      %5139 = vmatpush1.msra.mxu0 0.0
      %5140 = vmatprep.subr.mxu0 0.0
      %5141 = vmatpush1.msra.mxu0 0.0
      %5142 = vmatprep.subr.mxu0 0.0
      %5143 = vmatpush1.msra.mxu0 0.0
      %5144 = vmatprep.subr.mxu0 0.0
      %5145 = vmatpush1.msra.mxu0 0.0
      %5146 = vmatprep.subr.mxu0 0.0
      %5147 = vmatpush1.msra.mxu0 0.0
      %5148 = vmatprep.subr.mxu0 0.0
      %5149 = vmatpush1.msra.mxu0 0.0
      %5150 = vmatprep.subr.mxu0 0.0
      %5151 = vmatpush1.msra.mxu0 0.0
      %5152 = vmatprep.subr.mxu0 0.0
      %5153 = vmatpush1.msra.mxu0 0.0
      %5154 = vmatprep.subr.mxu0 0.0
      %5155 = vmatpush1.msra.mxu0 0.0
      %5156 = vmatprep.subr.mxu0 0.0
      %5157 = vmatpush1.msra.mxu0 0.0
      %5158 = vmatprep.subr.mxu0 0.0
      %5159 = vmatpush1.msra.mxu0 0.0
      %5160 = vmatprep.subr.mxu0 0.0
      %5161 = vmatpush1.msra.mxu0 0.0
      %5162 = vmatprep.subr.mxu0 0.0
      %5163 = vmatpush1.msra.mxu0 0.0
      %5164 = vmatprep.subr.mxu0 0.0
      %5165 = vmatpush1.msra.mxu0 0.0
      %5166 = vmatprep.subr.mxu0 0.0
      %5167 = vmatpush1.msra.mxu0 0.0
      %5168 = vmatprep.subr.mxu0 0.0
      %5169 = vmatpush1.msra.mxu0 0.0
      %5170 = vmatprep.subr.mxu0 0.0
      %5171 = vmatpush1.msra.mxu0 0.0
      %5172 = vmatprep.subr.mxu0 0.0
      %5173 = vmatpush1.msra.mxu0 0.0
      %5174 = vmatprep.subr.mxu0 0.0
      %5175 = vmatpush1.msra.mxu0 0.0
      %5176 = vmatprep.subr.mxu0 0.0
      %5177 = vmatpush1.msra.mxu0 0.0
      %5178 = vmatprep.subr.mxu0 0.0
      %5179 = vmatpush1.msra.mxu0 0.0
      %5180 = vmatprep.subr.mxu0 0.0
      %5181 = vmatpush1.msra.mxu0 0.0
      %5182 = vmatprep.subr.mxu0 0.0
      %5183 = vmatpush1.msra.mxu0 0.0
      %5184 = vmatprep.subr.mxu0 0.0
      %5185 = vmatpush1.msra.mxu0 0.0
      %5186 = vmatprep.subr.mxu0 0.0
      %5187 = vmatpush1.msra.mxu0 0.0
      %5188 = vmatprep.mubr.f32.mxu0 0.0
      %5189 = vmatmul.mubr.f32.gmra.mrb[0].mxu0 %v1079
      %v5190 = vpop.f32.mrb[0].mxu0
      %v5191 = vadd.f32 0.0, %v5190
      %v5192 = vpop.f32.mrb[0].mxu0
      %5193 = vmatprep.mubr.f32.mxu0 0.0
      %5194 = vmatmul.mubr.f32.gmra.mrb[0].mxu0 %v1082
      %v5195 = vpop.f32.mrb[0].mxu0
      %v5196 = vadd.f32 0.0, %v5195
      %v5197 = vpop.f32.mrb[0].mxu0
      %5198 = vmatprep.mubr.f32.mxu0 0.0
      %5199 = vmatmul.mubr.f32.gmra.mrb[0].mxu0 %v1085
      %v5200 = vpop.f32.mrb[0].mxu0
      %v5201 = vadd.f32 0.0, %v5200
      %v5202 = vpop.f32.mrb[0].mxu0
      %5203 = vmatprep.mubr.f32.mxu0 0.0
      %5204 = vmatmul.mubr.f32.gmra.mrb[0].mxu0 %v1088
      %v5205 = vpop.f32.mrb[0].mxu0
      %v5206 = vadd.f32 0.0, %v5205
      %v5207 = vpop.f32.mrb[0].mxu0
      %5208 = vmatprep.mubr.f32.mxu0 0.0
      %5209 = vmatmul.mubr.f32.gmra.mrb[0].mxu0 %v1091
      %v5210 = vpop.f32.mrb[0].mxu0
      %v5211 = vadd.f32 0.0, %v5210
      %v5212 = vpop.f32.mrb[0].mxu0
      %5213 = vmatprep.mubr.f32.mxu0 0.0
      %5214 = vmatmul.mubr.f32.gmra.mrb[0].mxu0 %v1094
      %v5215 = vpop.f32.mrb[0].mxu0
      %v5216 = vadd.f32 0.0, %v5215
      %v5217 = vpop.f32.mrb[0].mxu0
      %5218 = vmatprep.mubr.f32.mxu0 0.0
      %5219 = vmatmul.mubr.f32.gmra.mrb[0].mxu0 %v1097
      %v5220 = vpop.f32.mrb[0].mxu0
      %v5221 = vadd.f32 0.0, %v5220
      %v5222 = vpop.f32.mrb[0].mxu0
      %5223 = vmatprep.mubr.f32.mxu0 0.0
      %5224 = vmatmul.mubr.f32.gmra.mrb[0].mxu0 %v1100
      %v5225 = vpop.f32.mrb[0].mxu0
      %v5226 = vadd.f32 0.0, %v5225
      %v5227 = vpop.f32.mrb[0].mxu0
      %5228 = vdwg.mxu0
      %v5229 = vsub.f32 %v5086, %v5191
      %v5230 = vsub.f32 %v5091, %v5196
      %v5231 = vsub.f32 %v5096, %v5201
      %v5232 = vsub.f32 %v5101, %v5206
      %v5233 = vsub.f32 %v5106, %v5211
      %v5234 = vsub.f32 %v5111, %v5216
      %v5235 = vsub.f32 %v5116, %v5221
      %v5236 = vsub.f32 %v5121, %v5226
      %v5237 = vmul.f32 %v5229, %v5229
      %v5238 = vmul.f32 %v5230, %v5230
      %v5239 = vmul.f32 %v5231, %v5231
      %v5240 = vmul.f32 %v5232, %v5232
      %v5241 = vmul.f32 %v5233, %v5233
      %v5242 = vmul.f32 %v5234, %v5234
      %v5243 = vmul.f32 %v5235, %v5235
      %v5244 = vmul.f32 %v5236, %v5236
      %v5245 = vsel %vm1534, %v5237, 0.0
      %5246 = vadd.xlane.f32.xlu0 %v5245
      %v5247 = vpop.xlane.xlu0 %5246
      %v5248 = vsel %vm1534, %v5238, 0.0
      %5249 = vadd.xlane.f32.xlu0 %v5248
      %v5250 = vpop.xlane.xlu0 %5249
      %v5251 = vsel %vm1534, %v5239, 0.0
      %5252 = vadd.xlane.f32.xlu0 %v5251
      %v5253 = vpop.xlane.xlu0 %5252
      %v5254 = vsel %vm1534, %v5240, 0.0
      %5255 = vadd.xlane.f32.xlu0 %v5254
      %v5256 = vpop.xlane.xlu0 %5255
      %v5257 = vsel %vm1534, %v5241, 0.0
      %5258 = vadd.xlane.f32.xlu0 %v5257
      %v5259 = vpop.xlane.xlu0 %5258
      %v5260 = vsel %vm1534, %v5242, 0.0
      %5261 = vadd.xlane.f32.xlu0 %v5260
      %v5262 = vpop.xlane.xlu0 %5261
      %v5263 = vsel %vm1534, %v5243, 0.0
      %5264 = vadd.xlane.f32.xlu0 %v5263
      %v5265 = vpop.xlane.xlu0 %5264
      %v5266 = vsel %vm1534, %v5244, 0.0
      %5267 = vadd.xlane.f32.xlu0 %v5266
      %v5268 = vpop.xlane.xlu0 %5267
      %v5270 = vsel %vm1559, %v4910, 0
      %v5273 = vsel %vm1563, %v4922, 0
      %v5276 = vsel %vm1563, %v4923, 0
      %5278 = vmatprep.subr.mxu0 %v4913
      %5279 = vmatpush1.msra.mxu0 %v4912
      %5280 = vmatprep.subr.mxu0 %v4915
      %5281 = vmatpush1.msra.mxu0 %v4914
      %5282 = vmatprep.subr.mxu0 %v4917
      %5283 = vmatpush1.msra.mxu0 %v4916
      %5284 = vmatprep.subr.mxu0 %v4919
      %5285 = vmatpush1.msra.mxu0 %v4918
      %5286 = vmatprep.subr.mxu0 %v4921
      %5287 = vmatpush1.msra.mxu0 %v4920
      %5288 = vmatprep.subr.mxu0 %v5276
      %5289 = vmatpush1.msra.mxu0 %v5273
      %5290 = vmatprep.subr.mxu0 0.0
      %5291 = vmatpush1.msra.mxu0 0.0
      %5292 = vmatprep.subr.mxu0 0.0
      %5293 = vmatpush1.msra.mxu0 0.0
      %5294 = vmatprep.subr.mxu0 0.0
      %5295 = vmatpush1.msra.mxu0 0.0
      %5296 = vmatprep.subr.mxu0 0.0
      %5297 = vmatpush1.msra.mxu0 0.0
      %5298 = vmatprep.subr.mxu0 0.0
      %5299 = vmatpush1.msra.mxu0 0.0
      %5300 = vmatprep.subr.mxu0 0.0
      %5301 = vmatpush1.msra.mxu0 0.0
      %5302 = vmatprep.subr.mxu0 0.0
      %5303 = vmatpush1.msra.mxu0 0.0
      %5304 = vmatprep.subr.mxu0 0.0
      %5305 = vmatpush1.msra.mxu0 0.0
      %5306 = vmatprep.subr.mxu0 0.0
      %5307 = vmatpush1.msra.mxu0 0.0
      %5308 = vmatprep.subr.mxu0 0.0
      %5309 = vmatpush1.msra.mxu0 0.0
      %5310 = vmatprep.subr.mxu0 0.0
      %5311 = vmatpush1.msra.mxu0 0.0
      %5312 = vmatprep.subr.mxu0 0.0
      %5313 = vmatpush1.msra.mxu0 0.0
      %5314 = vmatprep.subr.mxu0 0.0
      %5315 = vmatpush1.msra.mxu0 0.0
      %5316 = vmatprep.subr.mxu0 0.0
      %5317 = vmatpush1.msra.mxu0 0.0
      %5318 = vmatprep.subr.mxu0 0.0
      %5319 = vmatpush1.msra.mxu0 0.0
      %5320 = vmatprep.subr.mxu0 0.0
      %5321 = vmatpush1.msra.mxu0 0.0
      %5322 = vmatprep.subr.mxu0 0.0
      %5323 = vmatpush1.msra.mxu0 0.0
      %5324 = vmatprep.subr.mxu0 0.0
      %5325 = vmatpush1.msra.mxu0 0.0
      %5326 = vmatprep.subr.mxu0 0.0
      %5327 = vmatpush1.msra.mxu0 0.0
      %5328 = vmatprep.subr.mxu0 0.0
      %5329 = vmatpush1.msra.mxu0 0.0
      %5330 = vmatprep.subr.mxu0 0.0
      %5331 = vmatpush1.msra.mxu0 0.0
      %5332 = vmatprep.subr.mxu0 0.0
      %5333 = vmatpush1.msra.mxu0 0.0
      %5334 = vmatprep.subr.mxu0 0.0
      %5335 = vmatpush1.msra.mxu0 0.0
      %5336 = vmatprep.subr.mxu0 0.0
      %5337 = vmatpush1.msra.mxu0 0.0
      %5338 = vmatprep.subr.mxu0 0.0
      %5339 = vmatpush1.msra.mxu0 0.0
      %5340 = vmatprep.subr.mxu0 0.0
      %5341 = vmatpush1.msra.mxu0 0.0
      %5342 = vmatprep.mubr.f32.mxu0 0.0
      %5343 = vmatmul.mubr.f32.gmra.mrb[0].mxu0 %v5270
      %v5344 = vpop.f32.mrb[0].mxu0
      %v5345 = vadd.f32 0.0, %v5344
      %v5346 = vpop.f32.mrb[0].mxu0
      %v5347 = vadd.f32 0.0, %v5346
      %5348 = vdwg.mxu0
      %v5350 = vsel %vm1563, %v4935, 0
      %v5353 = vsel %vm1563, %v4936, 0
      %5355 = vmatprep.subr.mxu0 %v4926
      %5356 = vmatpush1.msra.mxu0 %v4925
      %5357 = vmatprep.subr.mxu0 %v4928
      %5358 = vmatpush1.msra.mxu0 %v4927
      %5359 = vmatprep.subr.mxu0 %v4930
      %5360 = vmatpush1.msra.mxu0 %v4929
      %5361 = vmatprep.subr.mxu0 %v4932
      %5362 = vmatpush1.msra.mxu0 %v4931
      %5363 = vmatprep.subr.mxu0 %v4934
      %5364 = vmatpush1.msra.mxu0 %v4933
      %5365 = vmatprep.subr.mxu0 %v5353
      %5366 = vmatpush1.msra.mxu0 %v5350
      %5367 = vmatprep.subr.mxu0 0.0
      %5368 = vmatpush1.msra.mxu0 0.0
      %5369 = vmatprep.subr.mxu0 0.0
      %5370 = vmatpush1.msra.mxu0 0.0
      %5371 = vmatprep.subr.mxu0 0.0
      %5372 = vmatpush1.msra.mxu0 0.0
      %5373 = vmatprep.subr.mxu0 0.0
      %5374 = vmatpush1.msra.mxu0 0.0
      %5375 = vmatprep.subr.mxu0 0.0
      %5376 = vmatpush1.msra.mxu0 0.0
      %5377 = vmatprep.subr.mxu0 0.0
      %5378 = vmatpush1.msra.mxu0 0.0
      %5379 = vmatprep.subr.mxu0 0.0
      %5380 = vmatpush1.msra.mxu0 0.0
      %5381 = vmatprep.subr.mxu0 0.0
      %5382 = vmatpush1.msra.mxu0 0.0
      %5383 = vmatprep.subr.mxu0 0.0
      %5384 = vmatpush1.msra.mxu0 0.0
      %5385 = vmatprep.subr.mxu0 0.0
      %5386 = vmatpush1.msra.mxu0 0.0
      %5387 = vmatprep.subr.mxu0 0.0
      %5388 = vmatpush1.msra.mxu0 0.0
      %5389 = vmatprep.subr.mxu0 0.0
      %5390 = vmatpush1.msra.mxu0 0.0
      %5391 = vmatprep.subr.mxu0 0.0
      %5392 = vmatpush1.msra.mxu0 0.0
      %5393 = vmatprep.subr.mxu0 0.0
      %5394 = vmatpush1.msra.mxu0 0.0
      %5395 = vmatprep.subr.mxu0 0.0
      %5396 = vmatpush1.msra.mxu0 0.0
      %5397 = vmatprep.subr.mxu0 0.0
      %5398 = vmatpush1.msra.mxu0 0.0
      %5399 = vmatprep.subr.mxu0 0.0
      %5400 = vmatpush1.msra.mxu0 0.0
      %5401 = vmatprep.subr.mxu0 0.0
      %5402 = vmatpush1.msra.mxu0 0.0
      %5403 = vmatprep.subr.mxu0 0.0
      %5404 = vmatpush1.msra.mxu0 0.0
      %5405 = vmatprep.subr.mxu0 0.0
      %5406 = vmatpush1.msra.mxu0 0.0
      %5407 = vmatprep.subr.mxu0 0.0
      %5408 = vmatpush1.msra.mxu0 0.0
      %5409 = vmatprep.subr.mxu0 0.0
      %5410 = vmatpush1.msra.mxu0 0.0
      %5411 = vmatprep.subr.mxu0 0.0
      %5412 = vmatpush1.msra.mxu0 0.0
      %5413 = vmatprep.subr.mxu0 0.0
      %5414 = vmatpush1.msra.mxu0 0.0
      %5415 = vmatprep.subr.mxu0 0.0
      %5416 = vmatpush1.msra.mxu0 0.0
      %5417 = vmatprep.subr.mxu0 0.0
      %5418 = vmatpush1.msra.mxu0 0.0
      %5419 = vmatprep.mubr.f32.mxu0 0.0
      %5420 = vmatmul.mubr.f32.gmra.mrb[0].mxu0 %v5270
      %v5421 = vpop.f32.mrb[0].mxu0
      %v5422 = vadd.f32 0.0, %v5421
      %v5423 = vpop.f32.mrb[0].mxu0
      %v5424 = vadd.f32 0.0, %v5423
      %5425 = vdwg.mxu0
      %5426 = vmatprep.subr.mxu0 %v5424
      %5427 = vmatpush1.msra.mxu0 %v5422
      %5428 = vmatprep.subr.mxu0 0.0
      %5429 = vmatpush1.msra.mxu0 0.0
      %5430 = vmatprep.subr.mxu0 0.0
      %5431 = vmatpush1.msra.mxu0 0.0
      %5432 = vmatprep.subr.mxu0 0.0
      %5433 = vmatpush1.msra.mxu0 0.0
      %5434 = vmatprep.subr.mxu0 0.0
      %5435 = vmatpush1.msra.mxu0 0.0
      %5436 = vmatprep.subr.mxu0 0.0
      %5437 = vmatpush1.msra.mxu0 0.0
      %5438 = vmatprep.subr.mxu0 0.0
      %5439 = vmatpush1.msra.mxu0 0.0
      %5440 = vmatprep.subr.mxu0 0.0
      %5441 = vmatpush1.msra.mxu0 0.0
      %5442 = vmatprep.subr.mxu0 0.0
      %5443 = vmatpush1.msra.mxu0 0.0
      %5444 = vmatprep.subr.mxu0 0.0
      %5445 = vmatpush1.msra.mxu0 0.0
      %5446 = vmatprep.subr.mxu0 0.0
      %5447 = vmatpush1.msra.mxu0 0.0
      %5448 = vmatprep.subr.mxu0 0.0
      %5449 = vmatpush1.msra.mxu0 0.0
      %5450 = vmatprep.subr.mxu0 0.0
      %5451 = vmatpush1.msra.mxu0 0.0
      %5452 = vmatprep.subr.mxu0 0.0
      %5453 = vmatpush1.msra.mxu0 0.0
      %5454 = vmatprep.subr.mxu0 0.0
      %5455 = vmatpush1.msra.mxu0 0.0
      %5456 = vmatprep.subr.mxu0 0.0
      %5457 = vmatpush1.msra.mxu0 0.0
      %5458 = vmatprep.subr.mxu0 0.0
      %5459 = vmatpush1.msra.mxu0 0.0
      %5460 = vmatprep.subr.mxu0 0.0
      %5461 = vmatpush1.msra.mxu0 0.0
      %5462 = vmatprep.subr.mxu0 0.0
      %5463 = vmatpush1.msra.mxu0 0.0
      %5464 = vmatprep.subr.mxu0 0.0
      %5465 = vmatpush1.msra.mxu0 0.0
      %5466 = vmatprep.subr.mxu0 0.0
      %5467 = vmatpush1.msra.mxu0 0.0
      %5468 = vmatprep.subr.mxu0 0.0
      %5469 = vmatpush1.msra.mxu0 0.0
      %5470 = vmatprep.subr.mxu0 0.0
      %5471 = vmatpush1.msra.mxu0 0.0
      %5472 = vmatprep.subr.mxu0 0.0
      %5473 = vmatpush1.msra.mxu0 0.0
      %5474 = vmatprep.subr.mxu0 0.0
      %5475 = vmatpush1.msra.mxu0 0.0
      %5476 = vmatprep.subr.mxu0 0.0
      %5477 = vmatpush1.msra.mxu0 0.0
      %5478 = vmatprep.subr.mxu0 0.0
      %5479 = vmatpush1.msra.mxu0 0.0
      %5480 = vmatprep.subr.mxu0 0.0
      %5481 = vmatpush1.msra.mxu0 0.0
      %5482 = vmatprep.subr.mxu0 0.0
      %5483 = vmatpush1.msra.mxu0 0.0
      %5484 = vmatprep.subr.mxu0 0.0
      %5485 = vmatpush1.msra.mxu0 0.0
      %5486 = vmatprep.subr.mxu0 0.0
      %5487 = vmatpush1.msra.mxu0 0.0
      %5488 = vmatprep.subr.mxu0 0.0
      %5489 = vmatpush1.msra.mxu0 0.0
      %5490 = vmatprep.mubr.f32.mxu0 0.0
      %5491 = vmatmul.mubr.f32.gmra.mrb[0].mxu0 %v1079
      %v5492 = vpop.f32.mrb[0].mxu0
      %v5493 = vadd.f32 0.0, %v5492
      %v5494 = vpop.f32.mrb[0].mxu0
      %v5495 = vadd.f32 0.0, %v5494
      %5496 = vmatprep.mubr.f32.mxu0 0.0
      %5497 = vmatmul.mubr.f32.gmra.mrb[0].mxu0 %v1082
      %v5498 = vpop.f32.mrb[0].mxu0
      %v5499 = vadd.f32 0.0, %v5498
      %v5500 = vpop.f32.mrb[0].mxu0
      %v5501 = vadd.f32 0.0, %v5500
      %5502 = vmatprep.mubr.f32.mxu0 0.0
      %5503 = vmatmul.mubr.f32.gmra.mrb[0].mxu0 %v1085
      %v5504 = vpop.f32.mrb[0].mxu0
      %v5505 = vadd.f32 0.0, %v5504
      %v5506 = vpop.f32.mrb[0].mxu0
      %v5507 = vadd.f32 0.0, %v5506
      %5508 = vmatprep.mubr.f32.mxu0 0.0
      %5509 = vmatmul.mubr.f32.gmra.mrb[0].mxu0 %v1088
      %v5510 = vpop.f32.mrb[0].mxu0
      %v5511 = vadd.f32 0.0, %v5510
      %v5512 = vpop.f32.mrb[0].mxu0
      %v5513 = vadd.f32 0.0, %v5512
      %5514 = vmatprep.mubr.f32.mxu0 0.0
      %5515 = vmatmul.mubr.f32.gmra.mrb[0].mxu0 %v1091
      %v5516 = vpop.f32.mrb[0].mxu0
      %v5517 = vadd.f32 0.0, %v5516
      %v5518 = vpop.f32.mrb[0].mxu0
      %v5519 = vadd.f32 0.0, %v5518
      %5520 = vmatprep.mubr.f32.mxu0 0.0
      %5521 = vmatmul.mubr.f32.gmra.mrb[0].mxu0 %v1094
      %v5522 = vpop.f32.mrb[0].mxu0
      %v5523 = vadd.f32 0.0, %v5522
      %v5524 = vpop.f32.mrb[0].mxu0
      %v5525 = vadd.f32 0.0, %v5524
      %5526 = vmatprep.mubr.f32.mxu0 0.0
      %5527 = vmatmul.mubr.f32.gmra.mrb[0].mxu0 %v1097
      %v5528 = vpop.f32.mrb[0].mxu0
      %v5529 = vadd.f32 0.0, %v5528
      %v5530 = vpop.f32.mrb[0].mxu0
      %v5531 = vadd.f32 0.0, %v5530
      %5532 = vmatprep.mubr.f32.mxu0 0.0
      %5533 = vmatmul.mubr.f32.gmra.mrb[0].mxu0 %v1100
      %v5534 = vpop.f32.mrb[0].mxu0
      %v5535 = vadd.f32 0.0, %v5534
      %v5536 = vpop.f32.mrb[0].mxu0
      %v5537 = vadd.f32 0.0, %v5536
      %5538 = vdwg.mxu0
      %5539 = vmatprep.subr.mxu0 %v5347
      %5540 = vmatpush1.msra.mxu0 %v5345
      %5541 = vmatprep.subr.mxu0 0.0
      %5542 = vmatpush1.msra.mxu0 0.0
      %5543 = vmatprep.subr.mxu0 0.0
      %5544 = vmatpush1.msra.mxu0 0.0
      %5545 = vmatprep.subr.mxu0 0.0
      %5546 = vmatpush1.msra.mxu0 0.0
      %5547 = vmatprep.subr.mxu0 0.0
      %5548 = vmatpush1.msra.mxu0 0.0
      %5549 = vmatprep.subr.mxu0 0.0
      %5550 = vmatpush1.msra.mxu0 0.0
      %5551 = vmatprep.subr.mxu0 0.0
      %5552 = vmatpush1.msra.mxu0 0.0
      %5553 = vmatprep.subr.mxu0 0.0
      %5554 = vmatpush1.msra.mxu0 0.0
      %5555 = vmatprep.subr.mxu0 0.0
      %5556 = vmatpush1.msra.mxu0 0.0
      %5557 = vmatprep.subr.mxu0 0.0
      %5558 = vmatpush1.msra.mxu0 0.0
      %5559 = vmatprep.subr.mxu0 0.0
      %5560 = vmatpush1.msra.mxu0 0.0
      %5561 = vmatprep.subr.mxu0 0.0
      %5562 = vmatpush1.msra.mxu0 0.0
      %5563 = vmatprep.subr.mxu0 0.0
      %5564 = vmatpush1.msra.mxu0 0.0
      %5565 = vmatprep.subr.mxu0 0.0
      %5566 = vmatpush1.msra.mxu0 0.0
      %5567 = vmatprep.subr.mxu0 0.0
      %5568 = vmatpush1.msra.mxu0 0.0
      %5569 = vmatprep.subr.mxu0 0.0
      %5570 = vmatpush1.msra.mxu0 0.0
      %5571 = vmatprep.subr.mxu0 0.0
      %5572 = vmatpush1.msra.mxu0 0.0
      %5573 = vmatprep.subr.mxu0 0.0
      %5574 = vmatpush1.msra.mxu0 0.0
      %5575 = vmatprep.subr.mxu0 0.0
      %5576 = vmatpush1.msra.mxu0 0.0
      %5577 = vmatprep.subr.mxu0 0.0
      %5578 = vmatpush1.msra.mxu0 0.0
      %5579 = vmatprep.subr.mxu0 0.0
      %5580 = vmatpush1.msra.mxu0 0.0
      %5581 = vmatprep.subr.mxu0 0.0
      %5582 = vmatpush1.msra.mxu0 0.0
      %5583 = vmatprep.subr.mxu0 0.0
      %5584 = vmatpush1.msra.mxu0 0.0
      %5585 = vmatprep.subr.mxu0 0.0
      %5586 = vmatpush1.msra.mxu0 0.0
      %5587 = vmatprep.subr.mxu0 0.0
      %5588 = vmatpush1.msra.mxu0 0.0
      %5589 = vmatprep.subr.mxu0 0.0
      %5590 = vmatpush1.msra.mxu0 0.0
      %5591 = vmatprep.subr.mxu0 0.0
      %5592 = vmatpush1.msra.mxu0 0.0
      %5593 = vmatprep.subr.mxu0 0.0
      %5594 = vmatpush1.msra.mxu0 0.0
      %5595 = vmatprep.subr.mxu0 0.0
      %5596 = vmatpush1.msra.mxu0 0.0
      %5597 = vmatprep.subr.mxu0 0.0
      %5598 = vmatpush1.msra.mxu0 0.0
      %5599 = vmatprep.subr.mxu0 0.0
      %5600 = vmatpush1.msra.mxu0 0.0
      %5601 = vmatprep.subr.mxu0 0.0
      %5602 = vmatpush1.msra.mxu0 0.0
      %5603 = vmatprep.mubr.f32.mxu0 0.0
      %5604 = vmatmul.mubr.f32.gmra.mrb[0].mxu0 %v950
      %v5605 = vpop.f32.mrb[0].mxu0
      %v5606 = vadd.f32 %v5493, %v5605
      %v5607 = vpop.f32.mrb[0].mxu0
      %v5608 = vadd.f32 %v5495, %v5607
      %5609 = vmatprep.mubr.f32.mxu0 0.0
      %5610 = vmatmul.mubr.f32.gmra.mrb[0].mxu0 %v953
      %v5611 = vpop.f32.mrb[0].mxu0
      %v5612 = vadd.f32 %v5499, %v5611
      %v5613 = vpop.f32.mrb[0].mxu0
      %v5614 = vadd.f32 %v5501, %v5613
      %5615 = vmatprep.mubr.f32.mxu0 0.0
      %5616 = vmatmul.mubr.f32.gmra.mrb[0].mxu0 %v956
      %v5617 = vpop.f32.mrb[0].mxu0
      %v5618 = vadd.f32 %v5505, %v5617
      %v5619 = vpop.f32.mrb[0].mxu0
      %v5620 = vadd.f32 %v5507, %v5619
      %5621 = vmatprep.mubr.f32.mxu0 0.0
      %5622 = vmatmul.mubr.f32.gmra.mrb[0].mxu0 %v959
      %v5623 = vpop.f32.mrb[0].mxu0
      %v5624 = vadd.f32 %v5511, %v5623
      %v5625 = vpop.f32.mrb[0].mxu0
      %v5626 = vadd.f32 %v5513, %v5625
      %5627 = vmatprep.mubr.f32.mxu0 0.0
      %5628 = vmatmul.mubr.f32.gmra.mrb[0].mxu0 %v962
      %v5629 = vpop.f32.mrb[0].mxu0
      %v5630 = vadd.f32 %v5517, %v5629
      %v5631 = vpop.f32.mrb[0].mxu0
      %v5632 = vadd.f32 %v5519, %v5631
      %5633 = vmatprep.mubr.f32.mxu0 0.0
      %5634 = vmatmul.mubr.f32.gmra.mrb[0].mxu0 %v965
      %v5635 = vpop.f32.mrb[0].mxu0
      %v5636 = vadd.f32 %v5523, %v5635
      %v5637 = vpop.f32.mrb[0].mxu0
      %v5638 = vadd.f32 %v5525, %v5637
      %5639 = vmatprep.mubr.f32.mxu0 0.0
      %5640 = vmatmul.mubr.f32.gmra.mrb[0].mxu0 %v968
      %v5641 = vpop.f32.mrb[0].mxu0
      %v5642 = vadd.f32 %v5529, %v5641
      %v5643 = vpop.f32.mrb[0].mxu0
      %v5644 = vadd.f32 %v5531, %v5643
      %5645 = vmatprep.mubr.f32.mxu0 0.0
      %5646 = vmatmul.mubr.f32.gmra.mrb[0].mxu0 %v971
      %v5647 = vpop.f32.mrb[0].mxu0
      %v5648 = vadd.f32 %v5535, %v5647
      %v5649 = vpop.f32.mrb[0].mxu0
      %v5650 = vadd.f32 %v5537, %v5649
      %5651 = vdwg.mxu0
      %v5653 = vlaneseq
      %v5654 = vshrl.u32 %v5653, 7
      %v5655 = vsub.s32 0, %v5654
      %v5656 = vrot.slane %v4938, %v5655
      %v5657 = vlaneseq
      %v5658 = vshrl.u32 %v5657, 7
      %v5659 = vsub.s32 1, %v5658
      %v5660 = vrot.slane %v4938, %v5659
      %v5663 = vmul.f32 %v5247, %v5656
      %v5664 = vmul.f32 %v5247, %v5660
      %v5665 = vmul.f32 %v5250, %v5656
      %v5666 = vmul.f32 %v5250, %v5660
      %v5667 = vmul.f32 %v5253, %v5656
      %v5668 = vmul.f32 %v5253, %v5660
      %v5669 = vmul.f32 %v5256, %v5656
      %v5670 = vmul.f32 %v5256, %v5660
      %v5671 = vmul.f32 %v5259, %v5656
      %v5672 = vmul.f32 %v5259, %v5660
      %v5673 = vmul.f32 %v5262, %v5656
      %v5674 = vmul.f32 %v5262, %v5660
      %v5675 = vmul.f32 %v5265, %v5656
      %v5676 = vmul.f32 %v5265, %v5660
      %v5677 = vmul.f32 %v5268, %v5656
      %v5678 = vmul.f32 %v5268, %v5660
      %v5679 = vadd.f32 %v5606, %v5663
      %v5680 = vadd.f32 %v5608, %v5664
      %v5681 = vadd.f32 %v5612, %v5665
      %v5682 = vadd.f32 %v5614, %v5666
      %v5683 = vadd.f32 %v5618, %v5667
      %v5684 = vadd.f32 %v5620, %v5668
      %v5685 = vadd.f32 %v5624, %v5669
      %v5686 = vadd.f32 %v5626, %v5670
      %v5687 = vadd.f32 %v5630, %v5671
      %v5688 = vadd.f32 %v5632, %v5672
      %v5689 = vadd.f32 %v5636, %v5673
      %v5690 = vadd.f32 %v5638, %v5674
      %v5691 = vadd.f32 %v5642, %v5675
      %v5692 = vadd.f32 %v5644, %v5676
      %v5693 = vadd.f32 %v5648, %v5677
      %v5694 = vadd.f32 %v5650, %v5678
      %v5696 = vlaneseq
      %v5697 = vshrl.u32 %v5696, 7
      %v5698 = vsub.s32 0, %v5697
      %v5699 = vrot.slane %v4940, %v5698
      %v5700 = vlaneseq
      %v5701 = vshrl.u32 %v5700, 7
      %v5702 = vsub.s32 1, %v5701
      %v5703 = vrot.slane %v4940, %v5702
      %v5706 = vadd.f32 %v5679, %v5699
      %v5707 = vadd.f32 %v5680, %v5703
      %v5708 = vadd.f32 %v5681, %v5699
      %v5709 = vadd.f32 %v5682, %v5703
      %v5710 = vadd.f32 %v5683, %v5699
      %v5711 = vadd.f32 %v5684, %v5703
      %v5712 = vadd.f32 %v5685, %v5699
      %v5713 = vadd.f32 %v5686, %v5703
      %v5714 = vadd.f32 %v5687, %v5699
      %v5715 = vadd.f32 %v5688, %v5703
      %v5716 = vadd.f32 %v5689, %v5699
      %v5717 = vadd.f32 %v5690, %v5703
      %v5718 = vadd.f32 %v5691, %v5699
      %v5719 = vadd.f32 %v5692, %v5703
      %v5720 = vadd.f32 %v5693, %v5699
      %v5721 = vadd.f32 %v5694, %v5703
      %v5722 = vmul.f32 %v5706, 0.5
      %v5723 = vmul.f32 %v5707, 0.5
      %v5724 = vmul.f32 %v5708, 0.5
      %v5725 = vmul.f32 %v5709, 0.5
      %v5726 = vmul.f32 %v5710, 0.5
      %v5727 = vmul.f32 %v5711, 0.5
      %v5728 = vmul.f32 %v5712, 0.5
      %v5729 = vmul.f32 %v5713, 0.5
      %v5730 = vmul.f32 %v5714, 0.5
      %v5731 = vmul.f32 %v5715, 0.5
      %v5732 = vmul.f32 %v5716, 0.5
      %v5733 = vmul.f32 %v5717, 0.5
      %v5734 = vmul.f32 %v5718, 0.5
      %v5735 = vmul.f32 %v5719, 0.5
      %v5736 = vmul.f32 %v5720, 0.5
      %v5737 = vmul.f32 %v5721, 0.5
      %v5738 = vtanh.pop %v5722
      %v5739 = vtanh.pop %v5723
      %v5740 = vtanh.pop %v5724
      %v5741 = vtanh.pop %v5725
      %v5742 = vtanh.pop %v5726
      %v5743 = vtanh.pop %v5727
      %v5744 = vtanh.pop %v5728
      %v5745 = vtanh.pop %v5729
      %v5746 = vtanh.pop %v5730
      %v5747 = vtanh.pop %v5731
      %v5748 = vtanh.pop %v5732
      %v5749 = vtanh.pop %v5733
      %v5750 = vtanh.pop %v5734
      %v5751 = vtanh.pop %v5735
      %v5752 = vtanh.pop %v5736
      %v5753 = vtanh.pop %v5737
      %v5754 = vmul.f32 %v5738, 0.5
      %v5755 = vmul.f32 %v5739, 0.5
      %v5756 = vmul.f32 %v5740, 0.5
      %v5757 = vmul.f32 %v5741, 0.5
      %v5758 = vmul.f32 %v5742, 0.5
      %v5759 = vmul.f32 %v5743, 0.5
      %v5760 = vmul.f32 %v5744, 0.5
      %v5761 = vmul.f32 %v5745, 0.5
      %v5762 = vmul.f32 %v5746, 0.5
      %v5763 = vmul.f32 %v5747, 0.5
      %v5764 = vmul.f32 %v5748, 0.5
      %v5765 = vmul.f32 %v5749, 0.5
      %v5766 = vmul.f32 %v5750, 0.5
      %v5767 = vmul.f32 %v5751, 0.5
      %v5768 = vmul.f32 %v5752, 0.5
      %v5769 = vmul.f32 %v5753, 0.5
      %v5770 = vadd.f32 %v5754, 0.5
      %v5771 = vadd.f32 %v5755, 0.5
      %v5772 = vadd.f32 %v5756, 0.5
      %v5773 = vadd.f32 %v5757, 0.5
      %v5774 = vadd.f32 %v5758, 0.5
      %v5775 = vadd.f32 %v5759, 0.5
      %v5776 = vadd.f32 %v5760, 0.5
      %v5777 = vadd.f32 %v5761, 0.5
      %v5778 = vadd.f32 %v5762, 0.5
      %v5779 = vadd.f32 %v5763, 0.5
      %v5780 = vadd.f32 %v5764, 0.5
      %v5781 = vadd.f32 %v5765, 0.5
      %v5782 = vadd.f32 %v5766, 0.5
      %v5783 = vadd.f32 %v5767, 0.5
      %v5784 = vadd.f32 %v5768, 0.5
      %v5785 = vadd.f32 %v5769, 0.5
      %v5786 = vmul.f32 %v5706, %v5770
      %v5787 = vmul.f32 %v5707, %v5771
      %v5788 = vmul.f32 %v5708, %v5772
      %v5789 = vmul.f32 %v5709, %v5773
      %v5790 = vmul.f32 %v5710, %v5774
      %v5791 = vmul.f32 %v5711, %v5775
      %v5792 = vmul.f32 %v5712, %v5776
      %v5793 = vmul.f32 %v5713, %v5777
      %v5794 = vmul.f32 %v5714, %v5778
      %v5795 = vmul.f32 %v5715, %v5779
      %v5796 = vmul.f32 %v5716, %v5780
      %v5797 = vmul.f32 %v5717, %v5781
      %v5798 = vmul.f32 %v5718, %v5782
      %v5799 = vmul.f32 %v5719, %v5783
      %v5800 = vmul.f32 %v5720, %v5784
      %v5801 = vmul.f32 %v5721, %v5785
      %v5803 = vlaneseq
      %v5804 = vshrl.u32 %v5803, 7
      %v5805 = vsub.s32 0, %v5804
      %v5806 = vrot.slane %v4964, %v5805
      %v5809 = vsel %vm2100, %v5787, 0
      %v5812 = vsel %vm2100, %v5789, 0
      %v5815 = vsel %vm2100, %v5791, 0
      %v5818 = vsel %vm2100, %v5793, 0
      %v5821 = vsel %vm2100, %v5795, 0
      %v5824 = vsel %vm2100, %v5797, 0
      %v5827 = vsel %vm2100, %v5799, 0
      %v5830 = vsel %vm2100, %v5801, 0
      %v5833 = vsel %vm2125, %v4962, 0
      %5835 = vmatprep.subr.mxu0 0.0
      %5836 = vmatpush1.msra.mxu0 %v4942
      %5837 = vmatprep.subr.mxu0 0.0
      %5838 = vmatpush1.msra.mxu0 %v4943
      %5839 = vmatprep.subr.mxu0 0.0
      %5840 = vmatpush1.msra.mxu0 %v4944
      %5841 = vmatprep.subr.mxu0 0.0
      %5842 = vmatpush1.msra.mxu0 %v4945
      %5843 = vmatprep.subr.mxu0 0.0
      %5844 = vmatpush1.msra.mxu0 %v4946
      %5845 = vmatprep.subr.mxu0 0.0
      %5846 = vmatpush1.msra.mxu0 %v4947
      %5847 = vmatprep.subr.mxu0 0.0
      %5848 = vmatpush1.msra.mxu0 %v4948
      %5849 = vmatprep.subr.mxu0 0.0
      %5850 = vmatpush1.msra.mxu0 %v4949
      %5851 = vmatprep.subr.mxu0 0.0
      %5852 = vmatpush1.msra.mxu0 %v4950
      %5853 = vmatprep.subr.mxu0 0.0
      %5854 = vmatpush1.msra.mxu0 %v4951
      %5855 = vmatprep.subr.mxu0 0.0
      %5856 = vmatpush1.msra.mxu0 %v4952
      %5857 = vmatprep.subr.mxu0 0.0
      %5858 = vmatpush1.msra.mxu0 %v4953
      %5859 = vmatprep.subr.mxu0 0.0
      %5860 = vmatpush1.msra.mxu0 %v4954
      %5861 = vmatprep.subr.mxu0 0.0
      %5862 = vmatpush1.msra.mxu0 %v4955
      %5863 = vmatprep.subr.mxu0 0.0
      %5864 = vmatpush1.msra.mxu0 %v4956
      %5865 = vmatprep.subr.mxu0 0.0
      %5866 = vmatpush1.msra.mxu0 %v4957
      %5867 = vmatprep.subr.mxu0 0.0
      %5868 = vmatpush1.msra.mxu0 %v4958
      %5869 = vmatprep.subr.mxu0 0.0
      %5870 = vmatpush1.msra.mxu0 %v4959
      %5871 = vmatprep.subr.mxu0 0.0
      %5872 = vmatpush1.msra.mxu0 %v4960
      %5873 = vmatprep.subr.mxu0 0.0
      %5874 = vmatpush1.msra.mxu0 %v4961
      %5875 = vmatprep.subr.mxu0 0.0
      %5876 = vmatpush1.msra.mxu0 %v5833
      %5877 = vmatprep.subr.mxu0 0.0
      %5878 = vmatpush1.msra.mxu0 0.0
      %5879 = vmatprep.subr.mxu0 0.0
      %5880 = vmatpush1.msra.mxu0 0.0
      %5881 = vmatprep.subr.mxu0 0.0
      %5882 = vmatpush1.msra.mxu0 0.0
      %5883 = vmatprep.subr.mxu0 0.0
      %5884 = vmatpush1.msra.mxu0 0.0
      %5885 = vmatprep.subr.mxu0 0.0
      %5886 = vmatpush1.msra.mxu0 0.0
      %5887 = vmatprep.subr.mxu0 0.0
      %5888 = vmatpush1.msra.mxu0 0.0
      %5889 = vmatprep.subr.mxu0 0.0
      %5890 = vmatpush1.msra.mxu0 0.0
      %5891 = vmatprep.subr.mxu0 0.0
      %5892 = vmatpush1.msra.mxu0 0.0
      %5893 = vmatprep.subr.mxu0 0.0
      %5894 = vmatpush1.msra.mxu0 0.0
      %5895 = vmatprep.subr.mxu0 0.0
      %5896 = vmatpush1.msra.mxu0 0.0
      %5897 = vmatprep.subr.mxu0 0.0
      %5898 = vmatpush1.msra.mxu0 0.0
      %5899 = vmatprep.mubr.f32.mxu0 %v5809
      %5900 = vmatmul.mubr.f32.gmra.mrb[0].mxu0 %v5786
      %v5901 = vpop.f32.mrb[0].mxu0
      %v5902 = vadd.f32 %v5806, %v5901
      %v5903 = vpop.f32.mrb[0].mxu0
      %5904 = vmatprep.mubr.f32.mxu0 %v5812
      %5905 = vmatmul.mubr.f32.gmra.mrb[0].mxu0 %v5788
      %v5906 = vpop.f32.mrb[0].mxu0
      %v5907 = vadd.f32 %v5806, %v5906
      %v5908 = vpop.f32.mrb[0].mxu0
      %5909 = vmatprep.mubr.f32.mxu0 %v5815
      %5910 = vmatmul.mubr.f32.gmra.mrb[0].mxu0 %v5790
      %v5911 = vpop.f32.mrb[0].mxu0
      %v5912 = vadd.f32 %v5806, %v5911
      %v5913 = vpop.f32.mrb[0].mxu0
      %5914 = vmatprep.mubr.f32.mxu0 %v5818
      %5915 = vmatmul.mubr.f32.gmra.mrb[0].mxu0 %v5792
      %v5916 = vpop.f32.mrb[0].mxu0
      %v5917 = vadd.f32 %v5806, %v5916
      %v5918 = vpop.f32.mrb[0].mxu0
      %5919 = vmatprep.mubr.f32.mxu0 %v5821
      %5920 = vmatmul.mubr.f32.gmra.mrb[0].mxu0 %v5794
      %v5921 = vpop.f32.mrb[0].mxu0
      %v5922 = vadd.f32 %v5806, %v5921
      %v5923 = vpop.f32.mrb[0].mxu0
      %5924 = vmatprep.mubr.f32.mxu0 %v5824
      %5925 = vmatmul.mubr.f32.gmra.mrb[0].mxu0 %v5796
      %v5926 = vpop.f32.mrb[0].mxu0
      %v5927 = vadd.f32 %v5806, %v5926
      %v5928 = vpop.f32.mrb[0].mxu0
      %5929 = vmatprep.mubr.f32.mxu0 %v5827
      %5930 = vmatmul.mubr.f32.gmra.mrb[0].mxu0 %v5798
      %v5931 = vpop.f32.mrb[0].mxu0
      %v5932 = vadd.f32 %v5806, %v5931
      %v5933 = vpop.f32.mrb[0].mxu0
      %5934 = vmatprep.mubr.f32.mxu0 %v5830
      %5935 = vmatmul.mubr.f32.gmra.mrb[0].mxu0 %v5800
      %v5936 = vpop.f32.mrb[0].mxu0
      %v5937 = vadd.f32 %v5806, %v5936
      %v5938 = vpop.f32.mrb[0].mxu0
      %5939 = vdwg.mxu0
      %v5940 = vmul.f32 %v5902, 0.5
      %v5941 = vmul.f32 %v5907, 0.5
      %v5942 = vmul.f32 %v5912, 0.5
      %v5943 = vmul.f32 %v5917, 0.5
      %v5944 = vmul.f32 %v5922, 0.5
      %v5945 = vmul.f32 %v5927, 0.5
      %v5946 = vmul.f32 %v5932, 0.5
      %v5947 = vmul.f32 %v5937, 0.5
      %v5948 = vtanh.pop %v5940
      %v5949 = vtanh.pop %v5941
      %v5950 = vtanh.pop %v5942
      %v5951 = vtanh.pop %v5943
      %v5952 = vtanh.pop %v5944
      %v5953 = vtanh.pop %v5945
      %v5954 = vtanh.pop %v5946
      %v5955 = vtanh.pop %v5947
      %v5956 = vmul.f32 %v5948, 0.5
      %v5957 = vmul.f32 %v5949, 0.5
      %v5958 = vmul.f32 %v5950, 0.5
      %v5959 = vmul.f32 %v5951, 0.5
      %v5960 = vmul.f32 %v5952, 0.5
      %v5961 = vmul.f32 %v5953, 0.5
      %v5962 = vmul.f32 %v5954, 0.5
      %v5963 = vmul.f32 %v5955, 0.5
      %v5964 = vadd.f32 %v5956, 0.5
      %v5965 = vadd.f32 %v5957, 0.5
      %v5966 = vadd.f32 %v5958, 0.5
      %v5967 = vadd.f32 %v5959, 0.5
      %v5968 = vadd.f32 %v5960, 0.5
      %v5969 = vadd.f32 %v5961, 0.5
      %v5970 = vadd.f32 %v5962, 0.5
      %v5971 = vadd.f32 %v5963, 0.5
      %v5972 = vmul.f32 %v5902, %v5964
      %v5973 = vmul.f32 %v5907, %v5965
      %v5974 = vmul.f32 %v5912, %v5966
      %v5975 = vmul.f32 %v5917, %v5967
      %v5976 = vmul.f32 %v5922, %v5968
      %v5977 = vmul.f32 %v5927, %v5969
      %v5978 = vmul.f32 %v5932, %v5970
      %v5979 = vmul.f32 %v5937, %v5971
      %v5981 = vlaneseq
      %v5982 = vshrl.u32 %v5981, 7
      %v5983 = vsub.s32 0, %v5982
      %v5984 = vrot.slane %v4971, %v5983
      %v5987 = vsel %vm2280, %v5972, 0
      %v5990 = vsel %vm2280, %v5973, 0
      %v5993 = vsel %vm2280, %v5974, 0
      %v5996 = vsel %vm2280, %v5975, 0
      %v5999 = vsel %vm2280, %v5976, 0
      %v6002 = vsel %vm2280, %v5977, 0
      %v6005 = vsel %vm2280, %v5978, 0
      %v6008 = vsel %vm2280, %v5979, 0
      %6010 = vmatprep.subr.mxu0 0.0
      %6011 = vmatpush1.msra.mxu0 %v4966
      %6012 = vmatprep.subr.mxu0 0.0
      %6013 = vmatpush1.msra.mxu0 %v4967
      %6014 = vmatprep.subr.mxu0 0.0
      %6015 = vmatpush1.msra.mxu0 %v4968
      %6016 = vmatprep.subr.mxu0 0.0
      %6017 = vmatpush1.msra.mxu0 %v4969
      %6018 = vmatprep.subr.mxu0 0.0
      %6019 = vmatpush1.msra.mxu0 0.0
      %6020 = vmatprep.subr.mxu0 0.0
      %6021 = vmatpush1.msra.mxu0 0.0
      %6022 = vmatprep.subr.mxu0 0.0
      %6023 = vmatpush1.msra.mxu0 0.0
      %6024 = vmatprep.subr.mxu0 0.0
      %6025 = vmatpush1.msra.mxu0 0.0
      %6026 = vmatprep.subr.mxu0 0.0
      %6027 = vmatpush1.msra.mxu0 0.0
      %6028 = vmatprep.subr.mxu0 0.0
      %6029 = vmatpush1.msra.mxu0 0.0
      %6030 = vmatprep.subr.mxu0 0.0
      %6031 = vmatpush1.msra.mxu0 0.0
      %6032 = vmatprep.subr.mxu0 0.0
      %6033 = vmatpush1.msra.mxu0 0.0
      %6034 = vmatprep.subr.mxu0 0.0
      %6035 = vmatpush1.msra.mxu0 0.0
      %6036 = vmatprep.subr.mxu0 0.0
      %6037 = vmatpush1.msra.mxu0 0.0
      %6038 = vmatprep.subr.mxu0 0.0
      %6039 = vmatpush1.msra.mxu0 0.0
      %6040 = vmatprep.subr.mxu0 0.0
      %6041 = vmatpush1.msra.mxu0 0.0
      %6042 = vmatprep.subr.mxu0 0.0
      %6043 = vmatpush1.msra.mxu0 0.0
      %6044 = vmatprep.subr.mxu0 0.0
      %6045 = vmatpush1.msra.mxu0 0.0
      %6046 = vmatprep.subr.mxu0 0.0
      %6047 = vmatpush1.msra.mxu0 0.0
      %6048 = vmatprep.subr.mxu0 0.0
      %6049 = vmatpush1.msra.mxu0 0.0
      %6050 = vmatprep.subr.mxu0 0.0
      %6051 = vmatpush1.msra.mxu0 0.0
      %6052 = vmatprep.subr.mxu0 0.0
      %6053 = vmatpush1.msra.mxu0 0.0
      %6054 = vmatprep.subr.mxu0 0.0
      %6055 = vmatpush1.msra.mxu0 0.0
      %6056 = vmatprep.subr.mxu0 0.0
      %6057 = vmatpush1.msra.mxu0 0.0
      %6058 = vmatprep.subr.mxu0 0.0
      %6059 = vmatpush1.msra.mxu0 0.0
      %6060 = vmatprep.subr.mxu0 0.0
      %6061 = vmatpush1.msra.mxu0 0.0
      %6062 = vmatprep.subr.mxu0 0.0
      %6063 = vmatpush1.msra.mxu0 0.0
      %6064 = vmatprep.subr.mxu0 0.0
      %6065 = vmatpush1.msra.mxu0 0.0
      %6066 = vmatprep.subr.mxu0 0.0
      %6067 = vmatpush1.msra.mxu0 0.0
      %6068 = vmatprep.subr.mxu0 0.0
      %6069 = vmatpush1.msra.mxu0 0.0
      %6070 = vmatprep.subr.mxu0 0.0
      %6071 = vmatpush1.msra.mxu0 0.0
      %6072 = vmatprep.subr.mxu0 0.0
      %6073 = vmatpush1.msra.mxu0 0.0
      %6074 = vmatprep.mubr.f32.mxu0 0.0
      %6075 = vmatmul.mubr.f32.gmra.mrb[0].mxu0 %v5987
      %v6076 = vpop.f32.mrb[0].mxu0
      %v6077 = vadd.f32 %v5984, %v6076
      %v6078 = vpop.f32.mrb[0].mxu0
      %6079 = vmatprep.mubr.f32.mxu0 0.0
      %6080 = vmatmul.mubr.f32.gmra.mrb[0].mxu0 %v5990
      %v6081 = vpop.f32.mrb[0].mxu0
      %v6082 = vadd.f32 %v5984, %v6081
      %v6083 = vpop.f32.mrb[0].mxu0
      %6084 = vmatprep.mubr.f32.mxu0 0.0
      %6085 = vmatmul.mubr.f32.gmra.mrb[0].mxu0 %v5993
      %v6086 = vpop.f32.mrb[0].mxu0
      %v6087 = vadd.f32 %v5984, %v6086
      %v6088 = vpop.f32.mrb[0].mxu0
      %6089 = vmatprep.mubr.f32.mxu0 0.0
      %6090 = vmatmul.mubr.f32.gmra.mrb[0].mxu0 %v5996
      %v6091 = vpop.f32.mrb[0].mxu0
      %v6092 = vadd.f32 %v5984, %v6091
      %v6093 = vpop.f32.mrb[0].mxu0
      %6094 = vmatprep.mubr.f32.mxu0 0.0
      %6095 = vmatmul.mubr.f32.gmra.mrb[0].mxu0 %v5999
      %v6096 = vpop.f32.mrb[0].mxu0
      %v6097 = vadd.f32 %v5984, %v6096
      %v6098 = vpop.f32.mrb[0].mxu0
      %6099 = vmatprep.mubr.f32.mxu0 0.0
      %6100 = vmatmul.mubr.f32.gmra.mrb[0].mxu0 %v6002
      %v6101 = vpop.f32.mrb[0].mxu0
      %v6102 = vadd.f32 %v5984, %v6101
      %v6103 = vpop.f32.mrb[0].mxu0
      %6104 = vmatprep.mubr.f32.mxu0 0.0
      %6105 = vmatmul.mubr.f32.gmra.mrb[0].mxu0 %v6005
      %v6106 = vpop.f32.mrb[0].mxu0
      %v6107 = vadd.f32 %v5984, %v6106
      %v6108 = vpop.f32.mrb[0].mxu0
      %6109 = vmatprep.mubr.f32.mxu0 0.0
      %6110 = vmatmul.mubr.f32.gmra.mrb[0].mxu0 %v6008
      %v6111 = vpop.f32.mrb[0].mxu0
      %v6112 = vadd.f32 %v5984, %v6111
      %v6113 = vpop.f32.mrb[0].mxu0
      %6114 = vdwg.mxu0
      %v6115 = vmul.f32 %v6077, 0.5
      %v6116 = vmul.f32 %v6082, 0.5
      %v6117 = vmul.f32 %v6087, 0.5
      %v6118 = vmul.f32 %v6092, 0.5
      %v6119 = vmul.f32 %v6097, 0.5
      %v6120 = vmul.f32 %v6102, 0.5
      %v6121 = vmul.f32 %v6107, 0.5
      %v6122 = vmul.f32 %v6112, 0.5
      %v6123 = vtanh.pop %v6115
      %v6124 = vtanh.pop %v6116
      %v6125 = vtanh.pop %v6117
      %v6126 = vtanh.pop %v6118
      %v6127 = vtanh.pop %v6119
      %v6128 = vtanh.pop %v6120
      %v6129 = vtanh.pop %v6121
      %v6130 = vtanh.pop %v6122
      %v6131 = vmul.f32 %v6123, 0.5
      %v6132 = vmul.f32 %v6124, 0.5
      %v6133 = vmul.f32 %v6125, 0.5
      %v6134 = vmul.f32 %v6126, 0.5
      %v6135 = vmul.f32 %v6127, 0.5
      %v6136 = vmul.f32 %v6128, 0.5
      %v6137 = vmul.f32 %v6129, 0.5
      %v6138 = vmul.f32 %v6130, 0.5
      %v6139 = vadd.f32 %v6131, 0.5
      %v6140 = vadd.f32 %v6132, 0.5
      %v6141 = vadd.f32 %v6133, 0.5
      %v6142 = vadd.f32 %v6134, 0.5
      %v6143 = vadd.f32 %v6135, 0.5
      %v6144 = vadd.f32 %v6136, 0.5
      %v6145 = vadd.f32 %v6137, 0.5
      %v6146 = vadd.f32 %v6138, 0.5
      %v6147 = vmul.f32 %v6077, %v6139
      %v6148 = vmul.f32 %v6082, %v6140
      %v6149 = vmul.f32 %v6087, %v6141
      %v6150 = vmul.f32 %v6092, %v6142
      %v6151 = vmul.f32 %v6097, %v6143
      %v6152 = vmul.f32 %v6102, %v6144
      %v6153 = vmul.f32 %v6107, %v6145
      %v6154 = vmul.f32 %v6112, %v6146
      %v6156 = vlaneseq
      %v6157 = vshrl.u32 %v6156, 7
      %v6158 = vsub.s32 0, %v6157
      %v6159 = vrot.slane %v4990, %v6158
      %6161 = vmatprep.subr.mxu0 0.0
      %6162 = vmatpush1.msra.mxu0 %v4973
      %6163 = vmatprep.subr.mxu0 0.0
      %6164 = vmatpush1.msra.mxu0 %v4974
      %6165 = vmatprep.subr.mxu0 0.0
      %6166 = vmatpush1.msra.mxu0 %v4975
      %6167 = vmatprep.subr.mxu0 0.0
      %6168 = vmatpush1.msra.mxu0 %v4976
      %6169 = vmatprep.subr.mxu0 0.0
      %6170 = vmatpush1.msra.mxu0 %v4977
      %6171 = vmatprep.subr.mxu0 0.0
      %6172 = vmatpush1.msra.mxu0 %v4978
      %6173 = vmatprep.subr.mxu0 0.0
      %6174 = vmatpush1.msra.mxu0 %v4979
      %6175 = vmatprep.subr.mxu0 0.0
      %6176 = vmatpush1.msra.mxu0 %v4980
      %6177 = vmatprep.subr.mxu0 0.0
      %6178 = vmatpush1.msra.mxu0 %v4981
      %6179 = vmatprep.subr.mxu0 0.0
      %6180 = vmatpush1.msra.mxu0 %v4982
      %6181 = vmatprep.subr.mxu0 0.0
      %6182 = vmatpush1.msra.mxu0 %v4983
      %6183 = vmatprep.subr.mxu0 0.0
      %6184 = vmatpush1.msra.mxu0 %v4984
      %6185 = vmatprep.subr.mxu0 0.0
      %6186 = vmatpush1.msra.mxu0 %v4985
      %6187 = vmatprep.subr.mxu0 0.0
      %6188 = vmatpush1.msra.mxu0 %v4986
      %6189 = vmatprep.subr.mxu0 0.0
      %6190 = vmatpush1.msra.mxu0 %v4987
      %6191 = vmatprep.subr.mxu0 0.0
      %6192 = vmatpush1.msra.mxu0 %v4988
      %6193 = vmatprep.subr.mxu0 0.0
      %6194 = vmatpush1.msra.mxu0 0.0
      %6195 = vmatprep.subr.mxu0 0.0
      %6196 = vmatpush1.msra.mxu0 0.0
      %6197 = vmatprep.subr.mxu0 0.0
      %6198 = vmatpush1.msra.mxu0 0.0
      %6199 = vmatprep.subr.mxu0 0.0
      %6200 = vmatpush1.msra.mxu0 0.0
      %6201 = vmatprep.subr.mxu0 0.0
      %6202 = vmatpush1.msra.mxu0 0.0
      %6203 = vmatprep.subr.mxu0 0.0
      %6204 = vmatpush1.msra.mxu0 0.0
      %6205 = vmatprep.subr.mxu0 0.0
      %6206 = vmatpush1.msra.mxu0 0.0
      %6207 = vmatprep.subr.mxu0 0.0
      %6208 = vmatpush1.msra.mxu0 0.0
      %6209 = vmatprep.subr.mxu0 0.0
      %6210 = vmatpush1.msra.mxu0 0.0
      %6211 = vmatprep.subr.mxu0 0.0
      %6212 = vmatpush1.msra.mxu0 0.0
      %6213 = vmatprep.subr.mxu0 0.0
      %6214 = vmatpush1.msra.mxu0 0.0
      %6215 = vmatprep.subr.mxu0 0.0
      %6216 = vmatpush1.msra.mxu0 0.0
      %6217 = vmatprep.subr.mxu0 0.0
      %6218 = vmatpush1.msra.mxu0 0.0
      %6219 = vmatprep.subr.mxu0 0.0
      %6220 = vmatpush1.msra.mxu0 0.0
      %6221 = vmatprep.subr.mxu0 0.0
      %6222 = vmatpush1.msra.mxu0 0.0
      %6223 = vmatprep.subr.mxu0 0.0
      %6224 = vmatpush1.msra.mxu0 0.0
      %6225 = vmatprep.mubr.f32.mxu0 0.0
      %6226 = vmatmul.mubr.f32.gmra.mrb[0].mxu0 %v6147
      %v6227 = vpop.f32.mrb[0].mxu0
      %v6228 = vadd.f32 %v6159, %v6227
      %v6229 = vpop.f32.mrb[0].mxu0
      %6230 = vmatprep.mubr.f32.mxu0 0.0
      %6231 = vmatmul.mubr.f32.gmra.mrb[0].mxu0 %v6148
      %v6232 = vpop.f32.mrb[0].mxu0
      %v6233 = vadd.f32 %v6159, %v6232
      %v6234 = vpop.f32.mrb[0].mxu0
      %6235 = vmatprep.mubr.f32.mxu0 0.0
      %6236 = vmatmul.mubr.f32.gmra.mrb[0].mxu0 %v6149
      %v6237 = vpop.f32.mrb[0].mxu0
      %v6238 = vadd.f32 %v6159, %v6237
      %v6239 = vpop.f32.mrb[0].mxu0
      %6240 = vmatprep.mubr.f32.mxu0 0.0
      %6241 = vmatmul.mubr.f32.gmra.mrb[0].mxu0 %v6150
      %v6242 = vpop.f32.mrb[0].mxu0
      %v6243 = vadd.f32 %v6159, %v6242
      %v6244 = vpop.f32.mrb[0].mxu0
      %6245 = vmatprep.mubr.f32.mxu0 0.0
      %6246 = vmatmul.mubr.f32.gmra.mrb[0].mxu0 %v6151
      %v6247 = vpop.f32.mrb[0].mxu0
      %v6248 = vadd.f32 %v6159, %v6247
      %v6249 = vpop.f32.mrb[0].mxu0
      %6250 = vmatprep.mubr.f32.mxu0 0.0
      %6251 = vmatmul.mubr.f32.gmra.mrb[0].mxu0 %v6152
      %v6252 = vpop.f32.mrb[0].mxu0
      %v6253 = vadd.f32 %v6159, %v6252
      %v6254 = vpop.f32.mrb[0].mxu0
      %6255 = vmatprep.mubr.f32.mxu0 0.0
      %6256 = vmatmul.mubr.f32.gmra.mrb[0].mxu0 %v6153
      %v6257 = vpop.f32.mrb[0].mxu0
      %v6258 = vadd.f32 %v6159, %v6257
      %v6259 = vpop.f32.mrb[0].mxu0
      %6260 = vmatprep.mubr.f32.mxu0 0.0
      %6261 = vmatmul.mubr.f32.gmra.mrb[0].mxu0 %v6154
      %v6262 = vpop.f32.mrb[0].mxu0
      %v6263 = vadd.f32 %v6159, %v6262
      %v6264 = vpop.f32.mrb[0].mxu0
      %6265 = vdwg.mxu0
      %v6266 = vmul.f32 %v1207, %v6228
      %v6267 = vmul.f32 %v1208, %v6233
      %v6268 = vmul.f32 %v1209, %v6238
      %v6269 = vmul.f32 %v1210, %v6243
      %v6270 = vmul.f32 %v1211, %v6248
      %v6271 = vmul.f32 %v1212, %v6253
      %v6272 = vmul.f32 %v1213, %v6258
      %v6273 = vmul.f32 %v1214, %v6263
      %v6274 = vmax.f32 %v5247, 1e-08
      %v6275 = vmax.f32 %v5250, 1e-08
      %v6276 = vmax.f32 %v5253, 1e-08
      %v6277 = vmax.f32 %v5256, 1e-08
      %v6278 = vmax.f32 %v5259, 1e-08
      %v6279 = vmax.f32 %v5262, 1e-08
      %v6280 = vmax.f32 %v5265, 1e-08
      %v6281 = vmax.f32 %v5268, 1e-08
      %v6282 = vrcp.pop %v6274
      %v6283 = vmul.f32 %v5229, %v6282
      %v6284 = vrcp.pop %v6275
      %v6285 = vmul.f32 %v5230, %v6284
      %v6286 = vrcp.pop %v6276
      %v6287 = vmul.f32 %v5231, %v6286
      %v6288 = vrcp.pop %v6277
      %v6289 = vmul.f32 %v5232, %v6288
      %v6290 = vrcp.pop %v6278
      %v6291 = vmul.f32 %v5233, %v6290
      %v6292 = vrcp.pop %v6279
      %v6293 = vmul.f32 %v5234, %v6292
      %v6294 = vrcp.pop %v6280
      %v6295 = vmul.f32 %v5235, %v6294
      %v6296 = vrcp.pop %v6281
      %v6297 = vmul.f32 %v5236, %v6296
      %6299 = vset.pattern.permute.xlu0 0
      %6300 = vperm.xlu0 %6299, %v6266
      %v6301 = vpop.permute.xlu0 %6300
      %6304 = vset.pattern.permute.xlu0 0
      %6305 = vperm.xlu0 %6304, %v6267
      %v6306 = vpop.permute.xlu0 %6305
      %6309 = vset.pattern.permute.xlu0 0
      %6310 = vperm.xlu0 %6309, %v6268
      %v6311 = vpop.permute.xlu0 %6310
      %6314 = vset.pattern.permute.xlu0 0
      %6315 = vperm.xlu0 %6314, %v6269
      %v6316 = vpop.permute.xlu0 %6315
      %6319 = vset.pattern.permute.xlu0 0
      %6320 = vperm.xlu0 %6319, %v6270
      %v6321 = vpop.permute.xlu0 %6320
      %6324 = vset.pattern.permute.xlu0 0
      %6325 = vperm.xlu0 %6324, %v6271
      %v6326 = vpop.permute.xlu0 %6325
      %6329 = vset.pattern.permute.xlu0 0
      %6330 = vperm.xlu0 %6329, %v6272
      %v6331 = vpop.permute.xlu0 %6330
      %6334 = vset.pattern.permute.xlu0 0
      %6335 = vperm.xlu0 %6334, %v6273
      %v6336 = vpop.permute.xlu0 %6335
      %v6338 = vmul.f32 %v6301, %v6283
      %v6339 = vmul.f32 %v6306, %v6285
      %v6340 = vmul.f32 %v6311, %v6287
      %v6341 = vmul.f32 %v6316, %v6289
      %v6342 = vmul.f32 %v6321, %v6291
      %v6343 = vmul.f32 %v6326, %v6293
      %v6344 = vmul.f32 %v6331, %v6295
      %v6345 = vmul.f32 %v6336, %v6297
      %6346 = vmatprep.subr.mxu0 0.0
      %6347 = vmatpush1.msra.mxu0 %v6338
      %6348 = vmatprep.subr.mxu0 0.0
      %6349 = vmatpush1.msra.mxu0 %v6339
      %6350 = vmatprep.subr.mxu0 0.0
      %6351 = vmatpush1.msra.mxu0 %v6340
      %6352 = vmatprep.subr.mxu0 0.0
      %6353 = vmatpush1.msra.mxu0 %v6341
      %6354 = vmatprep.subr.mxu0 0.0
      %6355 = vmatpush1.msra.mxu0 %v6342
      %6356 = vmatprep.subr.mxu0 0.0
      %6357 = vmatpush1.msra.mxu0 %v6343
      %6358 = vmatprep.subr.mxu0 0.0
      %6359 = vmatpush1.msra.mxu0 %v6344
      %6360 = vmatprep.subr.mxu0 0.0
      %6361 = vmatpush1.msra.mxu0 %v6345
      %6362 = vmatprep.subr.mxu0 0.0
      %6363 = vmatpush1.msra.mxu0 0.0
      %6364 = vmatprep.subr.mxu0 0.0
      %6365 = vmatpush1.msra.mxu0 0.0
      %6366 = vmatprep.subr.mxu0 0.0
      %6367 = vmatpush1.msra.mxu0 0.0
      %6368 = vmatprep.subr.mxu0 0.0
      %6369 = vmatpush1.msra.mxu0 0.0
      %6370 = vmatprep.subr.mxu0 0.0
      %6371 = vmatpush1.msra.mxu0 0.0
      %6372 = vmatprep.subr.mxu0 0.0
      %6373 = vmatpush1.msra.mxu0 0.0
      %6374 = vmatprep.subr.mxu0 0.0
      %6375 = vmatpush1.msra.mxu0 0.0
      %6376 = vmatprep.subr.mxu0 0.0
      %6377 = vmatpush1.msra.mxu0 0.0
      %6378 = vmatprep.subr.mxu0 0.0
      %6379 = vmatpush1.msra.mxu0 0.0
      %6380 = vmatprep.subr.mxu0 0.0
      %6381 = vmatpush1.msra.mxu0 0.0
      %6382 = vmatprep.subr.mxu0 0.0
      %6383 = vmatpush1.msra.mxu0 0.0
      %6384 = vmatprep.subr.mxu0 0.0
      %6385 = vmatpush1.msra.mxu0 0.0
      %6386 = vmatprep.subr.mxu0 0.0
      %6387 = vmatpush1.msra.mxu0 0.0
      %6388 = vmatprep.subr.mxu0 0.0
      %6389 = vmatpush1.msra.mxu0 0.0
      %6390 = vmatprep.subr.mxu0 0.0
      %6391 = vmatpush1.msra.mxu0 0.0
      %6392 = vmatprep.subr.mxu0 0.0
      %6393 = vmatpush1.msra.mxu0 0.0
      %6394 = vmatprep.subr.mxu0 0.0
      %6395 = vmatpush1.msra.mxu0 0.0
      %6396 = vmatprep.subr.mxu0 0.0
      %6397 = vmatpush1.msra.mxu0 0.0
      %6398 = vmatprep.subr.mxu0 0.0
      %6399 = vmatpush1.msra.mxu0 0.0
      %6400 = vmatprep.subr.mxu0 0.0
      %6401 = vmatpush1.msra.mxu0 0.0
      %6402 = vmatprep.subr.mxu0 0.0
      %6403 = vmatpush1.msra.mxu0 0.0
      %6404 = vmatprep.subr.mxu0 0.0
      %6405 = vmatpush1.msra.mxu0 0.0
      %6406 = vmatprep.subr.mxu0 0.0
      %6407 = vmatpush1.msra.mxu0 0.0
      %6408 = vmatprep.subr.mxu0 0.0
      %6409 = vmatpush1.msra.mxu0 0.0
      %6410 = vmatprep.mubr.f32.mxu0 0.0
      %6411 = vmatmul.mubr.f32.gmra.mrb[0].mxu0 %v2643
      %v6412 = vpop.f32.mrb[0].mxu0
      %v6413 = vadd.f32 0.0, %v6412
      %v6414 = vpop.f32.mrb[0].mxu0
      %6415 = vdwg.mxu0
      %v6416 = vadd.f32 %v4589, %v6413
      %v6417 = vmul.f32 %v2719, %v5972
      %v6418 = vmul.f32 %v2724, %v5973
      %v6419 = vmul.f32 %v2729, %v5974
      %v6420 = vmul.f32 %v2734, %v5975
      %v6421 = vmul.f32 %v2739, %v5976
      %v6422 = vmul.f32 %v2744, %v5977
      %v6423 = vmul.f32 %v2749, %v5978
      %v6424 = vmul.f32 %v2754, %v5979
      %6425 = vmatprep.subr.mxu0 0.0
      %6426 = vmatpush1.msra.mxu0 %v6417
      %6427 = vmatprep.subr.mxu0 0.0
      %6428 = vmatpush1.msra.mxu0 %v6418
      %6429 = vmatprep.subr.mxu0 0.0
      %6430 = vmatpush1.msra.mxu0 %v6419
      %6431 = vmatprep.subr.mxu0 0.0
      %6432 = vmatpush1.msra.mxu0 %v6420
      %6433 = vmatprep.subr.mxu0 0.0
      %6434 = vmatpush1.msra.mxu0 %v6421
      %6435 = vmatprep.subr.mxu0 0.0
      %6436 = vmatpush1.msra.mxu0 %v6422
      %6437 = vmatprep.subr.mxu0 0.0
      %6438 = vmatpush1.msra.mxu0 %v6423
      %6439 = vmatprep.subr.mxu0 0.0
      %6440 = vmatpush1.msra.mxu0 %v6424
      %6441 = vmatprep.subr.mxu0 0.0
      %6442 = vmatpush1.msra.mxu0 0.0
      %6443 = vmatprep.subr.mxu0 0.0
      %6444 = vmatpush1.msra.mxu0 0.0
      %6445 = vmatprep.subr.mxu0 0.0
      %6446 = vmatpush1.msra.mxu0 0.0
      %6447 = vmatprep.subr.mxu0 0.0
      %6448 = vmatpush1.msra.mxu0 0.0
      %6449 = vmatprep.subr.mxu0 0.0
      %6450 = vmatpush1.msra.mxu0 0.0
      %6451 = vmatprep.subr.mxu0 0.0
      %6452 = vmatpush1.msra.mxu0 0.0
      %6453 = vmatprep.subr.mxu0 0.0
      %6454 = vmatpush1.msra.mxu0 0.0
      %6455 = vmatprep.subr.mxu0 0.0
      %6456 = vmatpush1.msra.mxu0 0.0
      %6457 = vmatprep.subr.mxu0 0.0
      %6458 = vmatpush1.msra.mxu0 0.0
      %6459 = vmatprep.subr.mxu0 0.0
      %6460 = vmatpush1.msra.mxu0 0.0
      %6461 = vmatprep.subr.mxu0 0.0
      %6462 = vmatpush1.msra.mxu0 0.0
      %6463 = vmatprep.subr.mxu0 0.0
      %6464 = vmatpush1.msra.mxu0 0.0
      %6465 = vmatprep.subr.mxu0 0.0
      %6466 = vmatpush1.msra.mxu0 0.0
      %6467 = vmatprep.subr.mxu0 0.0
      %6468 = vmatpush1.msra.mxu0 0.0
      %6469 = vmatprep.subr.mxu0 0.0
      %6470 = vmatpush1.msra.mxu0 0.0
      %6471 = vmatprep.subr.mxu0 0.0
      %6472 = vmatpush1.msra.mxu0 0.0
      %6473 = vmatprep.subr.mxu0 0.0
      %6474 = vmatpush1.msra.mxu0 0.0
      %6475 = vmatprep.subr.mxu0 0.0
      %6476 = vmatpush1.msra.mxu0 0.0
      %6477 = vmatprep.subr.mxu0 0.0
      %6478 = vmatpush1.msra.mxu0 0.0
      %6479 = vmatprep.subr.mxu0 0.0
      %6480 = vmatpush1.msra.mxu0 0.0
      %6481 = vmatprep.subr.mxu0 0.0
      %6482 = vmatpush1.msra.mxu0 0.0
      %6483 = vmatprep.subr.mxu0 0.0
      %6484 = vmatpush1.msra.mxu0 0.0
      %6485 = vmatprep.subr.mxu0 0.0
      %6486 = vmatpush1.msra.mxu0 0.0
      %6487 = vmatprep.subr.mxu0 0.0
      %6488 = vmatpush1.msra.mxu0 0.0
      %6489 = vmatprep.mubr.f32.mxu0 0.0
      %6490 = vmatmul.mubr.f32.gmra.mrb[0].mxu0 %v2643
      %v6491 = vpop.f32.mrb[0].mxu0
      %v6492 = vadd.f32 0.0, %v6491
      %v6493 = vpop.f32.mrb[0].mxu0
      %6494 = vdwg.mxu0
      %v6495 = vmul.f32 %v6492, %v947
      %v6497 = vsel %vm2280, %v6495, 0
      %6499 = vmatprep.subr.mxu0 0.0
      %6500 = vmatpush1.msra.mxu0 %v4999
      %6501 = vmatprep.subr.mxu0 0.0
      %6502 = vmatpush1.msra.mxu0 %v5000
      %6503 = vmatprep.subr.mxu0 0.0
      %6504 = vmatpush1.msra.mxu0 %v5001
      %6505 = vmatprep.subr.mxu0 0.0
      %6506 = vmatpush1.msra.mxu0 %v5002
      %6507 = vmatprep.subr.mxu0 0.0
      %6508 = vmatpush1.msra.mxu0 0.0
      %6509 = vmatprep.subr.mxu0 0.0
      %6510 = vmatpush1.msra.mxu0 0.0
      %6511 = vmatprep.subr.mxu0 0.0
      %6512 = vmatpush1.msra.mxu0 0.0
      %6513 = vmatprep.subr.mxu0 0.0
      %6514 = vmatpush1.msra.mxu0 0.0
      %6515 = vmatprep.subr.mxu0 0.0
      %6516 = vmatpush1.msra.mxu0 0.0
      %6517 = vmatprep.subr.mxu0 0.0
      %6518 = vmatpush1.msra.mxu0 0.0
      %6519 = vmatprep.subr.mxu0 0.0
      %6520 = vmatpush1.msra.mxu0 0.0
      %6521 = vmatprep.subr.mxu0 0.0
      %6522 = vmatpush1.msra.mxu0 0.0
      %6523 = vmatprep.subr.mxu0 0.0
      %6524 = vmatpush1.msra.mxu0 0.0
      %6525 = vmatprep.subr.mxu0 0.0
      %6526 = vmatpush1.msra.mxu0 0.0
      %6527 = vmatprep.subr.mxu0 0.0
      %6528 = vmatpush1.msra.mxu0 0.0
      %6529 = vmatprep.subr.mxu0 0.0
      %6530 = vmatpush1.msra.mxu0 0.0
      %6531 = vmatprep.subr.mxu0 0.0
      %6532 = vmatpush1.msra.mxu0 0.0
      %6533 = vmatprep.subr.mxu0 0.0
      %6534 = vmatpush1.msra.mxu0 0.0
      %6535 = vmatprep.subr.mxu0 0.0
      %6536 = vmatpush1.msra.mxu0 0.0
      %6537 = vmatprep.subr.mxu0 0.0
      %6538 = vmatpush1.msra.mxu0 0.0
      %6539 = vmatprep.subr.mxu0 0.0
      %6540 = vmatpush1.msra.mxu0 0.0
      %6541 = vmatprep.subr.mxu0 0.0
      %6542 = vmatpush1.msra.mxu0 0.0
      %6543 = vmatprep.subr.mxu0 0.0
      %6544 = vmatpush1.msra.mxu0 0.0
      %6545 = vmatprep.subr.mxu0 0.0
      %6546 = vmatpush1.msra.mxu0 0.0
      %6547 = vmatprep.subr.mxu0 0.0
      %6548 = vmatpush1.msra.mxu0 0.0
      %6549 = vmatprep.subr.mxu0 0.0
      %6550 = vmatpush1.msra.mxu0 0.0
      %6551 = vmatprep.subr.mxu0 0.0
      %6552 = vmatpush1.msra.mxu0 0.0
      %6553 = vmatprep.subr.mxu0 0.0
      %6554 = vmatpush1.msra.mxu0 0.0
      %6555 = vmatprep.subr.mxu0 0.0
      %6556 = vmatpush1.msra.mxu0 0.0
      %6557 = vmatprep.subr.mxu0 0.0
      %6558 = vmatpush1.msra.mxu0 0.0
      %6559 = vmatprep.subr.mxu0 0.0
      %6560 = vmatpush1.msra.mxu0 0.0
      %6561 = vmatprep.subr.mxu0 0.0
      %6562 = vmatpush1.msra.mxu0 0.0
      %6563 = vmatprep.mubr.f32.mxu0 0.0
      %6564 = vmatmul.mubr.f32.gmra.mrb[0].mxu0 %v6497
      %v6565 = vpop.f32.mrb[0].mxu0
      %v6566 = vadd.f32 0.0, %v6565
      %v6567 = vpop.f32.mrb[0].mxu0
      %6568 = vdwg.mxu0
      %v6570 = vsel %vm1563, %v4997, 0
      %6572 = vmatprep.subr.mxu0 0.0
      %6573 = vmatpush1.msra.mxu0 %v4992
      %6574 = vmatprep.subr.mxu0 0.0
      %6575 = vmatpush1.msra.mxu0 %v4993
      %6576 = vmatprep.subr.mxu0 0.0
      %6577 = vmatpush1.msra.mxu0 %v4994
      %6578 = vmatprep.subr.mxu0 0.0
      %6579 = vmatpush1.msra.mxu0 %v4995
      %6580 = vmatprep.subr.mxu0 0.0
      %6581 = vmatpush1.msra.mxu0 %v4996
      %6582 = vmatprep.subr.mxu0 0.0
      %6583 = vmatpush1.msra.mxu0 %v6570
      %6584 = vmatprep.subr.mxu0 0.0
      %6585 = vmatpush1.msra.mxu0 0.0
      %6586 = vmatprep.subr.mxu0 0.0
      %6587 = vmatpush1.msra.mxu0 0.0
      %6588 = vmatprep.subr.mxu0 0.0
      %6589 = vmatpush1.msra.mxu0 0.0
      %6590 = vmatprep.subr.mxu0 0.0
      %6591 = vmatpush1.msra.mxu0 0.0
      %6592 = vmatprep.subr.mxu0 0.0
      %6593 = vmatpush1.msra.mxu0 0.0
      %6594 = vmatprep.subr.mxu0 0.0
      %6595 = vmatpush1.msra.mxu0 0.0
      %6596 = vmatprep.subr.mxu0 0.0
      %6597 = vmatpush1.msra.mxu0 0.0
      %6598 = vmatprep.subr.mxu0 0.0
      %6599 = vmatpush1.msra.mxu0 0.0
      %6600 = vmatprep.subr.mxu0 0.0
      %6601 = vmatpush1.msra.mxu0 0.0
      %6602 = vmatprep.subr.mxu0 0.0
      %6603 = vmatpush1.msra.mxu0 0.0
      %6604 = vmatprep.subr.mxu0 0.0
      %6605 = vmatpush1.msra.mxu0 0.0
      %6606 = vmatprep.subr.mxu0 0.0
      %6607 = vmatpush1.msra.mxu0 0.0
      %6608 = vmatprep.subr.mxu0 0.0
      %6609 = vmatpush1.msra.mxu0 0.0
      %6610 = vmatprep.subr.mxu0 0.0
      %6611 = vmatpush1.msra.mxu0 0.0
      %6612 = vmatprep.subr.mxu0 0.0
      %6613 = vmatpush1.msra.mxu0 0.0
      %6614 = vmatprep.subr.mxu0 0.0
      %6615 = vmatpush1.msra.mxu0 0.0
      %6616 = vmatprep.subr.mxu0 0.0
      %6617 = vmatpush1.msra.mxu0 0.0
      %6618 = vmatprep.subr.mxu0 0.0
      %6619 = vmatpush1.msra.mxu0 0.0
      %6620 = vmatprep.subr.mxu0 0.0
      %6621 = vmatpush1.msra.mxu0 0.0
      %6622 = vmatprep.subr.mxu0 0.0
      %6623 = vmatpush1.msra.mxu0 0.0
      %6624 = vmatprep.subr.mxu0 0.0
      %6625 = vmatpush1.msra.mxu0 0.0
      %6626 = vmatprep.subr.mxu0 0.0
      %6627 = vmatpush1.msra.mxu0 0.0
      %6628 = vmatprep.subr.mxu0 0.0
      %6629 = vmatpush1.msra.mxu0 0.0
      %6630 = vmatprep.subr.mxu0 0.0
      %6631 = vmatpush1.msra.mxu0 0.0
      %6632 = vmatprep.subr.mxu0 0.0
      %6633 = vmatpush1.msra.mxu0 0.0
      %6634 = vmatprep.subr.mxu0 0.0
      %6635 = vmatpush1.msra.mxu0 0.0
      %6636 = vmatprep.mubr.f32.mxu0 0.0
      %6637 = vmatmul.mubr.f32.gmra.mrb[0].mxu0 %v5270
      %v6638 = vpop.f32.mrb[0].mxu0
      %v6639 = vadd.f32 %v6566, %v6638
      %v6640 = vpop.f32.mrb[0].mxu0
      %6641 = vdwg.mxu0
      %v6643 = vlaneseq
      %v6644 = vshrl.u32 %v6643, 7
      %v6645 = vsub.s32 0, %v6644
      %v6646 = vrot.slane %v5004, %v6645
      %v6648 = vadd.f32 %v6639, %v6646
      %v6649 = vmul.f32 %v6648, 0.5
      %v6650 = vtanh.pop %v6649
      %v6651 = vmul.f32 %v6650, 0.5
      %v6652 = vadd.f32 %v6651, 0.5
      %v6653 = vmul.f32 %v6648, %v6652
      %v6655 = vlaneseq
      %v6656 = vshrl.u32 %v6655, 7
      %v6657 = vsub.s32 0, %v6656
      %v6658 = vrot.slane %v5018, %v6657
      %v6661 = vsel %vm2999, %v6653, 0
      %v6664 = vsel %vm3003, %v5016, 0
      %6666 = vmatprep.subr.mxu0 0.0
      %6667 = vmatpush1.msra.mxu0 %v5006
      %6668 = vmatprep.subr.mxu0 0.0
      %6669 = vmatpush1.msra.mxu0 %v5007
      %6670 = vmatprep.subr.mxu0 0.0
      %6671 = vmatpush1.msra.mxu0 %v5008
      %6672 = vmatprep.subr.mxu0 0.0
      %6673 = vmatpush1.msra.mxu0 %v5009
      %6674 = vmatprep.subr.mxu0 0.0
      %6675 = vmatpush1.msra.mxu0 %v5010
      %6676 = vmatprep.subr.mxu0 0.0
      %6677 = vmatpush1.msra.mxu0 %v5011
      %6678 = vmatprep.subr.mxu0 0.0
      %6679 = vmatpush1.msra.mxu0 %v5012
      %6680 = vmatprep.subr.mxu0 0.0
      %6681 = vmatpush1.msra.mxu0 %v5013
      %6682 = vmatprep.subr.mxu0 0.0
      %6683 = vmatpush1.msra.mxu0 %v5014
      %6684 = vmatprep.subr.mxu0 0.0
      %6685 = vmatpush1.msra.mxu0 %v5015
      %6686 = vmatprep.subr.mxu0 0.0
      %6687 = vmatpush1.msra.mxu0 %v6664
      %6688 = vmatprep.subr.mxu0 0.0
      %6689 = vmatpush1.msra.mxu0 0.0
      %6690 = vmatprep.subr.mxu0 0.0
      %6691 = vmatpush1.msra.mxu0 0.0
      %6692 = vmatprep.subr.mxu0 0.0
      %6693 = vmatpush1.msra.mxu0 0.0
      %6694 = vmatprep.subr.mxu0 0.0
      %6695 = vmatpush1.msra.mxu0 0.0
      %6696 = vmatprep.subr.mxu0 0.0
      %6697 = vmatpush1.msra.mxu0 0.0
      %6698 = vmatprep.subr.mxu0 0.0
      %6699 = vmatpush1.msra.mxu0 0.0
      %6700 = vmatprep.subr.mxu0 0.0
      %6701 = vmatpush1.msra.mxu0 0.0
      %6702 = vmatprep.subr.mxu0 0.0
      %6703 = vmatpush1.msra.mxu0 0.0
      %6704 = vmatprep.subr.mxu0 0.0
      %6705 = vmatpush1.msra.mxu0 0.0
      %6706 = vmatprep.subr.mxu0 0.0
      %6707 = vmatpush1.msra.mxu0 0.0
      %6708 = vmatprep.subr.mxu0 0.0
      %6709 = vmatpush1.msra.mxu0 0.0
      %6710 = vmatprep.subr.mxu0 0.0
      %6711 = vmatpush1.msra.mxu0 0.0
      %6712 = vmatprep.subr.mxu0 0.0
      %6713 = vmatpush1.msra.mxu0 0.0
      %6714 = vmatprep.subr.mxu0 0.0
      %6715 = vmatpush1.msra.mxu0 0.0
      %6716 = vmatprep.subr.mxu0 0.0
      %6717 = vmatpush1.msra.mxu0 0.0
      %6718 = vmatprep.subr.mxu0 0.0
      %6719 = vmatpush1.msra.mxu0 0.0
      %6720 = vmatprep.subr.mxu0 0.0
      %6721 = vmatpush1.msra.mxu0 0.0
      %6722 = vmatprep.subr.mxu0 0.0
      %6723 = vmatpush1.msra.mxu0 0.0
      %6724 = vmatprep.subr.mxu0 0.0
      %6725 = vmatpush1.msra.mxu0 0.0
      %6726 = vmatprep.subr.mxu0 0.0
      %6727 = vmatpush1.msra.mxu0 0.0
      %6728 = vmatprep.subr.mxu0 0.0
      %6729 = vmatpush1.msra.mxu0 0.0
      %6730 = vmatprep.mubr.f32.mxu0 0.0
      %6731 = vmatmul.mubr.f32.gmra.mrb[0].mxu0 %v6661
      %v6732 = vpop.f32.mrb[0].mxu0
      %v6733 = vadd.f32 %v6658, %v6732
      %v6734 = vpop.f32.mrb[0].mxu0
      %6735 = vdwg.mxu0
      %v6736 = vmul.f32 %v3080, %v6733
      %v6737 = vadd.f32 %v4910, %v6736
      %s6738 = scalar_lea.vmem %s846, 288
      %v6739 = vld [vmem:[%s6738] sm:$0xff]
      %v6740 = vld [vmem:[%s6738 + $0x8] sm:$0xff]
      %v6741 = vld [vmem:[%s6738 + $0x10] sm:$0xff]
      %v6742 = vld [vmem:[%s6738 + $0x18] sm:$0xff]
      %v6743 = vld [vmem:[%s6738 + $0x20] sm:$0xff]
      %v6744 = vld [vmem:[%s6738 + $0x28] sm:$0xff]
      %v6745 = vld [vmem:[%s6738 + $0x30] sm:$0xff]
      %v6746 = vld [vmem:[%s6738 + $0x38] sm:$0xff]
      %v6747 = vld [vmem:[%s6738 + $0x40] sm:$0xff]
      %v6748 = vld [vmem:[%s6738 + $0x48] sm:$0xff]
      %v6749 = vld [vmem:[%s6738 + $0x50] sm:$0x1]
      %v6750 = vld [vmem:[%s6738 + $0x58] sm:$0x1]
      %s6751 = scalar_lea.vmem %s851, 288
      %v6752 = vld [vmem:[%s6751] sm:$0xff]
      %v6753 = vld [vmem:[%s6751 + $0x8] sm:$0xff]
      %v6754 = vld [vmem:[%s6751 + $0x10] sm:$0xff]
      %v6755 = vld [vmem:[%s6751 + $0x18] sm:$0xff]
      %v6756 = vld [vmem:[%s6751 + $0x20] sm:$0xff]
      %v6757 = vld [vmem:[%s6751 + $0x28] sm:$0xff]
      %v6758 = vld [vmem:[%s6751 + $0x30] sm:$0xff]
      %v6759 = vld [vmem:[%s6751 + $0x38] sm:$0xff]
      %v6760 = vld [vmem:[%s6751 + $0x40] sm:$0xff]
      %v6761 = vld [vmem:[%s6751 + $0x48] sm:$0xff]
      %v6762 = vld [vmem:[%s6751 + $0x50] sm:$0x1]
      %v6763 = vld [vmem:[%s6751 + $0x58] sm:$0x1]
      %s6764 = scalar_lea.vmem %s855, 6
      %v6765 = vld [vmem:[%s6764] sm:$0x3]
      %s6766 = scalar_lea.vmem %s859, 6
      %v6767 = vld [vmem:[%s6766] sm:$0x3]
      %s6768 = scalar_lea.vmem %s864, 504
      %v6769 = vld [vmem:[%s6768] sm:$0xff]
      %v6770 = vld [vmem:[%s6768 + $0x8] sm:$0xff]
      %v6771 = vld [vmem:[%s6768 + $0x10] sm:$0xff]
      %v6772 = vld [vmem:[%s6768 + $0x18] sm:$0xff]
      %v6773 = vld [vmem:[%s6768 + $0x20] sm:$0xff]
      %v6774 = vld [vmem:[%s6768 + $0x28] sm:$0xff]
      %v6775 = vld [vmem:[%s6768 + $0x30] sm:$0xff]
      %v6776 = vld [vmem:[%s6768 + $0x38] sm:$0xff]
      %v6777 = vld [vmem:[%s6768 + $0x40] sm:$0xff]
      %v6778 = vld [vmem:[%s6768 + $0x48] sm:$0xff]
      %v6779 = vld [vmem:[%s6768 + $0x50] sm:$0xff]
      %v6780 = vld [vmem:[%s6768 + $0x58] sm:$0xff]
      %v6781 = vld [vmem:[%s6768 + $0x60] sm:$0xff]
      %v6782 = vld [vmem:[%s6768 + $0x68] sm:$0xff]
      %v6783 = vld [vmem:[%s6768 + $0x70] sm:$0xff]
      %v6784 = vld [vmem:[%s6768 + $0x78] sm:$0xff]
      %v6785 = vld [vmem:[%s6768 + $0x80] sm:$0xff]
      %v6786 = vld [vmem:[%s6768 + $0x88] sm:$0xff]
      %v6787 = vld [vmem:[%s6768 + $0x90] sm:$0xff]
      %v6788 = vld [vmem:[%s6768 + $0x98] sm:$0xff]
      %v6789 = vld [vmem:[%s6768 + $0xa0] sm:$0x3f]
      %s6790 = scalar_lea.vmem %s868, 3
      %v6791 = vld [vmem:[%s6790] sm:$0x1]
      %s6792 = scalar_lea.vmem %s873, 96
      %v6793 = vld [vmem:[%s6792] sm:$0xff]
      %v6794 = vld [vmem:[%s6792 + $0x8] sm:$0xff]
      %v6795 = vld [vmem:[%s6792 + $0x10] sm:$0xff]
      %v6796 = vld [vmem:[%s6792 + $0x18] sm:$0xff]
      %s6797 = scalar_lea.vmem %s877, 3
      %v6798 = vld [vmem:[%s6797] sm:$0x1]
      %s6799 = scalar_lea.vmem %s882, 384
      %v6800 = vld [vmem:[%s6799] sm:$0xff]
      %v6801 = vld [vmem:[%s6799 + $0x8] sm:$0xff]
      %v6802 = vld [vmem:[%s6799 + $0x10] sm:$0xff]
      %v6803 = vld [vmem:[%s6799 + $0x18] sm:$0xff]
      %v6804 = vld [vmem:[%s6799 + $0x20] sm:$0xff]
      %v6805 = vld [vmem:[%s6799 + $0x28] sm:$0xff]
      %v6806 = vld [vmem:[%s6799 + $0x30] sm:$0xff]
      %v6807 = vld [vmem:[%s6799 + $0x38] sm:$0xff]
      %v6808 = vld [vmem:[%s6799 + $0x40] sm:$0xff]
      %v6809 = vld [vmem:[%s6799 + $0x48] sm:$0xff]
      %v6810 = vld [vmem:[%s6799 + $0x50] sm:$0xff]
      %v6811 = vld [vmem:[%s6799 + $0x58] sm:$0xff]
      %v6812 = vld [vmem:[%s6799 + $0x60] sm:$0xff]
      %v6813 = vld [vmem:[%s6799 + $0x68] sm:$0xff]
      %v6814 = vld [vmem:[%s6799 + $0x70] sm:$0xff]
      %v6815 = vld [vmem:[%s6799 + $0x78] sm:$0xff]
      %s6816 = scalar_lea.vmem %s886, 3
      %v6817 = vld [vmem:[%s6816] sm:$0x1]
      %6818 = vmatprep.subr.mxu0 0.0
      %6819 = vmatpush1.msra.mxu0 %v6416
      %6820 = vmatprep.subr.mxu0 0.0
      %6821 = vmatpush1.msra.mxu0 0.0
      %6822 = vmatprep.subr.mxu0 0.0
      %6823 = vmatpush1.msra.mxu0 0.0
      %6824 = vmatprep.subr.mxu0 0.0
      %6825 = vmatpush1.msra.mxu0 0.0
      %6826 = vmatprep.subr.mxu0 0.0
      %6827 = vmatpush1.msra.mxu0 0.0
      %6828 = vmatprep.subr.mxu0 0.0
      %6829 = vmatpush1.msra.mxu0 0.0
      %6830 = vmatprep.subr.mxu0 0.0
      %6831 = vmatpush1.msra.mxu0 0.0
      %6832 = vmatprep.subr.mxu0 0.0
      %6833 = vmatpush1.msra.mxu0 0.0
      %6834 = vmatprep.subr.mxu0 0.0
      %6835 = vmatpush1.msra.mxu0 0.0
      %6836 = vmatprep.subr.mxu0 0.0
      %6837 = vmatpush1.msra.mxu0 0.0
      %6838 = vmatprep.subr.mxu0 0.0
      %6839 = vmatpush1.msra.mxu0 0.0
      %6840 = vmatprep.subr.mxu0 0.0
      %6841 = vmatpush1.msra.mxu0 0.0
      %6842 = vmatprep.subr.mxu0 0.0
      %6843 = vmatpush1.msra.mxu0 0.0
      %6844 = vmatprep.subr.mxu0 0.0
      %6845 = vmatpush1.msra.mxu0 0.0
      %6846 = vmatprep.subr.mxu0 0.0
      %6847 = vmatpush1.msra.mxu0 0.0
      %6848 = vmatprep.subr.mxu0 0.0
      %6849 = vmatpush1.msra.mxu0 0.0
      %6850 = vmatprep.subr.mxu0 0.0
      %6851 = vmatpush1.msra.mxu0 0.0
      %6852 = vmatprep.subr.mxu0 0.0
      %6853 = vmatpush1.msra.mxu0 0.0
      %6854 = vmatprep.subr.mxu0 0.0
      %6855 = vmatpush1.msra.mxu0 0.0
      %6856 = vmatprep.subr.mxu0 0.0
      %6857 = vmatpush1.msra.mxu0 0.0
      %6858 = vmatprep.subr.mxu0 0.0
      %6859 = vmatpush1.msra.mxu0 0.0
      %6860 = vmatprep.subr.mxu0 0.0
      %6861 = vmatpush1.msra.mxu0 0.0
      %6862 = vmatprep.subr.mxu0 0.0
      %6863 = vmatpush1.msra.mxu0 0.0
      %6864 = vmatprep.subr.mxu0 0.0
      %6865 = vmatpush1.msra.mxu0 0.0
      %6866 = vmatprep.subr.mxu0 0.0
      %6867 = vmatpush1.msra.mxu0 0.0
      %6868 = vmatprep.subr.mxu0 0.0
      %6869 = vmatpush1.msra.mxu0 0.0
      %6870 = vmatprep.subr.mxu0 0.0
      %6871 = vmatpush1.msra.mxu0 0.0
      %6872 = vmatprep.subr.mxu0 0.0
      %6873 = vmatpush1.msra.mxu0 0.0
      %6874 = vmatprep.subr.mxu0 0.0
      %6875 = vmatpush1.msra.mxu0 0.0
      %6876 = vmatprep.subr.mxu0 0.0
      %6877 = vmatpush1.msra.mxu0 0.0
      %6878 = vmatprep.subr.mxu0 0.0
      %6879 = vmatpush1.msra.mxu0 0.0
      %6880 = vmatprep.subr.mxu0 0.0
      %6881 = vmatpush1.msra.mxu0 0.0
      %6882 = vmatprep.mubr.f32.mxu0 0.0
      %6883 = vmatmul.mubr.f32.gmra.mrb[0].mxu0 %v950
      %v6884 = vpop.f32.mrb[0].mxu0
      %v6885 = vadd.f32 0.0, %v6884
      %v6886 = vpop.f32.mrb[0].mxu0
      %6887 = vmatprep.mubr.f32.mxu0 0.0
      %6888 = vmatmul.mubr.f32.gmra.mrb[0].mxu0 %v953
      %v6889 = vpop.f32.mrb[0].mxu0
      %v6890 = vadd.f32 0.0, %v6889
      %v6891 = vpop.f32.mrb[0].mxu0
      %6892 = vmatprep.mubr.f32.mxu0 0.0
      %6893 = vmatmul.mubr.f32.gmra.mrb[0].mxu0 %v956
      %v6894 = vpop.f32.mrb[0].mxu0
      %v6895 = vadd.f32 0.0, %v6894
      %v6896 = vpop.f32.mrb[0].mxu0
      %6897 = vmatprep.mubr.f32.mxu0 0.0
      %6898 = vmatmul.mubr.f32.gmra.mrb[0].mxu0 %v959
      %v6899 = vpop.f32.mrb[0].mxu0
      %v6900 = vadd.f32 0.0, %v6899
      %v6901 = vpop.f32.mrb[0].mxu0
      %6902 = vmatprep.mubr.f32.mxu0 0.0
      %6903 = vmatmul.mubr.f32.gmra.mrb[0].mxu0 %v962
      %v6904 = vpop.f32.mrb[0].mxu0
      %v6905 = vadd.f32 0.0, %v6904
      %v6906 = vpop.f32.mrb[0].mxu0
      %6907 = vmatprep.mubr.f32.mxu0 0.0
      %6908 = vmatmul.mubr.f32.gmra.mrb[0].mxu0 %v965
      %v6909 = vpop.f32.mrb[0].mxu0
      %v6910 = vadd.f32 0.0, %v6909
      %v6911 = vpop.f32.mrb[0].mxu0
      %6912 = vmatprep.mubr.f32.mxu0 0.0
      %6913 = vmatmul.mubr.f32.gmra.mrb[0].mxu0 %v968
      %v6914 = vpop.f32.mrb[0].mxu0
      %v6915 = vadd.f32 0.0, %v6914
      %v6916 = vpop.f32.mrb[0].mxu0
      %6917 = vmatprep.mubr.f32.mxu0 0.0
      %6918 = vmatmul.mubr.f32.gmra.mrb[0].mxu0 %v971
      %v6919 = vpop.f32.mrb[0].mxu0
      %v6920 = vadd.f32 0.0, %v6919
      %v6921 = vpop.f32.mrb[0].mxu0
      %6922 = vdwg.mxu0
      %6923 = vmatprep.subr.mxu0 0.0
      %6924 = vmatpush1.msra.mxu0 %v6416
      %6925 = vmatprep.subr.mxu0 0.0
      %6926 = vmatpush1.msra.mxu0 0.0
      %6927 = vmatprep.subr.mxu0 0.0
      %6928 = vmatpush1.msra.mxu0 0.0
      %6929 = vmatprep.subr.mxu0 0.0
      %6930 = vmatpush1.msra.mxu0 0.0
      %6931 = vmatprep.subr.mxu0 0.0
      %6932 = vmatpush1.msra.mxu0 0.0
      %6933 = vmatprep.subr.mxu0 0.0
      %6934 = vmatpush1.msra.mxu0 0.0
      %6935 = vmatprep.subr.mxu0 0.0
      %6936 = vmatpush1.msra.mxu0 0.0
      %6937 = vmatprep.subr.mxu0 0.0
      %6938 = vmatpush1.msra.mxu0 0.0
      %6939 = vmatprep.subr.mxu0 0.0
      %6940 = vmatpush1.msra.mxu0 0.0
      %6941 = vmatprep.subr.mxu0 0.0
      %6942 = vmatpush1.msra.mxu0 0.0
      %6943 = vmatprep.subr.mxu0 0.0
      %6944 = vmatpush1.msra.mxu0 0.0
      %6945 = vmatprep.subr.mxu0 0.0
      %6946 = vmatpush1.msra.mxu0 0.0
      %6947 = vmatprep.subr.mxu0 0.0
      %6948 = vmatpush1.msra.mxu0 0.0
      %6949 = vmatprep.subr.mxu0 0.0
      %6950 = vmatpush1.msra.mxu0 0.0
      %6951 = vmatprep.subr.mxu0 0.0
      %6952 = vmatpush1.msra.mxu0 0.0
      %6953 = vmatprep.subr.mxu0 0.0
      %6954 = vmatpush1.msra.mxu0 0.0
      %6955 = vmatprep.subr.mxu0 0.0
      %6956 = vmatpush1.msra.mxu0 0.0
      %6957 = vmatprep.subr.mxu0 0.0
      %6958 = vmatpush1.msra.mxu0 0.0
      %6959 = vmatprep.subr.mxu0 0.0
      %6960 = vmatpush1.msra.mxu0 0.0
      %6961 = vmatprep.subr.mxu0 0.0
      %6962 = vmatpush1.msra.mxu0 0.0
      %6963 = vmatprep.subr.mxu0 0.0
      %6964 = vmatpush1.msra.mxu0 0.0
      %6965 = vmatprep.subr.mxu0 0.0
      %6966 = vmatpush1.msra.mxu0 0.0
      %6967 = vmatprep.subr.mxu0 0.0
      %6968 = vmatpush1.msra.mxu0 0.0
      %6969 = vmatprep.subr.mxu0 0.0
      %6970 = vmatpush1.msra.mxu0 0.0
      %6971 = vmatprep.subr.mxu0 0.0
      %6972 = vmatpush1.msra.mxu0 0.0
      %6973 = vmatprep.subr.mxu0 0.0
      %6974 = vmatpush1.msra.mxu0 0.0
      %6975 = vmatprep.subr.mxu0 0.0
      %6976 = vmatpush1.msra.mxu0 0.0
      %6977 = vmatprep.subr.mxu0 0.0
      %6978 = vmatpush1.msra.mxu0 0.0
      %6979 = vmatprep.subr.mxu0 0.0
      %6980 = vmatpush1.msra.mxu0 0.0
      %6981 = vmatprep.subr.mxu0 0.0
      %6982 = vmatpush1.msra.mxu0 0.0
      %6983 = vmatprep.subr.mxu0 0.0
      %6984 = vmatpush1.msra.mxu0 0.0
      %6985 = vmatprep.subr.mxu0 0.0
      %6986 = vmatpush1.msra.mxu0 0.0
      %6987 = vmatprep.mubr.f32.mxu0 0.0
      %6988 = vmatmul.mubr.f32.gmra.mrb[0].mxu0 %v1079
      %v6989 = vpop.f32.mrb[0].mxu0
      %v6990 = vadd.f32 0.0, %v6989
      %v6991 = vpop.f32.mrb[0].mxu0
      %6992 = vmatprep.mubr.f32.mxu0 0.0
      %6993 = vmatmul.mubr.f32.gmra.mrb[0].mxu0 %v1082
      %v6994 = vpop.f32.mrb[0].mxu0
      %v6995 = vadd.f32 0.0, %v6994
      %v6996 = vpop.f32.mrb[0].mxu0
      %6997 = vmatprep.mubr.f32.mxu0 0.0
      %6998 = vmatmul.mubr.f32.gmra.mrb[0].mxu0 %v1085
      %v6999 = vpop.f32.mrb[0].mxu0
      %v7000 = vadd.f32 0.0, %v6999
      %v7001 = vpop.f32.mrb[0].mxu0
      %7002 = vmatprep.mubr.f32.mxu0 0.0
      %7003 = vmatmul.mubr.f32.gmra.mrb[0].mxu0 %v1088
      %v7004 = vpop.f32.mrb[0].mxu0
      %v7005 = vadd.f32 0.0, %v7004
      %v7006 = vpop.f32.mrb[0].mxu0
      %7007 = vmatprep.mubr.f32.mxu0 0.0
      %7008 = vmatmul.mubr.f32.gmra.mrb[0].mxu0 %v1091
      %v7009 = vpop.f32.mrb[0].mxu0
      %v7010 = vadd.f32 0.0, %v7009
      %v7011 = vpop.f32.mrb[0].mxu0
      %7012 = vmatprep.mubr.f32.mxu0 0.0
      %7013 = vmatmul.mubr.f32.gmra.mrb[0].mxu0 %v1094
      %v7014 = vpop.f32.mrb[0].mxu0
      %v7015 = vadd.f32 0.0, %v7014
      %v7016 = vpop.f32.mrb[0].mxu0
      %7017 = vmatprep.mubr.f32.mxu0 0.0
      %7018 = vmatmul.mubr.f32.gmra.mrb[0].mxu0 %v1097
      %v7019 = vpop.f32.mrb[0].mxu0
      %v7020 = vadd.f32 0.0, %v7019
      %v7021 = vpop.f32.mrb[0].mxu0
      %7022 = vmatprep.mubr.f32.mxu0 0.0
      %7023 = vmatmul.mubr.f32.gmra.mrb[0].mxu0 %v1100
      %v7024 = vpop.f32.mrb[0].mxu0
      %v7025 = vadd.f32 0.0, %v7024
      %v7026 = vpop.f32.mrb[0].mxu0
      %7027 = vdwg.mxu0
      %v7028 = vsub.f32 %v6885, %v6990
      %v7029 = vsub.f32 %v6890, %v6995
      %v7030 = vsub.f32 %v6895, %v7000
      %v7031 = vsub.f32 %v6900, %v7005
      %v7032 = vsub.f32 %v6905, %v7010
      %v7033 = vsub.f32 %v6910, %v7015
      %v7034 = vsub.f32 %v6915, %v7020
      %v7035 = vsub.f32 %v6920, %v7025
      %v7036 = vmul.f32 %v7028, %v7028
      %v7037 = vmul.f32 %v7029, %v7029
      %v7038 = vmul.f32 %v7030, %v7030
      %v7039 = vmul.f32 %v7031, %v7031
      %v7040 = vmul.f32 %v7032, %v7032
      %v7041 = vmul.f32 %v7033, %v7033
      %v7042 = vmul.f32 %v7034, %v7034
      %v7043 = vmul.f32 %v7035, %v7035
      %v7044 = vsel %vm1534, %v7036, 0.0
      %7045 = vadd.xlane.f32.xlu0 %v7044
      %v7046 = vpop.xlane.xlu0 %7045
      %v7047 = vsel %vm1534, %v7037, 0.0
      %7048 = vadd.xlane.f32.xlu0 %v7047
      %v7049 = vpop.xlane.xlu0 %7048
      %v7050 = vsel %vm1534, %v7038, 0.0
      %7051 = vadd.xlane.f32.xlu0 %v7050
      %v7052 = vpop.xlane.xlu0 %7051
      %v7053 = vsel %vm1534, %v7039, 0.0
      %7054 = vadd.xlane.f32.xlu0 %v7053
      %v7055 = vpop.xlane.xlu0 %7054
      %v7056 = vsel %vm1534, %v7040, 0.0
      %7057 = vadd.xlane.f32.xlu0 %v7056
      %v7058 = vpop.xlane.xlu0 %7057
      %v7059 = vsel %vm1534, %v7041, 0.0
      %7060 = vadd.xlane.f32.xlu0 %v7059
      %v7061 = vpop.xlane.xlu0 %7060
      %v7062 = vsel %vm1534, %v7042, 0.0
      %7063 = vadd.xlane.f32.xlu0 %v7062
      %v7064 = vpop.xlane.xlu0 %7063
      %v7065 = vsel %vm1534, %v7043, 0.0
      %7066 = vadd.xlane.f32.xlu0 %v7065
      %v7067 = vpop.xlane.xlu0 %7066
      %v7069 = vsel %vm1559, %v6737, 0
      %v7072 = vsel %vm1563, %v6749, 0
      %v7075 = vsel %vm1563, %v6750, 0
      %7077 = vmatprep.subr.mxu0 %v6740
      %7078 = vmatpush1.msra.mxu0 %v6739
      %7079 = vmatprep.subr.mxu0 %v6742
      %7080 = vmatpush1.msra.mxu0 %v6741
      %7081 = vmatprep.subr.mxu0 %v6744
      %7082 = vmatpush1.msra.mxu0 %v6743
      %7083 = vmatprep.subr.mxu0 %v6746
      %7084 = vmatpush1.msra.mxu0 %v6745
      %7085 = vmatprep.subr.mxu0 %v6748
      %7086 = vmatpush1.msra.mxu0 %v6747
      %7087 = vmatprep.subr.mxu0 %v7075
      %7088 = vmatpush1.msra.mxu0 %v7072
      %7089 = vmatprep.subr.mxu0 0.0
      %7090 = vmatpush1.msra.mxu0 0.0
      %7091 = vmatprep.subr.mxu0 0.0
      %7092 = vmatpush1.msra.mxu0 0.0
      %7093 = vmatprep.subr.mxu0 0.0
      %7094 = vmatpush1.msra.mxu0 0.0
      %7095 = vmatprep.subr.mxu0 0.0
      %7096 = vmatpush1.msra.mxu0 0.0
      %7097 = vmatprep.subr.mxu0 0.0
      %7098 = vmatpush1.msra.mxu0 0.0
      %7099 = vmatprep.subr.mxu0 0.0
      %7100 = vmatpush1.msra.mxu0 0.0
      %7101 = vmatprep.subr.mxu0 0.0
      %7102 = vmatpush1.msra.mxu0 0.0
      %7103 = vmatprep.subr.mxu0 0.0
      %7104 = vmatpush1.msra.mxu0 0.0
      %7105 = vmatprep.subr.mxu0 0.0
      %7106 = vmatpush1.msra.mxu0 0.0
      %7107 = vmatprep.subr.mxu0 0.0
      %7108 = vmatpush1.msra.mxu0 0.0
      %7109 = vmatprep.subr.mxu0 0.0
      %7110 = vmatpush1.msra.mxu0 0.0
      %7111 = vmatprep.subr.mxu0 0.0
      %7112 = vmatpush1.msra.mxu0 0.0
      %7113 = vmatprep.subr.mxu0 0.0
      %7114 = vmatpush1.msra.mxu0 0.0
      %7115 = vmatprep.subr.mxu0 0.0
      %7116 = vmatpush1.msra.mxu0 0.0
      %7117 = vmatprep.subr.mxu0 0.0
      %7118 = vmatpush1.msra.mxu0 0.0
      %7119 = vmatprep.subr.mxu0 0.0
      %7120 = vmatpush1.msra.mxu0 0.0
      %7121 = vmatprep.subr.mxu0 0.0
      %7122 = vmatpush1.msra.mxu0 0.0
      %7123 = vmatprep.subr.mxu0 0.0
      %7124 = vmatpush1.msra.mxu0 0.0
      %7125 = vmatprep.subr.mxu0 0.0
      %7126 = vmatpush1.msra.mxu0 0.0
      %7127 = vmatprep.subr.mxu0 0.0
      %7128 = vmatpush1.msra.mxu0 0.0
      %7129 = vmatprep.subr.mxu0 0.0
      %7130 = vmatpush1.msra.mxu0 0.0
      %7131 = vmatprep.subr.mxu0 0.0
      %7132 = vmatpush1.msra.mxu0 0.0
      %7133 = vmatprep.subr.mxu0 0.0
      %7134 = vmatpush1.msra.mxu0 0.0
      %7135 = vmatprep.subr.mxu0 0.0
      %7136 = vmatpush1.msra.mxu0 0.0
      %7137 = vmatprep.subr.mxu0 0.0
      %7138 = vmatpush1.msra.mxu0 0.0
      %7139 = vmatprep.subr.mxu0 0.0
      %7140 = vmatpush1.msra.mxu0 0.0
      %7141 = vmatprep.mubr.f32.mxu0 0.0
      %7142 = vmatmul.mubr.f32.gmra.mrb[0].mxu0 %v7069
      %v7143 = vpop.f32.mrb[0].mxu0
      %v7144 = vadd.f32 0.0, %v7143
      %v7145 = vpop.f32.mrb[0].mxu0
      %v7146 = vadd.f32 0.0, %v7145
      %7147 = vdwg.mxu0
      %v7149 = vsel %vm1563, %v6762, 0
      %v7152 = vsel %vm1563, %v6763, 0
      %7154 = vmatprep.subr.mxu0 %v6753
      %7155 = vmatpush1.msra.mxu0 %v6752
      %7156 = vmatprep.subr.mxu0 %v6755
      %7157 = vmatpush1.msra.mxu0 %v6754
      %7158 = vmatprep.subr.mxu0 %v6757
      %7159 = vmatpush1.msra.mxu0 %v6756
      %7160 = vmatprep.subr.mxu0 %v6759
      %7161 = vmatpush1.msra.mxu0 %v6758
      %7162 = vmatprep.subr.mxu0 %v6761
      %7163 = vmatpush1.msra.mxu0 %v6760
      %7164 = vmatprep.subr.mxu0 %v7152
      %7165 = vmatpush1.msra.mxu0 %v7149
      %7166 = vmatprep.subr.mxu0 0.0
      %7167 = vmatpush1.msra.mxu0 0.0
      %7168 = vmatprep.subr.mxu0 0.0
      %7169 = vmatpush1.msra.mxu0 0.0
      %7170 = vmatprep.subr.mxu0 0.0
      %7171 = vmatpush1.msra.mxu0 0.0
      %7172 = vmatprep.subr.mxu0 0.0
      %7173 = vmatpush1.msra.mxu0 0.0
      %7174 = vmatprep.subr.mxu0 0.0
      %7175 = vmatpush1.msra.mxu0 0.0
      %7176 = vmatprep.subr.mxu0 0.0
      %7177 = vmatpush1.msra.mxu0 0.0
      %7178 = vmatprep.subr.mxu0 0.0
      %7179 = vmatpush1.msra.mxu0 0.0
      %7180 = vmatprep.subr.mxu0 0.0
      %7181 = vmatpush1.msra.mxu0 0.0
      %7182 = vmatprep.subr.mxu0 0.0
      %7183 = vmatpush1.msra.mxu0 0.0
      %7184 = vmatprep.subr.mxu0 0.0
      %7185 = vmatpush1.msra.mxu0 0.0
      %7186 = vmatprep.subr.mxu0 0.0
      %7187 = vmatpush1.msra.mxu0 0.0
      %7188 = vmatprep.subr.mxu0 0.0
      %7189 = vmatpush1.msra.mxu0 0.0
      %7190 = vmatprep.subr.mxu0 0.0
      %7191 = vmatpush1.msra.mxu0 0.0
      %7192 = vmatprep.subr.mxu0 0.0
      %7193 = vmatpush1.msra.mxu0 0.0
      %7194 = vmatprep.subr.mxu0 0.0
      %7195 = vmatpush1.msra.mxu0 0.0
      %7196 = vmatprep.subr.mxu0 0.0
      %7197 = vmatpush1.msra.mxu0 0.0
      %7198 = vmatprep.subr.mxu0 0.0
      %7199 = vmatpush1.msra.mxu0 0.0
      %7200 = vmatprep.subr.mxu0 0.0
      %7201 = vmatpush1.msra.mxu0 0.0
      %7202 = vmatprep.subr.mxu0 0.0
      %7203 = vmatpush1.msra.mxu0 0.0
      %7204 = vmatprep.subr.mxu0 0.0
      %7205 = vmatpush1.msra.mxu0 0.0
      %7206 = vmatprep.subr.mxu0 0.0
      %7207 = vmatpush1.msra.mxu0 0.0
      %7208 = vmatprep.subr.mxu0 0.0
      %7209 = vmatpush1.msra.mxu0 0.0
      %7210 = vmatprep.subr.mxu0 0.0
      %7211 = vmatpush1.msra.mxu0 0.0
      %7212 = vmatprep.subr.mxu0 0.0
      %7213 = vmatpush1.msra.mxu0 0.0
      %7214 = vmatprep.subr.mxu0 0.0
      %7215 = vmatpush1.msra.mxu0 0.0
      %7216 = vmatprep.subr.mxu0 0.0
      %7217 = vmatpush1.msra.mxu0 0.0
      %7218 = vmatprep.mubr.f32.mxu0 0.0
      %7219 = vmatmul.mubr.f32.gmra.mrb[0].mxu0 %v7069
      %v7220 = vpop.f32.mrb[0].mxu0
      %v7221 = vadd.f32 0.0, %v7220
      %v7222 = vpop.f32.mrb[0].mxu0
      %v7223 = vadd.f32 0.0, %v7222
      %7224 = vdwg.mxu0
      %7225 = vmatprep.subr.mxu0 %v7223
      %7226 = vmatpush1.msra.mxu0 %v7221
      %7227 = vmatprep.subr.mxu0 0.0
      %7228 = vmatpush1.msra.mxu0 0.0
      %7229 = vmatprep.subr.mxu0 0.0
      %7230 = vmatpush1.msra.mxu0 0.0
      %7231 = vmatprep.subr.mxu0 0.0
      %7232 = vmatpush1.msra.mxu0 0.0
      %7233 = vmatprep.subr.mxu0 0.0
      %7234 = vmatpush1.msra.mxu0 0.0
      %7235 = vmatprep.subr.mxu0 0.0
      %7236 = vmatpush1.msra.mxu0 0.0
      %7237 = vmatprep.subr.mxu0 0.0
      %7238 = vmatpush1.msra.mxu0 0.0
      %7239 = vmatprep.subr.mxu0 0.0
      %7240 = vmatpush1.msra.mxu0 0.0
      %7241 = vmatprep.subr.mxu0 0.0
      %7242 = vmatpush1.msra.mxu0 0.0
      %7243 = vmatprep.subr.mxu0 0.0
      %7244 = vmatpush1.msra.mxu0 0.0
      %7245 = vmatprep.subr.mxu0 0.0
      %7246 = vmatpush1.msra.mxu0 0.0
      %7247 = vmatprep.subr.mxu0 0.0
      %7248 = vmatpush1.msra.mxu0 0.0
      %7249 = vmatprep.subr.mxu0 0.0
      %7250 = vmatpush1.msra.mxu0 0.0
      %7251 = vmatprep.subr.mxu0 0.0
      %7252 = vmatpush1.msra.mxu0 0.0
      %7253 = vmatprep.subr.mxu0 0.0
      %7254 = vmatpush1.msra.mxu0 0.0
      %7255 = vmatprep.subr.mxu0 0.0
      %7256 = vmatpush1.msra.mxu0 0.0
      %7257 = vmatprep.subr.mxu0 0.0
      %7258 = vmatpush1.msra.mxu0 0.0
      %7259 = vmatprep.subr.mxu0 0.0
      %7260 = vmatpush1.msra.mxu0 0.0
      %7261 = vmatprep.subr.mxu0 0.0
      %7262 = vmatpush1.msra.mxu0 0.0
      %7263 = vmatprep.subr.mxu0 0.0
      %7264 = vmatpush1.msra.mxu0 0.0
      %7265 = vmatprep.subr.mxu0 0.0
      %7266 = vmatpush1.msra.mxu0 0.0
      %7267 = vmatprep.subr.mxu0 0.0
      %7268 = vmatpush1.msra.mxu0 0.0
      %7269 = vmatprep.subr.mxu0 0.0
      %7270 = vmatpush1.msra.mxu0 0.0
      %7271 = vmatprep.subr.mxu0 0.0
      %7272 = vmatpush1.msra.mxu0 0.0
      %7273 = vmatprep.subr.mxu0 0.0
      %7274 = vmatpush1.msra.mxu0 0.0
      %7275 = vmatprep.subr.mxu0 0.0
      %7276 = vmatpush1.msra.mxu0 0.0
      %7277 = vmatprep.subr.mxu0 0.0
      %7278 = vmatpush1.msra.mxu0 0.0
      %7279 = vmatprep.subr.mxu0 0.0
      %7280 = vmatpush1.msra.mxu0 0.0
      %7281 = vmatprep.subr.mxu0 0.0
      %7282 = vmatpush1.msra.mxu0 0.0
      %7283 = vmatprep.subr.mxu0 0.0
      %7284 = vmatpush1.msra.mxu0 0.0
      %7285 = vmatprep.subr.mxu0 0.0
      %7286 = vmatpush1.msra.mxu0 0.0
      %7287 = vmatprep.subr.mxu0 0.0
      %7288 = vmatpush1.msra.mxu0 0.0
      %7289 = vmatprep.mubr.f32.mxu0 0.0
      %7290 = vmatmul.mubr.f32.gmra.mrb[0].mxu0 %v1079
      %v7291 = vpop.f32.mrb[0].mxu0
      %v7292 = vadd.f32 0.0, %v7291
      %v7293 = vpop.f32.mrb[0].mxu0
      %v7294 = vadd.f32 0.0, %v7293
      %7295 = vmatprep.mubr.f32.mxu0 0.0
      %7296 = vmatmul.mubr.f32.gmra.mrb[0].mxu0 %v1082
      %v7297 = vpop.f32.mrb[0].mxu0
      %v7298 = vadd.f32 0.0, %v7297
      %v7299 = vpop.f32.mrb[0].mxu0
      %v7300 = vadd.f32 0.0, %v7299
      %7301 = vmatprep.mubr.f32.mxu0 0.0
      %7302 = vmatmul.mubr.f32.gmra.mrb[0].mxu0 %v1085
      %v7303 = vpop.f32.mrb[0].mxu0
      %v7304 = vadd.f32 0.0, %v7303
      %v7305 = vpop.f32.mrb[0].mxu0
      %v7306 = vadd.f32 0.0, %v7305
      %7307 = vmatprep.mubr.f32.mxu0 0.0
      %7308 = vmatmul.mubr.f32.gmra.mrb[0].mxu0 %v1088
      %v7309 = vpop.f32.mrb[0].mxu0
      %v7310 = vadd.f32 0.0, %v7309
      %v7311 = vpop.f32.mrb[0].mxu0
      %v7312 = vadd.f32 0.0, %v7311
      %7313 = vmatprep.mubr.f32.mxu0 0.0
      %7314 = vmatmul.mubr.f32.gmra.mrb[0].mxu0 %v1091
      %v7315 = vpop.f32.mrb[0].mxu0
      %v7316 = vadd.f32 0.0, %v7315
      %v7317 = vpop.f32.mrb[0].mxu0
      %v7318 = vadd.f32 0.0, %v7317
      %7319 = vmatprep.mubr.f32.mxu0 0.0
      %7320 = vmatmul.mubr.f32.gmra.mrb[0].mxu0 %v1094
      %v7321 = vpop.f32.mrb[0].mxu0
      %v7322 = vadd.f32 0.0, %v7321
      %v7323 = vpop.f32.mrb[0].mxu0
      %v7324 = vadd.f32 0.0, %v7323
      %7325 = vmatprep.mubr.f32.mxu0 0.0
      %7326 = vmatmul.mubr.f32.gmra.mrb[0].mxu0 %v1097
      %v7327 = vpop.f32.mrb[0].mxu0
      %v7328 = vadd.f32 0.0, %v7327
      %v7329 = vpop.f32.mrb[0].mxu0
      %v7330 = vadd.f32 0.0, %v7329
      %7331 = vmatprep.mubr.f32.mxu0 0.0
      %7332 = vmatmul.mubr.f32.gmra.mrb[0].mxu0 %v1100
      %v7333 = vpop.f32.mrb[0].mxu0
      %v7334 = vadd.f32 0.0, %v7333
      %v7335 = vpop.f32.mrb[0].mxu0
      %v7336 = vadd.f32 0.0, %v7335
      %7337 = vdwg.mxu0
      %7338 = vmatprep.subr.mxu0 %v7146
      %7339 = vmatpush1.msra.mxu0 %v7144
      %7340 = vmatprep.subr.mxu0 0.0
      %7341 = vmatpush1.msra.mxu0 0.0
      %7342 = vmatprep.subr.mxu0 0.0
      %7343 = vmatpush1.msra.mxu0 0.0
      %7344 = vmatprep.subr.mxu0 0.0
      %7345 = vmatpush1.msra.mxu0 0.0
      %7346 = vmatprep.subr.mxu0 0.0
      %7347 = vmatpush1.msra.mxu0 0.0
      %7348 = vmatprep.subr.mxu0 0.0
      %7349 = vmatpush1.msra.mxu0 0.0
      %7350 = vmatprep.subr.mxu0 0.0
      %7351 = vmatpush1.msra.mxu0 0.0
      %7352 = vmatprep.subr.mxu0 0.0
      %7353 = vmatpush1.msra.mxu0 0.0
      %7354 = vmatprep.subr.mxu0 0.0
      %7355 = vmatpush1.msra.mxu0 0.0
      %7356 = vmatprep.subr.mxu0 0.0
      %7357 = vmatpush1.msra.mxu0 0.0
      %7358 = vmatprep.subr.mxu0 0.0
      %7359 = vmatpush1.msra.mxu0 0.0
      %7360 = vmatprep.subr.mxu0 0.0
      %7361 = vmatpush1.msra.mxu0 0.0
      %7362 = vmatprep.subr.mxu0 0.0
      %7363 = vmatpush1.msra.mxu0 0.0
      %7364 = vmatprep.subr.mxu0 0.0
      %7365 = vmatpush1.msra.mxu0 0.0
      %7366 = vmatprep.subr.mxu0 0.0
      %7367 = vmatpush1.msra.mxu0 0.0
      %7368 = vmatprep.subr.mxu0 0.0
      %7369 = vmatpush1.msra.mxu0 0.0
      %7370 = vmatprep.subr.mxu0 0.0
      %7371 = vmatpush1.msra.mxu0 0.0
      %7372 = vmatprep.subr.mxu0 0.0
      %7373 = vmatpush1.msra.mxu0 0.0
      %7374 = vmatprep.subr.mxu0 0.0
      %7375 = vmatpush1.msra.mxu0 0.0
      %7376 = vmatprep.subr.mxu0 0.0
      %7377 = vmatpush1.msra.mxu0 0.0
      %7378 = vmatprep.subr.mxu0 0.0
      %7379 = vmatpush1.msra.mxu0 0.0
      %7380 = vmatprep.subr.mxu0 0.0
      %7381 = vmatpush1.msra.mxu0 0.0
      %7382 = vmatprep.subr.mxu0 0.0
      %7383 = vmatpush1.msra.mxu0 0.0
      %7384 = vmatprep.subr.mxu0 0.0
      %7385 = vmatpush1.msra.mxu0 0.0
      %7386 = vmatprep.subr.mxu0 0.0
      %7387 = vmatpush1.msra.mxu0 0.0
      %7388 = vmatprep.subr.mxu0 0.0
      %7389 = vmatpush1.msra.mxu0 0.0
      %7390 = vmatprep.subr.mxu0 0.0
      %7391 = vmatpush1.msra.mxu0 0.0
      %7392 = vmatprep.subr.mxu0 0.0
      %7393 = vmatpush1.msra.mxu0 0.0
      %7394 = vmatprep.subr.mxu0 0.0
      %7395 = vmatpush1.msra.mxu0 0.0
      %7396 = vmatprep.subr.mxu0 0.0
      %7397 = vmatpush1.msra.mxu0 0.0
      %7398 = vmatprep.subr.mxu0 0.0
      %7399 = vmatpush1.msra.mxu0 0.0
      %7400 = vmatprep.subr.mxu0 0.0
      %7401 = vmatpush1.msra.mxu0 0.0
      %7402 = vmatprep.mubr.f32.mxu0 0.0
      %7403 = vmatmul.mubr.f32.gmra.mrb[0].mxu0 %v950
      %v7404 = vpop.f32.mrb[0].mxu0
      %v7405 = vadd.f32 %v7292, %v7404
      %v7406 = vpop.f32.mrb[0].mxu0
      %v7407 = vadd.f32 %v7294, %v7406
      %7408 = vmatprep.mubr.f32.mxu0 0.0
      %7409 = vmatmul.mubr.f32.gmra.mrb[0].mxu0 %v953
      %v7410 = vpop.f32.mrb[0].mxu0
      %v7411 = vadd.f32 %v7298, %v7410
      %v7412 = vpop.f32.mrb[0].mxu0
      %v7413 = vadd.f32 %v7300, %v7412
      %7414 = vmatprep.mubr.f32.mxu0 0.0
      %7415 = vmatmul.mubr.f32.gmra.mrb[0].mxu0 %v956
      %v7416 = vpop.f32.mrb[0].mxu0
      %v7417 = vadd.f32 %v7304, %v7416
      %v7418 = vpop.f32.mrb[0].mxu0
      %v7419 = vadd.f32 %v7306, %v7418
      %7420 = vmatprep.mubr.f32.mxu0 0.0
      %7421 = vmatmul.mubr.f32.gmra.mrb[0].mxu0 %v959
      %v7422 = vpop.f32.mrb[0].mxu0
      %v7423 = vadd.f32 %v7310, %v7422
      %v7424 = vpop.f32.mrb[0].mxu0
      %v7425 = vadd.f32 %v7312, %v7424
      %7426 = vmatprep.mubr.f32.mxu0 0.0
      %7427 = vmatmul.mubr.f32.gmra.mrb[0].mxu0 %v962
      %v7428 = vpop.f32.mrb[0].mxu0
      %v7429 = vadd.f32 %v7316, %v7428
      %v7430 = vpop.f32.mrb[0].mxu0
      %v7431 = vadd.f32 %v7318, %v7430
      %7432 = vmatprep.mubr.f32.mxu0 0.0
      %7433 = vmatmul.mubr.f32.gmra.mrb[0].mxu0 %v965
      %v7434 = vpop.f32.mrb[0].mxu0
      %v7435 = vadd.f32 %v7322, %v7434
      %v7436 = vpop.f32.mrb[0].mxu0
      %v7437 = vadd.f32 %v7324, %v7436
      %7438 = vmatprep.mubr.f32.mxu0 0.0
      %7439 = vmatmul.mubr.f32.gmra.mrb[0].mxu0 %v968
      %v7440 = vpop.f32.mrb[0].mxu0
      %v7441 = vadd.f32 %v7328, %v7440
      %v7442 = vpop.f32.mrb[0].mxu0
      %v7443 = vadd.f32 %v7330, %v7442
      %7444 = vmatprep.mubr.f32.mxu0 0.0
      %7445 = vmatmul.mubr.f32.gmra.mrb[0].mxu0 %v971
      %v7446 = vpop.f32.mrb[0].mxu0
      %v7447 = vadd.f32 %v7334, %v7446
      %v7448 = vpop.f32.mrb[0].mxu0
      %v7449 = vadd.f32 %v7336, %v7448
      %7450 = vdwg.mxu0
      %v7452 = vlaneseq
      %v7453 = vshrl.u32 %v7452, 7
      %v7454 = vsub.s32 0, %v7453
      %v7455 = vrot.slane %v6765, %v7454
      %v7456 = vlaneseq
      %v7457 = vshrl.u32 %v7456, 7
      %v7458 = vsub.s32 1, %v7457
      %v7459 = vrot.slane %v6765, %v7458
      %v7462 = vmul.f32 %v7046, %v7455
      %v7463 = vmul.f32 %v7046, %v7459
      %v7464 = vmul.f32 %v7049, %v7455
      %v7465 = vmul.f32 %v7049, %v7459
      %v7466 = vmul.f32 %v7052, %v7455
      %v7467 = vmul.f32 %v7052, %v7459
      %v7468 = vmul.f32 %v7055, %v7455
      %v7469 = vmul.f32 %v7055, %v7459
      %v7470 = vmul.f32 %v7058, %v7455
      %v7471 = vmul.f32 %v7058, %v7459
      %v7472 = vmul.f32 %v7061, %v7455
      %v7473 = vmul.f32 %v7061, %v7459
      %v7474 = vmul.f32 %v7064, %v7455
      %v7475 = vmul.f32 %v7064, %v7459
      %v7476 = vmul.f32 %v7067, %v7455
      %v7477 = vmul.f32 %v7067, %v7459
      %v7478 = vadd.f32 %v7405, %v7462
      %v7479 = vadd.f32 %v7407, %v7463
      %v7480 = vadd.f32 %v7411, %v7464
      %v7481 = vadd.f32 %v7413, %v7465
      %v7482 = vadd.f32 %v7417, %v7466
      %v7483 = vadd.f32 %v7419, %v7467
      %v7484 = vadd.f32 %v7423, %v7468
      %v7485 = vadd.f32 %v7425, %v7469
      %v7486 = vadd.f32 %v7429, %v7470
      %v7487 = vadd.f32 %v7431, %v7471
      %v7488 = vadd.f32 %v7435, %v7472
      %v7489 = vadd.f32 %v7437, %v7473
      %v7490 = vadd.f32 %v7441, %v7474
      %v7491 = vadd.f32 %v7443, %v7475
      %v7492 = vadd.f32 %v7447, %v7476
      %v7493 = vadd.f32 %v7449, %v7477
      %v7495 = vlaneseq
      %v7496 = vshrl.u32 %v7495, 7
      %v7497 = vsub.s32 0, %v7496
      %v7498 = vrot.slane %v6767, %v7497
      %v7499 = vlaneseq
      %v7500 = vshrl.u32 %v7499, 7
      %v7501 = vsub.s32 1, %v7500
      %v7502 = vrot.slane %v6767, %v7501
      %v7505 = vadd.f32 %v7478, %v7498
      %v7506 = vadd.f32 %v7479, %v7502
      %v7507 = vadd.f32 %v7480, %v7498
      %v7508 = vadd.f32 %v7481, %v7502
      %v7509 = vadd.f32 %v7482, %v7498
      %v7510 = vadd.f32 %v7483, %v7502
      %v7511 = vadd.f32 %v7484, %v7498
      %v7512 = vadd.f32 %v7485, %v7502
      %v7513 = vadd.f32 %v7486, %v7498
      %v7514 = vadd.f32 %v7487, %v7502
      %v7515 = vadd.f32 %v7488, %v7498
      %v7516 = vadd.f32 %v7489, %v7502
      %v7517 = vadd.f32 %v7490, %v7498
      %v7518 = vadd.f32 %v7491, %v7502
      %v7519 = vadd.f32 %v7492, %v7498
      %v7520 = vadd.f32 %v7493, %v7502
      %v7521 = vmul.f32 %v7505, 0.5
      %v7522 = vmul.f32 %v7506, 0.5
      %v7523 = vmul.f32 %v7507, 0.5
      %v7524 = vmul.f32 %v7508, 0.5
      %v7525 = vmul.f32 %v7509, 0.5
      %v7526 = vmul.f32 %v7510, 0.5
      %v7527 = vmul.f32 %v7511, 0.5
      %v7528 = vmul.f32 %v7512, 0.5
      %v7529 = vmul.f32 %v7513, 0.5
      %v7530 = vmul.f32 %v7514, 0.5
      %v7531 = vmul.f32 %v7515, 0.5
      %v7532 = vmul.f32 %v7516, 0.5
      %v7533 = vmul.f32 %v7517, 0.5
      %v7534 = vmul.f32 %v7518, 0.5
      %v7535 = vmul.f32 %v7519, 0.5
      %v7536 = vmul.f32 %v7520, 0.5
      %v7537 = vtanh.pop %v7521
      %v7538 = vtanh.pop %v7522
      %v7539 = vtanh.pop %v7523
      %v7540 = vtanh.pop %v7524
      %v7541 = vtanh.pop %v7525
      %v7542 = vtanh.pop %v7526
      %v7543 = vtanh.pop %v7527
      %v7544 = vtanh.pop %v7528
      %v7545 = vtanh.pop %v7529
      %v7546 = vtanh.pop %v7530
      %v7547 = vtanh.pop %v7531
      %v7548 = vtanh.pop %v7532
      %v7549 = vtanh.pop %v7533
      %v7550 = vtanh.pop %v7534
      %v7551 = vtanh.pop %v7535
      %v7552 = vtanh.pop %v7536
      %v7553 = vmul.f32 %v7537, 0.5
      %v7554 = vmul.f32 %v7538, 0.5
      %v7555 = vmul.f32 %v7539, 0.5
      %v7556 = vmul.f32 %v7540, 0.5
      %v7557 = vmul.f32 %v7541, 0.5
      %v7558 = vmul.f32 %v7542, 0.5
      %v7559 = vmul.f32 %v7543, 0.5
      %v7560 = vmul.f32 %v7544, 0.5
      %v7561 = vmul.f32 %v7545, 0.5
      %v7562 = vmul.f32 %v7546, 0.5
      %v7563 = vmul.f32 %v7547, 0.5
      %v7564 = vmul.f32 %v7548, 0.5
      %v7565 = vmul.f32 %v7549, 0.5
      %v7566 = vmul.f32 %v7550, 0.5
      %v7567 = vmul.f32 %v7551, 0.5
      %v7568 = vmul.f32 %v7552, 0.5
      %v7569 = vadd.f32 %v7553, 0.5
      %v7570 = vadd.f32 %v7554, 0.5
      %v7571 = vadd.f32 %v7555, 0.5
      %v7572 = vadd.f32 %v7556, 0.5
      %v7573 = vadd.f32 %v7557, 0.5
      %v7574 = vadd.f32 %v7558, 0.5
      %v7575 = vadd.f32 %v7559, 0.5
      %v7576 = vadd.f32 %v7560, 0.5
      %v7577 = vadd.f32 %v7561, 0.5
      %v7578 = vadd.f32 %v7562, 0.5
      %v7579 = vadd.f32 %v7563, 0.5
      %v7580 = vadd.f32 %v7564, 0.5
      %v7581 = vadd.f32 %v7565, 0.5
      %v7582 = vadd.f32 %v7566, 0.5
      %v7583 = vadd.f32 %v7567, 0.5
      %v7584 = vadd.f32 %v7568, 0.5
      %v7585 = vmul.f32 %v7505, %v7569
      %v7586 = vmul.f32 %v7506, %v7570
      %v7587 = vmul.f32 %v7507, %v7571
      %v7588 = vmul.f32 %v7508, %v7572
      %v7589 = vmul.f32 %v7509, %v7573
      %v7590 = vmul.f32 %v7510, %v7574
      %v7591 = vmul.f32 %v7511, %v7575
      %v7592 = vmul.f32 %v7512, %v7576
      %v7593 = vmul.f32 %v7513, %v7577
      %v7594 = vmul.f32 %v7514, %v7578
      %v7595 = vmul.f32 %v7515, %v7579
      %v7596 = vmul.f32 %v7516, %v7580
      %v7597 = vmul.f32 %v7517, %v7581
      %v7598 = vmul.f32 %v7518, %v7582
      %v7599 = vmul.f32 %v7519, %v7583
      %v7600 = vmul.f32 %v7520, %v7584
      %v7602 = vlaneseq
      %v7603 = vshrl.u32 %v7602, 7
      %v7604 = vsub.s32 0, %v7603
      %v7605 = vrot.slane %v6791, %v7604
      %v7608 = vsel %vm2100, %v7586, 0
      %v7611 = vsel %vm2100, %v7588, 0
      %v7614 = vsel %vm2100, %v7590, 0
      %v7617 = vsel %vm2100, %v7592, 0
      %v7620 = vsel %vm2100, %v7594, 0
      %v7623 = vsel %vm2100, %v7596, 0
      %v7626 = vsel %vm2100, %v7598, 0
      %v7629 = vsel %vm2100, %v7600, 0
      %v7632 = vsel %vm2125, %v6789, 0
      %7634 = vmatprep.subr.mxu0 0.0
      %7635 = vmatpush1.msra.mxu0 %v6769
      %7636 = vmatprep.subr.mxu0 0.0
      %7637 = vmatpush1.msra.mxu0 %v6770
      %7638 = vmatprep.subr.mxu0 0.0
      %7639 = vmatpush1.msra.mxu0 %v6771
      %7640 = vmatprep.subr.mxu0 0.0
      %7641 = vmatpush1.msra.mxu0 %v6772
      %7642 = vmatprep.subr.mxu0 0.0
      %7643 = vmatpush1.msra.mxu0 %v6773
      %7644 = vmatprep.subr.mxu0 0.0
      %7645 = vmatpush1.msra.mxu0 %v6774
      %7646 = vmatprep.subr.mxu0 0.0
      %7647 = vmatpush1.msra.mxu0 %v6775
      %7648 = vmatprep.subr.mxu0 0.0
      %7649 = vmatpush1.msra.mxu0 %v6776
      %7650 = vmatprep.subr.mxu0 0.0
      %7651 = vmatpush1.msra.mxu0 %v6777
      %7652 = vmatprep.subr.mxu0 0.0
      %7653 = vmatpush1.msra.mxu0 %v6778
      %7654 = vmatprep.subr.mxu0 0.0
      %7655 = vmatpush1.msra.mxu0 %v6779
      %7656 = vmatprep.subr.mxu0 0.0
      %7657 = vmatpush1.msra.mxu0 %v6780
      %7658 = vmatprep.subr.mxu0 0.0
      %7659 = vmatpush1.msra.mxu0 %v6781
      %7660 = vmatprep.subr.mxu0 0.0
      %7661 = vmatpush1.msra.mxu0 %v6782
      %7662 = vmatprep.subr.mxu0 0.0
      %7663 = vmatpush1.msra.mxu0 %v6783
      %7664 = vmatprep.subr.mxu0 0.0
      %7665 = vmatpush1.msra.mxu0 %v6784
      %7666 = vmatprep.subr.mxu0 0.0
      %7667 = vmatpush1.msra.mxu0 %v6785
      %7668 = vmatprep.subr.mxu0 0.0
      %7669 = vmatpush1.msra.mxu0 %v6786
      %7670 = vmatprep.subr.mxu0 0.0
      %7671 = vmatpush1.msra.mxu0 %v6787
      %7672 = vmatprep.subr.mxu0 0.0
      %7673 = vmatpush1.msra.mxu0 %v6788
      %7674 = vmatprep.subr.mxu0 0.0
      %7675 = vmatpush1.msra.mxu0 %v7632
      %7676 = vmatprep.subr.mxu0 0.0
      %7677 = vmatpush1.msra.mxu0 0.0
      %7678 = vmatprep.subr.mxu0 0.0
      %7679 = vmatpush1.msra.mxu0 0.0
      %7680 = vmatprep.subr.mxu0 0.0
      %7681 = vmatpush1.msra.mxu0 0.0
      %7682 = vmatprep.subr.mxu0 0.0
      %7683 = vmatpush1.msra.mxu0 0.0
      %7684 = vmatprep.subr.mxu0 0.0
      %7685 = vmatpush1.msra.mxu0 0.0
      %7686 = vmatprep.subr.mxu0 0.0
      %7687 = vmatpush1.msra.mxu0 0.0
      %7688 = vmatprep.subr.mxu0 0.0
      %7689 = vmatpush1.msra.mxu0 0.0
      %7690 = vmatprep.subr.mxu0 0.0
      %7691 = vmatpush1.msra.mxu0 0.0
      %7692 = vmatprep.subr.mxu0 0.0
      %7693 = vmatpush1.msra.mxu0 0.0
      %7694 = vmatprep.subr.mxu0 0.0
      %7695 = vmatpush1.msra.mxu0 0.0
      %7696 = vmatprep.subr.mxu0 0.0
      %7697 = vmatpush1.msra.mxu0 0.0
      %7698 = vmatprep.mubr.f32.mxu0 %v7608
      %7699 = vmatmul.mubr.f32.gmra.mrb[0].mxu0 %v7585
      %v7700 = vpop.f32.mrb[0].mxu0
      %v7701 = vadd.f32 %v7605, %v7700
      %v7702 = vpop.f32.mrb[0].mxu0
      %7703 = vmatprep.mubr.f32.mxu0 %v7611
      %7704 = vmatmul.mubr.f32.gmra.mrb[0].mxu0 %v7587
      %v7705 = vpop.f32.mrb[0].mxu0
      %v7706 = vadd.f32 %v7605, %v7705
      %v7707 = vpop.f32.mrb[0].mxu0
      %7708 = vmatprep.mubr.f32.mxu0 %v7614
      %7709 = vmatmul.mubr.f32.gmra.mrb[0].mxu0 %v7589
      %v7710 = vpop.f32.mrb[0].mxu0
      %v7711 = vadd.f32 %v7605, %v7710
      %v7712 = vpop.f32.mrb[0].mxu0
      %7713 = vmatprep.mubr.f32.mxu0 %v7617
      %7714 = vmatmul.mubr.f32.gmra.mrb[0].mxu0 %v7591
      %v7715 = vpop.f32.mrb[0].mxu0
      %v7716 = vadd.f32 %v7605, %v7715
      %v7717 = vpop.f32.mrb[0].mxu0
      %7718 = vmatprep.mubr.f32.mxu0 %v7620
      %7719 = vmatmul.mubr.f32.gmra.mrb[0].mxu0 %v7593
      %v7720 = vpop.f32.mrb[0].mxu0
      %v7721 = vadd.f32 %v7605, %v7720
      %v7722 = vpop.f32.mrb[0].mxu0
      %7723 = vmatprep.mubr.f32.mxu0 %v7623
      %7724 = vmatmul.mubr.f32.gmra.mrb[0].mxu0 %v7595
      %v7725 = vpop.f32.mrb[0].mxu0
      %v7726 = vadd.f32 %v7605, %v7725
      %v7727 = vpop.f32.mrb[0].mxu0
      %7728 = vmatprep.mubr.f32.mxu0 %v7626
      %7729 = vmatmul.mubr.f32.gmra.mrb[0].mxu0 %v7597
      %v7730 = vpop.f32.mrb[0].mxu0
      %v7731 = vadd.f32 %v7605, %v7730
      %v7732 = vpop.f32.mrb[0].mxu0
      %7733 = vmatprep.mubr.f32.mxu0 %v7629
      %7734 = vmatmul.mubr.f32.gmra.mrb[0].mxu0 %v7599
      %v7735 = vpop.f32.mrb[0].mxu0
      %v7736 = vadd.f32 %v7605, %v7735
      %v7737 = vpop.f32.mrb[0].mxu0
      %7738 = vdwg.mxu0
      %v7739 = vmul.f32 %v7701, 0.5
      %v7740 = vmul.f32 %v7706, 0.5
      %v7741 = vmul.f32 %v7711, 0.5
      %v7742 = vmul.f32 %v7716, 0.5
      %v7743 = vmul.f32 %v7721, 0.5
      %v7744 = vmul.f32 %v7726, 0.5
      %v7745 = vmul.f32 %v7731, 0.5
      %v7746 = vmul.f32 %v7736, 0.5
      %v7747 = vtanh.pop %v7739
      %v7748 = vtanh.pop %v7740
      %v7749 = vtanh.pop %v7741
      %v7750 = vtanh.pop %v7742
      %v7751 = vtanh.pop %v7743
      %v7752 = vtanh.pop %v7744
      %v7753 = vtanh.pop %v7745
      %v7754 = vtanh.pop %v7746
      %v7755 = vmul.f32 %v7747, 0.5
      %v7756 = vmul.f32 %v7748, 0.5
      %v7757 = vmul.f32 %v7749, 0.5
      %v7758 = vmul.f32 %v7750, 0.5
      %v7759 = vmul.f32 %v7751, 0.5
      %v7760 = vmul.f32 %v7752, 0.5
      %v7761 = vmul.f32 %v7753, 0.5
      %v7762 = vmul.f32 %v7754, 0.5
      %v7763 = vadd.f32 %v7755, 0.5
      %v7764 = vadd.f32 %v7756, 0.5
      %v7765 = vadd.f32 %v7757, 0.5
      %v7766 = vadd.f32 %v7758, 0.5
      %v7767 = vadd.f32 %v7759, 0.5
      %v7768 = vadd.f32 %v7760, 0.5
      %v7769 = vadd.f32 %v7761, 0.5
      %v7770 = vadd.f32 %v7762, 0.5
      %v7771 = vmul.f32 %v7701, %v7763
      %v7772 = vmul.f32 %v7706, %v7764
      %v7773 = vmul.f32 %v7711, %v7765
      %v7774 = vmul.f32 %v7716, %v7766
      %v7775 = vmul.f32 %v7721, %v7767
      %v7776 = vmul.f32 %v7726, %v7768
      %v7777 = vmul.f32 %v7731, %v7769
      %v7778 = vmul.f32 %v7736, %v7770
      %v7780 = vlaneseq
      %v7781 = vshrl.u32 %v7780, 7
      %v7782 = vsub.s32 0, %v7781
      %v7783 = vrot.slane %v6798, %v7782
      %v7786 = vsel %vm2280, %v7771, 0
      %v7789 = vsel %vm2280, %v7772, 0
      %v7792 = vsel %vm2280, %v7773, 0
      %v7795 = vsel %vm2280, %v7774, 0
      %v7798 = vsel %vm2280, %v7775, 0
      %v7801 = vsel %vm2280, %v7776, 0
      %v7804 = vsel %vm2280, %v7777, 0
      %v7807 = vsel %vm2280, %v7778, 0
      %7809 = vmatprep.subr.mxu0 0.0
      %7810 = vmatpush1.msra.mxu0 %v6793
      %7811 = vmatprep.subr.mxu0 0.0
      %7812 = vmatpush1.msra.mxu0 %v6794
      %7813 = vmatprep.subr.mxu0 0.0
      %7814 = vmatpush1.msra.mxu0 %v6795
      %7815 = vmatprep.subr.mxu0 0.0
      %7816 = vmatpush1.msra.mxu0 %v6796
      %7817 = vmatprep.subr.mxu0 0.0
      %7818 = vmatpush1.msra.mxu0 0.0
      %7819 = vmatprep.subr.mxu0 0.0
      %7820 = vmatpush1.msra.mxu0 0.0
      %7821 = vmatprep.subr.mxu0 0.0
      %7822 = vmatpush1.msra.mxu0 0.0
      %7823 = vmatprep.subr.mxu0 0.0
      %7824 = vmatpush1.msra.mxu0 0.0
      %7825 = vmatprep.subr.mxu0 0.0
      %7826 = vmatpush1.msra.mxu0 0.0
      %7827 = vmatprep.subr.mxu0 0.0
      %7828 = vmatpush1.msra.mxu0 0.0
      %7829 = vmatprep.subr.mxu0 0.0
      %7830 = vmatpush1.msra.mxu0 0.0
      %7831 = vmatprep.subr.mxu0 0.0
      %7832 = vmatpush1.msra.mxu0 0.0
      %7833 = vmatprep.subr.mxu0 0.0
      %7834 = vmatpush1.msra.mxu0 0.0
      %7835 = vmatprep.subr.mxu0 0.0
      %7836 = vmatpush1.msra.mxu0 0.0
      %7837 = vmatprep.subr.mxu0 0.0
      %7838 = vmatpush1.msra.mxu0 0.0
      %7839 = vmatprep.subr.mxu0 0.0
      %7840 = vmatpush1.msra.mxu0 0.0
      %7841 = vmatprep.subr.mxu0 0.0
      %7842 = vmatpush1.msra.mxu0 0.0
      %7843 = vmatprep.subr.mxu0 0.0
      %7844 = vmatpush1.msra.mxu0 0.0
      %7845 = vmatprep.subr.mxu0 0.0
      %7846 = vmatpush1.msra.mxu0 0.0
      %7847 = vmatprep.subr.mxu0 0.0
      %7848 = vmatpush1.msra.mxu0 0.0
      %7849 = vmatprep.subr.mxu0 0.0
      %7850 = vmatpush1.msra.mxu0 0.0
      %7851 = vmatprep.subr.mxu0 0.0
      %7852 = vmatpush1.msra.mxu0 0.0
      %7853 = vmatprep.subr.mxu0 0.0
      %7854 = vmatpush1.msra.mxu0 0.0
      %7855 = vmatprep.subr.mxu0 0.0
      %7856 = vmatpush1.msra.mxu0 0.0
      %7857 = vmatprep.subr.mxu0 0.0
      %7858 = vmatpush1.msra.mxu0 0.0
      %7859 = vmatprep.subr.mxu0 0.0
      %7860 = vmatpush1.msra.mxu0 0.0
      %7861 = vmatprep.subr.mxu0 0.0
      %7862 = vmatpush1.msra.mxu0 0.0
      %7863 = vmatprep.subr.mxu0 0.0
      %7864 = vmatpush1.msra.mxu0 0.0
      %7865 = vmatprep.subr.mxu0 0.0
      %7866 = vmatpush1.msra.mxu0 0.0
      %7867 = vmatprep.subr.mxu0 0.0
      %7868 = vmatpush1.msra.mxu0 0.0
      %7869 = vmatprep.subr.mxu0 0.0
      %7870 = vmatpush1.msra.mxu0 0.0
      %7871 = vmatprep.subr.mxu0 0.0
      %7872 = vmatpush1.msra.mxu0 0.0
      %7873 = vmatprep.mubr.f32.mxu0 0.0
      %7874 = vmatmul.mubr.f32.gmra.mrb[0].mxu0 %v7786
      %v7875 = vpop.f32.mrb[0].mxu0
      %v7876 = vadd.f32 %v7783, %v7875
      %v7877 = vpop.f32.mrb[0].mxu0
      %7878 = vmatprep.mubr.f32.mxu0 0.0
      %7879 = vmatmul.mubr.f32.gmra.mrb[0].mxu0 %v7789
      %v7880 = vpop.f32.mrb[0].mxu0
      %v7881 = vadd.f32 %v7783, %v7880
      %v7882 = vpop.f32.mrb[0].mxu0
      %7883 = vmatprep.mubr.f32.mxu0 0.0
      %7884 = vmatmul.mubr.f32.gmra.mrb[0].mxu0 %v7792
      %v7885 = vpop.f32.mrb[0].mxu0
      %v7886 = vadd.f32 %v7783, %v7885
      %v7887 = vpop.f32.mrb[0].mxu0
      %7888 = vmatprep.mubr.f32.mxu0 0.0
      %7889 = vmatmul.mubr.f32.gmra.mrb[0].mxu0 %v7795
      %v7890 = vpop.f32.mrb[0].mxu0
      %v7891 = vadd.f32 %v7783, %v7890
      %v7892 = vpop.f32.mrb[0].mxu0
      %7893 = vmatprep.mubr.f32.mxu0 0.0
      %7894 = vmatmul.mubr.f32.gmra.mrb[0].mxu0 %v7798
      %v7895 = vpop.f32.mrb[0].mxu0
      %v7896 = vadd.f32 %v7783, %v7895
      %v7897 = vpop.f32.mrb[0].mxu0
      %7898 = vmatprep.mubr.f32.mxu0 0.0
      %7899 = vmatmul.mubr.f32.gmra.mrb[0].mxu0 %v7801
      %v7900 = vpop.f32.mrb[0].mxu0
      %v7901 = vadd.f32 %v7783, %v7900
      %v7902 = vpop.f32.mrb[0].mxu0
      %7903 = vmatprep.mubr.f32.mxu0 0.0
      %7904 = vmatmul.mubr.f32.gmra.mrb[0].mxu0 %v7804
      %v7905 = vpop.f32.mrb[0].mxu0
      %v7906 = vadd.f32 %v7783, %v7905
      %v7907 = vpop.f32.mrb[0].mxu0
      %7908 = vmatprep.mubr.f32.mxu0 0.0
      %7909 = vmatmul.mubr.f32.gmra.mrb[0].mxu0 %v7807
      %v7910 = vpop.f32.mrb[0].mxu0
      %v7911 = vadd.f32 %v7783, %v7910
      %v7912 = vpop.f32.mrb[0].mxu0
      %7913 = vdwg.mxu0
      %v7914 = vmul.f32 %v7876, 0.5
      %v7915 = vmul.f32 %v7881, 0.5
      %v7916 = vmul.f32 %v7886, 0.5
      %v7917 = vmul.f32 %v7891, 0.5
      %v7918 = vmul.f32 %v7896, 0.5
      %v7919 = vmul.f32 %v7901, 0.5
      %v7920 = vmul.f32 %v7906, 0.5
      %v7921 = vmul.f32 %v7911, 0.5
      %v7922 = vtanh.pop %v7914
      %v7923 = vtanh.pop %v7915
      %v7924 = vtanh.pop %v7916
      %v7925 = vtanh.pop %v7917
      %v7926 = vtanh.pop %v7918
      %v7927 = vtanh.pop %v7919
      %v7928 = vtanh.pop %v7920
      %v7929 = vtanh.pop %v7921
      %v7930 = vmul.f32 %v7922, 0.5
      %v7931 = vmul.f32 %v7923, 0.5
      %v7932 = vmul.f32 %v7924, 0.5
      %v7933 = vmul.f32 %v7925, 0.5
      %v7934 = vmul.f32 %v7926, 0.5
      %v7935 = vmul.f32 %v7927, 0.5
      %v7936 = vmul.f32 %v7928, 0.5
      %v7937 = vmul.f32 %v7929, 0.5
      %v7938 = vadd.f32 %v7930, 0.5
      %v7939 = vadd.f32 %v7931, 0.5
      %v7940 = vadd.f32 %v7932, 0.5
      %v7941 = vadd.f32 %v7933, 0.5
      %v7942 = vadd.f32 %v7934, 0.5
      %v7943 = vadd.f32 %v7935, 0.5
      %v7944 = vadd.f32 %v7936, 0.5
      %v7945 = vadd.f32 %v7937, 0.5
      %v7946 = vmul.f32 %v7876, %v7938
      %v7947 = vmul.f32 %v7881, %v7939
      %v7948 = vmul.f32 %v7886, %v7940
      %v7949 = vmul.f32 %v7891, %v7941
      %v7950 = vmul.f32 %v7896, %v7942
      %v7951 = vmul.f32 %v7901, %v7943
      %v7952 = vmul.f32 %v7906, %v7944
      %v7953 = vmul.f32 %v7911, %v7945
      %v7955 = vlaneseq
      %v7956 = vshrl.u32 %v7955, 7
      %v7957 = vsub.s32 0, %v7956
      %v7958 = vrot.slane %v6817, %v7957
      %7960 = vmatprep.subr.mxu0 0.0
      %7961 = vmatpush1.msra.mxu0 %v6800
      %7962 = vmatprep.subr.mxu0 0.0
      %7963 = vmatpush1.msra.mxu0 %v6801
      %7964 = vmatprep.subr.mxu0 0.0
      %7965 = vmatpush1.msra.mxu0 %v6802
      %7966 = vmatprep.subr.mxu0 0.0
      %7967 = vmatpush1.msra.mxu0 %v6803
      %7968 = vmatprep.subr.mxu0 0.0
      %7969 = vmatpush1.msra.mxu0 %v6804
      %7970 = vmatprep.subr.mxu0 0.0
      %7971 = vmatpush1.msra.mxu0 %v6805
      %7972 = vmatprep.subr.mxu0 0.0
      %7973 = vmatpush1.msra.mxu0 %v6806
      %7974 = vmatprep.subr.mxu0 0.0
      %7975 = vmatpush1.msra.mxu0 %v6807
      %7976 = vmatprep.subr.mxu0 0.0
      %7977 = vmatpush1.msra.mxu0 %v6808
      %7978 = vmatprep.subr.mxu0 0.0
      %7979 = vmatpush1.msra.mxu0 %v6809
      %7980 = vmatprep.subr.mxu0 0.0
      %7981 = vmatpush1.msra.mxu0 %v6810
      %7982 = vmatprep.subr.mxu0 0.0
      %7983 = vmatpush1.msra.mxu0 %v6811
      %7984 = vmatprep.subr.mxu0 0.0
      %7985 = vmatpush1.msra.mxu0 %v6812
      %7986 = vmatprep.subr.mxu0 0.0
      %7987 = vmatpush1.msra.mxu0 %v6813
      %7988 = vmatprep.subr.mxu0 0.0
      %7989 = vmatpush1.msra.mxu0 %v6814
      %7990 = vmatprep.subr.mxu0 0.0
      %7991 = vmatpush1.msra.mxu0 %v6815
      %7992 = vmatprep.subr.mxu0 0.0
      %7993 = vmatpush1.msra.mxu0 0.0
      %7994 = vmatprep.subr.mxu0 0.0
      %7995 = vmatpush1.msra.mxu0 0.0
      %7996 = vmatprep.subr.mxu0 0.0
      %7997 = vmatpush1.msra.mxu0 0.0
      %7998 = vmatprep.subr.mxu0 0.0
      %7999 = vmatpush1.msra.mxu0 0.0
      %8000 = vmatprep.subr.mxu0 0.0
      %8001 = vmatpush1.msra.mxu0 0.0
      %8002 = vmatprep.subr.mxu0 0.0
      %8003 = vmatpush1.msra.mxu0 0.0
      %8004 = vmatprep.subr.mxu0 0.0
      %8005 = vmatpush1.msra.mxu0 0.0
      %8006 = vmatprep.subr.mxu0 0.0
      %8007 = vmatpush1.msra.mxu0 0.0
      %8008 = vmatprep.subr.mxu0 0.0
      %8009 = vmatpush1.msra.mxu0 0.0
      %8010 = vmatprep.subr.mxu0 0.0
      %8011 = vmatpush1.msra.mxu0 0.0
      %8012 = vmatprep.subr.mxu0 0.0
      %8013 = vmatpush1.msra.mxu0 0.0
      %8014 = vmatprep.subr.mxu0 0.0
      %8015 = vmatpush1.msra.mxu0 0.0
      %8016 = vmatprep.subr.mxu0 0.0
      %8017 = vmatpush1.msra.mxu0 0.0
      %8018 = vmatprep.subr.mxu0 0.0
      %8019 = vmatpush1.msra.mxu0 0.0
      %8020 = vmatprep.subr.mxu0 0.0
      %8021 = vmatpush1.msra.mxu0 0.0
      %8022 = vmatprep.subr.mxu0 0.0
      %8023 = vmatpush1.msra.mxu0 0.0
      %8024 = vmatprep.mubr.f32.mxu0 0.0
      %8025 = vmatmul.mubr.f32.gmra.mrb[0].mxu0 %v7946
      %v8026 = vpop.f32.mrb[0].mxu0
      %v8027 = vadd.f32 %v7958, %v8026
      %v8028 = vpop.f32.mrb[0].mxu0
      %8029 = vmatprep.mubr.f32.mxu0 0.0
      %8030 = vmatmul.mubr.f32.gmra.mrb[0].mxu0 %v7947
      %v8031 = vpop.f32.mrb[0].mxu0
      %v8032 = vadd.f32 %v7958, %v8031
      %v8033 = vpop.f32.mrb[0].mxu0
      %8034 = vmatprep.mubr.f32.mxu0 0.0
      %8035 = vmatmul.mubr.f32.gmra.mrb[0].mxu0 %v7948
      %v8036 = vpop.f32.mrb[0].mxu0
      %v8037 = vadd.f32 %v7958, %v8036
      %v8038 = vpop.f32.mrb[0].mxu0
      %8039 = vmatprep.mubr.f32.mxu0 0.0
      %8040 = vmatmul.mubr.f32.gmra.mrb[0].mxu0 %v7949
      %v8041 = vpop.f32.mrb[0].mxu0
      %v8042 = vadd.f32 %v7958, %v8041
      %v8043 = vpop.f32.mrb[0].mxu0
      %8044 = vmatprep.mubr.f32.mxu0 0.0
      %8045 = vmatmul.mubr.f32.gmra.mrb[0].mxu0 %v7950
      %v8046 = vpop.f32.mrb[0].mxu0
      %v8047 = vadd.f32 %v7958, %v8046
      %v8048 = vpop.f32.mrb[0].mxu0
      %8049 = vmatprep.mubr.f32.mxu0 0.0
      %8050 = vmatmul.mubr.f32.gmra.mrb[0].mxu0 %v7951
      %v8051 = vpop.f32.mrb[0].mxu0
      %v8052 = vadd.f32 %v7958, %v8051
      %v8053 = vpop.f32.mrb[0].mxu0
      %8054 = vmatprep.mubr.f32.mxu0 0.0
      %8055 = vmatmul.mubr.f32.gmra.mrb[0].mxu0 %v7952
      %v8056 = vpop.f32.mrb[0].mxu0
      %v8057 = vadd.f32 %v7958, %v8056
      %v8058 = vpop.f32.mrb[0].mxu0
      %8059 = vmatprep.mubr.f32.mxu0 0.0
      %8060 = vmatmul.mubr.f32.gmra.mrb[0].mxu0 %v7953
      %v8061 = vpop.f32.mrb[0].mxu0
      %v8062 = vadd.f32 %v7958, %v8061
      %v8063 = vpop.f32.mrb[0].mxu0
      %8064 = vdwg.mxu0
      %v8065 = vmul.f32 %v1207, %v8027
      %v8066 = vmul.f32 %v1208, %v8032
      %v8067 = vmul.f32 %v1209, %v8037
      %v8068 = vmul.f32 %v1210, %v8042
      %v8069 = vmul.f32 %v1211, %v8047
      %v8070 = vmul.f32 %v1212, %v8052
      %v8071 = vmul.f32 %v1213, %v8057
      %v8072 = vmul.f32 %v1214, %v8062
      %v8073 = vmax.f32 %v7046, 1e-08
      %v8074 = vmax.f32 %v7049, 1e-08
      %v8075 = vmax.f32 %v7052, 1e-08
      %v8076 = vmax.f32 %v7055, 1e-08
      %v8077 = vmax.f32 %v7058, 1e-08
      %v8078 = vmax.f32 %v7061, 1e-08
      %v8079 = vmax.f32 %v7064, 1e-08
      %v8080 = vmax.f32 %v7067, 1e-08
      %v8081 = vrcp.pop %v8073
      %v8082 = vmul.f32 %v7028, %v8081
      %v8083 = vrcp.pop %v8074
      %v8084 = vmul.f32 %v7029, %v8083
      %v8085 = vrcp.pop %v8075
      %v8086 = vmul.f32 %v7030, %v8085
      %v8087 = vrcp.pop %v8076
      %v8088 = vmul.f32 %v7031, %v8087
      %v8089 = vrcp.pop %v8077
      %v8090 = vmul.f32 %v7032, %v8089
      %v8091 = vrcp.pop %v8078
      %v8092 = vmul.f32 %v7033, %v8091
      %v8093 = vrcp.pop %v8079
      %v8094 = vmul.f32 %v7034, %v8093
      %v8095 = vrcp.pop %v8080
      %v8096 = vmul.f32 %v7035, %v8095
      %8098 = vset.pattern.permute.xlu0 0
      %8099 = vperm.xlu0 %8098, %v8065
      %v8100 = vpop.permute.xlu0 %8099
      %8103 = vset.pattern.permute.xlu0 0
      %8104 = vperm.xlu0 %8103, %v8066
      %v8105 = vpop.permute.xlu0 %8104
      %8108 = vset.pattern.permute.xlu0 0
      %8109 = vperm.xlu0 %8108, %v8067
      %v8110 = vpop.permute.xlu0 %8109
      %8113 = vset.pattern.permute.xlu0 0
      %8114 = vperm.xlu0 %8113, %v8068
      %v8115 = vpop.permute.xlu0 %8114
      %8118 = vset.pattern.permute.xlu0 0
      %8119 = vperm.xlu0 %8118, %v8069
      %v8120 = vpop.permute.xlu0 %8119
      %8123 = vset.pattern.permute.xlu0 0
      %8124 = vperm.xlu0 %8123, %v8070
      %v8125 = vpop.permute.xlu0 %8124
      %8128 = vset.pattern.permute.xlu0 0
      %8129 = vperm.xlu0 %8128, %v8071
      %v8130 = vpop.permute.xlu0 %8129
      %8133 = vset.pattern.permute.xlu0 0
      %8134 = vperm.xlu0 %8133, %v8072
      %v8135 = vpop.permute.xlu0 %8134
      %v8137 = vmul.f32 %v8100, %v8082
      %v8138 = vmul.f32 %v8105, %v8084
      %v8139 = vmul.f32 %v8110, %v8086
      %v8140 = vmul.f32 %v8115, %v8088
      %v8141 = vmul.f32 %v8120, %v8090
      %v8142 = vmul.f32 %v8125, %v8092
      %v8143 = vmul.f32 %v8130, %v8094
      %v8144 = vmul.f32 %v8135, %v8096
      %8145 = vmatprep.subr.mxu0 0.0
      %8146 = vmatpush1.msra.mxu0 %v8137
      %8147 = vmatprep.subr.mxu0 0.0
      %8148 = vmatpush1.msra.mxu0 %v8138
      %8149 = vmatprep.subr.mxu0 0.0
      %8150 = vmatpush1.msra.mxu0 %v8139
      %8151 = vmatprep.subr.mxu0 0.0
      %8152 = vmatpush1.msra.mxu0 %v8140
      %8153 = vmatprep.subr.mxu0 0.0
      %8154 = vmatpush1.msra.mxu0 %v8141
      %8155 = vmatprep.subr.mxu0 0.0
      %8156 = vmatpush1.msra.mxu0 %v8142
      %8157 = vmatprep.subr.mxu0 0.0
      %8158 = vmatpush1.msra.mxu0 %v8143
      %8159 = vmatprep.subr.mxu0 0.0
      %8160 = vmatpush1.msra.mxu0 %v8144
      %8161 = vmatprep.subr.mxu0 0.0
      %8162 = vmatpush1.msra.mxu0 0.0
      %8163 = vmatprep.subr.mxu0 0.0
      %8164 = vmatpush1.msra.mxu0 0.0
      %8165 = vmatprep.subr.mxu0 0.0
      %8166 = vmatpush1.msra.mxu0 0.0
      %8167 = vmatprep.subr.mxu0 0.0
      %8168 = vmatpush1.msra.mxu0 0.0
      %8169 = vmatprep.subr.mxu0 0.0
      %8170 = vmatpush1.msra.mxu0 0.0
      %8171 = vmatprep.subr.mxu0 0.0
      %8172 = vmatpush1.msra.mxu0 0.0
      %8173 = vmatprep.subr.mxu0 0.0
      %8174 = vmatpush1.msra.mxu0 0.0
      %8175 = vmatprep.subr.mxu0 0.0
      %8176 = vmatpush1.msra.mxu0 0.0
      %8177 = vmatprep.subr.mxu0 0.0
      %8178 = vmatpush1.msra.mxu0 0.0
      %8179 = vmatprep.subr.mxu0 0.0
      %8180 = vmatpush1.msra.mxu0 0.0
      %8181 = vmatprep.subr.mxu0 0.0
      %8182 = vmatpush1.msra.mxu0 0.0
      %8183 = vmatprep.subr.mxu0 0.0
      %8184 = vmatpush1.msra.mxu0 0.0
      %8185 = vmatprep.subr.mxu0 0.0
      %8186 = vmatpush1.msra.mxu0 0.0
      %8187 = vmatprep.subr.mxu0 0.0
      %8188 = vmatpush1.msra.mxu0 0.0
      %8189 = vmatprep.subr.mxu0 0.0
      %8190 = vmatpush1.msra.mxu0 0.0
      %8191 = vmatprep.subr.mxu0 0.0
      %8192 = vmatpush1.msra.mxu0 0.0
      %8193 = vmatprep.subr.mxu0 0.0
      %8194 = vmatpush1.msra.mxu0 0.0
      %8195 = vmatprep.subr.mxu0 0.0
      %8196 = vmatpush1.msra.mxu0 0.0
      %8197 = vmatprep.subr.mxu0 0.0
      %8198 = vmatpush1.msra.mxu0 0.0
      %8199 = vmatprep.subr.mxu0 0.0
      %8200 = vmatpush1.msra.mxu0 0.0
      %8201 = vmatprep.subr.mxu0 0.0
      %8202 = vmatpush1.msra.mxu0 0.0
      %8203 = vmatprep.subr.mxu0 0.0
      %8204 = vmatpush1.msra.mxu0 0.0
      %8205 = vmatprep.subr.mxu0 0.0
      %8206 = vmatpush1.msra.mxu0 0.0
      %8207 = vmatprep.subr.mxu0 0.0
      %8208 = vmatpush1.msra.mxu0 0.0
      %8209 = vmatprep.mubr.f32.mxu0 0.0
      %8210 = vmatmul.mubr.f32.gmra.mrb[0].mxu0 %v2643
      %v8211 = vpop.f32.mrb[0].mxu0
      %v8212 = vadd.f32 0.0, %v8211
      %v8213 = vpop.f32.mrb[0].mxu0
      %8214 = vdwg.mxu0
      %v8215 = vadd.f32 %v6416, %v8212
      %8216 = vst.msk [vmem:[%s913] sm:$0xff] %vm1534, %v8215
      %p8217 = scmp.lt.s32.totalorder %s32, 4
      %s8218 = scalar_select %p8217, %s32, 4
      %s8219 = smul.addr %s8218, 8
      %s8220 = scalar_lea.vmem %s21, %s8219
      // Predicated region
      $region105: #{mask_decoy_gen.1} parent=103 // pred_check
        %p8221 = pneg %p566
      $region106: #{mask_decoy_gen.1} parent=103 // pred_check_branch
        %8223 = sbr.rel (%p8221) target = $region108
      $region107: #{mask_decoy_gen.1} parent=103 // pred_region
        _
      $region108: #{mask_decoy_gen.1} parent=103 // pred_fallthru
        _
    $region104: #{mask_decoy_gen.1} parent=5 // pred_fallthru
      _
    %p8224 = scmp.le.s32.totalorder 2, %s27
    // Predicated region
    $region109: #{mask_decoy_gen.1} parent=5 // pred_check
      %p8225 = pneg %p8224
    $region110: #{mask_decoy_gen.1} parent=5 // pred_check_branch
      %8227 = sbr.rel (%p8225) target = $region112
    $region111: #{mask_decoy_gen.1} parent=5 // pred_region
      %s8228 = ssub.s32 %s27, 2
      // Predicated region
      $region113: #{mask_decoy_gen.1} parent=111 // pred_check
        %p8229 = pneg %p572
      $region114: #{mask_decoy_gen.1} parent=111 // pred_check_branch
        %8231 = sbr.rel (%p8229) target = $region116
      $region115: #{mask_decoy_gen.1} parent=111 // pred_region
        %p8232 = scmp.lt.s32.totalorder %s33, 4
        %s8233 = scalar_select %p8232, %s33, 4
        %s8234 = smul.addr %s8233, 8
        %s8235 = scalar_lea.vmem %s21, %s8234
      $region116: #{mask_decoy_gen.1} parent=111 // pred_fallthru
        _
    $region112: #{mask_decoy_gen.1} parent=5 // pred_fallthru
      _
  $region6: #{mask_decoy_gen.1} parent=0 // loop_footer
    %s31 = sadd.s32 1, %s27
  $region7: #{mask_decoy_gen.1} parent=0 // loop_footer_branch
    %26 = sbr.rel target = $region3
  $region8: #{mask_decoy_gen.1} parent=0 // loop_exit
    _

</llo_original>
